<compile_context>
chip_gen: v7x
topology: tpu7x:2x2x1
jax: 0.10.0
libtpu: 0.0.40
codegen_flags: <defaults>
</compile_context>

<pallas_src>
import math

import jax
import jax.numpy as jnp
from jax import lax
from jax.experimental import pallas as pl
from jax.experimental.pallas import tpu as pltpu

_LANE = 128    # lane width: last-dim padding target
_SUB = 8       # sublane tile
_VMEM = pltpu.MemorySpace.VMEM


def _round_up(n, m):
    return ((n + m - 1) // m) * m


def _pad128(n):
    return max(_LANE, _round_up(n, _LANE))


# ------------------------- deterministic parameters -------------------------
# nn.Linear-style init; weights stored (in_features, out_features): y = x@W+b.

def _init_linear(key, din, dout):
    kw, kb = jax.random.split(key)
    bound = 1.0 / math.sqrt(din)
    w = jax.random.uniform(kw, (din, dout), jnp.float32, -bound, bound)
    b = jax.random.uniform(kb, (1, dout), jnp.float32, -bound, bound)
    return w, b


def _init_activation(key, dim):
    kb, kg = jax.random.split(key)
    beta = jax.random.uniform(kb, (1, dim), jnp.float32)     # ~ torch.rand(dim)
    gamma = jax.random.uniform(kg, (1, dim), jnp.float32)
    return beta, gamma


def init_params(key, cfg, is_cross_spectra):
    keys = iter(jax.random.split(key, 256))
    if not is_cross_spectra:
        input_dim = cfg['num_cosmo_params'] + cfg['num_bias_params']
    else:
        input_dim = cfg['num_cosmo_params'] + 2 * cfg['num_bias_params']
    output_dim = cfg['num_ells'] * cfg['num_kbins']
    embedding_dim = cfg['split_size'] * cfg['split_dim']
    mlp_dims = cfg['mlp_dims']

    params = {'input_layer': _init_linear(next(keys), input_dim, mlp_dims[0])}

    mlp_blocks = []
    for i in range(cfg['num_mlp_blocks']):
        din, dout = mlp_dims[i], mlp_dims[i + 1]
        layers = []
        for j in range(cfg['num_block_layers']):
            lin_in = din if j == 0 else dout
            w, b = _init_linear(next(keys), lin_in, dout)
            beta, gamma = _init_activation(next(keys), dout)
            layers.append((w, b, beta, gamma))
        blk = {'layers': layers}
        if cfg['use_skip_connection'] and din != dout:
            blk['skip'] = _init_linear(next(keys), din, dout)
        mlp_blocks.append(blk)
    params['mlp_blocks'] = mlp_blocks

    params['embedding_layer'] = _init_linear(next(keys), mlp_dims[-1],
                                             embedding_dim)

    d = cfg['split_dim']
    tblocks, acts = [], []
    for _ in range(cfg['num_transformer_blocks']):
        p = {}
        for name in ('wq', 'wk', 'wv', 'wo'):
            w, b = _init_linear(next(keys), d, d)
            p[name] = w
            p['b' + name[1]] = b
        p['w1'], p['b1'] = _init_linear(next(keys), d, d)
        p['w2'], p['b2'] = _init_linear(next(keys), d, d)
        p['ln1_g'] = jnp.ones((1, d), jnp.float32)
        p['ln1_b'] = jnp.zeros((1, d), jnp.float32)
        p['ln2_g'] = jnp.ones((1, d), jnp.float32)
        p['ln2_b'] = jnp.zeros((1, d), jnp.float32)
        tblocks.append(p)
        acts.append(_init_activation(next(keys), embedding_dim))
    params['transformer_blocks'] = tblocks
    params['activations'] = acts

    params['output_layer'] = _init_linear(next(keys), embedding_dim, output_dim)
    return params


# ---------------------- packing: pad / block-diagonalize ---------------------

def _pad_mat(w, rp, cp):
    out = jnp.zeros((rp, cp), jnp.float32)
    return out.at[:w.shape[0], :w.shape[1]].set(w)


def _pad_row(v, cp):
    out = jnp.zeros((1, cp), jnp.float32)
    return out.at[:, :v.shape[1]].set(v)


def _block_diag(w, s):
    d = w.shape[0]
    m = jnp.zeros((s * d, s * d), jnp.float32)
    for t in range(s):
        m = m.at[t * d:(t + 1) * d, t * d:(t + 1) * d].set(w)
    return m


def _tile_row(v, s):
    return jnp.tile(v, (1, s))


def pack_params(params, cfg):
    """Flatten params into the (padded, lane-dense) list the kernel consumes."""
    s, d = cfg['split_size'], cfg['split_dim']
    e = s * d
    epad = _pad128(e)
    flat = []

    # input layer
    w, b = params['input_layer']
    flat += [_pad_mat(w, _pad128(w.shape[0]), _pad128(w.shape[1])),
             _pad_row(b, _pad128(w.shape[1]))]

    # MLP resnet blocks
    for blk in params['mlp_blocks']:
        for (w, b, beta, gamma) in blk['layers']:
            cp = _pad128(w.shape[1])
            flat += [_pad_mat(w, _pad128(w.shape[0]), cp), _pad_row(b, cp),
                     _pad_row(beta, cp), _pad_row(gamma, cp)]
        if 'skip' in blk:
            w, b = blk['skip']
            cp = _pad128(w.shape[1])
            flat += [_pad_mat(w, _pad128(w.shape[0]), cp), _pad_row(b, cp)]

    # embedding layer
    w, b = params['embedding_layer']
    flat += [_pad_mat(w, _pad128(w.shape[0]), epad), _pad_row(b, epad)]

    # block-diagonal per-token averaging matrix (LayerNorm over split_dim as a matmul)
    avg = _block_diag(jnp.full((d, d), 1.0 / d, jnp.float32), s)
    flat += [_pad_mat(avg, epad, epad)]

    # transformer blocks (+ their gated activations)
    for tp, (a_beta, a_gamma) in zip(params['transformer_blocks'],
                                     params['activations']):
        for nm in ('q', 'k', 'v'):
            flat += [_pad_mat(_block_diag(tp['w' + nm], s), epad, epad),
                     _pad_row(_tile_row(tp['b' + nm], s), epad)]
        flat += [_pad_mat(_block_diag(tp['wo'], s), e, epad),   # (E, EPAD): row-sliced per token
                 _pad_row(_tile_row(tp['bo'], s), epad)]
        flat += [_pad_row(_tile_row(tp['ln1_g'], s), epad),
                 _pad_row(_tile_row(tp['ln1_b'], s), epad)]
        flat += [_pad_mat(_block_diag(tp['w1'], s), epad, epad),
                 _pad_row(_tile_row(tp['b1'], s), epad)]
        flat += [_pad_mat(_block_diag(tp['w2'], s), epad, epad),
                 _pad_row(_tile_row(tp['b2'], s), epad)]
        flat += [_pad_row(_tile_row(tp['ln2_g'], s), epad),
                 _pad_row(_tile_row(tp['ln2_b'], s), epad)]
        flat += [_pad_row(a_beta, epad), _pad_row(a_gamma, epad)]

    # output layer
    w, b = params['output_layer']
    flat += [_pad_mat(w, epad, _pad128(w.shape[1])),
             _pad_row(b, _pad128(w.shape[1]))]
    return flat


# --------------------------------- kernel -----------------------------------

def _make_kernel(cfg, n_params):
    mlp_dims = cfg['mlp_dims']
    s, d = cfg['split_size'], cfg['split_dim']
    inv_sqrt_d = 1.0 / math.sqrt(d)
    use_skip = cfg['use_skip_connection']
    num_mlp = cfg['num_mlp_blocks']
    nlayers = cfg['num_block_layers']
    ntb = cfg['num_transformer_blocks']

    def kernel(x_ref, *refs):
        o_ref = refs[-1]
        prefs = refs[:-1]
        cursor = [0]

        def nxt():
            r = prefs[cursor[0]]
            cursor[0] += 1
            return r[...]

        def dot(a, b):
            return jnp.dot(a, b, preferred_element_type=jnp.float32)

        def gated(y, beta, gamma):
            # gamma-gated sigmoid; reciprocal on the EUP slot.
            sig = pl.reciprocal(1.0 + jnp.exp(-beta * y), approx=True)
            return (gamma + sig * (1.0 - gamma)) * y

        x = x_ref[...]                                   # (TB, IPAD)

        # ---- input layer ----
        w, b = nxt(), nxt()
        x = dot(x, w) + b

        # ---- MLP resnet blocks ----
        for bi in range(num_mlp):
            x_in = x
            for _ in range(nlayers):
                w, b, beta, gamma = nxt(), nxt(), nxt(), nxt()
                x = gated(dot(x, w) + b, beta, gamma)
            if use_skip:
                if mlp_dims[bi] != mlp_dims[bi + 1]:
                    ws, bs = nxt(), nxt()
                    x = x + dot(x_in, ws) + bs
                else:
                    x = x + x_in

        # ---- embedding ----
        w, b = nxt(), nxt()
        x = dot(x, w) + b                                # (TB, EPAD), real cols [0, s*d)

        avg_bd = nxt()                                   # (EPAD, EPAD) per-token averaging

        def token_ln(h, g, bb):
            # per-token LayerNorm expressed with a block-diagonal averaging matmul,
            # keeping everything in the 128-lane 2-D layout.
            mu = dot(h, avg_bd)
            c = h - mu
            var = dot(c * c, avg_bd)
            return c * lax.rsqrt(var + 1e-5) * g + bb

        # ---- transformer encoder blocks + gated activations ----
        for _ in range(ntb):
            wq, bq = nxt(), nxt()
            wk, bk = nxt(), nxt()
            wv, bv = nxt(), nxt()
            wo, bo = nxt(), nxt()
            ln1g, ln1b = nxt(), nxt()
            w1, b1 = nxt(), nxt()
            w2, b2 = nxt(), nxt()
            ln2g, ln2b = nxt(), nxt()
            a_beta, a_gamma = nxt(), nxt()

            q = dot(x, wq) + bq                          # (TB, EPAD)
            k = dot(x, wk) + bk
            v = dot(x, wv) + bv

            # single-head self-attention over the s tokens.  s=4, d=8 is far
            # too small for the MXU, so scores/weights stay on the VPU with
            # static lane slices (no per-batch batched matmuls, no reshapes).
            attn_out = None
            for qi in range(s):
                qq = q[:, qi * d:(qi + 1) * d]           # (TB, d)
                sc = [jnp.sum(qq * k[:, ki * d:(ki + 1) * d],
                              axis=-1, keepdims=True) * inv_sqrt_d
                      for ki in range(s)]                # s x (TB, 1)
                m = sc[0]
                for t in sc[1:]:
                    m = jnp.maximum(m, t)
                ex = [jnp.exp(t - m) for t in sc]
                den = ex[0]
                for t in ex[1:]:
                    den = den + t
                inv_den = pl.reciprocal(den, approx=True)
                acc = (ex[0] * inv_den) * v[:, 0:d]
                for ki in range(1, s):
                    acc = acc + (ex[ki] * inv_den) * v[:, ki * d:(ki + 1) * d]
                # project this token's context through its rows of the
                # block-diagonal output weight (avoids a lane concatenate).
                part = dot(acc, wo[qi * d:(qi + 1) * d, :])      # (TB, EPAD)
                attn_out = part if attn_out is None else attn_out + part
            attn_out = attn_out + bo

            h = token_ln(x + attn_out, ln1g, ln1b)
            ff = jnp.maximum(dot(h, w1) + b1, 0.0)
            ff = dot(ff, w2) + b2
            x = token_ln(h + ff, ln2g, ln2b)
            x = gated(x, a_beta, a_gamma)                # activation_function

        # ---- output layer ----
        w, b = nxt(), nxt()
        o_ref[...] = dot(x, w) + b

        assert cursor[0] == n_params, (cursor[0], n_params)

    return kernel


# --------------------------------- forward ----------------------------------

def single_transformer_forward(flat_params, input_params, cfg, is_cross_spectra):
    nb = cfg['num_bias_params']
    x = input_params if is_cross_spectra else input_params[:, :-nb]
    batch, in_dim = x.shape
    in_pad = _pad128(in_dim)
    out_dim = cfg['num_ells'] * cfg['num_kbins']
    out_pad = _pad128(out_dim)

    # Batch tile: largest multiple of 8 up to 256 (256 keeps the v6e/v7x MXU
    # M-dim full and divides cleanly; fits easily in v7x's 64 MiB VMEM).
    bp8 = _round_up(batch, _SUB)
    tb = min(256, bp8)
    batch_pad = _round_up(batch, tb)

    x_padded = jnp.zeros((batch_pad, in_pad), jnp.float32)
    x_padded = x_padded.at[:batch, :in_dim].set(x)

    kernel = _make_kernel(cfg, len(flat_params))
    wspec = pl.BlockSpec(memory_space=_VMEM)     # whole array resident in VMEM

    out = pl.pallas_call(
        kernel,
        out_shape=jax.ShapeDtypeStruct((batch_pad, out_pad), jnp.float32),
        grid=(batch_pad // tb,),
        in_specs=[pl.BlockSpec((tb, in_pad), lambda i: (i, 0))]
                 + [wspec] * len(flat_params),
        out_specs=pl.BlockSpec((tb, out_pad), lambda i: (i, 0)),
        compiler_params=pltpu.CompilerParams(
            dimension_semantics=("parallel",)),
    )(x_padded, *flat_params)

    return out[:batch, :out_dim]


# ------------------------- pure-JAX reference (check) ------------------------

def _reference_forward(params, input_params, cfg, is_cross_spectra):
    nb = cfg['num_bias_params']
    x = input_params if is_cross_spectra else input_params[:, :-nb]
    x = x @ params['input_layer'][0] + params['input_layer'][1]
    for blk in params['mlp_blocks']:
        x_in = x
        for (w, b, beta, gamma) in blk['layers']:
            y = x @ w + b
            sig = 1.0 / (1.0 + jnp.exp(-beta * y))
            x = (gamma + sig * (1.0 - gamma)) * y
        if cfg['use_skip_connection']:
            skip = (x_in @ blk['skip'][0] + blk['skip'][1]) if 'skip' in blk else x_in
            x = x + skip
    x = x @ params['embedding_layer'][0] + params['embedding_layer'][1]

    batch = x.shape[0]
    s, d = cfg['split_size'], cfg['split_dim']

    def ln(v, g, b):
        mu = jnp.mean(v, -1, keepdims=True)
        var = jnp.mean((v - mu) ** 2, -1, keepdims=True)
        return (v - mu) * lax.rsqrt(var + 1e-5) * g + b

    for tp, (a_beta, a_gamma) in zip(params['transformer_blocks'],
                                     params['activations']):
        tok = x.reshape(batch, s, d)
        q = jnp.einsum('bsd,de->bse', tok, tp['wq']) + tp['bq']
        k = jnp.einsum('bsd,de->bse', tok, tp['wk']) + tp['bk']
        v = jnp.einsum('bsd,de->bse', tok, tp['wv']) + tp['bv']
        sc = jnp.einsum('bqd,bkd->bqk', q, k) / math.sqrt(d)
        sc = sc - sc.max(-1, keepdims=True)
        p = jnp.exp(sc)
        p = p / p.sum(-1, keepdims=True)
        attn = jnp.einsum('bqk,bkd->bqd', p, v)
        attn = jnp.einsum('bsd,de->bse', attn, tp['wo']) + tp['bo']
        h = ln(tok + attn, tp['ln1_g'], tp['ln1_b'])
        ff = jnp.maximum(jnp.einsum('bsd,de->bse', h, tp['w1']) + tp['b1'], 0.0)
        ff = jnp.einsum('bsd,de->bse', ff, tp['w2']) + tp['b2']
        tok = ln(h + ff, tp['ln2_g'], tp['ln2_b'])
        x = tok.reshape(batch, s * d)
        sig = 1.0 / (1.0 + jnp.exp(-a_beta * x))
        x = (a_gamma + sig * (1.0 - a_gamma)) * x
    return x @ params['output_layer'][0] + params['output_layer'][1]


# ----------------------------------- main ------------------------------------

if __name__ == "__main__":
    cfg = {
        'num_ells': 2,
        'num_kbins': 16,
        'num_cosmo_params': 4,
        'num_bias_params': 3,
        'mlp_dims': [32, 48, 32],
        'num_mlp_blocks': 2,
        'num_block_layers': 2,
        'use_skip_connection': True,
        'split_dim': 8,
        'split_size': 4,           # embedding_dim = 32
        'num_transformer_blocks': 2,
    }
    is_cross_spectra = False

    key = jax.random.PRNGKey(0)
    k_params, k_x = jax.random.split(key)
    params = init_params(k_params, cfg, is_cross_spectra)
    flat_params = pack_params(params, cfg)

    # Raw input carries cosmo + 2*bias params; forward() drops the trailing
    # bias params when is_cross_spectra=False.
    batch = 2
    raw_dim = cfg['num_cosmo_params'] + 2 * cfg['num_bias_params']
    x = jax.random.normal(k_x, (batch, raw_dim), jnp.float32)

    fwd = jax.jit(lambda fp, xx: single_transformer_forward(
        fp, xx, cfg, is_cross_spectra))
    out = jax.block_until_ready(fwd(flat_params, x))

    assert out.shape == (batch, cfg['num_ells'] * cfg['num_kbins']), out.shape
    assert bool(jnp.all(jnp.isfinite(out)))

    # Cross-check against a pure-JAX reference (loose tol: approx EUP recip).
    ref = _reference_forward(params, x, cfg, is_cross_spectra)
    max_err = float(jnp.max(jnp.abs(out - ref)))
    assert max_err < 5e-2, f"mismatch vs reference, max abs err = {max_err}"

    print("KERNEL_OK")
</pallas_src>

<mosaic_0001>
module attributes {stable_mosaic.version = 11 : i64} {
  func.func @kernel(%arg0: i32, %arg1: memref<8x128xf32, #tpu.memory_space<vmem>>, %arg2: memref<128x128xf32, #tpu.memory_space<vmem>>, %arg3: memref<1x128xf32, #tpu.memory_space<vmem>>, %arg4: memref<128x128xf32, #tpu.memory_space<vmem>>, %arg5: memref<1x128xf32, #tpu.memory_space<vmem>>, %arg6: memref<1x128xf32, #tpu.memory_space<vmem>>, %arg7: memref<1x128xf32, #tpu.memory_space<vmem>>, %arg8: memref<128x128xf32, #tpu.memory_space<vmem>>, %arg9: memref<1x128xf32, #tpu.memory_space<vmem>>, %arg10: memref<1x128xf32, #tpu.memory_space<vmem>>, %arg11: memref<1x128xf32, #tpu.memory_space<vmem>>, %arg12: memref<128x128xf32, #tpu.memory_space<vmem>>, %arg13: memref<1x128xf32, #tpu.memory_space<vmem>>, %arg14: memref<128x128xf32, #tpu.memory_space<vmem>>, %arg15: memref<1x128xf32, #tpu.memory_space<vmem>>, %arg16: memref<1x128xf32, #tpu.memory_space<vmem>>, %arg17: memref<1x128xf32, #tpu.memory_space<vmem>>, %arg18: memref<128x128xf32, #tpu.memory_space<vmem>>, %arg19: memref<1x128xf32, #tpu.memory_space<vmem>>, %arg20: memref<1x128xf32, #tpu.memory_space<vmem>>, %arg21: memref<1x128xf32, #tpu.memory_space<vmem>>, %arg22: memref<128x128xf32, #tpu.memory_space<vmem>>, %arg23: memref<1x128xf32, #tpu.memory_space<vmem>>, %arg24: memref<128x128xf32, #tpu.memory_space<vmem>>, %arg25: memref<1x128xf32, #tpu.memory_space<vmem>>, %arg26: memref<128x128xf32, #tpu.memory_space<vmem>>, %arg27: memref<128x128xf32, #tpu.memory_space<vmem>>, %arg28: memref<1x128xf32, #tpu.memory_space<vmem>>, %arg29: memref<128x128xf32, #tpu.memory_space<vmem>>, %arg30: memref<1x128xf32, #tpu.memory_space<vmem>>, %arg31: memref<128x128xf32, #tpu.memory_space<vmem>>, %arg32: memref<1x128xf32, #tpu.memory_space<vmem>>, %arg33: memref<32x128xf32, #tpu.memory_space<vmem>>, %arg34: memref<1x128xf32, #tpu.memory_space<vmem>>, %arg35: memref<1x128xf32, #tpu.memory_space<vmem>>, %arg36: memref<1x128xf32, #tpu.memory_space<vmem>>, %arg37: memref<128x128xf32, #tpu.memory_space<vmem>>, %arg38: memref<1x128xf32, #tpu.memory_space<vmem>>, %arg39: memref<128x128xf32, #tpu.memory_space<vmem>>, %arg40: memref<1x128xf32, #tpu.memory_space<vmem>>, %arg41: memref<1x128xf32, #tpu.memory_space<vmem>>, %arg42: memref<1x128xf32, #tpu.memory_space<vmem>>, %arg43: memref<1x128xf32, #tpu.memory_space<vmem>>, %arg44: memref<1x128xf32, #tpu.memory_space<vmem>>, %arg45: memref<128x128xf32, #tpu.memory_space<vmem>>, %arg46: memref<1x128xf32, #tpu.memory_space<vmem>>, %arg47: memref<128x128xf32, #tpu.memory_space<vmem>>, %arg48: memref<1x128xf32, #tpu.memory_space<vmem>>, %arg49: memref<128x128xf32, #tpu.memory_space<vmem>>, %arg50: memref<1x128xf32, #tpu.memory_space<vmem>>, %arg51: memref<32x128xf32, #tpu.memory_space<vmem>>, %arg52: memref<1x128xf32, #tpu.memory_space<vmem>>, %arg53: memref<1x128xf32, #tpu.memory_space<vmem>>, %arg54: memref<1x128xf32, #tpu.memory_space<vmem>>, %arg55: memref<128x128xf32, #tpu.memory_space<vmem>>, %arg56: memref<1x128xf32, #tpu.memory_space<vmem>>, %arg57: memref<128x128xf32, #tpu.memory_space<vmem>>, %arg58: memref<1x128xf32, #tpu.memory_space<vmem>>, %arg59: memref<1x128xf32, #tpu.memory_space<vmem>>, %arg60: memref<1x128xf32, #tpu.memory_space<vmem>>, %arg61: memref<1x128xf32, #tpu.memory_space<vmem>>, %arg62: memref<1x128xf32, #tpu.memory_space<vmem>>, %arg63: memref<128x128xf32, #tpu.memory_space<vmem>>, %arg64: memref<1x128xf32, #tpu.memory_space<vmem>>, %arg65: memref<8x128xf32, #tpu.memory_space<vmem>>) attributes {dimension_semantics = [#tpu.dimension_semantics<parallel>], iteration_bounds = array<i64: 1>, scalar_prefetch = 0 : i64, scratch_operands = 0 : i64, tpu.core_type = #tpu.core_type<tc>, window_params = [{transform_indices = @transform_0, window_bounds = array<i64: 8, 128>}, {pipeline_mode = #tpu.pipeline_mode<synchronous>, transform_indices = @transform_1, window_bounds = array<i64: 128, 128>}, {pipeline_mode = #tpu.pipeline_mode<synchronous>, transform_indices = @transform_2, window_bounds = array<i64: 1, 128>}, {pipeline_mode = #tpu.pipeline_mode<synchronous>, transform_indices = @transform_3, window_bounds = array<i64: 128, 128>}, {pipeline_mode = #tpu.pipeline_mode<synchronous>, transform_indices = @transform_4, window_bounds = array<i64: 1, 128>}, {pipeline_mode = #tpu.pipeline_mode<synchronous>, transform_indices = @transform_5, window_bounds = array<i64: 1, 128>}, {pipeline_mode = #tpu.pipeline_mode<synchronous>, transform_indices = @transform_6, window_bounds = array<i64: 1, 128>}, {pipeline_mode = #tpu.pipeline_mode<synchronous>, transform_indices = @transform_7, window_bounds = array<i64: 128, 128>}, {pipeline_mode = #tpu.pipeline_mode<synchronous>, transform_indices = @transform_8, window_bounds = array<i64: 1, 128>}, {pipeline_mode = #tpu.pipeline_mode<synchronous>, transform_indices = @transform_9, window_bounds = array<i64: 1, 128>}, {pipeline_mode = #tpu.pipeline_mode<synchronous>, transform_indices = @transform_10, window_bounds = array<i64: 1, 128>}, {pipeline_mode = #tpu.pipeline_mode<synchronous>, transform_indices = @transform_11, window_bounds = array<i64: 128, 128>}, {pipeline_mode = #tpu.pipeline_mode<synchronous>, transform_indices = @transform_12, window_bounds = array<i64: 1, 128>}, {pipeline_mode = #tpu.pipeline_mode<synchronous>, transform_indices = @transform_13, window_bounds = array<i64: 128, 128>}, {pipeline_mode = #tpu.pipeline_mode<synchronous>, transform_indices = @transform_14, window_bounds = array<i64: 1, 128>}, {pipeline_mode = #tpu.pipeline_mode<synchronous>, transform_indices = @transform_15, window_bounds = array<i64: 1, 128>}, {pipeline_mode = #tpu.pipeline_mode<synchronous>, transform_indices = @transform_16, window_bounds = array<i64: 1, 128>}, {pipeline_mode = #tpu.pipeline_mode<synchronous>, transform_indices = @transform_17, window_bounds = array<i64: 128, 128>}, {pipeline_mode = #tpu.pipeline_mode<synchronous>, transform_indices = @transform_18, window_bounds = array<i64: 1, 128>}, {pipeline_mode = #tpu.pipeline_mode<synchronous>, transform_indices = @transform_19, window_bounds = array<i64: 1, 128>}, {pipeline_mode = #tpu.pipeline_mode<synchronous>, transform_indices = @transform_20, window_bounds = array<i64: 1, 128>}, {pipeline_mode = #tpu.pipeline_mode<synchronous>, transform_indices = @transform_21, window_bounds = array<i64: 128, 128>}, {pipeline_mode = #tpu.pipeline_mode<synchronous>, transform_indices = @transform_22, window_bounds = array<i64: 1, 128>}, {pipeline_mode = #tpu.pipeline_mode<synchronous>, transform_indices = @transform_23, window_bounds = array<i64: 128, 128>}, {pipeline_mode = #tpu.pipeline_mode<synchronous>, transform_indices = @transform_24, window_bounds = array<i64: 1, 128>}, {pipeline_mode = #tpu.pipeline_mode<synchronous>, transform_indices = @transform_25, window_bounds = array<i64: 128, 128>}, {pipeline_mode = #tpu.pipeline_mode<synchronous>, transform_indices = @transform_26, window_bounds = array<i64: 128, 128>}, {pipeline_mode = #tpu.pipeline_mode<synchronous>, transform_indices = @transform_27, window_bounds = array<i64: 1, 128>}, {pipeline_mode = #tpu.pipeline_mode<synchronous>, transform_indices = @transform_28, window_bounds = array<i64: 128, 128>}, {pipeline_mode = #tpu.pipeline_mode<synchronous>, transform_indices = @transform_29, window_bounds = array<i64: 1, 128>}, {pipeline_mode = #tpu.pipeline_mode<synchronous>, transform_indices = @transform_30, window_bounds = array<i64: 128, 128>}, {pipeline_mode = #tpu.pipeline_mode<synchronous>, transform_indices = @transform_31, window_bounds = array<i64: 1, 128>}, {pipeline_mode = #tpu.pipeline_mode<synchronous>, transform_indices = @transform_32, window_bounds = array<i64: 32, 128>}, {pipeline_mode = #tpu.pipeline_mode<synchronous>, transform_indices = @transform_33, window_bounds = array<i64: 1, 128>}, {pipeline_mode = #tpu.pipeline_mode<synchronous>, transform_indices = @transform_34, window_bounds = array<i64: 1, 128>}, {pipeline_mode = #tpu.pipeline_mode<synchronous>, transform_indices = @transform_35, window_bounds = array<i64: 1, 128>}, {pipeline_mode = #tpu.pipeline_mode<synchronous>, transform_indices = @transform_36, window_bounds = array<i64: 128, 128>}, {pipeline_mode = #tpu.pipeline_mode<synchronous>, transform_indices = @transform_37, window_bounds = array<i64: 1, 128>}, {pipeline_mode = #tpu.pipeline_mode<synchronous>, transform_indices = @transform_38, window_bounds = array<i64: 128, 128>}, {pipeline_mode = #tpu.pipeline_mode<synchronous>, transform_indices = @transform_39, window_bounds = array<i64: 1, 128>}, {pipeline_mode = #tpu.pipeline_mode<synchronous>, transform_indices = @transform_40, window_bounds = array<i64: 1, 128>}, {pipeline_mode = #tpu.pipeline_mode<synchronous>, transform_indices = @transform_41, window_bounds = array<i64: 1, 128>}, {pipeline_mode = #tpu.pipeline_mode<synchronous>, transform_indices = @transform_42, window_bounds = array<i64: 1, 128>}, {pipeline_mode = #tpu.pipeline_mode<synchronous>, transform_indices = @transform_43, window_bounds = array<i64: 1, 128>}, {pipeline_mode = #tpu.pipeline_mode<synchronous>, transform_indices = @transform_44, window_bounds = array<i64: 128, 128>}, {pipeline_mode = #tpu.pipeline_mode<synchronous>, transform_indices = @transform_45, window_bounds = array<i64: 1, 128>}, {pipeline_mode = #tpu.pipeline_mode<synchronous>, transform_indices = @transform_46, window_bounds = array<i64: 128, 128>}, {pipeline_mode = #tpu.pipeline_mode<synchronous>, transform_indices = @transform_47, window_bounds = array<i64: 1, 128>}, {pipeline_mode = #tpu.pipeline_mode<synchronous>, transform_indices = @transform_48, window_bounds = array<i64: 128, 128>}, {pipeline_mode = #tpu.pipeline_mode<synchronous>, transform_indices = @transform_49, window_bounds = array<i64: 1, 128>}, {pipeline_mode = #tpu.pipeline_mode<synchronous>, transform_indices = @transform_50, window_bounds = array<i64: 32, 128>}, {pipeline_mode = #tpu.pipeline_mode<synchronous>, transform_indices = @transform_51, window_bounds = array<i64: 1, 128>}, {pipeline_mode = #tpu.pipeline_mode<synchronous>, transform_indices = @transform_52, window_bounds = array<i64: 1, 128>}, {pipeline_mode = #tpu.pipeline_mode<synchronous>, transform_indices = @transform_53, window_bounds = array<i64: 1, 128>}, {pipeline_mode = #tpu.pipeline_mode<synchronous>, transform_indices = @transform_54, window_bounds = array<i64: 128, 128>}, {pipeline_mode = #tpu.pipeline_mode<synchronous>, transform_indices = @transform_55, window_bounds = array<i64: 1, 128>}, {pipeline_mode = #tpu.pipeline_mode<synchronous>, transform_indices = @transform_56, window_bounds = array<i64: 128, 128>}, {pipeline_mode = #tpu.pipeline_mode<synchronous>, transform_indices = @transform_57, window_bounds = array<i64: 1, 128>}, {pipeline_mode = #tpu.pipeline_mode<synchronous>, transform_indices = @transform_58, window_bounds = array<i64: 1, 128>}, {pipeline_mode = #tpu.pipeline_mode<synchronous>, transform_indices = @transform_59, window_bounds = array<i64: 1, 128>}, {pipeline_mode = #tpu.pipeline_mode<synchronous>, transform_indices = @transform_60, window_bounds = array<i64: 1, 128>}, {pipeline_mode = #tpu.pipeline_mode<synchronous>, transform_indices = @transform_61, window_bounds = array<i64: 1, 128>}, {pipeline_mode = #tpu.pipeline_mode<synchronous>, transform_indices = @transform_62, window_bounds = array<i64: 128, 128>}, {pipeline_mode = #tpu.pipeline_mode<synchronous>, transform_indices = @transform_63, window_bounds = array<i64: 1, 128>}, {transform_indices = @transform_64, window_bounds = array<i64: 8, 128>}]} {
    %c0 = arith.constant 0 : index
    %c0_0 = arith.constant 0 : index
    %0 = vector.load %arg1[%c0, %c0_0] : memref<8x128xf32, #tpu.memory_space<vmem>>, vector<8x128xf32>
    %c0_1 = arith.constant 0 : index
    %c0_2 = arith.constant 0 : index
    %1 = vector.load %arg2[%c0_1, %c0_2] : memref<128x128xf32, #tpu.memory_space<vmem>>, vector<128x128xf32>
    %c0_3 = arith.constant 0 : index
    %c0_4 = arith.constant 0 : index
    %2 = vector.load %arg3[%c0_3, %c0_4] : memref<1x128xf32, #tpu.memory_space<vmem>>, vector<1x128xf32>
    %cst = arith.constant dense<0.000000e+00> : vector<8x128xf32>
    %3 = tpu.matmul %0, %1, %cst {dimension_numbers = #tpu.dot_dimension_numbers<[1], [0], [0], [1], [0, 0, 1, 1], [], []>} : vector<8x128xf32>, vector<128x128xf32>, vector<8x128xf32> -> vector<8x128xf32>
    %4 = vector.broadcast %2 : vector<1x128xf32> to vector<8x128xf32>
    %5 = arith.addf %3, %4 : vector<8x128xf32>
    %c0_5 = arith.constant 0 : index
    %c0_6 = arith.constant 0 : index
    %6 = vector.load %arg4[%c0_5, %c0_6] : memref<128x128xf32, #tpu.memory_space<vmem>>, vector<128x128xf32>
    %c0_7 = arith.constant 0 : index
    %c0_8 = arith.constant 0 : index
    %7 = vector.load %arg5[%c0_7, %c0_8] : memref<1x128xf32, #tpu.memory_space<vmem>>, vector<1x128xf32>
    %c0_9 = arith.constant 0 : index
    %c0_10 = arith.constant 0 : index
    %8 = vector.load %arg6[%c0_9, %c0_10] : memref<1x128xf32, #tpu.memory_space<vmem>>, vector<1x128xf32>
    %c0_11 = arith.constant 0 : index
    %c0_12 = arith.constant 0 : index
    %9 = vector.load %arg7[%c0_11, %c0_12] : memref<1x128xf32, #tpu.memory_space<vmem>>, vector<1x128xf32>
    %cst_13 = arith.constant dense<0.000000e+00> : vector<8x128xf32>
    %10 = tpu.matmul %5, %6, %cst_13 {dimension_numbers = #tpu.dot_dimension_numbers<[1], [0], [0], [1], [0, 0, 1, 1], [], []>} : vector<8x128xf32>, vector<128x128xf32>, vector<8x128xf32> -> vector<8x128xf32>
    %11 = vector.broadcast %7 : vector<1x128xf32> to vector<8x128xf32>
    %12 = arith.addf %10, %11 : vector<8x128xf32>
    %cst_14 = arith.constant 0.000000e+00 : f32
    %13 = vector.broadcast %cst_14 : f32 to vector<1x128xf32>
    %14 = arith.subf %13, %8 : vector<1x128xf32>
    %15 = vector.broadcast %14 : vector<1x128xf32> to vector<8x128xf32>
    %16 = arith.mulf %15, %12 : vector<8x128xf32>
    %17 = math.exp %16 : vector<8x128xf32>
    %cst_15 = arith.constant 1.000000e+00 : f32
    %18 = vector.broadcast %cst_15 : f32 to vector<8x128xf32>
    %19 = arith.addf %18, %17 : vector<8x128xf32>
    %20 = tpu.reciprocal %19 {approx = true} : vector<8x128xf32> -> vector<8x128xf32>
    %cst_16 = arith.constant 1.000000e+00 : f32
    %21 = vector.broadcast %cst_16 : f32 to vector<1x128xf32>
    %22 = arith.subf %21, %9 : vector<1x128xf32>
    %23 = vector.broadcast %22 : vector<1x128xf32> to vector<8x128xf32>
    %24 = arith.mulf %20, %23 : vector<8x128xf32>
    %25 = vector.broadcast %9 : vector<1x128xf32> to vector<8x128xf32>
    %26 = arith.addf %25, %24 : vector<8x128xf32>
    %27 = arith.mulf %26, %12 : vector<8x128xf32>
    %c0_17 = arith.constant 0 : index
    %c0_18 = arith.constant 0 : index
    %28 = vector.load %arg8[%c0_17, %c0_18] : memref<128x128xf32, #tpu.memory_space<vmem>>, vector<128x128xf32>
    %c0_19 = arith.constant 0 : index
    %c0_20 = arith.constant 0 : index
    %29 = vector.load %arg9[%c0_19, %c0_20] : memref<1x128xf32, #tpu.memory_space<vmem>>, vector<1x128xf32>
    %c0_21 = arith.constant 0 : index
    %c0_22 = arith.constant 0 : index
    %30 = vector.load %arg10[%c0_21, %c0_22] : memref<1x128xf32, #tpu.memory_space<vmem>>, vector<1x128xf32>
    %c0_23 = arith.constant 0 : index
    %c0_24 = arith.constant 0 : index
    %31 = vector.load %arg11[%c0_23, %c0_24] : memref<1x128xf32, #tpu.memory_space<vmem>>, vector<1x128xf32>
    %cst_25 = arith.constant dense<0.000000e+00> : vector<8x128xf32>
    %32 = tpu.matmul %27, %28, %cst_25 {dimension_numbers = #tpu.dot_dimension_numbers<[1], [0], [0], [1], [0, 0, 1, 1], [], []>} : vector<8x128xf32>, vector<128x128xf32>, vector<8x128xf32> -> vector<8x128xf32>
    %33 = vector.broadcast %29 : vector<1x128xf32> to vector<8x128xf32>
    %34 = arith.addf %32, %33 : vector<8x128xf32>
    %cst_26 = arith.constant 0.000000e+00 : f32
    %35 = vector.broadcast %cst_26 : f32 to vector<1x128xf32>
    %36 = arith.subf %35, %30 : vector<1x128xf32>
    %37 = vector.broadcast %36 : vector<1x128xf32> to vector<8x128xf32>
    %38 = arith.mulf %37, %34 : vector<8x128xf32>
    %39 = math.exp %38 : vector<8x128xf32>
    %cst_27 = arith.constant 1.000000e+00 : f32
    %40 = vector.broadcast %cst_27 : f32 to vector<8x128xf32>
    %41 = arith.addf %40, %39 : vector<8x128xf32>
    %42 = tpu.reciprocal %41 {approx = true} : vector<8x128xf32> -> vector<8x128xf32>
    %cst_28 = arith.constant 1.000000e+00 : f32
    %43 = vector.broadcast %cst_28 : f32 to vector<1x128xf32>
    %44 = arith.subf %43, %31 : vector<1x128xf32>
    %45 = vector.broadcast %44 : vector<1x128xf32> to vector<8x128xf32>
    %46 = arith.mulf %42, %45 : vector<8x128xf32>
    %47 = vector.broadcast %31 : vector<1x128xf32> to vector<8x128xf32>
    %48 = arith.addf %47, %46 : vector<8x128xf32>
    %49 = arith.mulf %48, %34 : vector<8x128xf32>
    %c0_29 = arith.constant 0 : index
    %c0_30 = arith.constant 0 : index
    %50 = vector.load %arg12[%c0_29, %c0_30] : memref<128x128xf32, #tpu.memory_space<vmem>>, vector<128x128xf32>
    %c0_31 = arith.constant 0 : index
    %c0_32 = arith.constant 0 : index
    %51 = vector.load %arg13[%c0_31, %c0_32] : memref<1x128xf32, #tpu.memory_space<vmem>>, vector<1x128xf32>
    %cst_33 = arith.constant dense<0.000000e+00> : vector<8x128xf32>
    %52 = tpu.matmul %5, %50, %cst_33 {dimension_numbers = #tpu.dot_dimension_numbers<[1], [0], [0], [1], [0, 0, 1, 1], [], []>} : vector<8x128xf32>, vector<128x128xf32>, vector<8x128xf32> -> vector<8x128xf32>
    %53 = arith.addf %49, %52 : vector<8x128xf32>
    %54 = vector.broadcast %51 : vector<1x128xf32> to vector<8x128xf32>
    %55 = arith.addf %53, %54 : vector<8x128xf32>
    %c0_34 = arith.constant 0 : index
    %c0_35 = arith.constant 0 : index
    %56 = vector.load %arg14[%c0_34, %c0_35] : memref<128x128xf32, #tpu.memory_space<vmem>>, vector<128x128xf32>
    %c0_36 = arith.constant 0 : index
    %c0_37 = arith.constant 0 : index
    %57 = vector.load %arg15[%c0_36, %c0_37] : memref<1x128xf32, #tpu.memory_space<vmem>>, vector<1x128xf32>
    %c0_38 = arith.constant 0 : index
    %c0_39 = arith.constant 0 : index
    %58 = vector.load %arg16[%c0_38, %c0_39] : memref<1x128xf32, #tpu.memory_space<vmem>>, vector<1x128xf32>
    %c0_40 = arith.constant 0 : index
    %c0_41 = arith.constant 0 : index
    %59 = vector.load %arg17[%c0_40, %c0_41] : memref<1x128xf32, #tpu.memory_space<vmem>>, vector<1x128xf32>
    %cst_42 = arith.constant dense<0.000000e+00> : vector<8x128xf32>
    %60 = tpu.matmul %55, %56, %cst_42 {dimension_numbers = #tpu.dot_dimension_numbers<[1], [0], [0], [1], [0, 0, 1, 1], [], []>} : vector<8x128xf32>, vector<128x128xf32>, vector<8x128xf32> -> vector<8x128xf32>
    %61 = vector.broadcast %57 : vector<1x128xf32> to vector<8x128xf32>
    %62 = arith.addf %60, %61 : vector<8x128xf32>
    %cst_43 = arith.constant 0.000000e+00 : f32
    %63 = vector.broadcast %cst_43 : f32 to vector<1x128xf32>
    %64 = arith.subf %63, %58 : vector<1x128xf32>
    %65 = vector.broadcast %64 : vector<1x128xf32> to vector<8x128xf32>
    %66 = arith.mulf %65, %62 : vector<8x128xf32>
    %67 = math.exp %66 : vector<8x128xf32>
    %cst_44 = arith.constant 1.000000e+00 : f32
    %68 = vector.broadcast %cst_44 : f32 to vector<8x128xf32>
    %69 = arith.addf %68, %67 : vector<8x128xf32>
    %70 = tpu.reciprocal %69 {approx = true} : vector<8x128xf32> -> vector<8x128xf32>
    %cst_45 = arith.constant 1.000000e+00 : f32
    %71 = vector.broadcast %cst_45 : f32 to vector<1x128xf32>
    %72 = arith.subf %71, %59 : vector<1x128xf32>
    %73 = vector.broadcast %72 : vector<1x128xf32> to vector<8x128xf32>
    %74 = arith.mulf %70, %73 : vector<8x128xf32>
    %75 = vector.broadcast %59 : vector<1x128xf32> to vector<8x128xf32>
    %76 = arith.addf %75, %74 : vector<8x128xf32>
    %77 = arith.mulf %76, %62 : vector<8x128xf32>
    %c0_46 = arith.constant 0 : index
    %c0_47 = arith.constant 0 : index
    %78 = vector.load %arg18[%c0_46, %c0_47] : memref<128x128xf32, #tpu.memory_space<vmem>>, vector<128x128xf32>
    %c0_48 = arith.constant 0 : index
    %c0_49 = arith.constant 0 : index
    %79 = vector.load %arg19[%c0_48, %c0_49] : memref<1x128xf32, #tpu.memory_space<vmem>>, vector<1x128xf32>
    %c0_50 = arith.constant 0 : index
    %c0_51 = arith.constant 0 : index
    %80 = vector.load %arg20[%c0_50, %c0_51] : memref<1x128xf32, #tpu.memory_space<vmem>>, vector<1x128xf32>
    %c0_52 = arith.constant 0 : index
    %c0_53 = arith.constant 0 : index
    %81 = vector.load %arg21[%c0_52, %c0_53] : memref<1x128xf32, #tpu.memory_space<vmem>>, vector<1x128xf32>
    %cst_54 = arith.constant dense<0.000000e+00> : vector<8x128xf32>
    %82 = tpu.matmul %77, %78, %cst_54 {dimension_numbers = #tpu.dot_dimension_numbers<[1], [0], [0], [1], [0, 0, 1, 1], [], []>} : vector<8x128xf32>, vector<128x128xf32>, vector<8x128xf32> -> vector<8x128xf32>
    %83 = vector.broadcast %79 : vector<1x128xf32> to vector<8x128xf32>
    %84 = arith.addf %82, %83 : vector<8x128xf32>
    %cst_55 = arith.constant 0.000000e+00 : f32
    %85 = vector.broadcast %cst_55 : f32 to vector<1x128xf32>
    %86 = arith.subf %85, %80 : vector<1x128xf32>
    %87 = vector.broadcast %86 : vector<1x128xf32> to vector<8x128xf32>
    %88 = arith.mulf %87, %84 : vector<8x128xf32>
    %89 = math.exp %88 : vector<8x128xf32>
    %cst_56 = arith.constant 1.000000e+00 : f32
    %90 = vector.broadcast %cst_56 : f32 to vector<8x128xf32>
    %91 = arith.addf %90, %89 : vector<8x128xf32>
    %92 = tpu.reciprocal %91 {approx = true} : vector<8x128xf32> -> vector<8x128xf32>
    %cst_57 = arith.constant 1.000000e+00 : f32
    %93 = vector.broadcast %cst_57 : f32 to vector<1x128xf32>
    %94 = arith.subf %93, %81 : vector<1x128xf32>
    %95 = vector.broadcast %94 : vector<1x128xf32> to vector<8x128xf32>
    %96 = arith.mulf %92, %95 : vector<8x128xf32>
    %97 = vector.broadcast %81 : vector<1x128xf32> to vector<8x128xf32>
    %98 = arith.addf %97, %96 : vector<8x128xf32>
    %99 = arith.mulf %98, %84 : vector<8x128xf32>
    %c0_58 = arith.constant 0 : index
    %c0_59 = arith.constant 0 : index
    %100 = vector.load %arg22[%c0_58, %c0_59] : memref<128x128xf32, #tpu.memory_space<vmem>>, vector<128x128xf32>
    %c0_60 = arith.constant 0 : index
    %c0_61 = arith.constant 0 : index
    %101 = vector.load %arg23[%c0_60, %c0_61] : memref<1x128xf32, #tpu.memory_space<vmem>>, vector<1x128xf32>
    %cst_62 = arith.constant dense<0.000000e+00> : vector<8x128xf32>
    %102 = tpu.matmul %55, %100, %cst_62 {dimension_numbers = #tpu.dot_dimension_numbers<[1], [0], [0], [1], [0, 0, 1, 1], [], []>} : vector<8x128xf32>, vector<128x128xf32>, vector<8x128xf32> -> vector<8x128xf32>
    %103 = arith.addf %99, %102 : vector<8x128xf32>
    %104 = vector.broadcast %101 : vector<1x128xf32> to vector<8x128xf32>
    %105 = arith.addf %103, %104 : vector<8x128xf32>
    %c0_63 = arith.constant 0 : index
    %c0_64 = arith.constant 0 : index
    %106 = vector.load %arg24[%c0_63, %c0_64] : memref<128x128xf32, #tpu.memory_space<vmem>>, vector<128x128xf32>
    %c0_65 = arith.constant 0 : index
    %c0_66 = arith.constant 0 : index
    %107 = vector.load %arg25[%c0_65, %c0_66] : memref<1x128xf32, #tpu.memory_space<vmem>>, vector<1x128xf32>
    %cst_67 = arith.constant dense<0.000000e+00> : vector<8x128xf32>
    %108 = tpu.matmul %105, %106, %cst_67 {dimension_numbers = #tpu.dot_dimension_numbers<[1], [0], [0], [1], [0, 0, 1, 1], [], []>} : vector<8x128xf32>, vector<128x128xf32>, vector<8x128xf32> -> vector<8x128xf32>
    %109 = vector.broadcast %107 : vector<1x128xf32> to vector<8x128xf32>
    %110 = arith.addf %108, %109 : vector<8x128xf32>
    %c0_68 = arith.constant 0 : index
    %c0_69 = arith.constant 0 : index
    %111 = vector.load %arg26[%c0_68, %c0_69] : memref<128x128xf32, #tpu.memory_space<vmem>>, vector<128x128xf32>
    %c0_70 = arith.constant 0 : index
    %c0_71 = arith.constant 0 : index
    %112 = vector.load %arg27[%c0_70, %c0_71] : memref<128x128xf32, #tpu.memory_space<vmem>>, vector<128x128xf32>
    %c0_72 = arith.constant 0 : index
    %c0_73 = arith.constant 0 : index
    %113 = vector.load %arg28[%c0_72, %c0_73] : memref<1x128xf32, #tpu.memory_space<vmem>>, vector<1x128xf32>
    %c0_74 = arith.constant 0 : index
    %c0_75 = arith.constant 0 : index
    %114 = vector.load %arg29[%c0_74, %c0_75] : memref<128x128xf32, #tpu.memory_space<vmem>>, vector<128x128xf32>
    %c0_76 = arith.constant 0 : index
    %c0_77 = arith.constant 0 : index
    %115 = vector.load %arg30[%c0_76, %c0_77] : memref<1x128xf32, #tpu.memory_space<vmem>>, vector<1x128xf32>
    %c0_78 = arith.constant 0 : index
    %c0_79 = arith.constant 0 : index
    %116 = vector.load %arg31[%c0_78, %c0_79] : memref<128x128xf32, #tpu.memory_space<vmem>>, vector<128x128xf32>
    %c0_80 = arith.constant 0 : index
    %c0_81 = arith.constant 0 : index
    %117 = vector.load %arg32[%c0_80, %c0_81] : memref<1x128xf32, #tpu.memory_space<vmem>>, vector<1x128xf32>
    %c0_82 = arith.constant 0 : index
    %c0_83 = arith.constant 0 : index
    %118 = vector.load %arg33[%c0_82, %c0_83] : memref<32x128xf32, #tpu.memory_space<vmem>>, vector<32x128xf32>
    %c0_84 = arith.constant 0 : index
    %c0_85 = arith.constant 0 : index
    %119 = vector.load %arg34[%c0_84, %c0_85] : memref<1x128xf32, #tpu.memory_space<vmem>>, vector<1x128xf32>
    %c0_86 = arith.constant 0 : index
    %c0_87 = arith.constant 0 : index
    %120 = vector.load %arg35[%c0_86, %c0_87] : memref<1x128xf32, #tpu.memory_space<vmem>>, vector<1x128xf32>
    %c0_88 = arith.constant 0 : index
    %c0_89 = arith.constant 0 : index
    %121 = vector.load %arg36[%c0_88, %c0_89] : memref<1x128xf32, #tpu.memory_space<vmem>>, vector<1x128xf32>
    %c0_90 = arith.constant 0 : index
    %c0_91 = arith.constant 0 : index
    %122 = vector.load %arg37[%c0_90, %c0_91] : memref<128x128xf32, #tpu.memory_space<vmem>>, vector<128x128xf32>
    %c0_92 = arith.constant 0 : index
    %c0_93 = arith.constant 0 : index
    %123 = vector.load %arg38[%c0_92, %c0_93] : memref<1x128xf32, #tpu.memory_space<vmem>>, vector<1x128xf32>
    %c0_94 = arith.constant 0 : index
    %c0_95 = arith.constant 0 : index
    %124 = vector.load %arg39[%c0_94, %c0_95] : memref<128x128xf32, #tpu.memory_space<vmem>>, vector<128x128xf32>
    %c0_96 = arith.constant 0 : index
    %c0_97 = arith.constant 0 : index
    %125 = vector.load %arg40[%c0_96, %c0_97] : memref<1x128xf32, #tpu.memory_space<vmem>>, vector<1x128xf32>
    %c0_98 = arith.constant 0 : index
    %c0_99 = arith.constant 0 : index
    %126 = vector.load %arg41[%c0_98, %c0_99] : memref<1x128xf32, #tpu.memory_space<vmem>>, vector<1x128xf32>
    %c0_100 = arith.constant 0 : index
    %c0_101 = arith.constant 0 : index
    %127 = vector.load %arg42[%c0_100, %c0_101] : memref<1x128xf32, #tpu.memory_space<vmem>>, vector<1x128xf32>
    %c0_102 = arith.constant 0 : index
    %c0_103 = arith.constant 0 : index
    %128 = vector.load %arg43[%c0_102, %c0_103] : memref<1x128xf32, #tpu.memory_space<vmem>>, vector<1x128xf32>
    %c0_104 = arith.constant 0 : index
    %c0_105 = arith.constant 0 : index
    %129 = vector.load %arg44[%c0_104, %c0_105] : memref<1x128xf32, #tpu.memory_space<vmem>>, vector<1x128xf32>
    %cst_106 = arith.constant dense<0.000000e+00> : vector<8x128xf32>
    %130 = tpu.matmul %110, %112, %cst_106 {dimension_numbers = #tpu.dot_dimension_numbers<[1], [0], [0], [1], [0, 0, 1, 1], [], []>} : vector<8x128xf32>, vector<128x128xf32>, vector<8x128xf32> -> vector<8x128xf32>
    %131 = vector.broadcast %113 : vector<1x128xf32> to vector<8x128xf32>
    %132 = arith.addf %130, %131 : vector<8x128xf32>
    %cst_107 = arith.constant dense<0.000000e+00> : vector<8x128xf32>
    %133 = tpu.matmul %110, %114, %cst_107 {dimension_numbers = #tpu.dot_dimension_numbers<[1], [0], [0], [1], [0, 0, 1, 1], [], []>} : vector<8x128xf32>, vector<128x128xf32>, vector<8x128xf32> -> vector<8x128xf32>
    %134 = vector.broadcast %115 : vector<1x128xf32> to vector<8x128xf32>
    %135 = arith.addf %133, %134 : vector<8x128xf32>
    %cst_108 = arith.constant dense<0.000000e+00> : vector<8x128xf32>
    %136 = tpu.matmul %110, %116, %cst_108 {dimension_numbers = #tpu.dot_dimension_numbers<[1], [0], [0], [1], [0, 0, 1, 1], [], []>} : vector<8x128xf32>, vector<128x128xf32>, vector<8x128xf32> -> vector<8x128xf32>
    %137 = vector.broadcast %117 : vector<1x128xf32> to vector<8x128xf32>
    %138 = arith.addf %136, %137 : vector<8x128xf32>
    %139 = vector.extract_strided_slice %132 {offsets = [0, 0], sizes = [8, 8], strides = [1, 1]} : vector<8x128xf32> to vector<8x8xf32>
    %140 = vector.extract_strided_slice %135 {offsets = [0, 0], sizes = [8, 8], strides = [1, 1]} : vector<8x128xf32> to vector<8x8xf32>
    %141 = arith.mulf %139, %140 : vector<8x8xf32>
    %cst_109 = arith.constant dense<0.000000e+00> : vector<8xf32>
    %142 = vector.multi_reduction <add>, %141, %cst_109 [1] : vector<8x8xf32> to vector<8xf32>
    %143 = vector.shape_cast %142 : vector<8xf32> to vector<8x1xf32>
    %cst_110 = arith.constant 0.353553385 : f32
    %144 = vector.broadcast %cst_110 : f32 to vector<8x1xf32>
    %145 = arith.mulf %143, %144 : vector<8x1xf32>
    %146 = vector.extract_strided_slice %135 {offsets = [0, 8], sizes = [8, 8], strides = [1, 1]} : vector<8x128xf32> to vector<8x8xf32>
    %147 = arith.mulf %139, %146 : vector<8x8xf32>
    %cst_111 = arith.constant dense<0.000000e+00> : vector<8xf32>
    %148 = vector.multi_reduction <add>, %147, %cst_111 [1] : vector<8x8xf32> to vector<8xf32>
    %149 = vector.shape_cast %148 : vector<8xf32> to vector<8x1xf32>
    %cst_112 = arith.constant 0.353553385 : f32
    %150 = vector.broadcast %cst_112 : f32 to vector<8x1xf32>
    %151 = arith.mulf %149, %150 : vector<8x1xf32>
    %152 = vector.extract_strided_slice %135 {offsets = [0, 16], sizes = [8, 8], strides = [1, 1]} : vector<8x128xf32> to vector<8x8xf32>
    %153 = arith.mulf %139, %152 : vector<8x8xf32>
    %cst_113 = arith.constant dense<0.000000e+00> : vector<8xf32>
    %154 = vector.multi_reduction <add>, %153, %cst_113 [1] : vector<8x8xf32> to vector<8xf32>
    %155 = vector.shape_cast %154 : vector<8xf32> to vector<8x1xf32>
    %cst_114 = arith.constant 0.353553385 : f32
    %156 = vector.broadcast %cst_114 : f32 to vector<8x1xf32>
    %157 = arith.mulf %155, %156 : vector<8x1xf32>
    %158 = vector.extract_strided_slice %135 {offsets = [0, 24], sizes = [8, 8], strides = [1, 1]} : vector<8x128xf32> to vector<8x8xf32>
    %159 = arith.mulf %139, %158 : vector<8x8xf32>
    %cst_115 = arith.constant dense<0.000000e+00> : vector<8xf32>
    %160 = vector.multi_reduction <add>, %159, %cst_115 [1] : vector<8x8xf32> to vector<8xf32>
    %161 = vector.shape_cast %160 : vector<8xf32> to vector<8x1xf32>
    %cst_116 = arith.constant 0.353553385 : f32
    %162 = vector.broadcast %cst_116 : f32 to vector<8x1xf32>
    %163 = arith.mulf %161, %162 : vector<8x1xf32>
    %164 = arith.maximumf %145, %151 : vector<8x1xf32>
    %165 = arith.maximumf %164, %157 : vector<8x1xf32>
    %166 = arith.maximumf %165, %163 : vector<8x1xf32>
    %167 = arith.subf %145, %166 : vector<8x1xf32>
    %168 = math.exp %167 : vector<8x1xf32>
    %169 = arith.subf %151, %166 : vector<8x1xf32>
    %170 = math.exp %169 : vector<8x1xf32>
    %171 = arith.subf %157, %166 : vector<8x1xf32>
    %172 = math.exp %171 : vector<8x1xf32>
    %173 = arith.subf %163, %166 : vector<8x1xf32>
    %174 = math.exp %173 : vector<8x1xf32>
    %175 = arith.addf %168, %170 : vector<8x1xf32>
    %176 = arith.addf %175, %172 : vector<8x1xf32>
    %177 = arith.addf %176, %174 : vector<8x1xf32>
    %178 = tpu.reciprocal %177 {approx = true} : vector<8x1xf32> -> vector<8x1xf32>
    %179 = arith.mulf %168, %178 : vector<8x1xf32>
    %180 = vector.extract_strided_slice %138 {offsets = [0, 0], sizes = [8, 8], strides = [1, 1]} : vector<8x128xf32> to vector<8x8xf32>
    %181 = vector.broadcast %179 : vector<8x1xf32> to vector<8x8xf32>
    %182 = arith.mulf %181, %180 : vector<8x8xf32>
    %183 = arith.mulf %170, %178 : vector<8x1xf32>
    %184 = vector.extract_strided_slice %138 {offsets = [0, 8], sizes = [8, 8], strides = [1, 1]} : vector<8x128xf32> to vector<8x8xf32>
    %185 = vector.broadcast %183 : vector<8x1xf32> to vector<8x8xf32>
    %186 = arith.mulf %185, %184 : vector<8x8xf32>
    %187 = arith.addf %182, %186 : vector<8x8xf32>
    %188 = arith.mulf %172, %178 : vector<8x1xf32>
    %189 = vector.extract_strided_slice %138 {offsets = [0, 16], sizes = [8, 8], strides = [1, 1]} : vector<8x128xf32> to vector<8x8xf32>
    %190 = vector.broadcast %188 : vector<8x1xf32> to vector<8x8xf32>
    %191 = arith.mulf %190, %189 : vector<8x8xf32>
    %192 = arith.addf %187, %191 : vector<8x8xf32>
    %193 = arith.mulf %174, %178 : vector<8x1xf32>
    %194 = vector.extract_strided_slice %138 {offsets = [0, 24], sizes = [8, 8], strides = [1, 1]} : vector<8x128xf32> to vector<8x8xf32>
    %195 = vector.broadcast %193 : vector<8x1xf32> to vector<8x8xf32>
    %196 = arith.mulf %195, %194 : vector<8x8xf32>
    %197 = arith.addf %192, %196 : vector<8x8xf32>
    %198 = vector.extract_strided_slice %118 {offsets = [0, 0], sizes = [8, 128], strides = [1, 1]} : vector<32x128xf32> to vector<8x128xf32>
    %cst_117 = arith.constant dense<0.000000e+00> : vector<8x128xf32>
    %199 = tpu.matmul %197, %198, %cst_117 {dimension_numbers = #tpu.dot_dimension_numbers<[1], [0], [0], [1], [0, 0, 1, 1], [], []>} : vector<8x8xf32>, vector<8x128xf32>, vector<8x128xf32> -> vector<8x128xf32>
    %200 = vector.extract_strided_slice %132 {offsets = [0, 8], sizes = [8, 8], strides = [1, 1]} : vector<8x128xf32> to vector<8x8xf32>
    %201 = vector.extract_strided_slice %135 {offsets = [0, 0], sizes = [8, 8], strides = [1, 1]} : vector<8x128xf32> to vector<8x8xf32>
    %202 = arith.mulf %200, %201 : vector<8x8xf32>
    %cst_118 = arith.constant dense<0.000000e+00> : vector<8xf32>
    %203 = vector.multi_reduction <add>, %202, %cst_118 [1] : vector<8x8xf32> to vector<8xf32>
    %204 = vector.shape_cast %203 : vector<8xf32> to vector<8x1xf32>
    %cst_119 = arith.constant 0.353553385 : f32
    %205 = vector.broadcast %cst_119 : f32 to vector<8x1xf32>
    %206 = arith.mulf %204, %205 : vector<8x1xf32>
    %207 = vector.extract_strided_slice %135 {offsets = [0, 8], sizes = [8, 8], strides = [1, 1]} : vector<8x128xf32> to vector<8x8xf32>
    %208 = arith.mulf %200, %207 : vector<8x8xf32>
    %cst_120 = arith.constant dense<0.000000e+00> : vector<8xf32>
    %209 = vector.multi_reduction <add>, %208, %cst_120 [1] : vector<8x8xf32> to vector<8xf32>
    %210 = vector.shape_cast %209 : vector<8xf32> to vector<8x1xf32>
    %cst_121 = arith.constant 0.353553385 : f32
    %211 = vector.broadcast %cst_121 : f32 to vector<8x1xf32>
    %212 = arith.mulf %210, %211 : vector<8x1xf32>
    %213 = vector.extract_strided_slice %135 {offsets = [0, 16], sizes = [8, 8], strides = [1, 1]} : vector<8x128xf32> to vector<8x8xf32>
    %214 = arith.mulf %200, %213 : vector<8x8xf32>
    %cst_122 = arith.constant dense<0.000000e+00> : vector<8xf32>
    %215 = vector.multi_reduction <add>, %214, %cst_122 [1] : vector<8x8xf32> to vector<8xf32>
    %216 = vector.shape_cast %215 : vector<8xf32> to vector<8x1xf32>
    %cst_123 = arith.constant 0.353553385 : f32
    %217 = vector.broadcast %cst_123 : f32 to vector<8x1xf32>
    %218 = arith.mulf %216, %217 : vector<8x1xf32>
    %219 = vector.extract_strided_slice %135 {offsets = [0, 24], sizes = [8, 8], strides = [1, 1]} : vector<8x128xf32> to vector<8x8xf32>
    %220 = arith.mulf %200, %219 : vector<8x8xf32>
    %cst_124 = arith.constant dense<0.000000e+00> : vector<8xf32>
    %221 = vector.multi_reduction <add>, %220, %cst_124 [1] : vector<8x8xf32> to vector<8xf32>
    %222 = vector.shape_cast %221 : vector<8xf32> to vector<8x1xf32>
    %cst_125 = arith.constant 0.353553385 : f32
    %223 = vector.broadcast %cst_125 : f32 to vector<8x1xf32>
    %224 = arith.mulf %222, %223 : vector<8x1xf32>
    %225 = arith.maximumf %206, %212 : vector<8x1xf32>
    %226 = arith.maximumf %225, %218 : vector<8x1xf32>
    %227 = arith.maximumf %226, %224 : vector<8x1xf32>
    %228 = arith.subf %206, %227 : vector<8x1xf32>
    %229 = math.exp %228 : vector<8x1xf32>
    %230 = arith.subf %212, %227 : vector<8x1xf32>
    %231 = math.exp %230 : vector<8x1xf32>
    %232 = arith.subf %218, %227 : vector<8x1xf32>
    %233 = math.exp %232 : vector<8x1xf32>
    %234 = arith.subf %224, %227 : vector<8x1xf32>
    %235 = math.exp %234 : vector<8x1xf32>
    %236 = arith.addf %229, %231 : vector<8x1xf32>
    %237 = arith.addf %236, %233 : vector<8x1xf32>
    %238 = arith.addf %237, %235 : vector<8x1xf32>
    %239 = tpu.reciprocal %238 {approx = true} : vector<8x1xf32> -> vector<8x1xf32>
    %240 = arith.mulf %229, %239 : vector<8x1xf32>
    %241 = vector.extract_strided_slice %138 {offsets = [0, 0], sizes = [8, 8], strides = [1, 1]} : vector<8x128xf32> to vector<8x8xf32>
    %242 = vector.broadcast %240 : vector<8x1xf32> to vector<8x8xf32>
    %243 = arith.mulf %242, %241 : vector<8x8xf32>
    %244 = arith.mulf %231, %239 : vector<8x1xf32>
    %245 = vector.extract_strided_slice %138 {offsets = [0, 8], sizes = [8, 8], strides = [1, 1]} : vector<8x128xf32> to vector<8x8xf32>
    %246 = vector.broadcast %244 : vector<8x1xf32> to vector<8x8xf32>
    %247 = arith.mulf %246, %245 : vector<8x8xf32>
    %248 = arith.addf %243, %247 : vector<8x8xf32>
    %249 = arith.mulf %233, %239 : vector<8x1xf32>
    %250 = vector.extract_strided_slice %138 {offsets = [0, 16], sizes = [8, 8], strides = [1, 1]} : vector<8x128xf32> to vector<8x8xf32>
    %251 = vector.broadcast %249 : vector<8x1xf32> to vector<8x8xf32>
    %252 = arith.mulf %251, %250 : vector<8x8xf32>
    %253 = arith.addf %248, %252 : vector<8x8xf32>
    %254 = arith.mulf %235, %239 : vector<8x1xf32>
    %255 = vector.extract_strided_slice %138 {offsets = [0, 24], sizes = [8, 8], strides = [1, 1]} : vector<8x128xf32> to vector<8x8xf32>
    %256 = vector.broadcast %254 : vector<8x1xf32> to vector<8x8xf32>
    %257 = arith.mulf %256, %255 : vector<8x8xf32>
    %258 = arith.addf %253, %257 : vector<8x8xf32>
    %259 = vector.extract_strided_slice %118 {offsets = [8, 0], sizes = [8, 128], strides = [1, 1]} : vector<32x128xf32> to vector<8x128xf32>
    %cst_126 = arith.constant dense<0.000000e+00> : vector<8x128xf32>
    %260 = tpu.matmul %258, %259, %cst_126 {dimension_numbers = #tpu.dot_dimension_numbers<[1], [0], [0], [1], [0, 0, 1, 1], [], []>} : vector<8x8xf32>, vector<8x128xf32>, vector<8x128xf32> -> vector<8x128xf32>
    %261 = arith.addf %199, %260 : vector<8x128xf32>
    %262 = vector.extract_strided_slice %132 {offsets = [0, 16], sizes = [8, 8], strides = [1, 1]} : vector<8x128xf32> to vector<8x8xf32>
    %263 = vector.extract_strided_slice %135 {offsets = [0, 0], sizes = [8, 8], strides = [1, 1]} : vector<8x128xf32> to vector<8x8xf32>
    %264 = arith.mulf %262, %263 : vector<8x8xf32>
    %cst_127 = arith.constant dense<0.000000e+00> : vector<8xf32>
    %265 = vector.multi_reduction <add>, %264, %cst_127 [1] : vector<8x8xf32> to vector<8xf32>
    %266 = vector.shape_cast %265 : vector<8xf32> to vector<8x1xf32>
    %cst_128 = arith.constant 0.353553385 : f32
    %267 = vector.broadcast %cst_128 : f32 to vector<8x1xf32>
    %268 = arith.mulf %266, %267 : vector<8x1xf32>
    %269 = vector.extract_strided_slice %135 {offsets = [0, 8], sizes = [8, 8], strides = [1, 1]} : vector<8x128xf32> to vector<8x8xf32>
    %270 = arith.mulf %262, %269 : vector<8x8xf32>
    %cst_129 = arith.constant dense<0.000000e+00> : vector<8xf32>
    %271 = vector.multi_reduction <add>, %270, %cst_129 [1] : vector<8x8xf32> to vector<8xf32>
    %272 = vector.shape_cast %271 : vector<8xf32> to vector<8x1xf32>
    %cst_130 = arith.constant 0.353553385 : f32
    %273 = vector.broadcast %cst_130 : f32 to vector<8x1xf32>
    %274 = arith.mulf %272, %273 : vector<8x1xf32>
    %275 = vector.extract_strided_slice %135 {offsets = [0, 16], sizes = [8, 8], strides = [1, 1]} : vector<8x128xf32> to vector<8x8xf32>
    %276 = arith.mulf %262, %275 : vector<8x8xf32>
    %cst_131 = arith.constant dense<0.000000e+00> : vector<8xf32>
    %277 = vector.multi_reduction <add>, %276, %cst_131 [1] : vector<8x8xf32> to vector<8xf32>
    %278 = vector.shape_cast %277 : vector<8xf32> to vector<8x1xf32>
    %cst_132 = arith.constant 0.353553385 : f32
    %279 = vector.broadcast %cst_132 : f32 to vector<8x1xf32>
    %280 = arith.mulf %278, %279 : vector<8x1xf32>
    %281 = vector.extract_strided_slice %135 {offsets = [0, 24], sizes = [8, 8], strides = [1, 1]} : vector<8x128xf32> to vector<8x8xf32>
    %282 = arith.mulf %262, %281 : vector<8x8xf32>
    %cst_133 = arith.constant dense<0.000000e+00> : vector<8xf32>
    %283 = vector.multi_reduction <add>, %282, %cst_133 [1] : vector<8x8xf32> to vector<8xf32>
    %284 = vector.shape_cast %283 : vector<8xf32> to vector<8x1xf32>
    %cst_134 = arith.constant 0.353553385 : f32
    %285 = vector.broadcast %cst_134 : f32 to vector<8x1xf32>
    %286 = arith.mulf %284, %285 : vector<8x1xf32>
    %287 = arith.maximumf %268, %274 : vector<8x1xf32>
    %288 = arith.maximumf %287, %280 : vector<8x1xf32>
    %289 = arith.maximumf %288, %286 : vector<8x1xf32>
    %290 = arith.subf %268, %289 : vector<8x1xf32>
    %291 = math.exp %290 : vector<8x1xf32>
    %292 = arith.subf %274, %289 : vector<8x1xf32>
    %293 = math.exp %292 : vector<8x1xf32>
    %294 = arith.subf %280, %289 : vector<8x1xf32>
    %295 = math.exp %294 : vector<8x1xf32>
    %296 = arith.subf %286, %289 : vector<8x1xf32>
    %297 = math.exp %296 : vector<8x1xf32>
    %298 = arith.addf %291, %293 : vector<8x1xf32>
    %299 = arith.addf %298, %295 : vector<8x1xf32>
    %300 = arith.addf %299, %297 : vector<8x1xf32>
    %301 = tpu.reciprocal %300 {approx = true} : vector<8x1xf32> -> vector<8x1xf32>
    %302 = arith.mulf %291, %301 : vector<8x1xf32>
    %303 = vector.extract_strided_slice %138 {offsets = [0, 0], sizes = [8, 8], strides = [1, 1]} : vector<8x128xf32> to vector<8x8xf32>
    %304 = vector.broadcast %302 : vector<8x1xf32> to vector<8x8xf32>
    %305 = arith.mulf %304, %303 : vector<8x8xf32>
    %306 = arith.mulf %293, %301 : vector<8x1xf32>
    %307 = vector.extract_strided_slice %138 {offsets = [0, 8], sizes = [8, 8], strides = [1, 1]} : vector<8x128xf32> to vector<8x8xf32>
    %308 = vector.broadcast %306 : vector<8x1xf32> to vector<8x8xf32>
    %309 = arith.mulf %308, %307 : vector<8x8xf32>
    %310 = arith.addf %305, %309 : vector<8x8xf32>
    %311 = arith.mulf %295, %301 : vector<8x1xf32>
    %312 = vector.extract_strided_slice %138 {offsets = [0, 16], sizes = [8, 8], strides = [1, 1]} : vector<8x128xf32> to vector<8x8xf32>
    %313 = vector.broadcast %311 : vector<8x1xf32> to vector<8x8xf32>
    %314 = arith.mulf %313, %312 : vector<8x8xf32>
    %315 = arith.addf %310, %314 : vector<8x8xf32>
    %316 = arith.mulf %297, %301 : vector<8x1xf32>
    %317 = vector.extract_strided_slice %138 {offsets = [0, 24], sizes = [8, 8], strides = [1, 1]} : vector<8x128xf32> to vector<8x8xf32>
    %318 = vector.broadcast %316 : vector<8x1xf32> to vector<8x8xf32>
    %319 = arith.mulf %318, %317 : vector<8x8xf32>
    %320 = arith.addf %315, %319 : vector<8x8xf32>
    %321 = vector.extract_strided_slice %118 {offsets = [16, 0], sizes = [8, 128], strides = [1, 1]} : vector<32x128xf32> to vector<8x128xf32>
    %cst_135 = arith.constant dense<0.000000e+00> : vector<8x128xf32>
    %322 = tpu.matmul %320, %321, %cst_135 {dimension_numbers = #tpu.dot_dimension_numbers<[1], [0], [0], [1], [0, 0, 1, 1], [], []>} : vector<8x8xf32>, vector<8x128xf32>, vector<8x128xf32> -> vector<8x128xf32>
    %323 = arith.addf %261, %322 : vector<8x128xf32>
    %324 = vector.extract_strided_slice %132 {offsets = [0, 24], sizes = [8, 8], strides = [1, 1]} : vector<8x128xf32> to vector<8x8xf32>
    %325 = vector.extract_strided_slice %135 {offsets = [0, 0], sizes = [8, 8], strides = [1, 1]} : vector<8x128xf32> to vector<8x8xf32>
    %326 = arith.mulf %324, %325 : vector<8x8xf32>
    %cst_136 = arith.constant dense<0.000000e+00> : vector<8xf32>
    %327 = vector.multi_reduction <add>, %326, %cst_136 [1] : vector<8x8xf32> to vector<8xf32>
    %328 = vector.shape_cast %327 : vector<8xf32> to vector<8x1xf32>
    %cst_137 = arith.constant 0.353553385 : f32
    %329 = vector.broadcast %cst_137 : f32 to vector<8x1xf32>
    %330 = arith.mulf %328, %329 : vector<8x1xf32>
    %331 = vector.extract_strided_slice %135 {offsets = [0, 8], sizes = [8, 8], strides = [1, 1]} : vector<8x128xf32> to vector<8x8xf32>
    %332 = arith.mulf %324, %331 : vector<8x8xf32>
    %cst_138 = arith.constant dense<0.000000e+00> : vector<8xf32>
    %333 = vector.multi_reduction <add>, %332, %cst_138 [1] : vector<8x8xf32> to vector<8xf32>
    %334 = vector.shape_cast %333 : vector<8xf32> to vector<8x1xf32>
    %cst_139 = arith.constant 0.353553385 : f32
    %335 = vector.broadcast %cst_139 : f32 to vector<8x1xf32>
    %336 = arith.mulf %334, %335 : vector<8x1xf32>
    %337 = vector.extract_strided_slice %135 {offsets = [0, 16], sizes = [8, 8], strides = [1, 1]} : vector<8x128xf32> to vector<8x8xf32>
    %338 = arith.mulf %324, %337 : vector<8x8xf32>
    %cst_140 = arith.constant dense<0.000000e+00> : vector<8xf32>
    %339 = vector.multi_reduction <add>, %338, %cst_140 [1] : vector<8x8xf32> to vector<8xf32>
    %340 = vector.shape_cast %339 : vector<8xf32> to vector<8x1xf32>
    %cst_141 = arith.constant 0.353553385 : f32
    %341 = vector.broadcast %cst_141 : f32 to vector<8x1xf32>
    %342 = arith.mulf %340, %341 : vector<8x1xf32>
    %343 = vector.extract_strided_slice %135 {offsets = [0, 24], sizes = [8, 8], strides = [1, 1]} : vector<8x128xf32> to vector<8x8xf32>
    %344 = arith.mulf %324, %343 : vector<8x8xf32>
    %cst_142 = arith.constant dense<0.000000e+00> : vector<8xf32>
    %345 = vector.multi_reduction <add>, %344, %cst_142 [1] : vector<8x8xf32> to vector<8xf32>
    %346 = vector.shape_cast %345 : vector<8xf32> to vector<8x1xf32>
    %cst_143 = arith.constant 0.353553385 : f32
    %347 = vector.broadcast %cst_143 : f32 to vector<8x1xf32>
    %348 = arith.mulf %346, %347 : vector<8x1xf32>
    %349 = arith.maximumf %330, %336 : vector<8x1xf32>
    %350 = arith.maximumf %349, %342 : vector<8x1xf32>
    %351 = arith.maximumf %350, %348 : vector<8x1xf32>
    %352 = arith.subf %330, %351 : vector<8x1xf32>
    %353 = math.exp %352 : vector<8x1xf32>
    %354 = arith.subf %336, %351 : vector<8x1xf32>
    %355 = math.exp %354 : vector<8x1xf32>
    %356 = arith.subf %342, %351 : vector<8x1xf32>
    %357 = math.exp %356 : vector<8x1xf32>
    %358 = arith.subf %348, %351 : vector<8x1xf32>
    %359 = math.exp %358 : vector<8x1xf32>
    %360 = arith.addf %353, %355 : vector<8x1xf32>
    %361 = arith.addf %360, %357 : vector<8x1xf32>
    %362 = arith.addf %361, %359 : vector<8x1xf32>
    %363 = tpu.reciprocal %362 {approx = true} : vector<8x1xf32> -> vector<8x1xf32>
    %364 = arith.mulf %353, %363 : vector<8x1xf32>
    %365 = vector.extract_strided_slice %138 {offsets = [0, 0], sizes = [8, 8], strides = [1, 1]} : vector<8x128xf32> to vector<8x8xf32>
    %366 = vector.broadcast %364 : vector<8x1xf32> to vector<8x8xf32>
    %367 = arith.mulf %366, %365 : vector<8x8xf32>
    %368 = arith.mulf %355, %363 : vector<8x1xf32>
    %369 = vector.extract_strided_slice %138 {offsets = [0, 8], sizes = [8, 8], strides = [1, 1]} : vector<8x128xf32> to vector<8x8xf32>
    %370 = vector.broadcast %368 : vector<8x1xf32> to vector<8x8xf32>
    %371 = arith.mulf %370, %369 : vector<8x8xf32>
    %372 = arith.addf %367, %371 : vector<8x8xf32>
    %373 = arith.mulf %357, %363 : vector<8x1xf32>
    %374 = vector.extract_strided_slice %138 {offsets = [0, 16], sizes = [8, 8], strides = [1, 1]} : vector<8x128xf32> to vector<8x8xf32>
    %375 = vector.broadcast %373 : vector<8x1xf32> to vector<8x8xf32>
    %376 = arith.mulf %375, %374 : vector<8x8xf32>
    %377 = arith.addf %372, %376 : vector<8x8xf32>
    %378 = arith.mulf %359, %363 : vector<8x1xf32>
    %379 = vector.extract_strided_slice %138 {offsets = [0, 24], sizes = [8, 8], strides = [1, 1]} : vector<8x128xf32> to vector<8x8xf32>
    %380 = vector.broadcast %378 : vector<8x1xf32> to vector<8x8xf32>
    %381 = arith.mulf %380, %379 : vector<8x8xf32>
    %382 = arith.addf %377, %381 : vector<8x8xf32>
    %383 = vector.extract_strided_slice %118 {offsets = [24, 0], sizes = [8, 128], strides = [1, 1]} : vector<32x128xf32> to vector<8x128xf32>
    %cst_144 = arith.constant dense<0.000000e+00> : vector<8x128xf32>
    %384 = tpu.matmul %382, %383, %cst_144 {dimension_numbers = #tpu.dot_dimension_numbers<[1], [0], [0], [1], [0, 0, 1, 1], [], []>} : vector<8x8xf32>, vector<8x128xf32>, vector<8x128xf32> -> vector<8x128xf32>
    %385 = arith.addf %323, %384 : vector<8x128xf32>
    %386 = vector.broadcast %119 : vector<1x128xf32> to vector<8x128xf32>
    %387 = arith.addf %385, %386 : vector<8x128xf32>
    %388 = arith.addf %110, %387 : vector<8x128xf32>
    %cst_145 = arith.constant dense<0.000000e+00> : vector<8x128xf32>
    %389 = tpu.matmul %388, %111, %cst_145 {dimension_numbers = #tpu.dot_dimension_numbers<[1], [0], [0], [1], [0, 0, 1, 1], [], []>} : vector<8x128xf32>, vector<128x128xf32>, vector<8x128xf32> -> vector<8x128xf32>
    %390 = arith.subf %388, %389 : vector<8x128xf32>
    %391 = arith.mulf %390, %390 : vector<8x128xf32>
    %cst_146 = arith.constant dense<0.000000e+00> : vector<8x128xf32>
    %392 = tpu.matmul %391, %111, %cst_146 {dimension_numbers = #tpu.dot_dimension_numbers<[1], [0], [0], [1], [0, 0, 1, 1], [], []>} : vector<8x128xf32>, vector<128x128xf32>, vector<8x128xf32> -> vector<8x128xf32>
    %cst_147 = arith.constant 9.99999974E-6 : f32
    %393 = vector.broadcast %cst_147 : f32 to vector<8x128xf32>
    %394 = arith.addf %392, %393 : vector<8x128xf32>
    %395 = math.rsqrt %394 : vector<8x128xf32>
    %396 = arith.mulf %390, %395 : vector<8x128xf32>
    %397 = vector.broadcast %120 : vector<1x128xf32> to vector<8x128xf32>
    %398 = arith.mulf %396, %397 : vector<8x128xf32>
    %399 = vector.broadcast %121 : vector<1x128xf32> to vector<8x128xf32>
    %400 = arith.addf %398, %399 : vector<8x128xf32>
    %cst_148 = arith.constant dense<0.000000e+00> : vector<8x128xf32>
    %401 = tpu.matmul %400, %122, %cst_148 {dimension_numbers = #tpu.dot_dimension_numbers<[1], [0], [0], [1], [0, 0, 1, 1], [], []>} : vector<8x128xf32>, vector<128x128xf32>, vector<8x128xf32> -> vector<8x128xf32>
    %402 = vector.broadcast %123 : vector<1x128xf32> to vector<8x128xf32>
    %403 = arith.addf %401, %402 : vector<8x128xf32>
    %cst_149 = arith.constant 0.000000e+00 : f32
    %404 = vector.broadcast %cst_149 : f32 to vector<8x128xf32>
    %405 = arith.maximumf %403, %404 : vector<8x128xf32>
    %cst_150 = arith.constant dense<0.000000e+00> : vector<8x128xf32>
    %406 = tpu.matmul %405, %124, %cst_150 {dimension_numbers = #tpu.dot_dimension_numbers<[1], [0], [0], [1], [0, 0, 1, 1], [], []>} : vector<8x128xf32>, vector<128x128xf32>, vector<8x128xf32> -> vector<8x128xf32>
    %407 = vector.broadcast %125 : vector<1x128xf32> to vector<8x128xf32>
    %408 = arith.addf %406, %407 : vector<8x128xf32>
    %409 = arith.addf %400, %408 : vector<8x128xf32>
    %cst_151 = arith.constant dense<0.000000e+00> : vector<8x128xf32>
    %410 = tpu.matmul %409, %111, %cst_151 {dimension_numbers = #tpu.dot_dimension_numbers<[1], [0], [0], [1], [0, 0, 1, 1], [], []>} : vector<8x128xf32>, vector<128x128xf32>, vector<8x128xf32> -> vector<8x128xf32>
    %411 = arith.subf %409, %410 : vector<8x128xf32>
    %412 = arith.mulf %411, %411 : vector<8x128xf32>
    %cst_152 = arith.constant dense<0.000000e+00> : vector<8x128xf32>
    %413 = tpu.matmul %412, %111, %cst_152 {dimension_numbers = #tpu.dot_dimension_numbers<[1], [0], [0], [1], [0, 0, 1, 1], [], []>} : vector<8x128xf32>, vector<128x128xf32>, vector<8x128xf32> -> vector<8x128xf32>
    %cst_153 = arith.constant 9.99999974E-6 : f32
    %414 = vector.broadcast %cst_153 : f32 to vector<8x128xf32>
    %415 = arith.addf %413, %414 : vector<8x128xf32>
    %416 = math.rsqrt %415 : vector<8x128xf32>
    %417 = arith.mulf %411, %416 : vector<8x128xf32>
    %418 = vector.broadcast %126 : vector<1x128xf32> to vector<8x128xf32>
    %419 = arith.mulf %417, %418 : vector<8x128xf32>
    %420 = vector.broadcast %127 : vector<1x128xf32> to vector<8x128xf32>
    %421 = arith.addf %419, %420 : vector<8x128xf32>
    %cst_154 = arith.constant 0.000000e+00 : f32
    %422 = vector.broadcast %cst_154 : f32 to vector<1x128xf32>
    %423 = arith.subf %422, %128 : vector<1x128xf32>
    %424 = vector.broadcast %423 : vector<1x128xf32> to vector<8x128xf32>
    %425 = arith.mulf %424, %421 : vector<8x128xf32>
    %426 = math.exp %425 : vector<8x128xf32>
    %cst_155 = arith.constant 1.000000e+00 : f32
    %427 = vector.broadcast %cst_155 : f32 to vector<8x128xf32>
    %428 = arith.addf %427, %426 : vector<8x128xf32>
    %429 = tpu.reciprocal %428 {approx = true} : vector<8x128xf32> -> vector<8x128xf32>
    %cst_156 = arith.constant 1.000000e+00 : f32
    %430 = vector.broadcast %cst_156 : f32 to vector<1x128xf32>
    %431 = arith.subf %430, %129 : vector<1x128xf32>
    %432 = vector.broadcast %431 : vector<1x128xf32> to vector<8x128xf32>
    %433 = arith.mulf %429, %432 : vector<8x128xf32>
    %434 = vector.broadcast %129 : vector<1x128xf32> to vector<8x128xf32>
    %435 = arith.addf %434, %433 : vector<8x128xf32>
    %436 = arith.mulf %435, %421 : vector<8x128xf32>
    %c0_157 = arith.constant 0 : index
    %c0_158 = arith.constant 0 : index
    %437 = vector.load %arg45[%c0_157, %c0_158] : memref<128x128xf32, #tpu.memory_space<vmem>>, vector<128x128xf32>
    %c0_159 = arith.constant 0 : index
    %c0_160 = arith.constant 0 : index
    %438 = vector.load %arg46[%c0_159, %c0_160] : memref<1x128xf32, #tpu.memory_space<vmem>>, vector<1x128xf32>
    %c0_161 = arith.constant 0 : index
    %c0_162 = arith.constant 0 : index
    %439 = vector.load %arg47[%c0_161, %c0_162] : memref<128x128xf32, #tpu.memory_space<vmem>>, vector<128x128xf32>
    %c0_163 = arith.constant 0 : index
    %c0_164 = arith.constant 0 : index
    %440 = vector.load %arg48[%c0_163, %c0_164] : memref<1x128xf32, #tpu.memory_space<vmem>>, vector<1x128xf32>
    %c0_165 = arith.constant 0 : index
    %c0_166 = arith.constant 0 : index
    %441 = vector.load %arg49[%c0_165, %c0_166] : memref<128x128xf32, #tpu.memory_space<vmem>>, vector<128x128xf32>
    %c0_167 = arith.constant 0 : index
    %c0_168 = arith.constant 0 : index
    %442 = vector.load %arg50[%c0_167, %c0_168] : memref<1x128xf32, #tpu.memory_space<vmem>>, vector<1x128xf32>
    %c0_169 = arith.constant 0 : index
    %c0_170 = arith.constant 0 : index
    %443 = vector.load %arg51[%c0_169, %c0_170] : memref<32x128xf32, #tpu.memory_space<vmem>>, vector<32x128xf32>
    %c0_171 = arith.constant 0 : index
    %c0_172 = arith.constant 0 : index
    %444 = vector.load %arg52[%c0_171, %c0_172] : memref<1x128xf32, #tpu.memory_space<vmem>>, vector<1x128xf32>
    %c0_173 = arith.constant 0 : index
    %c0_174 = arith.constant 0 : index
    %445 = vector.load %arg53[%c0_173, %c0_174] : memref<1x128xf32, #tpu.memory_space<vmem>>, vector<1x128xf32>
    %c0_175 = arith.constant 0 : index
    %c0_176 = arith.constant 0 : index
    %446 = vector.load %arg54[%c0_175, %c0_176] : memref<1x128xf32, #tpu.memory_space<vmem>>, vector<1x128xf32>
    %c0_177 = arith.constant 0 : index
    %c0_178 = arith.constant 0 : index
    %447 = vector.load %arg55[%c0_177, %c0_178] : memref<128x128xf32, #tpu.memory_space<vmem>>, vector<128x128xf32>
    %c0_179 = arith.constant 0 : index
    %c0_180 = arith.constant 0 : index
    %448 = vector.load %arg56[%c0_179, %c0_180] : memref<1x128xf32, #tpu.memory_space<vmem>>, vector<1x128xf32>
    %c0_181 = arith.constant 0 : index
    %c0_182 = arith.constant 0 : index
    %449 = vector.load %arg57[%c0_181, %c0_182] : memref<128x128xf32, #tpu.memory_space<vmem>>, vector<128x128xf32>
    %c0_183 = arith.constant 0 : index
    %c0_184 = arith.constant 0 : index
    %450 = vector.load %arg58[%c0_183, %c0_184] : memref<1x128xf32, #tpu.memory_space<vmem>>, vector<1x128xf32>
    %c0_185 = arith.constant 0 : index
    %c0_186 = arith.constant 0 : index
    %451 = vector.load %arg59[%c0_185, %c0_186] : memref<1x128xf32, #tpu.memory_space<vmem>>, vector<1x128xf32>
    %c0_187 = arith.constant 0 : index
    %c0_188 = arith.constant 0 : index
    %452 = vector.load %arg60[%c0_187, %c0_188] : memref<1x128xf32, #tpu.memory_space<vmem>>, vector<1x128xf32>
    %c0_189 = arith.constant 0 : index
    %c0_190 = arith.constant 0 : index
    %453 = vector.load %arg61[%c0_189, %c0_190] : memref<1x128xf32, #tpu.memory_space<vmem>>, vector<1x128xf32>
    %c0_191 = arith.constant 0 : index
    %c0_192 = arith.constant 0 : index
    %454 = vector.load %arg62[%c0_191, %c0_192] : memref<1x128xf32, #tpu.memory_space<vmem>>, vector<1x128xf32>
    %cst_193 = arith.constant dense<0.000000e+00> : vector<8x128xf32>
    %455 = tpu.matmul %436, %437, %cst_193 {dimension_numbers = #tpu.dot_dimension_numbers<[1], [0], [0], [1], [0, 0, 1, 1], [], []>} : vector<8x128xf32>, vector<128x128xf32>, vector<8x128xf32> -> vector<8x128xf32>
    %456 = vector.broadcast %438 : vector<1x128xf32> to vector<8x128xf32>
    %457 = arith.addf %455, %456 : vector<8x128xf32>
    %cst_194 = arith.constant dense<0.000000e+00> : vector<8x128xf32>
    %458 = tpu.matmul %436, %439, %cst_194 {dimension_numbers = #tpu.dot_dimension_numbers<[1], [0], [0], [1], [0, 0, 1, 1], [], []>} : vector<8x128xf32>, vector<128x128xf32>, vector<8x128xf32> -> vector<8x128xf32>
    %459 = vector.broadcast %440 : vector<1x128xf32> to vector<8x128xf32>
    %460 = arith.addf %458, %459 : vector<8x128xf32>
    %cst_195 = arith.constant dense<0.000000e+00> : vector<8x128xf32>
    %461 = tpu.matmul %436, %441, %cst_195 {dimension_numbers = #tpu.dot_dimension_numbers<[1], [0], [0], [1], [0, 0, 1, 1], [], []>} : vector<8x128xf32>, vector<128x128xf32>, vector<8x128xf32> -> vector<8x128xf32>
    %462 = vector.broadcast %442 : vector<1x128xf32> to vector<8x128xf32>
    %463 = arith.addf %461, %462 : vector<8x128xf32>
    %464 = vector.extract_strided_slice %457 {offsets = [0, 0], sizes = [8, 8], strides = [1, 1]} : vector<8x128xf32> to vector<8x8xf32>
    %465 = vector.extract_strided_slice %460 {offsets = [0, 0], sizes = [8, 8], strides = [1, 1]} : vector<8x128xf32> to vector<8x8xf32>
    %466 = arith.mulf %464, %465 : vector<8x8xf32>
    %cst_196 = arith.constant dense<0.000000e+00> : vector<8xf32>
    %467 = vector.multi_reduction <add>, %466, %cst_196 [1] : vector<8x8xf32> to vector<8xf32>
    %468 = vector.shape_cast %467 : vector<8xf32> to vector<8x1xf32>
    %cst_197 = arith.constant 0.353553385 : f32
    %469 = vector.broadcast %cst_197 : f32 to vector<8x1xf32>
    %470 = arith.mulf %468, %469 : vector<8x1xf32>
    %471 = vector.extract_strided_slice %460 {offsets = [0, 8], sizes = [8, 8], strides = [1, 1]} : vector<8x128xf32> to vector<8x8xf32>
    %472 = arith.mulf %464, %471 : vector<8x8xf32>
    %cst_198 = arith.constant dense<0.000000e+00> : vector<8xf32>
    %473 = vector.multi_reduction <add>, %472, %cst_198 [1] : vector<8x8xf32> to vector<8xf32>
    %474 = vector.shape_cast %473 : vector<8xf32> to vector<8x1xf32>
    %cst_199 = arith.constant 0.353553385 : f32
    %475 = vector.broadcast %cst_199 : f32 to vector<8x1xf32>
    %476 = arith.mulf %474, %475 : vector<8x1xf32>
    %477 = vector.extract_strided_slice %460 {offsets = [0, 16], sizes = [8, 8], strides = [1, 1]} : vector<8x128xf32> to vector<8x8xf32>
    %478 = arith.mulf %464, %477 : vector<8x8xf32>
    %cst_200 = arith.constant dense<0.000000e+00> : vector<8xf32>
    %479 = vector.multi_reduction <add>, %478, %cst_200 [1] : vector<8x8xf32> to vector<8xf32>
    %480 = vector.shape_cast %479 : vector<8xf32> to vector<8x1xf32>
    %cst_201 = arith.constant 0.353553385 : f32
    %481 = vector.broadcast %cst_201 : f32 to vector<8x1xf32>
    %482 = arith.mulf %480, %481 : vector<8x1xf32>
    %483 = vector.extract_strided_slice %460 {offsets = [0, 24], sizes = [8, 8], strides = [1, 1]} : vector<8x128xf32> to vector<8x8xf32>
    %484 = arith.mulf %464, %483 : vector<8x8xf32>
    %cst_202 = arith.constant dense<0.000000e+00> : vector<8xf32>
    %485 = vector.multi_reduction <add>, %484, %cst_202 [1] : vector<8x8xf32> to vector<8xf32>
    %486 = vector.shape_cast %485 : vector<8xf32> to vector<8x1xf32>
    %cst_203 = arith.constant 0.353553385 : f32
    %487 = vector.broadcast %cst_203 : f32 to vector<8x1xf32>
    %488 = arith.mulf %486, %487 : vector<8x1xf32>
    %489 = arith.maximumf %470, %476 : vector<8x1xf32>
    %490 = arith.maximumf %489, %482 : vector<8x1xf32>
    %491 = arith.maximumf %490, %488 : vector<8x1xf32>
    %492 = arith.subf %470, %491 : vector<8x1xf32>
    %493 = math.exp %492 : vector<8x1xf32>
    %494 = arith.subf %476, %491 : vector<8x1xf32>
    %495 = math.exp %494 : vector<8x1xf32>
    %496 = arith.subf %482, %491 : vector<8x1xf32>
    %497 = math.exp %496 : vector<8x1xf32>
    %498 = arith.subf %488, %491 : vector<8x1xf32>
    %499 = math.exp %498 : vector<8x1xf32>
    %500 = arith.addf %493, %495 : vector<8x1xf32>
    %501 = arith.addf %500, %497 : vector<8x1xf32>
    %502 = arith.addf %501, %499 : vector<8x1xf32>
    %503 = tpu.reciprocal %502 {approx = true} : vector<8x1xf32> -> vector<8x1xf32>
    %504 = arith.mulf %493, %503 : vector<8x1xf32>
    %505 = vector.extract_strided_slice %463 {offsets = [0, 0], sizes = [8, 8], strides = [1, 1]} : vector<8x128xf32> to vector<8x8xf32>
    %506 = vector.broadcast %504 : vector<8x1xf32> to vector<8x8xf32>
    %507 = arith.mulf %506, %505 : vector<8x8xf32>
    %508 = arith.mulf %495, %503 : vector<8x1xf32>
    %509 = vector.extract_strided_slice %463 {offsets = [0, 8], sizes = [8, 8], strides = [1, 1]} : vector<8x128xf32> to vector<8x8xf32>
    %510 = vector.broadcast %508 : vector<8x1xf32> to vector<8x8xf32>
    %511 = arith.mulf %510, %509 : vector<8x8xf32>
    %512 = arith.addf %507, %511 : vector<8x8xf32>
    %513 = arith.mulf %497, %503 : vector<8x1xf32>
    %514 = vector.extract_strided_slice %463 {offsets = [0, 16], sizes = [8, 8], strides = [1, 1]} : vector<8x128xf32> to vector<8x8xf32>
    %515 = vector.broadcast %513 : vector<8x1xf32> to vector<8x8xf32>
    %516 = arith.mulf %515, %514 : vector<8x8xf32>
    %517 = arith.addf %512, %516 : vector<8x8xf32>
    %518 = arith.mulf %499, %503 : vector<8x1xf32>
    %519 = vector.extract_strided_slice %463 {offsets = [0, 24], sizes = [8, 8], strides = [1, 1]} : vector<8x128xf32> to vector<8x8xf32>
    %520 = vector.broadcast %518 : vector<8x1xf32> to vector<8x8xf32>
    %521 = arith.mulf %520, %519 : vector<8x8xf32>
    %522 = arith.addf %517, %521 : vector<8x8xf32>
    %523 = vector.extract_strided_slice %443 {offsets = [0, 0], sizes = [8, 128], strides = [1, 1]} : vector<32x128xf32> to vector<8x128xf32>
    %cst_204 = arith.constant dense<0.000000e+00> : vector<8x128xf32>
    %524 = tpu.matmul %522, %523, %cst_204 {dimension_numbers = #tpu.dot_dimension_numbers<[1], [0], [0], [1], [0, 0, 1, 1], [], []>} : vector<8x8xf32>, vector<8x128xf32>, vector<8x128xf32> -> vector<8x128xf32>
    %525 = vector.extract_strided_slice %457 {offsets = [0, 8], sizes = [8, 8], strides = [1, 1]} : vector<8x128xf32> to vector<8x8xf32>
    %526 = vector.extract_strided_slice %460 {offsets = [0, 0], sizes = [8, 8], strides = [1, 1]} : vector<8x128xf32> to vector<8x8xf32>
    %527 = arith.mulf %525, %526 : vector<8x8xf32>
    %cst_205 = arith.constant dense<0.000000e+00> : vector<8xf32>
    %528 = vector.multi_reduction <add>, %527, %cst_205 [1] : vector<8x8xf32> to vector<8xf32>
    %529 = vector.shape_cast %528 : vector<8xf32> to vector<8x1xf32>
    %cst_206 = arith.constant 0.353553385 : f32
    %530 = vector.broadcast %cst_206 : f32 to vector<8x1xf32>
    %531 = arith.mulf %529, %530 : vector<8x1xf32>
    %532 = vector.extract_strided_slice %460 {offsets = [0, 8], sizes = [8, 8], strides = [1, 1]} : vector<8x128xf32> to vector<8x8xf32>
    %533 = arith.mulf %525, %532 : vector<8x8xf32>
    %cst_207 = arith.constant dense<0.000000e+00> : vector<8xf32>
    %534 = vector.multi_reduction <add>, %533, %cst_207 [1] : vector<8x8xf32> to vector<8xf32>
    %535 = vector.shape_cast %534 : vector<8xf32> to vector<8x1xf32>
    %cst_208 = arith.constant 0.353553385 : f32
    %536 = vector.broadcast %cst_208 : f32 to vector<8x1xf32>
    %537 = arith.mulf %535, %536 : vector<8x1xf32>
    %538 = vector.extract_strided_slice %460 {offsets = [0, 16], sizes = [8, 8], strides = [1, 1]} : vector<8x128xf32> to vector<8x8xf32>
    %539 = arith.mulf %525, %538 : vector<8x8xf32>
    %cst_209 = arith.constant dense<0.000000e+00> : vector<8xf32>
    %540 = vector.multi_reduction <add>, %539, %cst_209 [1] : vector<8x8xf32> to vector<8xf32>
    %541 = vector.shape_cast %540 : vector<8xf32> to vector<8x1xf32>
    %cst_210 = arith.constant 0.353553385 : f32
    %542 = vector.broadcast %cst_210 : f32 to vector<8x1xf32>
    %543 = arith.mulf %541, %542 : vector<8x1xf32>
    %544 = vector.extract_strided_slice %460 {offsets = [0, 24], sizes = [8, 8], strides = [1, 1]} : vector<8x128xf32> to vector<8x8xf32>
    %545 = arith.mulf %525, %544 : vector<8x8xf32>
    %cst_211 = arith.constant dense<0.000000e+00> : vector<8xf32>
    %546 = vector.multi_reduction <add>, %545, %cst_211 [1] : vector<8x8xf32> to vector<8xf32>
    %547 = vector.shape_cast %546 : vector<8xf32> to vector<8x1xf32>
    %cst_212 = arith.constant 0.353553385 : f32
    %548 = vector.broadcast %cst_212 : f32 to vector<8x1xf32>
    %549 = arith.mulf %547, %548 : vector<8x1xf32>
    %550 = arith.maximumf %531, %537 : vector<8x1xf32>
    %551 = arith.maximumf %550, %543 : vector<8x1xf32>
    %552 = arith.maximumf %551, %549 : vector<8x1xf32>
    %553 = arith.subf %531, %552 : vector<8x1xf32>
    %554 = math.exp %553 : vector<8x1xf32>
    %555 = arith.subf %537, %552 : vector<8x1xf32>
    %556 = math.exp %555 : vector<8x1xf32>
    %557 = arith.subf %543, %552 : vector<8x1xf32>
    %558 = math.exp %557 : vector<8x1xf32>
    %559 = arith.subf %549, %552 : vector<8x1xf32>
    %560 = math.exp %559 : vector<8x1xf32>
    %561 = arith.addf %554, %556 : vector<8x1xf32>
    %562 = arith.addf %561, %558 : vector<8x1xf32>
    %563 = arith.addf %562, %560 : vector<8x1xf32>
    %564 = tpu.reciprocal %563 {approx = true} : vector<8x1xf32> -> vector<8x1xf32>
    %565 = arith.mulf %554, %564 : vector<8x1xf32>
    %566 = vector.extract_strided_slice %463 {offsets = [0, 0], sizes = [8, 8], strides = [1, 1]} : vector<8x128xf32> to vector<8x8xf32>
    %567 = vector.broadcast %565 : vector<8x1xf32> to vector<8x8xf32>
    %568 = arith.mulf %567, %566 : vector<8x8xf32>
    %569 = arith.mulf %556, %564 : vector<8x1xf32>
    %570 = vector.extract_strided_slice %463 {offsets = [0, 8], sizes = [8, 8], strides = [1, 1]} : vector<8x128xf32> to vector<8x8xf32>
    %571 = vector.broadcast %569 : vector<8x1xf32> to vector<8x8xf32>
    %572 = arith.mulf %571, %570 : vector<8x8xf32>
    %573 = arith.addf %568, %572 : vector<8x8xf32>
    %574 = arith.mulf %558, %564 : vector<8x1xf32>
    %575 = vector.extract_strided_slice %463 {offsets = [0, 16], sizes = [8, 8], strides = [1, 1]} : vector<8x128xf32> to vector<8x8xf32>
    %576 = vector.broadcast %574 : vector<8x1xf32> to vector<8x8xf32>
    %577 = arith.mulf %576, %575 : vector<8x8xf32>
    %578 = arith.addf %573, %577 : vector<8x8xf32>
    %579 = arith.mulf %560, %564 : vector<8x1xf32>
    %580 = vector.extract_strided_slice %463 {offsets = [0, 24], sizes = [8, 8], strides = [1, 1]} : vector<8x128xf32> to vector<8x8xf32>
    %581 = vector.broadcast %579 : vector<8x1xf32> to vector<8x8xf32>
    %582 = arith.mulf %581, %580 : vector<8x8xf32>
    %583 = arith.addf %578, %582 : vector<8x8xf32>
    %584 = vector.extract_strided_slice %443 {offsets = [8, 0], sizes = [8, 128], strides = [1, 1]} : vector<32x128xf32> to vector<8x128xf32>
    %cst_213 = arith.constant dense<0.000000e+00> : vector<8x128xf32>
    %585 = tpu.matmul %583, %584, %cst_213 {dimension_numbers = #tpu.dot_dimension_numbers<[1], [0], [0], [1], [0, 0, 1, 1], [], []>} : vector<8x8xf32>, vector<8x128xf32>, vector<8x128xf32> -> vector<8x128xf32>
    %586 = arith.addf %524, %585 : vector<8x128xf32>
    %587 = vector.extract_strided_slice %457 {offsets = [0, 16], sizes = [8, 8], strides = [1, 1]} : vector<8x128xf32> to vector<8x8xf32>
    %588 = vector.extract_strided_slice %460 {offsets = [0, 0], sizes = [8, 8], strides = [1, 1]} : vector<8x128xf32> to vector<8x8xf32>
    %589 = arith.mulf %587, %588 : vector<8x8xf32>
    %cst_214 = arith.constant dense<0.000000e+00> : vector<8xf32>
    %590 = vector.multi_reduction <add>, %589, %cst_214 [1] : vector<8x8xf32> to vector<8xf32>
    %591 = vector.shape_cast %590 : vector<8xf32> to vector<8x1xf32>
    %cst_215 = arith.constant 0.353553385 : f32
    %592 = vector.broadcast %cst_215 : f32 to vector<8x1xf32>
    %593 = arith.mulf %591, %592 : vector<8x1xf32>
    %594 = vector.extract_strided_slice %460 {offsets = [0, 8], sizes = [8, 8], strides = [1, 1]} : vector<8x128xf32> to vector<8x8xf32>
    %595 = arith.mulf %587, %594 : vector<8x8xf32>
    %cst_216 = arith.constant dense<0.000000e+00> : vector<8xf32>
    %596 = vector.multi_reduction <add>, %595, %cst_216 [1] : vector<8x8xf32> to vector<8xf32>
    %597 = vector.shape_cast %596 : vector<8xf32> to vector<8x1xf32>
    %cst_217 = arith.constant 0.353553385 : f32
    %598 = vector.broadcast %cst_217 : f32 to vector<8x1xf32>
    %599 = arith.mulf %597, %598 : vector<8x1xf32>
    %600 = vector.extract_strided_slice %460 {offsets = [0, 16], sizes = [8, 8], strides = [1, 1]} : vector<8x128xf32> to vector<8x8xf32>
    %601 = arith.mulf %587, %600 : vector<8x8xf32>
    %cst_218 = arith.constant dense<0.000000e+00> : vector<8xf32>
    %602 = vector.multi_reduction <add>, %601, %cst_218 [1] : vector<8x8xf32> to vector<8xf32>
    %603 = vector.shape_cast %602 : vector<8xf32> to vector<8x1xf32>
    %cst_219 = arith.constant 0.353553385 : f32
    %604 = vector.broadcast %cst_219 : f32 to vector<8x1xf32>
    %605 = arith.mulf %603, %604 : vector<8x1xf32>
    %606 = vector.extract_strided_slice %460 {offsets = [0, 24], sizes = [8, 8], strides = [1, 1]} : vector<8x128xf32> to vector<8x8xf32>
    %607 = arith.mulf %587, %606 : vector<8x8xf32>
    %cst_220 = arith.constant dense<0.000000e+00> : vector<8xf32>
    %608 = vector.multi_reduction <add>, %607, %cst_220 [1] : vector<8x8xf32> to vector<8xf32>
    %609 = vector.shape_cast %608 : vector<8xf32> to vector<8x1xf32>
    %cst_221 = arith.constant 0.353553385 : f32
    %610 = vector.broadcast %cst_221 : f32 to vector<8x1xf32>
    %611 = arith.mulf %609, %610 : vector<8x1xf32>
    %612 = arith.maximumf %593, %599 : vector<8x1xf32>
    %613 = arith.maximumf %612, %605 : vector<8x1xf32>
    %614 = arith.maximumf %613, %611 : vector<8x1xf32>
    %615 = arith.subf %593, %614 : vector<8x1xf32>
    %616 = math.exp %615 : vector<8x1xf32>
    %617 = arith.subf %599, %614 : vector<8x1xf32>
    %618 = math.exp %617 : vector<8x1xf32>
    %619 = arith.subf %605, %614 : vector<8x1xf32>
    %620 = math.exp %619 : vector<8x1xf32>
    %621 = arith.subf %611, %614 : vector<8x1xf32>
    %622 = math.exp %621 : vector<8x1xf32>
    %623 = arith.addf %616, %618 : vector<8x1xf32>
    %624 = arith.addf %623, %620 : vector<8x1xf32>
    %625 = arith.addf %624, %622 : vector<8x1xf32>
    %626 = tpu.reciprocal %625 {approx = true} : vector<8x1xf32> -> vector<8x1xf32>
    %627 = arith.mulf %616, %626 : vector<8x1xf32>
    %628 = vector.extract_strided_slice %463 {offsets = [0, 0], sizes = [8, 8], strides = [1, 1]} : vector<8x128xf32> to vector<8x8xf32>
    %629 = vector.broadcast %627 : vector<8x1xf32> to vector<8x8xf32>
    %630 = arith.mulf %629, %628 : vector<8x8xf32>
    %631 = arith.mulf %618, %626 : vector<8x1xf32>
    %632 = vector.extract_strided_slice %463 {offsets = [0, 8], sizes = [8, 8], strides = [1, 1]} : vector<8x128xf32> to vector<8x8xf32>
    %633 = vector.broadcast %631 : vector<8x1xf32> to vector<8x8xf32>
    %634 = arith.mulf %633, %632 : vector<8x8xf32>
    %635 = arith.addf %630, %634 : vector<8x8xf32>
    %636 = arith.mulf %620, %626 : vector<8x1xf32>
    %637 = vector.extract_strided_slice %463 {offsets = [0, 16], sizes = [8, 8], strides = [1, 1]} : vector<8x128xf32> to vector<8x8xf32>
    %638 = vector.broadcast %636 : vector<8x1xf32> to vector<8x8xf32>
    %639 = arith.mulf %638, %637 : vector<8x8xf32>
    %640 = arith.addf %635, %639 : vector<8x8xf32>
    %641 = arith.mulf %622, %626 : vector<8x1xf32>
    %642 = vector.extract_strided_slice %463 {offsets = [0, 24], sizes = [8, 8], strides = [1, 1]} : vector<8x128xf32> to vector<8x8xf32>
    %643 = vector.broadcast %641 : vector<8x1xf32> to vector<8x8xf32>
    %644 = arith.mulf %643, %642 : vector<8x8xf32>
    %645 = arith.addf %640, %644 : vector<8x8xf32>
    %646 = vector.extract_strided_slice %443 {offsets = [16, 0], sizes = [8, 128], strides = [1, 1]} : vector<32x128xf32> to vector<8x128xf32>
    %cst_222 = arith.constant dense<0.000000e+00> : vector<8x128xf32>
    %647 = tpu.matmul %645, %646, %cst_222 {dimension_numbers = #tpu.dot_dimension_numbers<[1], [0], [0], [1], [0, 0, 1, 1], [], []>} : vector<8x8xf32>, vector<8x128xf32>, vector<8x128xf32> -> vector<8x128xf32>
    %648 = arith.addf %586, %647 : vector<8x128xf32>
    %649 = vector.extract_strided_slice %457 {offsets = [0, 24], sizes = [8, 8], strides = [1, 1]} : vector<8x128xf32> to vector<8x8xf32>
    %650 = vector.extract_strided_slice %460 {offsets = [0, 0], sizes = [8, 8], strides = [1, 1]} : vector<8x128xf32> to vector<8x8xf32>
    %651 = arith.mulf %649, %650 : vector<8x8xf32>
    %cst_223 = arith.constant dense<0.000000e+00> : vector<8xf32>
    %652 = vector.multi_reduction <add>, %651, %cst_223 [1] : vector<8x8xf32> to vector<8xf32>
    %653 = vector.shape_cast %652 : vector<8xf32> to vector<8x1xf32>
    %cst_224 = arith.constant 0.353553385 : f32
    %654 = vector.broadcast %cst_224 : f32 to vector<8x1xf32>
    %655 = arith.mulf %653, %654 : vector<8x1xf32>
    %656 = vector.extract_strided_slice %460 {offsets = [0, 8], sizes = [8, 8], strides = [1, 1]} : vector<8x128xf32> to vector<8x8xf32>
    %657 = arith.mulf %649, %656 : vector<8x8xf32>
    %cst_225 = arith.constant dense<0.000000e+00> : vector<8xf32>
    %658 = vector.multi_reduction <add>, %657, %cst_225 [1] : vector<8x8xf32> to vector<8xf32>
    %659 = vector.shape_cast %658 : vector<8xf32> to vector<8x1xf32>
    %cst_226 = arith.constant 0.353553385 : f32
    %660 = vector.broadcast %cst_226 : f32 to vector<8x1xf32>
    %661 = arith.mulf %659, %660 : vector<8x1xf32>
    %662 = vector.extract_strided_slice %460 {offsets = [0, 16], sizes = [8, 8], strides = [1, 1]} : vector<8x128xf32> to vector<8x8xf32>
    %663 = arith.mulf %649, %662 : vector<8x8xf32>
    %cst_227 = arith.constant dense<0.000000e+00> : vector<8xf32>
    %664 = vector.multi_reduction <add>, %663, %cst_227 [1] : vector<8x8xf32> to vector<8xf32>
    %665 = vector.shape_cast %664 : vector<8xf32> to vector<8x1xf32>
    %cst_228 = arith.constant 0.353553385 : f32
    %666 = vector.broadcast %cst_228 : f32 to vector<8x1xf32>
    %667 = arith.mulf %665, %666 : vector<8x1xf32>
    %668 = vector.extract_strided_slice %460 {offsets = [0, 24], sizes = [8, 8], strides = [1, 1]} : vector<8x128xf32> to vector<8x8xf32>
    %669 = arith.mulf %649, %668 : vector<8x8xf32>
    %cst_229 = arith.constant dense<0.000000e+00> : vector<8xf32>
    %670 = vector.multi_reduction <add>, %669, %cst_229 [1] : vector<8x8xf32> to vector<8xf32>
    %671 = vector.shape_cast %670 : vector<8xf32> to vector<8x1xf32>
    %cst_230 = arith.constant 0.353553385 : f32
    %672 = vector.broadcast %cst_230 : f32 to vector<8x1xf32>
    %673 = arith.mulf %671, %672 : vector<8x1xf32>
    %674 = arith.maximumf %655, %661 : vector<8x1xf32>
    %675 = arith.maximumf %674, %667 : vector<8x1xf32>
    %676 = arith.maximumf %675, %673 : vector<8x1xf32>
    %677 = arith.subf %655, %676 : vector<8x1xf32>
    %678 = math.exp %677 : vector<8x1xf32>
    %679 = arith.subf %661, %676 : vector<8x1xf32>
    %680 = math.exp %679 : vector<8x1xf32>
    %681 = arith.subf %667, %676 : vector<8x1xf32>
    %682 = math.exp %681 : vector<8x1xf32>
    %683 = arith.subf %673, %676 : vector<8x1xf32>
    %684 = math.exp %683 : vector<8x1xf32>
    %685 = arith.addf %678, %680 : vector<8x1xf32>
    %686 = arith.addf %685, %682 : vector<8x1xf32>
    %687 = arith.addf %686, %684 : vector<8x1xf32>
    %688 = tpu.reciprocal %687 {approx = true} : vector<8x1xf32> -> vector<8x1xf32>
    %689 = arith.mulf %678, %688 : vector<8x1xf32>
    %690 = vector.extract_strided_slice %463 {offsets = [0, 0], sizes = [8, 8], strides = [1, 1]} : vector<8x128xf32> to vector<8x8xf32>
    %691 = vector.broadcast %689 : vector<8x1xf32> to vector<8x8xf32>
    %692 = arith.mulf %691, %690 : vector<8x8xf32>
    %693 = arith.mulf %680, %688 : vector<8x1xf32>
    %694 = vector.extract_strided_slice %463 {offsets = [0, 8], sizes = [8, 8], strides = [1, 1]} : vector<8x128xf32> to vector<8x8xf32>
    %695 = vector.broadcast %693 : vector<8x1xf32> to vector<8x8xf32>
    %696 = arith.mulf %695, %694 : vector<8x8xf32>
    %697 = arith.addf %692, %696 : vector<8x8xf32>
    %698 = arith.mulf %682, %688 : vector<8x1xf32>
    %699 = vector.extract_strided_slice %463 {offsets = [0, 16], sizes = [8, 8], strides = [1, 1]} : vector<8x128xf32> to vector<8x8xf32>
    %700 = vector.broadcast %698 : vector<8x1xf32> to vector<8x8xf32>
    %701 = arith.mulf %700, %699 : vector<8x8xf32>
    %702 = arith.addf %697, %701 : vector<8x8xf32>
    %703 = arith.mulf %684, %688 : vector<8x1xf32>
    %704 = vector.extract_strided_slice %463 {offsets = [0, 24], sizes = [8, 8], strides = [1, 1]} : vector<8x128xf32> to vector<8x8xf32>
    %705 = vector.broadcast %703 : vector<8x1xf32> to vector<8x8xf32>
    %706 = arith.mulf %705, %704 : vector<8x8xf32>
    %707 = arith.addf %702, %706 : vector<8x8xf32>
    %708 = vector.extract_strided_slice %443 {offsets = [24, 0], sizes = [8, 128], strides = [1, 1]} : vector<32x128xf32> to vector<8x128xf32>
    %cst_231 = arith.constant dense<0.000000e+00> : vector<8x128xf32>
    %709 = tpu.matmul %707, %708, %cst_231 {dimension_numbers = #tpu.dot_dimension_numbers<[1], [0], [0], [1], [0, 0, 1, 1], [], []>} : vector<8x8xf32>, vector<8x128xf32>, vector<8x128xf32> -> vector<8x128xf32>
    %710 = arith.addf %648, %709 : vector<8x128xf32>
    %711 = vector.broadcast %444 : vector<1x128xf32> to vector<8x128xf32>
    %712 = arith.addf %710, %711 : vector<8x128xf32>
    %713 = arith.addf %436, %712 : vector<8x128xf32>
    %cst_232 = arith.constant dense<0.000000e+00> : vector<8x128xf32>
    %714 = tpu.matmul %713, %111, %cst_232 {dimension_numbers = #tpu.dot_dimension_numbers<[1], [0], [0], [1], [0, 0, 1, 1], [], []>} : vector<8x128xf32>, vector<128x128xf32>, vector<8x128xf32> -> vector<8x128xf32>
    %715 = arith.subf %713, %714 : vector<8x128xf32>
    %716 = arith.mulf %715, %715 : vector<8x128xf32>
    %cst_233 = arith.constant dense<0.000000e+00> : vector<8x128xf32>
    %717 = tpu.matmul %716, %111, %cst_233 {dimension_numbers = #tpu.dot_dimension_numbers<[1], [0], [0], [1], [0, 0, 1, 1], [], []>} : vector<8x128xf32>, vector<128x128xf32>, vector<8x128xf32> -> vector<8x128xf32>
    %cst_234 = arith.constant 9.99999974E-6 : f32
    %718 = vector.broadcast %cst_234 : f32 to vector<8x128xf32>
    %719 = arith.addf %717, %718 : vector<8x128xf32>
    %720 = math.rsqrt %719 : vector<8x128xf32>
    %721 = arith.mulf %715, %720 : vector<8x128xf32>
    %722 = vector.broadcast %445 : vector<1x128xf32> to vector<8x128xf32>
    %723 = arith.mulf %721, %722 : vector<8x128xf32>
    %724 = vector.broadcast %446 : vector<1x128xf32> to vector<8x128xf32>
    %725 = arith.addf %723, %724 : vector<8x128xf32>
    %cst_235 = arith.constant dense<0.000000e+00> : vector<8x128xf32>
    %726 = tpu.matmul %725, %447, %cst_235 {dimension_numbers = #tpu.dot_dimension_numbers<[1], [0], [0], [1], [0, 0, 1, 1], [], []>} : vector<8x128xf32>, vector<128x128xf32>, vector<8x128xf32> -> vector<8x128xf32>
    %727 = vector.broadcast %448 : vector<1x128xf32> to vector<8x128xf32>
    %728 = arith.addf %726, %727 : vector<8x128xf32>
    %cst_236 = arith.constant 0.000000e+00 : f32
    %729 = vector.broadcast %cst_236 : f32 to vector<8x128xf32>
    %730 = arith.maximumf %728, %729 : vector<8x128xf32>
    %cst_237 = arith.constant dense<0.000000e+00> : vector<8x128xf32>
    %731 = tpu.matmul %730, %449, %cst_237 {dimension_numbers = #tpu.dot_dimension_numbers<[1], [0], [0], [1], [0, 0, 1, 1], [], []>} : vector<8x128xf32>, vector<128x128xf32>, vector<8x128xf32> -> vector<8x128xf32>
    %732 = vector.broadcast %450 : vector<1x128xf32> to vector<8x128xf32>
    %733 = arith.addf %731, %732 : vector<8x128xf32>
    %734 = arith.addf %725, %733 : vector<8x128xf32>
    %cst_238 = arith.constant dense<0.000000e+00> : vector<8x128xf32>
    %735 = tpu.matmul %734, %111, %cst_238 {dimension_numbers = #tpu.dot_dimension_numbers<[1], [0], [0], [1], [0, 0, 1, 1], [], []>} : vector<8x128xf32>, vector<128x128xf32>, vector<8x128xf32> -> vector<8x128xf32>
    %736 = arith.subf %734, %735 : vector<8x128xf32>
    %737 = arith.mulf %736, %736 : vector<8x128xf32>
    %cst_239 = arith.constant dense<0.000000e+00> : vector<8x128xf32>
    %738 = tpu.matmul %737, %111, %cst_239 {dimension_numbers = #tpu.dot_dimension_numbers<[1], [0], [0], [1], [0, 0, 1, 1], [], []>} : vector<8x128xf32>, vector<128x128xf32>, vector<8x128xf32> -> vector<8x128xf32>
    %cst_240 = arith.constant 9.99999974E-6 : f32
    %739 = vector.broadcast %cst_240 : f32 to vector<8x128xf32>
    %740 = arith.addf %738, %739 : vector<8x128xf32>
    %741 = math.rsqrt %740 : vector<8x128xf32>
    %742 = arith.mulf %736, %741 : vector<8x128xf32>
    %743 = vector.broadcast %451 : vector<1x128xf32> to vector<8x128xf32>
    %744 = arith.mulf %742, %743 : vector<8x128xf32>
    %745 = vector.broadcast %452 : vector<1x128xf32> to vector<8x128xf32>
    %746 = arith.addf %744, %745 : vector<8x128xf32>
    %cst_241 = arith.constant 0.000000e+00 : f32
    %747 = vector.broadcast %cst_241 : f32 to vector<1x128xf32>
    %748 = arith.subf %747, %453 : vector<1x128xf32>
    %749 = vector.broadcast %748 : vector<1x128xf32> to vector<8x128xf32>
    %750 = arith.mulf %749, %746 : vector<8x128xf32>
    %751 = math.exp %750 : vector<8x128xf32>
    %cst_242 = arith.constant 1.000000e+00 : f32
    %752 = vector.broadcast %cst_242 : f32 to vector<8x128xf32>
    %753 = arith.addf %752, %751 : vector<8x128xf32>
    %754 = tpu.reciprocal %753 {approx = true} : vector<8x128xf32> -> vector<8x128xf32>
    %cst_243 = arith.constant 1.000000e+00 : f32
    %755 = vector.broadcast %cst_243 : f32 to vector<1x128xf32>
    %756 = arith.subf %755, %454 : vector<1x128xf32>
    %757 = vector.broadcast %756 : vector<1x128xf32> to vector<8x128xf32>
    %758 = arith.mulf %754, %757 : vector<8x128xf32>
    %759 = vector.broadcast %454 : vector<1x128xf32> to vector<8x128xf32>
    %760 = arith.addf %759, %758 : vector<8x128xf32>
    %761 = arith.mulf %760, %746 : vector<8x128xf32>
    %c0_244 = arith.constant 0 : index
    %c0_245 = arith.constant 0 : index
    %762 = vector.load %arg63[%c0_244, %c0_245] : memref<128x128xf32, #tpu.memory_space<vmem>>, vector<128x128xf32>
    %c0_246 = arith.constant 0 : index
    %c0_247 = arith.constant 0 : index
    %763 = vector.load %arg64[%c0_246, %c0_247] : memref<1x128xf32, #tpu.memory_space<vmem>>, vector<1x128xf32>
    %cst_248 = arith.constant dense<0.000000e+00> : vector<8x128xf32>
    %764 = tpu.matmul %761, %762, %cst_248 {dimension_numbers = #tpu.dot_dimension_numbers<[1], [0], [0], [1], [0, 0, 1, 1], [], []>} : vector<8x128xf32>, vector<128x128xf32>, vector<8x128xf32> -> vector<8x128xf32>
    %765 = vector.broadcast %763 : vector<1x128xf32> to vector<8x128xf32>
    %766 = arith.addf %764, %765 : vector<8x128xf32>
    %c0_249 = arith.constant 0 : index
    %c0_250 = arith.constant 0 : index
    %767 = vector.load %arg65[%c0_249, %c0_250] : memref<8x128xf32, #tpu.memory_space<vmem>>, vector<8x128xf32>
    tpu.vector_store %arg65[%c0_249, %c0_250], %766 {strides = array<i32>} : memref<8x128xf32, #tpu.memory_space<vmem>>, vector<8x128xf32>,
    return
  }
  func.func @transform_0(%arg0: i32) -> (i32, i32) {
    %c0_i32 = arith.constant 0 : i32
    %c0_i32_0 = arith.constant 0 : i32
    return %arg0, %c0_i32 : i32, i32
  }
  func.func @transform_1(%arg0: i32) -> (i32, i32) {
    %c0_i32 = arith.constant 0 : i32
    %c0_i32_0 = arith.constant 0 : i32
    %c0_i32_1 = arith.constant 0 : i32
    return %c0_i32, %c0_i32_0 : i32, i32
  }
  func.func @transform_2(%arg0: i32) -> (i32, i32) {
    %c0_i32 = arith.constant 0 : i32
    %c0_i32_0 = arith.constant 0 : i32
    %c0_i32_1 = arith.constant 0 : i32
    return %c0_i32, %c0_i32_0 : i32, i32
  }
  func.func @transform_3(%arg0: i32) -> (i32, i32) {
    %c0_i32 = arith.constant 0 : i32
    %c0_i32_0 = arith.constant 0 : i32
    %c0_i32_1 = arith.constant 0 : i32
    return %c0_i32, %c0_i32_0 : i32, i32
  }
  func.func @transform_4(%arg0: i32) -> (i32, i32) {
    %c0_i32 = arith.constant 0 : i32
    %c0_i32_0 = arith.constant 0 : i32
    %c0_i32_1 = arith.constant 0 : i32
    return %c0_i32, %c0_i32_0 : i32, i32
  }
  func.func @transform_5(%arg0: i32) -> (i32, i32) {
    %c0_i32 = arith.constant 0 : i32
    %c0_i32_0 = arith.constant 0 : i32
    %c0_i32_1 = arith.constant 0 : i32
    return %c0_i32, %c0_i32_0 : i32, i32
  }
  func.func @transform_6(%arg0: i32) -> (i32, i32) {
    %c0_i32 = arith.constant 0 : i32
    %c0_i32_0 = arith.constant 0 : i32
    %c0_i32_1 = arith.constant 0 : i32
    return %c0_i32, %c0_i32_0 : i32, i32
  }
  func.func @transform_7(%arg0: i32) -> (i32, i32) {
    %c0_i32 = arith.constant 0 : i32
    %c0_i32_0 = arith.constant 0 : i32
    %c0_i32_1 = arith.constant 0 : i32
    return %c0_i32, %c0_i32_0 : i32, i32
  }
  func.func @transform_8(%arg0: i32) -> (i32, i32) {
    %c0_i32 = arith.constant 0 : i32
    %c0_i32_0 = arith.constant 0 : i32
    %c0_i32_1 = arith.constant 0 : i32
    return %c0_i32, %c0_i32_0 : i32, i32
  }
  func.func @transform_9(%arg0: i32) -> (i32, i32) {
    %c0_i32 = arith.constant 0 : i32
    %c0_i32_0 = arith.constant 0 : i32
    %c0_i32_1 = arith.constant 0 : i32
    return %c0_i32, %c0_i32_0 : i32, i32
  }
  func.func @transform_10(%arg0: i32) -> (i32, i32) {
    %c0_i32 = arith.constant 0 : i32
    %c0_i32_0 = arith.constant 0 : i32
    %c0_i32_1 = arith.constant 0 : i32
    return %c0_i32, %c0_i32_0 : i32, i32
  }
  func.func @transform_11(%arg0: i32) -> (i32, i32) {
    %c0_i32 = arith.constant 0 : i32
    %c0_i32_0 = arith.constant 0 : i32
    %c0_i32_1 = arith.constant 0 : i32
    return %c0_i32, %c0_i32_0 : i32, i32
  }
  func.func @transform_12(%arg0: i32) -> (i32, i32) {
    %c0_i32 = arith.constant 0 : i32
    %c0_i32_0 = arith.constant 0 : i32
    %c0_i32_1 = arith.constant 0 : i32
    return %c0_i32, %c0_i32_0 : i32, i32
  }
  func.func @transform_13(%arg0: i32) -> (i32, i32) {
    %c0_i32 = arith.constant 0 : i32
    %c0_i32_0 = arith.constant 0 : i32
    %c0_i32_1 = arith.constant 0 : i32
    return %c0_i32, %c0_i32_0 : i32, i32
  }
  func.func @transform_14(%arg0: i32) -> (i32, i32) {
    %c0_i32 = arith.constant 0 : i32
    %c0_i32_0 = arith.constant 0 : i32
    %c0_i32_1 = arith.constant 0 : i32
    return %c0_i32, %c0_i32_0 : i32, i32
  }
  func.func @transform_15(%arg0: i32) -> (i32, i32) {
    %c0_i32 = arith.constant 0 : i32
    %c0_i32_0 = arith.constant 0 : i32
    %c0_i32_1 = arith.constant 0 : i32
    return %c0_i32, %c0_i32_0 : i32, i32
  }
  func.func @transform_16(%arg0: i32) -> (i32, i32) {
    %c0_i32 = arith.constant 0 : i32
    %c0_i32_0 = arith.constant 0 : i32
    %c0_i32_1 = arith.constant 0 : i32
    return %c0_i32, %c0_i32_0 : i32, i32
  }
  func.func @transform_17(%arg0: i32) -> (i32, i32) {
    %c0_i32 = arith.constant 0 : i32
    %c0_i32_0 = arith.constant 0 : i32
    %c0_i32_1 = arith.constant 0 : i32
    return %c0_i32, %c0_i32_0 : i32, i32
  }
  func.func @transform_18(%arg0: i32) -> (i32, i32) {
    %c0_i32 = arith.constant 0 : i32
    %c0_i32_0 = arith.constant 0 : i32
    %c0_i32_1 = arith.constant 0 : i32
    return %c0_i32, %c0_i32_0 : i32, i32
  }
  func.func @transform_19(%arg0: i32) -> (i32, i32) {
    %c0_i32 = arith.constant 0 : i32
    %c0_i32_0 = arith.constant 0 : i32
    %c0_i32_1 = arith.constant 0 : i32
    return %c0_i32, %c0_i32_0 : i32, i32
  }
  func.func @transform_20(%arg0: i32) -> (i32, i32) {
    %c0_i32 = arith.constant 0 : i32
    %c0_i32_0 = arith.constant 0 : i32
    %c0_i32_1 = arith.constant 0 : i32
    return %c0_i32, %c0_i32_0 : i32, i32
  }
  func.func @transform_21(%arg0: i32) -> (i32, i32) {
    %c0_i32 = arith.constant 0 : i32
    %c0_i32_0 = arith.constant 0 : i32
    %c0_i32_1 = arith.constant 0 : i32
    return %c0_i32, %c0_i32_0 : i32, i32
  }
  func.func @transform_22(%arg0: i32) -> (i32, i32) {
    %c0_i32 = arith.constant 0 : i32
    %c0_i32_0 = arith.constant 0 : i32
    %c0_i32_1 = arith.constant 0 : i32
    return %c0_i32, %c0_i32_0 : i32, i32
  }
  func.func @transform_23(%arg0: i32) -> (i32, i32) {
    %c0_i32 = arith.constant 0 : i32
    %c0_i32_0 = arith.constant 0 : i32
    %c0_i32_1 = arith.constant 0 : i32
    return %c0_i32, %c0_i32_0 : i32, i32
  }
  func.func @transform_24(%arg0: i32) -> (i32, i32) {
    %c0_i32 = arith.constant 0 : i32
    %c0_i32_0 = arith.constant 0 : i32
    %c0_i32_1 = arith.constant 0 : i32
    return %c0_i32, %c0_i32_0 : i32, i32
  }
  func.func @transform_25(%arg0: i32) -> (i32, i32) {
    %c0_i32 = arith.constant 0 : i32
    %c0_i32_0 = arith.constant 0 : i32
    %c0_i32_1 = arith.constant 0 : i32
    return %c0_i32, %c0_i32_0 : i32, i32
  }
  func.func @transform_26(%arg0: i32) -> (i32, i32) {
    %c0_i32 = arith.constant 0 : i32
    %c0_i32_0 = arith.constant 0 : i32
    %c0_i32_1 = arith.constant 0 : i32
    return %c0_i32, %c0_i32_0 : i32, i32
  }
  func.func @transform_27(%arg0: i32) -> (i32, i32) {
    %c0_i32 = arith.constant 0 : i32
    %c0_i32_0 = arith.constant 0 : i32
    %c0_i32_1 = arith.constant 0 : i32
    return %c0_i32, %c0_i32_0 : i32, i32
  }
  func.func @transform_28(%arg0: i32) -> (i32, i32) {
    %c0_i32 = arith.constant 0 : i32
    %c0_i32_0 = arith.constant 0 : i32
    %c0_i32_1 = arith.constant 0 : i32
    return %c0_i32, %c0_i32_0 : i32, i32
  }
  func.func @transform_29(%arg0: i32) -> (i32, i32) {
    %c0_i32 = arith.constant 0 : i32
    %c0_i32_0 = arith.constant 0 : i32
    %c0_i32_1 = arith.constant 0 : i32
    return %c0_i32, %c0_i32_0 : i32, i32
  }
  func.func @transform_30(%arg0: i32) -> (i32, i32) {
    %c0_i32 = arith.constant 0 : i32
    %c0_i32_0 = arith.constant 0 : i32
    %c0_i32_1 = arith.constant 0 : i32
    return %c0_i32, %c0_i32_0 : i32, i32
  }
  func.func @transform_31(%arg0: i32) -> (i32, i32) {
    %c0_i32 = arith.constant 0 : i32
    %c0_i32_0 = arith.constant 0 : i32
    %c0_i32_1 = arith.constant 0 : i32
    return %c0_i32, %c0_i32_0 : i32, i32
  }
  func.func @transform_32(%arg0: i32) -> (i32, i32) {
    %c0_i32 = arith.constant 0 : i32
    %c0_i32_0 = arith.constant 0 : i32
    %c0_i32_1 = arith.constant 0 : i32
    return %c0_i32, %c0_i32_0 : i32, i32
  }
  func.func @transform_33(%arg0: i32) -> (i32, i32) {
    %c0_i32 = arith.constant 0 : i32
    %c0_i32_0 = arith.constant 0 : i32
    %c0_i32_1 = arith.constant 0 : i32
    return %c0_i32, %c0_i32_0 : i32, i32
  }
  func.func @transform_34(%arg0: i32) -> (i32, i32) {
    %c0_i32 = arith.constant 0 : i32
    %c0_i32_0 = arith.constant 0 : i32
    %c0_i32_1 = arith.constant 0 : i32
    return %c0_i32, %c0_i32_0 : i32, i32
  }
  func.func @transform_35(%arg0: i32) -> (i32, i32) {
    %c0_i32 = arith.constant 0 : i32
    %c0_i32_0 = arith.constant 0 : i32
    %c0_i32_1 = arith.constant 0 : i32
    return %c0_i32, %c0_i32_0 : i32, i32
  }
  func.func @transform_36(%arg0: i32) -> (i32, i32) {
    %c0_i32 = arith.constant 0 : i32
    %c0_i32_0 = arith.constant 0 : i32
    %c0_i32_1 = arith.constant 0 : i32
    return %c0_i32, %c0_i32_0 : i32, i32
  }
  func.func @transform_37(%arg0: i32) -> (i32, i32) {
    %c0_i32 = arith.constant 0 : i32
    %c0_i32_0 = arith.constant 0 : i32
    %c0_i32_1 = arith.constant 0 : i32
    return %c0_i32, %c0_i32_0 : i32, i32
  }
  func.func @transform_38(%arg0: i32) -> (i32, i32) {
    %c0_i32 = arith.constant 0 : i32
    %c0_i32_0 = arith.constant 0 : i32
    %c0_i32_1 = arith.constant 0 : i32
    return %c0_i32, %c0_i32_0 : i32, i32
  }
  func.func @transform_39(%arg0: i32) -> (i32, i32) {
    %c0_i32 = arith.constant 0 : i32
    %c0_i32_0 = arith.constant 0 : i32
    %c0_i32_1 = arith.constant 0 : i32
    return %c0_i32, %c0_i32_0 : i32, i32
  }
  func.func @transform_40(%arg0: i32) -> (i32, i32) {
    %c0_i32 = arith.constant 0 : i32
    %c0_i32_0 = arith.constant 0 : i32
    %c0_i32_1 = arith.constant 0 : i32
    return %c0_i32, %c0_i32_0 : i32, i32
  }
  func.func @transform_41(%arg0: i32) -> (i32, i32) {
    %c0_i32 = arith.constant 0 : i32
    %c0_i32_0 = arith.constant 0 : i32
    %c0_i32_1 = arith.constant 0 : i32
    return %c0_i32, %c0_i32_0 : i32, i32
  }
  func.func @transform_42(%arg0: i32) -> (i32, i32) {
    %c0_i32 = arith.constant 0 : i32
    %c0_i32_0 = arith.constant 0 : i32
    %c0_i32_1 = arith.constant 0 : i32
    return %c0_i32, %c0_i32_0 : i32, i32
  }
  func.func @transform_43(%arg0: i32) -> (i32, i32) {
    %c0_i32 = arith.constant 0 : i32
    %c0_i32_0 = arith.constant 0 : i32
    %c0_i32_1 = arith.constant 0 : i32
    return %c0_i32, %c0_i32_0 : i32, i32
  }
  func.func @transform_44(%arg0: i32) -> (i32, i32) {
    %c0_i32 = arith.constant 0 : i32
    %c0_i32_0 = arith.constant 0 : i32
    %c0_i32_1 = arith.constant 0 : i32
    return %c0_i32, %c0_i32_0 : i32, i32
  }
  func.func @transform_45(%arg0: i32) -> (i32, i32) {
    %c0_i32 = arith.constant 0 : i32
    %c0_i32_0 = arith.constant 0 : i32
    %c0_i32_1 = arith.constant 0 : i32
    return %c0_i32, %c0_i32_0 : i32, i32
  }
  func.func @transform_46(%arg0: i32) -> (i32, i32) {
    %c0_i32 = arith.constant 0 : i32
    %c0_i32_0 = arith.constant 0 : i32
    %c0_i32_1 = arith.constant 0 : i32
    return %c0_i32, %c0_i32_0 : i32, i32
  }
  func.func @transform_47(%arg0: i32) -> (i32, i32) {
    %c0_i32 = arith.constant 0 : i32
    %c0_i32_0 = arith.constant 0 : i32
    %c0_i32_1 = arith.constant 0 : i32
    return %c0_i32, %c0_i32_0 : i32, i32
  }
  func.func @transform_48(%arg0: i32) -> (i32, i32) {
    %c0_i32 = arith.constant 0 : i32
    %c0_i32_0 = arith.constant 0 : i32
    %c0_i32_1 = arith.constant 0 : i32
    return %c0_i32, %c0_i32_0 : i32, i32
  }
  func.func @transform_49(%arg0: i32) -> (i32, i32) {
    %c0_i32 = arith.constant 0 : i32
    %c0_i32_0 = arith.constant 0 : i32
    %c0_i32_1 = arith.constant 0 : i32
    return %c0_i32, %c0_i32_0 : i32, i32
  }
  func.func @transform_50(%arg0: i32) -> (i32, i32) {
    %c0_i32 = arith.constant 0 : i32
    %c0_i32_0 = arith.constant 0 : i32
    %c0_i32_1 = arith.constant 0 : i32
    return %c0_i32, %c0_i32_0 : i32, i32
  }
  func.func @transform_51(%arg0: i32) -> (i32, i32) {
    %c0_i32 = arith.constant 0 : i32
    %c0_i32_0 = arith.constant 0 : i32
    %c0_i32_1 = arith.constant 0 : i32
    return %c0_i32, %c0_i32_0 : i32, i32
  }
  func.func @transform_52(%arg0: i32) -> (i32, i32) {
    %c0_i32 = arith.constant 0 : i32
    %c0_i32_0 = arith.constant 0 : i32
    %c0_i32_1 = arith.constant 0 : i32
    return %c0_i32, %c0_i32_0 : i32, i32
  }
  func.func @transform_53(%arg0: i32) -> (i32, i32) {
    %c0_i32 = arith.constant 0 : i32
    %c0_i32_0 = arith.constant 0 : i32
    %c0_i32_1 = arith.constant 0 : i32
    return %c0_i32, %c0_i32_0 : i32, i32
  }
  func.func @transform_54(%arg0: i32) -> (i32, i32) {
    %c0_i32 = arith.constant 0 : i32
    %c0_i32_0 = arith.constant 0 : i32
    %c0_i32_1 = arith.constant 0 : i32
    return %c0_i32, %c0_i32_0 : i32, i32
  }
  func.func @transform_55(%arg0: i32) -> (i32, i32) {
    %c0_i32 = arith.constant 0 : i32
    %c0_i32_0 = arith.constant 0 : i32
    %c0_i32_1 = arith.constant 0 : i32
    return %c0_i32, %c0_i32_0 : i32, i32
  }
  func.func @transform_56(%arg0: i32) -> (i32, i32) {
    %c0_i32 = arith.constant 0 : i32
    %c0_i32_0 = arith.constant 0 : i32
    %c0_i32_1 = arith.constant 0 : i32
    return %c0_i32, %c0_i32_0 : i32, i32
  }
  func.func @transform_57(%arg0: i32) -> (i32, i32) {
    %c0_i32 = arith.constant 0 : i32
    %c0_i32_0 = arith.constant 0 : i32
    %c0_i32_1 = arith.constant 0 : i32
    return %c0_i32, %c0_i32_0 : i32, i32
  }
  func.func @transform_58(%arg0: i32) -> (i32, i32) {
    %c0_i32 = arith.constant 0 : i32
    %c0_i32_0 = arith.constant 0 : i32
    %c0_i32_1 = arith.constant 0 : i32
    return %c0_i32, %c0_i32_0 : i32, i32
  }
  func.func @transform_59(%arg0: i32) -> (i32, i32) {
    %c0_i32 = arith.constant 0 : i32
    %c0_i32_0 = arith.constant 0 : i32
    %c0_i32_1 = arith.constant 0 : i32
    return %c0_i32, %c0_i32_0 : i32, i32
  }
  func.func @transform_60(%arg0: i32) -> (i32, i32) {
    %c0_i32 = arith.constant 0 : i32
    %c0_i32_0 = arith.constant 0 : i32
    %c0_i32_1 = arith.constant 0 : i32
    return %c0_i32, %c0_i32_0 : i32, i32
  }
  func.func @transform_61(%arg0: i32) -> (i32, i32) {
    %c0_i32 = arith.constant 0 : i32
    %c0_i32_0 = arith.constant 0 : i32
    %c0_i32_1 = arith.constant 0 : i32
    return %c0_i32, %c0_i32_0 : i32, i32
  }
  func.func @transform_62(%arg0: i32) -> (i32, i32) {
    %c0_i32 = arith.constant 0 : i32
    %c0_i32_0 = arith.constant 0 : i32
    %c0_i32_1 = arith.constant 0 : i32
    return %c0_i32, %c0_i32_0 : i32, i32
  }
  func.func @transform_63(%arg0: i32) -> (i32, i32) {
    %c0_i32 = arith.constant 0 : i32
    %c0_i32_0 = arith.constant 0 : i32
    %c0_i32_1 = arith.constant 0 : i32
    return %c0_i32, %c0_i32_0 : i32, i32
  }
  func.func @transform_64(%arg0: i32) -> (i32, i32) {
    %c0_i32 = arith.constant 0 : i32
    %c0_i32_0 = arith.constant 0 : i32
    return %arg0, %c0_i32 : i32, i32
  }
}

</mosaic_0001>

<llo_original>
// kernel: _lambda_.1
$region0: #{_lambda_.1}
  #allocation0 [shape = 'u32[]', space=smem, size = 0x4, offset = 0x4, fixed_abs, tag = 'smem constant byte address 0x4 - core index']
  #allocation1 [shape = 'u32[144,128]{1,0:T(1,128)}', space=vmem, size = 0x12000, scoped, tag = 'internal scratch']
  %s0 = inlined_call_operand.smem [shape: u32[65], index: -1, kind: input, shape index: {}]
  %s1 = sld [smem:[%s0]]
  %s2 = scalar_lea.smem %s0, 1
  %s3 = sld [smem:[%s2]]
  %s4 = scalar_lea.smem %s0, 2
  %s5 = sld [smem:[%s4]]
  %s6 = scalar_lea.smem %s0, 3
  %s7 = sld [smem:[%s6]]
  %s8 = scalar_lea.smem %s0, 4
  %s9 = sld [smem:[%s8]]
  %s10 = scalar_lea.smem %s0, 5
  %s11 = sld [smem:[%s10]]
  %s12 = scalar_lea.smem %s0, 6
  %s13 = sld [smem:[%s12]]
  %s14 = scalar_lea.smem %s0, 7
  %s15 = sld [smem:[%s14]]
  %s16 = scalar_lea.smem %s0, 8
  %s17 = sld [smem:[%s16]]
  %s18 = scalar_lea.smem %s0, 9
  %s19 = sld [smem:[%s18]]
  %s20 = scalar_lea.smem %s0, 10
  %s21 = sld [smem:[%s20]]
  %s22 = scalar_lea.smem %s0, 11
  %s23 = sld [smem:[%s22]]
  %s24 = scalar_lea.smem %s0, 12
  %s25 = sld [smem:[%s24]]
  %s26 = scalar_lea.smem %s0, 13
  %s27 = sld [smem:[%s26]]
  %s28 = scalar_lea.smem %s0, 14
  %s29 = sld [smem:[%s28]]
  %s30 = scalar_lea.smem %s0, 15
  %s31 = sld [smem:[%s30]]
  %s32 = scalar_lea.smem %s0, 16
  %s33 = sld [smem:[%s32]]
  %s34 = scalar_lea.smem %s0, 17
  %s35 = sld [smem:[%s34]]
  %s36 = scalar_lea.smem %s0, 18
  %s37 = sld [smem:[%s36]]
  %s38 = scalar_lea.smem %s0, 19
  %s39 = sld [smem:[%s38]]
  %s40 = scalar_lea.smem %s0, 20
  %s41 = sld [smem:[%s40]]
  %s42 = scalar_lea.smem %s0, 21
  %s43 = sld [smem:[%s42]]
  %s44 = scalar_lea.smem %s0, 22
  %s45 = sld [smem:[%s44]]
  %s46 = scalar_lea.smem %s0, 23
  %s47 = sld [smem:[%s46]]
  %s48 = scalar_lea.smem %s0, 24
  %s49 = sld [smem:[%s48]]
  %s50 = scalar_lea.smem %s0, 25
  %s51 = sld [smem:[%s50]]
  %s52 = scalar_lea.smem %s0, 26
  %s53 = sld [smem:[%s52]]
  %s54 = scalar_lea.smem %s0, 27
  %s55 = sld [smem:[%s54]]
  %s56 = scalar_lea.smem %s0, 28
  %s57 = sld [smem:[%s56]]
  %s58 = scalar_lea.smem %s0, 29
  %s59 = sld [smem:[%s58]]
  %s60 = scalar_lea.smem %s0, 30
  %s61 = sld [smem:[%s60]]
  %s62 = scalar_lea.smem %s0, 31
  %s63 = sld [smem:[%s62]]
  %s64 = scalar_lea.smem %s0, 32
  %s65 = sld [smem:[%s64]]
  %s66 = scalar_lea.smem %s0, 33
  %s67 = sld [smem:[%s66]]
  %s68 = scalar_lea.smem %s0, 34
  %s69 = sld [smem:[%s68]]
  %s70 = scalar_lea.smem %s0, 35
  %s71 = sld [smem:[%s70]]
  %s72 = scalar_lea.smem %s0, 36
  %s73 = sld [smem:[%s72]]
  %s74 = scalar_lea.smem %s0, 37
  %s75 = sld [smem:[%s74]]
  %s76 = scalar_lea.smem %s0, 38
  %s77 = sld [smem:[%s76]]
  %s78 = scalar_lea.smem %s0, 39
  %s79 = sld [smem:[%s78]]
  %s80 = scalar_lea.smem %s0, 40
  %s81 = sld [smem:[%s80]]
  %s82 = scalar_lea.smem %s0, 41
  %s83 = sld [smem:[%s82]]
  %s84 = scalar_lea.smem %s0, 42
  %s85 = sld [smem:[%s84]]
  %s86 = scalar_lea.smem %s0, 43
  %s87 = sld [smem:[%s86]]
  %s88 = scalar_lea.smem %s0, 44
  %s89 = sld [smem:[%s88]]
  %s90 = scalar_lea.smem %s0, 45
  %s91 = sld [smem:[%s90]]
  %s92 = scalar_lea.smem %s0, 46
  %s93 = sld [smem:[%s92]]
  %s94 = scalar_lea.smem %s0, 47
  %s95 = sld [smem:[%s94]]
  %s96 = scalar_lea.smem %s0, 48
  %s97 = sld [smem:[%s96]]
  %s98 = scalar_lea.smem %s0, 49
  %s99 = sld [smem:[%s98]]
  %s100 = scalar_lea.smem %s0, 50
  %s101 = sld [smem:[%s100]]
  %s102 = scalar_lea.smem %s0, 51
  %s103 = sld [smem:[%s102]]
  %s104 = scalar_lea.smem %s0, 52
  %s105 = sld [smem:[%s104]]
  %s106 = scalar_lea.smem %s0, 53
  %s107 = sld [smem:[%s106]]
  %s108 = scalar_lea.smem %s0, 54
  %s109 = sld [smem:[%s108]]
  %s110 = scalar_lea.smem %s0, 55
  %s111 = sld [smem:[%s110]]
  %s112 = scalar_lea.smem %s0, 56
  %s113 = sld [smem:[%s112]]
  %s114 = scalar_lea.smem %s0, 57
  %s115 = sld [smem:[%s114]]
  %s116 = scalar_lea.smem %s0, 58
  %s117 = sld [smem:[%s116]]
  %s118 = scalar_lea.smem %s0, 59
  %s119 = sld [smem:[%s118]]
  %s120 = scalar_lea.smem %s0, 60
  %s121 = sld [smem:[%s120]]
  %s122 = scalar_lea.smem %s0, 61
  %s123 = sld [smem:[%s122]]
  %s124 = scalar_lea.smem %s0, 62
  %s125 = sld [smem:[%s124]]
  %s126 = scalar_lea.smem %s0, 63
  %s127 = sld [smem:[%s126]]
  %s128 = scalar_lea.smem %s0, 64
  %s129 = sld [smem:[%s128]]
  %s130 = sld [smem:[#allocation0]]
  $region446: #{_lambda_.1} parent=0
    _
  %s132 = ssub.s32 1, %s130
  %s133 = scalar_select 0, %s132, %s130
  $region1: #{_lambda_.1} parent=0
    #allocation2 [shape = 'u8[65536]{0}', space=vmem, size = 0x10000, scoped, tag = 'input window, operand 1, single buffered']
    #allocation3 [shape = 's32[1]{0}', space=sflag, size = 0x4, scoped, tag = 'scoped memory for _lambda_.1']
    #allocation4 [shape = 'u8[512]{0}', space=vmem, size = 0x400, scoped, tag = 'input window, operand 2, single buffered']
    #allocation5 [shape = 's32[1]{0}', space=sflag, size = 0x4, scoped, tag = 'scoped memory for _lambda_.1']
    #allocation6 [shape = 'u8[65536]{0}', space=vmem, size = 0x10000, scoped, tag = 'input window, operand 3, single buffered']
    #allocation7 [shape = 'u8[512]{0}', space=vmem, size = 0x400, scoped, tag = 'input window, operand 4, single buffered']
    #allocation8 [shape = 's32[1]{0}', space=sflag, size = 0x4, scoped, tag = 'scoped memory for _lambda_.1']
    #allocation9 [shape = 'u8[512]{0}', space=vmem, size = 0x400, scoped, tag = 'input window, operand 5, single buffered']
    #allocation10 [shape = 'u8[512]{0}', space=vmem, size = 0x400, scoped, tag = 'input window, operand 6, single buffered']
    #allocation11 [shape = 's32[1]{0}', space=sflag, size = 0x4, scoped, tag = 'scoped memory for _lambda_.1']
    #allocation12 [shape = 'u8[65536]{0}', space=vmem, size = 0x10000, scoped, tag = 'input window, operand 7, single buffered']
    #allocation13 [shape = 'u8[512]{0}', space=vmem, size = 0x400, scoped, tag = 'input window, operand 8, single buffered']
    #allocation14 [shape = 's32[1]{0}', space=sflag, size = 0x4, scoped, tag = 'scoped memory for _lambda_.1']
    #allocation15 [shape = 'u8[512]{0}', space=vmem, size = 0x400, scoped, tag = 'input window, operand 9, single buffered']
    #allocation16 [shape = 'u8[512]{0}', space=vmem, size = 0x400, scoped, tag = 'input window, operand 10, single buffered']
    #allocation17 [shape = 's32[1]{0}', space=sflag, size = 0x4, scoped, tag = 'scoped memory for _lambda_.1']
    #allocation18 [shape = 'u8[65536]{0}', space=vmem, size = 0x10000, scoped, tag = 'input window, operand 11, single buffered']
    #allocation19 [shape = 'u8[512]{0}', space=vmem, size = 0x400, scoped, tag = 'input window, operand 12, single buffered']
    #allocation20 [shape = 's32[1]{0}', space=sflag, size = 0x4, scoped, tag = 'scoped memory for _lambda_.1']
    #allocation21 [shape = 'u8[65536]{0}', space=vmem, size = 0x10000, scoped, tag = 'input window, operand 13, single buffered']
    #allocation22 [shape = 'u8[512]{0}', space=vmem, size = 0x400, scoped, tag = 'input window, operand 14, single buffered']
    #allocation23 [shape = 's32[1]{0}', space=sflag, size = 0x4, scoped, tag = 'scoped memory for _lambda_.1']
    #allocation24 [shape = 'u8[512]{0}', space=vmem, size = 0x400, scoped, tag = 'input window, operand 15, single buffered']
    #allocation25 [shape = 'u8[512]{0}', space=vmem, size = 0x400, scoped, tag = 'input window, operand 16, single buffered']
    #allocation26 [shape = 's32[1]{0}', space=sflag, size = 0x4, scoped, tag = 'scoped memory for _lambda_.1']
    #allocation27 [shape = 'u8[65536]{0}', space=vmem, size = 0x10000, scoped, tag = 'input window, operand 17, single buffered']
    #allocation28 [shape = 'u8[512]{0}', space=vmem, size = 0x400, scoped, tag = 'input window, operand 18, single buffered']
    #allocation29 [shape = 's32[1]{0}', space=sflag, size = 0x4, scoped, tag = 'scoped memory for _lambda_.1']
    #allocation30 [shape = 'u8[512]{0}', space=vmem, size = 0x400, scoped, tag = 'input window, operand 19, single buffered']
    #allocation31 [shape = 'u8[512]{0}', space=vmem, size = 0x400, scoped, tag = 'input window, operand 20, single buffered']
    #allocation32 [shape = 's32[1]{0}', space=sflag, size = 0x4, scoped, tag = 'scoped memory for _lambda_.1']
    #allocation33 [shape = 'u8[65536]{0}', space=vmem, size = 0x10000, scoped, tag = 'input window, operand 21, single buffered']
    #allocation34 [shape = 'u8[512]{0}', space=vmem, size = 0x400, scoped, tag = 'input window, operand 22, single buffered']
    #allocation35 [shape = 's32[1]{0}', space=sflag, size = 0x4, scoped, tag = 'scoped memory for _lambda_.1']
    #allocation36 [shape = 'u8[65536]{0}', space=vmem, size = 0x10000, scoped, tag = 'input window, operand 23, single buffered']
    #allocation37 [shape = 'u8[512]{0}', space=vmem, size = 0x400, scoped, tag = 'input window, operand 24, single buffered']
    #allocation38 [shape = 's32[1]{0}', space=sflag, size = 0x4, scoped, tag = 'scoped memory for _lambda_.1']
    #allocation39 [shape = 'u8[65536]{0}', space=vmem, size = 0x10000, scoped, tag = 'input window, operand 25, single buffered']
    #allocation40 [shape = 'u8[65536]{0}', space=vmem, size = 0x10000, scoped, tag = 'input window, operand 26, single buffered']
    #allocation41 [shape = 's32[1]{0}', space=sflag, size = 0x4, scoped, tag = 'scoped memory for _lambda_.1']
    #allocation42 [shape = 'u8[512]{0}', space=vmem, size = 0x400, scoped, tag = 'input window, operand 27, single buffered']
    #allocation43 [shape = 'u8[65536]{0}', space=vmem, size = 0x10000, scoped, tag = 'input window, operand 28, single buffered']
    #allocation44 [shape = 's32[1]{0}', space=sflag, size = 0x4, scoped, tag = 'scoped memory for _lambda_.1']
    #allocation45 [shape = 'u8[512]{0}', space=vmem, size = 0x400, scoped, tag = 'input window, operand 29, single buffered']
    #allocation46 [shape = 'u8[65536]{0}', space=vmem, size = 0x10000, scoped, tag = 'input window, operand 30, single buffered']
    #allocation47 [shape = 's32[1]{0}', space=sflag, size = 0x4, scoped, tag = 'scoped memory for _lambda_.1']
    #allocation48 [shape = 'u8[512]{0}', space=vmem, size = 0x400, scoped, tag = 'input window, operand 31, single buffered']
    #allocation49 [shape = 'u8[16384]{0}', space=vmem, size = 0x4000, scoped, tag = 'input window, operand 32, single buffered']
    #allocation50 [shape = 's32[1]{0}', space=sflag, size = 0x4, scoped, tag = 'scoped memory for _lambda_.1']
    #allocation51 [shape = 'u8[512]{0}', space=vmem, size = 0x400, scoped, tag = 'input window, operand 33, single buffered']
    #allocation52 [shape = 'u8[512]{0}', space=vmem, size = 0x400, scoped, tag = 'input window, operand 34, single buffered']
    #allocation53 [shape = 's32[1]{0}', space=sflag, size = 0x4, scoped, tag = 'scoped memory for _lambda_.1']
    #allocation54 [shape = 'u8[512]{0}', space=vmem, size = 0x400, scoped, tag = 'input window, operand 35, single buffered']
    #allocation55 [shape = 'u8[512]{0}', space=vmem, size = 0x400, scoped, tag = 'input window, operand 37, single buffered']
    #allocation56 [shape = 's32[1]{0}', space=sflag, size = 0x4, scoped, tag = 'scoped memory for _lambda_.1']
    #allocation57 [shape = 'u8[65536]{0}', space=vmem, size = 0x10000, scoped, tag = 'input window, operand 38, single buffered']
    #allocation58 [shape = 'u8[512]{0}', space=vmem, size = 0x400, scoped, tag = 'input window, operand 39, single buffered']
    #allocation59 [shape = 's32[1]{0}', space=sflag, size = 0x4, scoped, tag = 'scoped memory for _lambda_.1']
    #allocation60 [shape = 'u8[512]{0}', space=vmem, size = 0x400, scoped, tag = 'input window, operand 40, single buffered']
    #allocation61 [shape = 'u8[65536]{0}', space=vmem, size = 0x10000, scoped, tag = 'input window, operand 44, single buffered']
    #allocation62 [shape = 's32[1]{0}', space=sflag, size = 0x4, scoped, tag = 'scoped memory for _lambda_.1']
    #allocation63 [shape = 'u8[65536]{0}', space=vmem, size = 0x10000, scoped, tag = 'input window, operand 46, single buffered']
    #allocation64 [shape = 'u8[65536]{0}', space=vmem, size = 0x10000, scoped, tag = 'input window, operand 48, single buffered']
    #allocation65 [shape = 's32[1]{0}', space=sflag, size = 0x4, scoped, tag = 'scoped memory for _lambda_.1']
    #allocation66 [shape = 'u8[65536]{0}', space=vmem, size = 0x10000, scoped, tag = 'input window, operand 54, single buffered']
    #allocation67 [shape = 'u8[65536]{0}', space=vmem, size = 0x10000, scoped, tag = 'input window, operand 56, single buffered']
    #allocation68 [shape = 's32[1]{0}', space=sflag, size = 0x4, scoped, tag = 'scoped memory for _lambda_.1']
    #allocation69 [shape = 'u8[65536]{0}', space=vmem, size = 0x10000, scoped, tag = 'input window, operand 62, single buffered']
    %134 = vsyncpa [#allocation3], 0
    %135 = vsyncpa [#allocation5], 0
    %136 = vsyncpa [#allocation8], 0
    %137 = vsyncpa [#allocation11], 0
    %138 = vsyncpa [#allocation14], 0
    %139 = vsyncpa [#allocation17], 0
    %140 = vsyncpa [#allocation20], 0
    %141 = vsyncpa [#allocation23], 0
    %142 = vsyncpa [#allocation26], 0
    %143 = vsyncpa [#allocation29], 0
    %144 = vsyncpa [#allocation32], 0
    %145 = vsyncpa [#allocation35], 0
    %146 = vsyncpa [#allocation38], 0
    %147 = vsyncpa [#allocation41], 0
    %148 = vsyncpa [#allocation44], 0
    %149 = vsyncpa [#allocation47], 0
    %150 = vsyncpa [#allocation50], 0
    %151 = vsyncpa [#allocation53], 0
    %152 = vsyncpa [#allocation56], 0
    %153 = vsyncpa [#allocation59], 0
    %154 = vsyncpa [#allocation62], 0
    %155 = vsyncpa [#allocation65], 0
    %156 = vsyncpa [#allocation68], 0
    // Predicated region
    $region2: #{_lambda_.1} parent=1 // pred_check
      _
    $region3: #{_lambda_.1} parent=1 // pred_check_branch
      %158 = sbr.rel (0) target = $region5
    $region4: #{_lambda_.1} parent=1 // pred_region
      _
    $region5: #{_lambda_.1} parent=1 // pred_fallthru
      _
    // Predicated region
    $region6: #{_lambda_.1} parent=1 // pred_check
      _
    $region7: #{_lambda_.1} parent=1 // pred_check_branch
      %160 = sbr.rel (0) target = $region9
    $region8: #{_lambda_.1} parent=1 // pred_region
      %s162 = ssub.s32 2048, 2048
      %163 = vsyncadd [#allocation3], %s162
      %s164 = sshll.u32 [#allocation2], 4
      %s165 = int_to_ptr.vmem [resolvable:$true] %s164
      %170 = dma.hbm_to_vmem [thread:$0]  %s3, 2048, %s165, [#allocation3], 128, 128, 8
    $region9: #{_lambda_.1} parent=1 // pred_fallthru
      _
    // Predicated region
    $region10: #{_lambda_.1} parent=1 // pred_check
      _
    $region11: #{_lambda_.1} parent=1 // pred_check_branch
      %172 = sbr.rel (0) target = $region13
    $region12: #{_lambda_.1} parent=1 // pred_region
      %s174 = ssub.s32 16, 16
      %175 = vsyncadd [#allocation5], %s174
      %s177 = sshll.u32 [#allocation4], 4
      %s178 = int_to_ptr.vmem [resolvable:$true] %s177
      %180 = dma.hbm_to_vmem [thread:$0]  %s5, 16, %s178, [#allocation5]
    $region13: #{_lambda_.1} parent=1 // pred_fallthru
      _
    // Predicated region
    $region14: #{_lambda_.1} parent=1 // pred_check
      _
    $region15: #{_lambda_.1} parent=1 // pred_check_branch
      %182 = sbr.rel (0) target = $region17
    $region16: #{_lambda_.1} parent=1 // pred_region
      %s184 = ssub.s32 2048, 2048
      %185 = vsyncadd [#allocation5], %s184
      %s186 = sshll.u32 [#allocation6], 4
      %s187 = int_to_ptr.vmem [resolvable:$true] %s186
      %192 = dma.hbm_to_vmem [thread:$0]  %s7, 2048, %s187, [#allocation5], 128, 128, 8
    $region17: #{_lambda_.1} parent=1 // pred_fallthru
      _
    // Predicated region
    $region18: #{_lambda_.1} parent=1 // pred_check
      _
    $region19: #{_lambda_.1} parent=1 // pred_check_branch
      %194 = sbr.rel (0) target = $region21
    $region20: #{_lambda_.1} parent=1 // pred_region
      %s196 = ssub.s32 16, 16
      %197 = vsyncadd [#allocation8], %s196
      %s199 = sshll.u32 [#allocation7], 4
      %s200 = int_to_ptr.vmem [resolvable:$true] %s199
      %202 = dma.hbm_to_vmem [thread:$0]  %s9, 16, %s200, [#allocation8]
    $region21: #{_lambda_.1} parent=1 // pred_fallthru
      _
    // Predicated region
    $region22: #{_lambda_.1} parent=1 // pred_check
      _
    $region23: #{_lambda_.1} parent=1 // pred_check_branch
      %204 = sbr.rel (0) target = $region25
    $region24: #{_lambda_.1} parent=1 // pred_region
      %s206 = ssub.s32 16, 16
      %207 = vsyncadd [#allocation8], %s206
      %s209 = sshll.u32 [#allocation9], 4
      %s210 = int_to_ptr.vmem [resolvable:$true] %s209
      %212 = dma.hbm_to_vmem [thread:$0]  %s11, 16, %s210, [#allocation8]
    $region25: #{_lambda_.1} parent=1 // pred_fallthru
      _
    // Predicated region
    $region26: #{_lambda_.1} parent=1 // pred_check
      _
    $region27: #{_lambda_.1} parent=1 // pred_check_branch
      %214 = sbr.rel (0) target = $region29
    $region28: #{_lambda_.1} parent=1 // pred_region
      %s216 = ssub.s32 16, 16
      %217 = vsyncadd [#allocation11], %s216
      %s219 = sshll.u32 [#allocation10], 4
      %s220 = int_to_ptr.vmem [resolvable:$true] %s219
      %222 = dma.hbm_to_vmem [thread:$0]  %s13, 16, %s220, [#allocation11]
    $region29: #{_lambda_.1} parent=1 // pred_fallthru
      _
    // Predicated region
    $region30: #{_lambda_.1} parent=1 // pred_check
      _
    $region31: #{_lambda_.1} parent=1 // pred_check_branch
      %224 = sbr.rel (0) target = $region33
    $region32: #{_lambda_.1} parent=1 // pred_region
      %s226 = ssub.s32 2048, 2048
      %227 = vsyncadd [#allocation11], %s226
      %s228 = sshll.u32 [#allocation12], 4
      %s229 = int_to_ptr.vmem [resolvable:$true] %s228
      %234 = dma.hbm_to_vmem [thread:$0]  %s15, 2048, %s229, [#allocation11], 128, 128, 8
    $region33: #{_lambda_.1} parent=1 // pred_fallthru
      _
    // Predicated region
    $region34: #{_lambda_.1} parent=1 // pred_check
      _
    $region35: #{_lambda_.1} parent=1 // pred_check_branch
      %236 = sbr.rel (0) target = $region37
    $region36: #{_lambda_.1} parent=1 // pred_region
      %s238 = ssub.s32 16, 16
      %239 = vsyncadd [#allocation14], %s238
      %s241 = sshll.u32 [#allocation13], 4
      %s242 = int_to_ptr.vmem [resolvable:$true] %s241
      %244 = dma.hbm_to_vmem [thread:$0]  %s17, 16, %s242, [#allocation14]
    $region37: #{_lambda_.1} parent=1 // pred_fallthru
      _
    // Predicated region
    $region38: #{_lambda_.1} parent=1 // pred_check
      _
    $region39: #{_lambda_.1} parent=1 // pred_check_branch
      %246 = sbr.rel (0) target = $region41
    $region40: #{_lambda_.1} parent=1 // pred_region
      %s248 = ssub.s32 16, 16
      %249 = vsyncadd [#allocation14], %s248
      %s251 = sshll.u32 [#allocation15], 4
      %s252 = int_to_ptr.vmem [resolvable:$true] %s251
      %254 = dma.hbm_to_vmem [thread:$0]  %s19, 16, %s252, [#allocation14]
    $region41: #{_lambda_.1} parent=1 // pred_fallthru
      _
    // Predicated region
    $region42: #{_lambda_.1} parent=1 // pred_check
      _
    $region43: #{_lambda_.1} parent=1 // pred_check_branch
      %256 = sbr.rel (0) target = $region45
    $region44: #{_lambda_.1} parent=1 // pred_region
      %s258 = ssub.s32 16, 16
      %259 = vsyncadd [#allocation17], %s258
      %s261 = sshll.u32 [#allocation16], 4
      %s262 = int_to_ptr.vmem [resolvable:$true] %s261
      %264 = dma.hbm_to_vmem [thread:$0]  %s21, 16, %s262, [#allocation17]
    $region45: #{_lambda_.1} parent=1 // pred_fallthru
      _
    // Predicated region
    $region46: #{_lambda_.1} parent=1 // pred_check
      _
    $region47: #{_lambda_.1} parent=1 // pred_check_branch
      %266 = sbr.rel (0) target = $region49
    $region48: #{_lambda_.1} parent=1 // pred_region
      %s268 = ssub.s32 2048, 2048
      %269 = vsyncadd [#allocation17], %s268
      %s270 = sshll.u32 [#allocation18], 4
      %s271 = int_to_ptr.vmem [resolvable:$true] %s270
      %276 = dma.hbm_to_vmem [thread:$0]  %s23, 2048, %s271, [#allocation17], 128, 128, 8
    $region49: #{_lambda_.1} parent=1 // pred_fallthru
      _
    // Predicated region
    $region50: #{_lambda_.1} parent=1 // pred_check
      _
    $region51: #{_lambda_.1} parent=1 // pred_check_branch
      %278 = sbr.rel (0) target = $region53
    $region52: #{_lambda_.1} parent=1 // pred_region
      %s280 = ssub.s32 16, 16
      %281 = vsyncadd [#allocation20], %s280
      %s283 = sshll.u32 [#allocation19], 4
      %s284 = int_to_ptr.vmem [resolvable:$true] %s283
      %286 = dma.hbm_to_vmem [thread:$0]  %s25, 16, %s284, [#allocation20]
    $region53: #{_lambda_.1} parent=1 // pred_fallthru
      _
    // Predicated region
    $region54: #{_lambda_.1} parent=1 // pred_check
      _
    $region55: #{_lambda_.1} parent=1 // pred_check_branch
      %288 = sbr.rel (0) target = $region57
    $region56: #{_lambda_.1} parent=1 // pred_region
      %s290 = ssub.s32 2048, 2048
      %291 = vsyncadd [#allocation20], %s290
      %s292 = sshll.u32 [#allocation21], 4
      %s293 = int_to_ptr.vmem [resolvable:$true] %s292
      %298 = dma.hbm_to_vmem [thread:$0]  %s27, 2048, %s293, [#allocation20], 128, 128, 8
    $region57: #{_lambda_.1} parent=1 // pred_fallthru
      _
    // Predicated region
    $region58: #{_lambda_.1} parent=1 // pred_check
      _
    $region59: #{_lambda_.1} parent=1 // pred_check_branch
      %300 = sbr.rel (0) target = $region61
    $region60: #{_lambda_.1} parent=1 // pred_region
      %s302 = ssub.s32 16, 16
      %303 = vsyncadd [#allocation23], %s302
      %s305 = sshll.u32 [#allocation22], 4
      %s306 = int_to_ptr.vmem [resolvable:$true] %s305
      %308 = dma.hbm_to_vmem [thread:$0]  %s29, 16, %s306, [#allocation23]
    $region61: #{_lambda_.1} parent=1 // pred_fallthru
      _
    // Predicated region
    $region62: #{_lambda_.1} parent=1 // pred_check
      _
    $region63: #{_lambda_.1} parent=1 // pred_check_branch
      %310 = sbr.rel (0) target = $region65
    $region64: #{_lambda_.1} parent=1 // pred_region
      %s312 = ssub.s32 16, 16
      %313 = vsyncadd [#allocation23], %s312
      %s315 = sshll.u32 [#allocation24], 4
      %s316 = int_to_ptr.vmem [resolvable:$true] %s315
      %318 = dma.hbm_to_vmem [thread:$0]  %s31, 16, %s316, [#allocation23]
    $region65: #{_lambda_.1} parent=1 // pred_fallthru
      _
    // Predicated region
    $region66: #{_lambda_.1} parent=1 // pred_check
      _
    $region67: #{_lambda_.1} parent=1 // pred_check_branch
      %320 = sbr.rel (0) target = $region69
    $region68: #{_lambda_.1} parent=1 // pred_region
      %s322 = ssub.s32 16, 16
      %323 = vsyncadd [#allocation26], %s322
      %s325 = sshll.u32 [#allocation25], 4
      %s326 = int_to_ptr.vmem [resolvable:$true] %s325
      %328 = dma.hbm_to_vmem [thread:$0]  %s33, 16, %s326, [#allocation26]
    $region69: #{_lambda_.1} parent=1 // pred_fallthru
      _
    // Predicated region
    $region70: #{_lambda_.1} parent=1 // pred_check
      _
    $region71: #{_lambda_.1} parent=1 // pred_check_branch
      %330 = sbr.rel (0) target = $region73
    $region72: #{_lambda_.1} parent=1 // pred_region
      %s332 = ssub.s32 2048, 2048
      %333 = vsyncadd [#allocation26], %s332
      %s334 = sshll.u32 [#allocation27], 4
      %s335 = int_to_ptr.vmem [resolvable:$true] %s334
      %340 = dma.hbm_to_vmem [thread:$0]  %s35, 2048, %s335, [#allocation26], 128, 128, 8
    $region73: #{_lambda_.1} parent=1 // pred_fallthru
      _
    // Predicated region
    $region74: #{_lambda_.1} parent=1 // pred_check
      _
    $region75: #{_lambda_.1} parent=1 // pred_check_branch
      %342 = sbr.rel (0) target = $region77
    $region76: #{_lambda_.1} parent=1 // pred_region
      %s344 = ssub.s32 16, 16
      %345 = vsyncadd [#allocation29], %s344
      %s347 = sshll.u32 [#allocation28], 4
      %s348 = int_to_ptr.vmem [resolvable:$true] %s347
      %350 = dma.hbm_to_vmem [thread:$0]  %s37, 16, %s348, [#allocation29]
    $region77: #{_lambda_.1} parent=1 // pred_fallthru
      _
    // Predicated region
    $region78: #{_lambda_.1} parent=1 // pred_check
      _
    $region79: #{_lambda_.1} parent=1 // pred_check_branch
      %352 = sbr.rel (0) target = $region81
    $region80: #{_lambda_.1} parent=1 // pred_region
      %s354 = ssub.s32 16, 16
      %355 = vsyncadd [#allocation29], %s354
      %s357 = sshll.u32 [#allocation30], 4
      %s358 = int_to_ptr.vmem [resolvable:$true] %s357
      %360 = dma.hbm_to_vmem [thread:$0]  %s39, 16, %s358, [#allocation29]
    $region81: #{_lambda_.1} parent=1 // pred_fallthru
      _
    // Predicated region
    $region82: #{_lambda_.1} parent=1 // pred_check
      _
    $region83: #{_lambda_.1} parent=1 // pred_check_branch
      %362 = sbr.rel (0) target = $region85
    $region84: #{_lambda_.1} parent=1 // pred_region
      %s364 = ssub.s32 16, 16
      %365 = vsyncadd [#allocation32], %s364
      %s367 = sshll.u32 [#allocation31], 4
      %s368 = int_to_ptr.vmem [resolvable:$true] %s367
      %370 = dma.hbm_to_vmem [thread:$0]  %s41, 16, %s368, [#allocation32]
    $region85: #{_lambda_.1} parent=1 // pred_fallthru
      _
    // Predicated region
    $region86: #{_lambda_.1} parent=1 // pred_check
      _
    $region87: #{_lambda_.1} parent=1 // pred_check_branch
      %372 = sbr.rel (0) target = $region89
    $region88: #{_lambda_.1} parent=1 // pred_region
      %s374 = ssub.s32 2048, 2048
      %375 = vsyncadd [#allocation32], %s374
      %s376 = sshll.u32 [#allocation33], 4
      %s377 = int_to_ptr.vmem [resolvable:$true] %s376
      %382 = dma.hbm_to_vmem [thread:$0]  %s43, 2048, %s377, [#allocation32], 128, 128, 8
    $region89: #{_lambda_.1} parent=1 // pred_fallthru
      _
    // Predicated region
    $region90: #{_lambda_.1} parent=1 // pred_check
      _
    $region91: #{_lambda_.1} parent=1 // pred_check_branch
      %384 = sbr.rel (0) target = $region93
    $region92: #{_lambda_.1} parent=1 // pred_region
      %s386 = ssub.s32 16, 16
      %387 = vsyncadd [#allocation35], %s386
      %s389 = sshll.u32 [#allocation34], 4
      %s390 = int_to_ptr.vmem [resolvable:$true] %s389
      %392 = dma.hbm_to_vmem [thread:$0]  %s45, 16, %s390, [#allocation35]
    $region93: #{_lambda_.1} parent=1 // pred_fallthru
      _
    // Predicated region
    $region94: #{_lambda_.1} parent=1 // pred_check
      _
    $region95: #{_lambda_.1} parent=1 // pred_check_branch
      %394 = sbr.rel (0) target = $region97
    $region96: #{_lambda_.1} parent=1 // pred_region
      %s396 = ssub.s32 2048, 2048
      %397 = vsyncadd [#allocation35], %s396
      %s398 = sshll.u32 [#allocation36], 4
      %s399 = int_to_ptr.vmem [resolvable:$true] %s398
      %404 = dma.hbm_to_vmem [thread:$0]  %s47, 2048, %s399, [#allocation35], 128, 128, 8
    $region97: #{_lambda_.1} parent=1 // pred_fallthru
      _
    // Predicated region
    $region98: #{_lambda_.1} parent=1 // pred_check
      _
    $region99: #{_lambda_.1} parent=1 // pred_check_branch
      %406 = sbr.rel (0) target = $region101
    $region100: #{_lambda_.1} parent=1 // pred_region
      %s408 = ssub.s32 16, 16
      %409 = vsyncadd [#allocation38], %s408
      %s411 = sshll.u32 [#allocation37], 4
      %s412 = int_to_ptr.vmem [resolvable:$true] %s411
      %414 = dma.hbm_to_vmem [thread:$0]  %s49, 16, %s412, [#allocation38]
    $region101: #{_lambda_.1} parent=1 // pred_fallthru
      _
    // Predicated region
    $region102: #{_lambda_.1} parent=1 // pred_check
      _
    $region103: #{_lambda_.1} parent=1 // pred_check_branch
      %416 = sbr.rel (0) target = $region105
    $region104: #{_lambda_.1} parent=1 // pred_region
      %s418 = ssub.s32 2048, 2048
      %419 = vsyncadd [#allocation38], %s418
      %s420 = sshll.u32 [#allocation39], 4
      %s421 = int_to_ptr.vmem [resolvable:$true] %s420
      %426 = dma.hbm_to_vmem [thread:$0]  %s51, 2048, %s421, [#allocation38], 128, 128, 8
    $region105: #{_lambda_.1} parent=1 // pred_fallthru
      _
    // Predicated region
    $region106: #{_lambda_.1} parent=1 // pred_check
      _
    $region107: #{_lambda_.1} parent=1 // pred_check_branch
      %428 = sbr.rel (0) target = $region109
    $region108: #{_lambda_.1} parent=1 // pred_region
      %s430 = ssub.s32 2048, 2048
      %431 = vsyncadd [#allocation41], %s430
      %s432 = sshll.u32 [#allocation40], 4
      %s433 = int_to_ptr.vmem [resolvable:$true] %s432
      %438 = dma.hbm_to_vmem [thread:$0]  %s53, 2048, %s433, [#allocation41], 128, 128, 8
    $region109: #{_lambda_.1} parent=1 // pred_fallthru
      _
    // Predicated region
    $region110: #{_lambda_.1} parent=1 // pred_check
      _
    $region111: #{_lambda_.1} parent=1 // pred_check_branch
      %440 = sbr.rel (0) target = $region113
    $region112: #{_lambda_.1} parent=1 // pred_region
      %s442 = ssub.s32 16, 16
      %443 = vsyncadd [#allocation41], %s442
      %s445 = sshll.u32 [#allocation42], 4
      %s446 = int_to_ptr.vmem [resolvable:$true] %s445
      %448 = dma.hbm_to_vmem [thread:$0]  %s55, 16, %s446, [#allocation41]
    $region113: #{_lambda_.1} parent=1 // pred_fallthru
      _
    // Predicated region
    $region114: #{_lambda_.1} parent=1 // pred_check
      _
    $region115: #{_lambda_.1} parent=1 // pred_check_branch
      %450 = sbr.rel (0) target = $region117
    $region116: #{_lambda_.1} parent=1 // pred_region
      %s452 = ssub.s32 2048, 2048
      %453 = vsyncadd [#allocation44], %s452
      %s454 = sshll.u32 [#allocation43], 4
      %s455 = int_to_ptr.vmem [resolvable:$true] %s454
      %460 = dma.hbm_to_vmem [thread:$0]  %s57, 2048, %s455, [#allocation44], 128, 128, 8
    $region117: #{_lambda_.1} parent=1 // pred_fallthru
      _
    // Predicated region
    $region118: #{_lambda_.1} parent=1 // pred_check
      _
    $region119: #{_lambda_.1} parent=1 // pred_check_branch
      %462 = sbr.rel (0) target = $region121
    $region120: #{_lambda_.1} parent=1 // pred_region
      %s464 = ssub.s32 16, 16
      %465 = vsyncadd [#allocation44], %s464
      %s467 = sshll.u32 [#allocation45], 4
      %s468 = int_to_ptr.vmem [resolvable:$true] %s467
      %470 = dma.hbm_to_vmem [thread:$0]  %s59, 16, %s468, [#allocation44]
    $region121: #{_lambda_.1} parent=1 // pred_fallthru
      _
    // Predicated region
    $region122: #{_lambda_.1} parent=1 // pred_check
      _
    $region123: #{_lambda_.1} parent=1 // pred_check_branch
      %472 = sbr.rel (0) target = $region125
    $region124: #{_lambda_.1} parent=1 // pred_region
      %s474 = ssub.s32 2048, 2048
      %475 = vsyncadd [#allocation47], %s474
      %s476 = sshll.u32 [#allocation46], 4
      %s477 = int_to_ptr.vmem [resolvable:$true] %s476
      %482 = dma.hbm_to_vmem [thread:$0]  %s61, 2048, %s477, [#allocation47], 128, 128, 8
    $region125: #{_lambda_.1} parent=1 // pred_fallthru
      _
    // Predicated region
    $region126: #{_lambda_.1} parent=1 // pred_check
      _
    $region127: #{_lambda_.1} parent=1 // pred_check_branch
      %484 = sbr.rel (0) target = $region129
    $region128: #{_lambda_.1} parent=1 // pred_region
      %s486 = ssub.s32 16, 16
      %487 = vsyncadd [#allocation47], %s486
      %s489 = sshll.u32 [#allocation48], 4
      %s490 = int_to_ptr.vmem [resolvable:$true] %s489
      %492 = dma.hbm_to_vmem [thread:$0]  %s63, 16, %s490, [#allocation47]
    $region129: #{_lambda_.1} parent=1 // pred_fallthru
      _
    // Predicated region
    $region130: #{_lambda_.1} parent=1 // pred_check
      _
    $region131: #{_lambda_.1} parent=1 // pred_check_branch
      %494 = sbr.rel (0) target = $region133
    $region132: #{_lambda_.1} parent=1 // pred_region
      %s496 = ssub.s32 512, 512
      %497 = vsyncadd [#allocation50], %s496
      %s498 = sshll.u32 [#allocation49], 4
      %s499 = int_to_ptr.vmem [resolvable:$true] %s498
      %504 = dma.hbm_to_vmem [thread:$0]  %s65, 512, %s499, [#allocation50], 128, 128, 8
    $region133: #{_lambda_.1} parent=1 // pred_fallthru
      _
    // Predicated region
    $region134: #{_lambda_.1} parent=1 // pred_check
      _
    $region135: #{_lambda_.1} parent=1 // pred_check_branch
      %506 = sbr.rel (0) target = $region137
    $region136: #{_lambda_.1} parent=1 // pred_region
      %s508 = ssub.s32 16, 16
      %509 = vsyncadd [#allocation50], %s508
      %s511 = sshll.u32 [#allocation51], 4
      %s512 = int_to_ptr.vmem [resolvable:$true] %s511
      %514 = dma.hbm_to_vmem [thread:$0]  %s67, 16, %s512, [#allocation50]
    $region137: #{_lambda_.1} parent=1 // pred_fallthru
      _
    // Predicated region
    $region138: #{_lambda_.1} parent=1 // pred_check
      _
    $region139: #{_lambda_.1} parent=1 // pred_check_branch
      %516 = sbr.rel (0) target = $region141
    $region140: #{_lambda_.1} parent=1 // pred_region
      %s518 = ssub.s32 16, 16
      %519 = vsyncadd [#allocation53], %s518
      %s521 = sshll.u32 [#allocation52], 4
      %s522 = int_to_ptr.vmem [resolvable:$true] %s521
      %524 = dma.hbm_to_vmem [thread:$0]  %s69, 16, %s522, [#allocation53]
    $region141: #{_lambda_.1} parent=1 // pred_fallthru
      _
    // Predicated region
    $region142: #{_lambda_.1} parent=1 // pred_check
      _
    $region143: #{_lambda_.1} parent=1 // pred_check_branch
      %526 = sbr.rel (0) target = $region145
    $region144: #{_lambda_.1} parent=1 // pred_region
      %s528 = ssub.s32 16, 16
      %529 = vsyncadd [#allocation53], %s528
      %s531 = sshll.u32 [#allocation54], 4
      %s532 = int_to_ptr.vmem [resolvable:$true] %s531
      %534 = dma.hbm_to_vmem [thread:$0]  %s71, 16, %s532, [#allocation53]
    $region145: #{_lambda_.1} parent=1 // pred_fallthru
      _
    // Predicated region
    $region146: #{_lambda_.1} parent=1 // pred_check
      _
    $region147: #{_lambda_.1} parent=1 // pred_check_branch
      %536 = sbr.rel (0) target = $region149
    $region148: #{_lambda_.1} parent=1 // pred_region
      _
    $region149: #{_lambda_.1} parent=1 // pred_fallthru
      _
    // Predicated region
    $region150: #{_lambda_.1} parent=1 // pred_check
      _
    $region151: #{_lambda_.1} parent=1 // pred_check_branch
      %538 = sbr.rel (0) target = $region153
    $region152: #{_lambda_.1} parent=1 // pred_region
      %s540 = ssub.s32 16, 16
      %541 = vsyncadd [#allocation56], %s540
      %s543 = sshll.u32 [#allocation55], 4
      %s544 = int_to_ptr.vmem [resolvable:$true] %s543
      %546 = dma.hbm_to_vmem [thread:$0]  %s75, 16, %s544, [#allocation56]
    $region153: #{_lambda_.1} parent=1 // pred_fallthru
      _
    // Predicated region
    $region154: #{_lambda_.1} parent=1 // pred_check
      _
    $region155: #{_lambda_.1} parent=1 // pred_check_branch
      %548 = sbr.rel (0) target = $region157
    $region156: #{_lambda_.1} parent=1 // pred_region
      %s550 = ssub.s32 2048, 2048
      %551 = vsyncadd [#allocation56], %s550
      %s552 = sshll.u32 [#allocation57], 4
      %s553 = int_to_ptr.vmem [resolvable:$true] %s552
      %558 = dma.hbm_to_vmem [thread:$0]  %s77, 2048, %s553, [#allocation56], 128, 128, 8
    $region157: #{_lambda_.1} parent=1 // pred_fallthru
      _
    // Predicated region
    $region158: #{_lambda_.1} parent=1 // pred_check
      _
    $region159: #{_lambda_.1} parent=1 // pred_check_branch
      %560 = sbr.rel (0) target = $region161
    $region160: #{_lambda_.1} parent=1 // pred_region
      %s562 = ssub.s32 16, 16
      %563 = vsyncadd [#allocation59], %s562
      %s565 = sshll.u32 [#allocation58], 4
      %s566 = int_to_ptr.vmem [resolvable:$true] %s565
      %568 = dma.hbm_to_vmem [thread:$0]  %s79, 16, %s566, [#allocation59]
    $region161: #{_lambda_.1} parent=1 // pred_fallthru
      _
    // Predicated region
    $region162: #{_lambda_.1} parent=1 // pred_check
      _
    $region163: #{_lambda_.1} parent=1 // pred_check_branch
      %570 = sbr.rel (0) target = $region165
    $region164: #{_lambda_.1} parent=1 // pred_region
      %s572 = ssub.s32 16, 16
      %573 = vsyncadd [#allocation59], %s572
      %s575 = sshll.u32 [#allocation60], 4
      %s576 = int_to_ptr.vmem [resolvable:$true] %s575
      %578 = dma.hbm_to_vmem [thread:$0]  %s81, 16, %s576, [#allocation59]
    $region165: #{_lambda_.1} parent=1 // pred_fallthru
      _
    // Predicated region
    $region166: #{_lambda_.1} parent=1 // pred_check
      _
    $region167: #{_lambda_.1} parent=1 // pred_check_branch
      %580 = sbr.rel (0) target = $region169
    $region168: #{_lambda_.1} parent=1 // pred_region
      _
    $region169: #{_lambda_.1} parent=1 // pred_fallthru
      _
    // Predicated region
    $region170: #{_lambda_.1} parent=1 // pred_check
      _
    $region171: #{_lambda_.1} parent=1 // pred_check_branch
      %582 = sbr.rel (0) target = $region173
    $region172: #{_lambda_.1} parent=1 // pred_region
      _
    $region173: #{_lambda_.1} parent=1 // pred_fallthru
      _
    // Predicated region
    $region174: #{_lambda_.1} parent=1 // pred_check
      _
    $region175: #{_lambda_.1} parent=1 // pred_check_branch
      %584 = sbr.rel (0) target = $region177
    $region176: #{_lambda_.1} parent=1 // pred_region
      _
    $region177: #{_lambda_.1} parent=1 // pred_fallthru
      _
    // Predicated region
    $region178: #{_lambda_.1} parent=1 // pred_check
      _
    $region179: #{_lambda_.1} parent=1 // pred_check_branch
      %586 = sbr.rel (0) target = $region181
    $region180: #{_lambda_.1} parent=1 // pred_region
      %s588 = ssub.s32 2048, 2048
      %589 = vsyncadd [#allocation62], %s588
      %s590 = sshll.u32 [#allocation61], 4
      %s591 = int_to_ptr.vmem [resolvable:$true] %s590
      %596 = dma.hbm_to_vmem [thread:$0]  %s89, 2048, %s591, [#allocation62], 128, 128, 8
    $region181: #{_lambda_.1} parent=1 // pred_fallthru
      _
    // Predicated region
    $region182: #{_lambda_.1} parent=1 // pred_check
      _
    $region183: #{_lambda_.1} parent=1 // pred_check_branch
      %598 = sbr.rel (0) target = $region185
    $region184: #{_lambda_.1} parent=1 // pred_region
      _
    $region185: #{_lambda_.1} parent=1 // pred_fallthru
      _
    // Predicated region
    $region186: #{_lambda_.1} parent=1 // pred_check
      _
    $region187: #{_lambda_.1} parent=1 // pred_check_branch
      %600 = sbr.rel (0) target = $region189
    $region188: #{_lambda_.1} parent=1 // pred_region
      %s602 = ssub.s32 2048, 2048
      %603 = vsyncadd [#allocation62], %s602
      %s604 = sshll.u32 [#allocation63], 4
      %s605 = int_to_ptr.vmem [resolvable:$true] %s604
      %610 = dma.hbm_to_vmem [thread:$0]  %s93, 2048, %s605, [#allocation62], 128, 128, 8
    $region189: #{_lambda_.1} parent=1 // pred_fallthru
      _
    // Predicated region
    $region190: #{_lambda_.1} parent=1 // pred_check
      _
    $region191: #{_lambda_.1} parent=1 // pred_check_branch
      %612 = sbr.rel (0) target = $region193
    $region192: #{_lambda_.1} parent=1 // pred_region
      _
    $region193: #{_lambda_.1} parent=1 // pred_fallthru
      _
    // Predicated region
    $region194: #{_lambda_.1} parent=1 // pred_check
      _
    $region195: #{_lambda_.1} parent=1 // pred_check_branch
      %614 = sbr.rel (0) target = $region197
    $region196: #{_lambda_.1} parent=1 // pred_region
      %s616 = ssub.s32 2048, 2048
      %617 = vsyncadd [#allocation65], %s616
      %s618 = sshll.u32 [#allocation64], 4
      %s619 = int_to_ptr.vmem [resolvable:$true] %s618
      %624 = dma.hbm_to_vmem [thread:$0]  %s97, 2048, %s619, [#allocation65], 128, 128, 8
    $region197: #{_lambda_.1} parent=1 // pred_fallthru
      _
    // Predicated region
    $region198: #{_lambda_.1} parent=1 // pred_check
      _
    $region199: #{_lambda_.1} parent=1 // pred_check_branch
      %626 = sbr.rel (0) target = $region201
    $region200: #{_lambda_.1} parent=1 // pred_region
      _
    $region201: #{_lambda_.1} parent=1 // pred_fallthru
      _
    // Predicated region
    $region202: #{_lambda_.1} parent=1 // pred_check
      _
    $region203: #{_lambda_.1} parent=1 // pred_check_branch
      %628 = sbr.rel (0) target = $region205
    $region204: #{_lambda_.1} parent=1 // pred_region
      _
    $region205: #{_lambda_.1} parent=1 // pred_fallthru
      _
    // Predicated region
    $region206: #{_lambda_.1} parent=1 // pred_check
      _
    $region207: #{_lambda_.1} parent=1 // pred_check_branch
      %630 = sbr.rel (0) target = $region209
    $region208: #{_lambda_.1} parent=1 // pred_region
      _
    $region209: #{_lambda_.1} parent=1 // pred_fallthru
      _
    // Predicated region
    $region210: #{_lambda_.1} parent=1 // pred_check
      _
    $region211: #{_lambda_.1} parent=1 // pred_check_branch
      %632 = sbr.rel (0) target = $region213
    $region212: #{_lambda_.1} parent=1 // pred_region
      _
    $region213: #{_lambda_.1} parent=1 // pred_fallthru
      _
    // Predicated region
    $region214: #{_lambda_.1} parent=1 // pred_check
      _
    $region215: #{_lambda_.1} parent=1 // pred_check_branch
      %634 = sbr.rel (0) target = $region217
    $region216: #{_lambda_.1} parent=1 // pred_region
      _
    $region217: #{_lambda_.1} parent=1 // pred_fallthru
      _
    // Predicated region
    $region218: #{_lambda_.1} parent=1 // pred_check
      _
    $region219: #{_lambda_.1} parent=1 // pred_check_branch
      %636 = sbr.rel (0) target = $region221
    $region220: #{_lambda_.1} parent=1 // pred_region
      %s638 = ssub.s32 2048, 2048
      %639 = vsyncadd [#allocation65], %s638
      %s640 = sshll.u32 [#allocation66], 4
      %s641 = int_to_ptr.vmem [resolvable:$true] %s640
      %646 = dma.hbm_to_vmem [thread:$0]  %s109, 2048, %s641, [#allocation65], 128, 128, 8
    $region221: #{_lambda_.1} parent=1 // pred_fallthru
      _
    // Predicated region
    $region222: #{_lambda_.1} parent=1 // pred_check
      _
    $region223: #{_lambda_.1} parent=1 // pred_check_branch
      %648 = sbr.rel (0) target = $region225
    $region224: #{_lambda_.1} parent=1 // pred_region
      _
    $region225: #{_lambda_.1} parent=1 // pred_fallthru
      _
    // Predicated region
    $region226: #{_lambda_.1} parent=1 // pred_check
      _
    $region227: #{_lambda_.1} parent=1 // pred_check_branch
      %650 = sbr.rel (0) target = $region229
    $region228: #{_lambda_.1} parent=1 // pred_region
      %s652 = ssub.s32 2048, 2048
      %653 = vsyncadd [#allocation68], %s652
      %s654 = sshll.u32 [#allocation67], 4
      %s655 = int_to_ptr.vmem [resolvable:$true] %s654
      %660 = dma.hbm_to_vmem [thread:$0]  %s113, 2048, %s655, [#allocation68], 128, 128, 8
    $region229: #{_lambda_.1} parent=1 // pred_fallthru
      _
    // Predicated region
    $region230: #{_lambda_.1} parent=1 // pred_check
      _
    $region231: #{_lambda_.1} parent=1 // pred_check_branch
      %662 = sbr.rel (0) target = $region233
    $region232: #{_lambda_.1} parent=1 // pred_region
      _
    $region233: #{_lambda_.1} parent=1 // pred_fallthru
      _
    // Predicated region
    $region234: #{_lambda_.1} parent=1 // pred_check
      _
    $region235: #{_lambda_.1} parent=1 // pred_check_branch
      %664 = sbr.rel (0) target = $region237
    $region236: #{_lambda_.1} parent=1 // pred_region
      _
    $region237: #{_lambda_.1} parent=1 // pred_fallthru
      _
    // Predicated region
    $region238: #{_lambda_.1} parent=1 // pred_check
      _
    $region239: #{_lambda_.1} parent=1 // pred_check_branch
      %666 = sbr.rel (0) target = $region241
    $region240: #{_lambda_.1} parent=1 // pred_region
      _
    $region241: #{_lambda_.1} parent=1 // pred_fallthru
      _
    // Predicated region
    $region242: #{_lambda_.1} parent=1 // pred_check
      _
    $region243: #{_lambda_.1} parent=1 // pred_check_branch
      %668 = sbr.rel (0) target = $region245
    $region244: #{_lambda_.1} parent=1 // pred_region
      _
    $region245: #{_lambda_.1} parent=1 // pred_fallthru
      _
    // Predicated region
    $region246: #{_lambda_.1} parent=1 // pred_check
      _
    $region247: #{_lambda_.1} parent=1 // pred_check_branch
      %670 = sbr.rel (0) target = $region249
    $region248: #{_lambda_.1} parent=1 // pred_region
      _
    $region249: #{_lambda_.1} parent=1 // pred_fallthru
      _
    // Predicated region
    $region250: #{_lambda_.1} parent=1 // pred_check
      _
    $region251: #{_lambda_.1} parent=1 // pred_check_branch
      %672 = sbr.rel (0) target = $region253
    $region252: #{_lambda_.1} parent=1 // pred_region
      %s674 = ssub.s32 2048, 2048
      %675 = vsyncadd [#allocation68], %s674
      %s676 = sshll.u32 [#allocation69], 4
      %s677 = int_to_ptr.vmem [resolvable:$true] %s676
      %682 = dma.hbm_to_vmem [thread:$0]  %s125, 2048, %s677, [#allocation68], 128, 128, 8
    $region253: #{_lambda_.1} parent=1 // pred_fallthru
      _
    // Predicated region
    $region254: #{_lambda_.1} parent=1 // pred_check
      _
    $region255: #{_lambda_.1} parent=1 // pred_check_branch
      %684 = sbr.rel (0) target = $region257
    $region256: #{_lambda_.1} parent=1 // pred_region
      _
    $region257: #{_lambda_.1} parent=1 // pred_fallthru
      _
    // Predicated region
    $region258: #{_lambda_.1} parent=1 // pred_check
      _
    $region259: #{_lambda_.1} parent=1 // pred_check_branch
      %686 = sbr.rel (0) target = $region261
    $region260: #{_lambda_.1} parent=1 // pred_region
      %687 = dma.done [#allocation3], 2048
    $region261: #{_lambda_.1} parent=1 // pred_fallthru
      _
    // Predicated region
    $region262: #{_lambda_.1} parent=1 // pred_check
      _
    $region263: #{_lambda_.1} parent=1 // pred_check_branch
      %689 = sbr.rel (0) target = $region265
    $region264: #{_lambda_.1} parent=1 // pred_region
      %690 = dma.done [#allocation5], 16
    $region265: #{_lambda_.1} parent=1 // pred_fallthru
      _
    // Predicated region
    $region266: #{_lambda_.1} parent=1 // pred_check
      _
    $region267: #{_lambda_.1} parent=1 // pred_check_branch
      %692 = sbr.rel (0) target = $region269
    $region268: #{_lambda_.1} parent=1 // pred_region
      %693 = dma.done [#allocation5], 2048
    $region269: #{_lambda_.1} parent=1 // pred_fallthru
      _
    // Predicated region
    $region270: #{_lambda_.1} parent=1 // pred_check
      _
    $region271: #{_lambda_.1} parent=1 // pred_check_branch
      %695 = sbr.rel (0) target = $region273
    $region272: #{_lambda_.1} parent=1 // pred_region
      %696 = dma.done [#allocation8], 16
    $region273: #{_lambda_.1} parent=1 // pred_fallthru
      _
    // Predicated region
    $region274: #{_lambda_.1} parent=1 // pred_check
      _
    $region275: #{_lambda_.1} parent=1 // pred_check_branch
      %698 = sbr.rel (0) target = $region277
    $region276: #{_lambda_.1} parent=1 // pred_region
      %699 = dma.done [#allocation8], 16
    $region277: #{_lambda_.1} parent=1 // pred_fallthru
      _
    // Predicated region
    $region278: #{_lambda_.1} parent=1 // pred_check
      _
    $region279: #{_lambda_.1} parent=1 // pred_check_branch
      %701 = sbr.rel (0) target = $region281
    $region280: #{_lambda_.1} parent=1 // pred_region
      %702 = dma.done [#allocation11], 16
    $region281: #{_lambda_.1} parent=1 // pred_fallthru
      _
    // Predicated region
    $region282: #{_lambda_.1} parent=1 // pred_check
      _
    $region283: #{_lambda_.1} parent=1 // pred_check_branch
      %704 = sbr.rel (0) target = $region285
    $region284: #{_lambda_.1} parent=1 // pred_region
      %705 = dma.done [#allocation11], 2048
    $region285: #{_lambda_.1} parent=1 // pred_fallthru
      _
    // Predicated region
    $region286: #{_lambda_.1} parent=1 // pred_check
      _
    $region287: #{_lambda_.1} parent=1 // pred_check_branch
      %707 = sbr.rel (0) target = $region289
    $region288: #{_lambda_.1} parent=1 // pred_region
      %708 = dma.done [#allocation14], 16
    $region289: #{_lambda_.1} parent=1 // pred_fallthru
      _
    // Predicated region
    $region290: #{_lambda_.1} parent=1 // pred_check
      _
    $region291: #{_lambda_.1} parent=1 // pred_check_branch
      %710 = sbr.rel (0) target = $region293
    $region292: #{_lambda_.1} parent=1 // pred_region
      %711 = dma.done [#allocation14], 16
    $region293: #{_lambda_.1} parent=1 // pred_fallthru
      _
    // Predicated region
    $region294: #{_lambda_.1} parent=1 // pred_check
      _
    $region295: #{_lambda_.1} parent=1 // pred_check_branch
      %713 = sbr.rel (0) target = $region297
    $region296: #{_lambda_.1} parent=1 // pred_region
      %714 = dma.done [#allocation17], 16
    $region297: #{_lambda_.1} parent=1 // pred_fallthru
      _
    // Predicated region
    $region298: #{_lambda_.1} parent=1 // pred_check
      _
    $region299: #{_lambda_.1} parent=1 // pred_check_branch
      %716 = sbr.rel (0) target = $region301
    $region300: #{_lambda_.1} parent=1 // pred_region
      %717 = dma.done [#allocation17], 2048
    $region301: #{_lambda_.1} parent=1 // pred_fallthru
      _
    // Predicated region
    $region302: #{_lambda_.1} parent=1 // pred_check
      _
    $region303: #{_lambda_.1} parent=1 // pred_check_branch
      %719 = sbr.rel (0) target = $region305
    $region304: #{_lambda_.1} parent=1 // pred_region
      %720 = dma.done [#allocation20], 16
    $region305: #{_lambda_.1} parent=1 // pred_fallthru
      _
    // Predicated region
    $region306: #{_lambda_.1} parent=1 // pred_check
      _
    $region307: #{_lambda_.1} parent=1 // pred_check_branch
      %722 = sbr.rel (0) target = $region309
    $region308: #{_lambda_.1} parent=1 // pred_region
      %723 = dma.done [#allocation20], 2048
    $region309: #{_lambda_.1} parent=1 // pred_fallthru
      _
    // Predicated region
    $region310: #{_lambda_.1} parent=1 // pred_check
      _
    $region311: #{_lambda_.1} parent=1 // pred_check_branch
      %725 = sbr.rel (0) target = $region313
    $region312: #{_lambda_.1} parent=1 // pred_region
      %726 = dma.done [#allocation23], 16
    $region313: #{_lambda_.1} parent=1 // pred_fallthru
      _
    // Predicated region
    $region314: #{_lambda_.1} parent=1 // pred_check
      _
    $region315: #{_lambda_.1} parent=1 // pred_check_branch
      %728 = sbr.rel (0) target = $region317
    $region316: #{_lambda_.1} parent=1 // pred_region
      %729 = dma.done [#allocation23], 16
    $region317: #{_lambda_.1} parent=1 // pred_fallthru
      _
    // Predicated region
    $region318: #{_lambda_.1} parent=1 // pred_check
      _
    $region319: #{_lambda_.1} parent=1 // pred_check_branch
      %731 = sbr.rel (0) target = $region321
    $region320: #{_lambda_.1} parent=1 // pred_region
      %732 = dma.done [#allocation26], 16
    $region321: #{_lambda_.1} parent=1 // pred_fallthru
      _
    // Predicated region
    $region322: #{_lambda_.1} parent=1 // pred_check
      _
    $region323: #{_lambda_.1} parent=1 // pred_check_branch
      %734 = sbr.rel (0) target = $region325
    $region324: #{_lambda_.1} parent=1 // pred_region
      %735 = dma.done [#allocation26], 2048
    $region325: #{_lambda_.1} parent=1 // pred_fallthru
      _
    // Predicated region
    $region326: #{_lambda_.1} parent=1 // pred_check
      _
    $region327: #{_lambda_.1} parent=1 // pred_check_branch
      %737 = sbr.rel (0) target = $region329
    $region328: #{_lambda_.1} parent=1 // pred_region
      %738 = dma.done [#allocation29], 16
    $region329: #{_lambda_.1} parent=1 // pred_fallthru
      _
    // Predicated region
    $region330: #{_lambda_.1} parent=1 // pred_check
      _
    $region331: #{_lambda_.1} parent=1 // pred_check_branch
      %740 = sbr.rel (0) target = $region333
    $region332: #{_lambda_.1} parent=1 // pred_region
      %741 = dma.done [#allocation29], 16
    $region333: #{_lambda_.1} parent=1 // pred_fallthru
      _
    // Predicated region
    $region334: #{_lambda_.1} parent=1 // pred_check
      _
    $region335: #{_lambda_.1} parent=1 // pred_check_branch
      %743 = sbr.rel (0) target = $region337
    $region336: #{_lambda_.1} parent=1 // pred_region
      %744 = dma.done [#allocation32], 16
    $region337: #{_lambda_.1} parent=1 // pred_fallthru
      _
    // Predicated region
    $region338: #{_lambda_.1} parent=1 // pred_check
      _
    $region339: #{_lambda_.1} parent=1 // pred_check_branch
      %746 = sbr.rel (0) target = $region341
    $region340: #{_lambda_.1} parent=1 // pred_region
      %747 = dma.done [#allocation32], 2048
    $region341: #{_lambda_.1} parent=1 // pred_fallthru
      _
    // Predicated region
    $region342: #{_lambda_.1} parent=1 // pred_check
      _
    $region343: #{_lambda_.1} parent=1 // pred_check_branch
      %749 = sbr.rel (0) target = $region345
    $region344: #{_lambda_.1} parent=1 // pred_region
      %750 = dma.done [#allocation35], 16
    $region345: #{_lambda_.1} parent=1 // pred_fallthru
      _
    // Predicated region
    $region346: #{_lambda_.1} parent=1 // pred_check
      _
    $region347: #{_lambda_.1} parent=1 // pred_check_branch
      %752 = sbr.rel (0) target = $region349
    $region348: #{_lambda_.1} parent=1 // pred_region
      %753 = dma.done [#allocation35], 2048
    $region349: #{_lambda_.1} parent=1 // pred_fallthru
      _
    // Predicated region
    $region350: #{_lambda_.1} parent=1 // pred_check
      _
    $region351: #{_lambda_.1} parent=1 // pred_check_branch
      %755 = sbr.rel (0) target = $region353
    $region352: #{_lambda_.1} parent=1 // pred_region
      %756 = dma.done [#allocation38], 16
    $region353: #{_lambda_.1} parent=1 // pred_fallthru
      _
    // Predicated region
    $region354: #{_lambda_.1} parent=1 // pred_check
      _
    $region355: #{_lambda_.1} parent=1 // pred_check_branch
      %758 = sbr.rel (0) target = $region357
    $region356: #{_lambda_.1} parent=1 // pred_region
      %759 = dma.done [#allocation38], 2048
    $region357: #{_lambda_.1} parent=1 // pred_fallthru
      _
    // Predicated region
    $region358: #{_lambda_.1} parent=1 // pred_check
      _
    $region359: #{_lambda_.1} parent=1 // pred_check_branch
      %761 = sbr.rel (0) target = $region361
    $region360: #{_lambda_.1} parent=1 // pred_region
      %762 = dma.done [#allocation41], 2048
    $region361: #{_lambda_.1} parent=1 // pred_fallthru
      _
    // Predicated region
    $region362: #{_lambda_.1} parent=1 // pred_check
      _
    $region363: #{_lambda_.1} parent=1 // pred_check_branch
      %764 = sbr.rel (0) target = $region365
    $region364: #{_lambda_.1} parent=1 // pred_region
      %765 = dma.done [#allocation41], 16
    $region365: #{_lambda_.1} parent=1 // pred_fallthru
      _
    // Predicated region
    $region366: #{_lambda_.1} parent=1 // pred_check
      _
    $region367: #{_lambda_.1} parent=1 // pred_check_branch
      %767 = sbr.rel (0) target = $region369
    $region368: #{_lambda_.1} parent=1 // pred_region
      %768 = dma.done [#allocation44], 2048
    $region369: #{_lambda_.1} parent=1 // pred_fallthru
      _
    // Predicated region
    $region370: #{_lambda_.1} parent=1 // pred_check
      _
    $region371: #{_lambda_.1} parent=1 // pred_check_branch
      %770 = sbr.rel (0) target = $region373
    $region372: #{_lambda_.1} parent=1 // pred_region
      %771 = dma.done [#allocation44], 16
    $region373: #{_lambda_.1} parent=1 // pred_fallthru
      _
    // Predicated region
    $region374: #{_lambda_.1} parent=1 // pred_check
      _
    $region375: #{_lambda_.1} parent=1 // pred_check_branch
      %773 = sbr.rel (0) target = $region377
    $region376: #{_lambda_.1} parent=1 // pred_region
      %774 = dma.done [#allocation47], 2048
    $region377: #{_lambda_.1} parent=1 // pred_fallthru
      _
    // Predicated region
    $region378: #{_lambda_.1} parent=1 // pred_check
      _
    $region379: #{_lambda_.1} parent=1 // pred_check_branch
      %776 = sbr.rel (0) target = $region381
    $region380: #{_lambda_.1} parent=1 // pred_region
      %777 = dma.done [#allocation47], 16
    $region381: #{_lambda_.1} parent=1 // pred_fallthru
      _
    // Predicated region
    $region382: #{_lambda_.1} parent=1 // pred_check
      _
    $region383: #{_lambda_.1} parent=1 // pred_check_branch
      %779 = sbr.rel (0) target = $region385
    $region384: #{_lambda_.1} parent=1 // pred_region
      %780 = dma.done [#allocation50], 512
    $region385: #{_lambda_.1} parent=1 // pred_fallthru
      _
    // Predicated region
    $region386: #{_lambda_.1} parent=1 // pred_check
      _
    $region387: #{_lambda_.1} parent=1 // pred_check_branch
      %782 = sbr.rel (0) target = $region389
    $region388: #{_lambda_.1} parent=1 // pred_region
      %783 = dma.done [#allocation50], 16
    $region389: #{_lambda_.1} parent=1 // pred_fallthru
      _
    // Predicated region
    $region390: #{_lambda_.1} parent=1 // pred_check
      _
    $region391: #{_lambda_.1} parent=1 // pred_check_branch
      %785 = sbr.rel (0) target = $region393
    $region392: #{_lambda_.1} parent=1 // pred_region
      %786 = dma.done [#allocation53], 16
    $region393: #{_lambda_.1} parent=1 // pred_fallthru
      _
    // Predicated region
    $region394: #{_lambda_.1} parent=1 // pred_check
      _
    $region395: #{_lambda_.1} parent=1 // pred_check_branch
      %788 = sbr.rel (0) target = $region397
    $region396: #{_lambda_.1} parent=1 // pred_region
      %789 = dma.done [#allocation53], 16
    $region397: #{_lambda_.1} parent=1 // pred_fallthru
      _
    // Predicated region
    $region398: #{_lambda_.1} parent=1 // pred_check
      _
    $region399: #{_lambda_.1} parent=1 // pred_check_branch
      %791 = sbr.rel (0) target = $region401
    $region400: #{_lambda_.1} parent=1 // pred_region
      %792 = dma.done [#allocation56], 16
    $region401: #{_lambda_.1} parent=1 // pred_fallthru
      _
    // Predicated region
    $region402: #{_lambda_.1} parent=1 // pred_check
      _
    $region403: #{_lambda_.1} parent=1 // pred_check_branch
      %794 = sbr.rel (0) target = $region405
    $region404: #{_lambda_.1} parent=1 // pred_region
      %795 = dma.done [#allocation56], 2048
    $region405: #{_lambda_.1} parent=1 // pred_fallthru
      _
    // Predicated region
    $region406: #{_lambda_.1} parent=1 // pred_check
      _
    $region407: #{_lambda_.1} parent=1 // pred_check_branch
      %797 = sbr.rel (0) target = $region409
    $region408: #{_lambda_.1} parent=1 // pred_region
      %798 = dma.done [#allocation59], 16
    $region409: #{_lambda_.1} parent=1 // pred_fallthru
      _
    // Predicated region
    $region410: #{_lambda_.1} parent=1 // pred_check
      _
    $region411: #{_lambda_.1} parent=1 // pred_check_branch
      %800 = sbr.rel (0) target = $region413
    $region412: #{_lambda_.1} parent=1 // pred_region
      %801 = dma.done [#allocation59], 16
    $region413: #{_lambda_.1} parent=1 // pred_fallthru
      _
    // Predicated region
    $region414: #{_lambda_.1} parent=1 // pred_check
      _
    $region415: #{_lambda_.1} parent=1 // pred_check_branch
      %803 = sbr.rel (0) target = $region417
    $region416: #{_lambda_.1} parent=1 // pred_region
      %804 = dma.done [#allocation62], 2048
    $region417: #{_lambda_.1} parent=1 // pred_fallthru
      _
    // Predicated region
    $region418: #{_lambda_.1} parent=1 // pred_check
      _
    $region419: #{_lambda_.1} parent=1 // pred_check_branch
      %806 = sbr.rel (0) target = $region421
    $region420: #{_lambda_.1} parent=1 // pred_region
      %807 = dma.done [#allocation62], 2048
    $region421: #{_lambda_.1} parent=1 // pred_fallthru
      _
    // Predicated region
    $region422: #{_lambda_.1} parent=1 // pred_check
      _
    $region423: #{_lambda_.1} parent=1 // pred_check_branch
      %809 = sbr.rel (0) target = $region425
    $region424: #{_lambda_.1} parent=1 // pred_region
      %810 = dma.done [#allocation65], 2048
    $region425: #{_lambda_.1} parent=1 // pred_fallthru
      _
    // Predicated region
    $region426: #{_lambda_.1} parent=1 // pred_check
      _
    $region427: #{_lambda_.1} parent=1 // pred_check_branch
      %812 = sbr.rel (0) target = $region429
    $region428: #{_lambda_.1} parent=1 // pred_region
      %813 = dma.done [#allocation65], 2048
    $region429: #{_lambda_.1} parent=1 // pred_fallthru
      _
    // Predicated region
    $region430: #{_lambda_.1} parent=1 // pred_check
      _
    $region431: #{_lambda_.1} parent=1 // pred_check_branch
      %815 = sbr.rel (0) target = $region433
    $region432: #{_lambda_.1} parent=1 // pred_region
      %816 = dma.done [#allocation68], 2048
    $region433: #{_lambda_.1} parent=1 // pred_fallthru
      _
    // Predicated region
    $region434: #{_lambda_.1} parent=1 // pred_check
      _
    $region435: #{_lambda_.1} parent=1 // pred_check_branch
      %818 = sbr.rel (0) target = $region437
    $region436: #{_lambda_.1} parent=1 // pred_region
      %819 = dma.done [#allocation68], 2048
    $region437: #{_lambda_.1} parent=1 // pred_fallthru
      _
    %v820 = vld [vmem:[%s1] sm:$0xff]
    %v821 = vld [vmem:[#allocation2] sm:$0xff]
    %v822 = vld [vmem:[#allocation2 + $0x8] sm:$0xff]
    %v823 = vld [vmem:[#allocation2 + $0x10] sm:$0xff]
    %v824 = vld [vmem:[#allocation2 + $0x18] sm:$0xff]
    %v825 = vld [vmem:[#allocation2 + $0x20] sm:$0xff]
    %v826 = vld [vmem:[#allocation2 + $0x28] sm:$0xff]
    %v827 = vld [vmem:[#allocation2 + $0x30] sm:$0xff]
    %v828 = vld [vmem:[#allocation2 + $0x38] sm:$0xff]
    %v829 = vld [vmem:[#allocation2 + $0x40] sm:$0xff]
    %v830 = vld [vmem:[#allocation2 + $0x48] sm:$0xff]
    %v831 = vld [vmem:[#allocation2 + $0x50] sm:$0xff]
    %v832 = vld [vmem:[#allocation2 + $0x58] sm:$0xff]
    %v833 = vld [vmem:[#allocation2 + $0x60] sm:$0xff]
    %v834 = vld [vmem:[#allocation2 + $0x68] sm:$0xff]
    %v835 = vld [vmem:[#allocation2 + $0x70] sm:$0xff]
    %v836 = vld [vmem:[#allocation2 + $0x78] sm:$0xff]
    %v837 = vld [vmem:[#allocation4] sm:$0x1]
    %v839 = vlaneseq
    %v840 = vshrl.u32 %v839, 7
    %v841 = vsub.s32 0, %v840
    %v842 = vrot.slane %v837, %v841
    %844 = vmatprep.subr.mxu0 0.0
    %845 = vmatpush1.msra.mxu0 %v821
    %846 = vmatprep.subr.mxu0 0.0
    %847 = vmatpush1.msra.mxu0 %v822
    %848 = vmatprep.subr.mxu0 0.0
    %849 = vmatpush1.msra.mxu0 %v823
    %850 = vmatprep.subr.mxu0 0.0
    %851 = vmatpush1.msra.mxu0 %v824
    %852 = vmatprep.subr.mxu0 0.0
    %853 = vmatpush1.msra.mxu0 %v825
    %854 = vmatprep.subr.mxu0 0.0
    %855 = vmatpush1.msra.mxu0 %v826
    %856 = vmatprep.subr.mxu0 0.0
    %857 = vmatpush1.msra.mxu0 %v827
    %858 = vmatprep.subr.mxu0 0.0
    %859 = vmatpush1.msra.mxu0 %v828
    %860 = vmatprep.subr.mxu0 0.0
    %861 = vmatpush1.msra.mxu0 %v829
    %862 = vmatprep.subr.mxu0 0.0
    %863 = vmatpush1.msra.mxu0 %v830
    %864 = vmatprep.subr.mxu0 0.0
    %865 = vmatpush1.msra.mxu0 %v831
    %866 = vmatprep.subr.mxu0 0.0
    %867 = vmatpush1.msra.mxu0 %v832
    %868 = vmatprep.subr.mxu0 0.0
    %869 = vmatpush1.msra.mxu0 %v833
    %870 = vmatprep.subr.mxu0 0.0
    %871 = vmatpush1.msra.mxu0 %v834
    %872 = vmatprep.subr.mxu0 0.0
    %873 = vmatpush1.msra.mxu0 %v835
    %874 = vmatprep.subr.mxu0 0.0
    %875 = vmatpush1.msra.mxu0 %v836
    %876 = vmatprep.subr.mxu0 0.0
    %877 = vmatpush1.msra.mxu0 0.0
    %878 = vmatprep.subr.mxu0 0.0
    %879 = vmatpush1.msra.mxu0 0.0
    %880 = vmatprep.subr.mxu0 0.0
    %881 = vmatpush1.msra.mxu0 0.0
    %882 = vmatprep.subr.mxu0 0.0
    %883 = vmatpush1.msra.mxu0 0.0
    %884 = vmatprep.subr.mxu0 0.0
    %885 = vmatpush1.msra.mxu0 0.0
    %886 = vmatprep.subr.mxu0 0.0
    %887 = vmatpush1.msra.mxu0 0.0
    %888 = vmatprep.subr.mxu0 0.0
    %889 = vmatpush1.msra.mxu0 0.0
    %890 = vmatprep.subr.mxu0 0.0
    %891 = vmatpush1.msra.mxu0 0.0
    %892 = vmatprep.subr.mxu0 0.0
    %893 = vmatpush1.msra.mxu0 0.0
    %894 = vmatprep.subr.mxu0 0.0
    %895 = vmatpush1.msra.mxu0 0.0
    %896 = vmatprep.subr.mxu0 0.0
    %897 = vmatpush1.msra.mxu0 0.0
    %898 = vmatprep.subr.mxu0 0.0
    %899 = vmatpush1.msra.mxu0 0.0
    %900 = vmatprep.subr.mxu0 0.0
    %901 = vmatpush1.msra.mxu0 0.0
    %902 = vmatprep.subr.mxu0 0.0
    %903 = vmatpush1.msra.mxu0 0.0
    %904 = vmatprep.subr.mxu0 0.0
    %905 = vmatpush1.msra.mxu0 0.0
    %906 = vmatprep.subr.mxu0 0.0
    %907 = vmatpush1.msra.mxu0 0.0
    %908 = vmatprep.mubr.f32.mxu0 0.0
    %909 = vmatmul.mubr.f32.gmra.mrb[0].mxu0 %v820
    %v910 = vpop.f32.mrb[0].mxu0
    %v911 = vadd.f32 %v842, %v910
    %v912 = vpop.f32.mrb[0].mxu0
    %913 = vdwg.mxu0
    %v914 = vld [vmem:[#allocation6] sm:$0xff]
    %v915 = vld [vmem:[#allocation6 + $0x8] sm:$0xff]
    %v916 = vld [vmem:[#allocation6 + $0x10] sm:$0xff]
    %v917 = vld [vmem:[#allocation6 + $0x18] sm:$0xff]
    %v918 = vld [vmem:[#allocation6 + $0x20] sm:$0xff]
    %v919 = vld [vmem:[#allocation6 + $0x28] sm:$0xff]
    %v920 = vld [vmem:[#allocation6 + $0x30] sm:$0xff]
    %v921 = vld [vmem:[#allocation6 + $0x38] sm:$0xff]
    %v922 = vld [vmem:[#allocation6 + $0x40] sm:$0xff]
    %v923 = vld [vmem:[#allocation6 + $0x48] sm:$0xff]
    %v924 = vld [vmem:[#allocation6 + $0x50] sm:$0xff]
    %v925 = vld [vmem:[#allocation6 + $0x58] sm:$0xff]
    %v926 = vld [vmem:[#allocation6 + $0x60] sm:$0xff]
    %v927 = vld [vmem:[#allocation6 + $0x68] sm:$0xff]
    %v928 = vld [vmem:[#allocation6 + $0x70] sm:$0xff]
    %v929 = vld [vmem:[#allocation6 + $0x78] sm:$0xff]
    %v930 = vld [vmem:[#allocation7] sm:$0x1]
    %v931 = vld [vmem:[#allocation9] sm:$0x1]
    %v932 = vld [vmem:[#allocation10] sm:$0x1]
    %v934 = vlaneseq
    %v935 = vshrl.u32 %v934, 7
    %v936 = vsub.s32 0, %v935
    %v937 = vrot.slane %v930, %v936
    %939 = vmatprep.subr.mxu0 0.0
    %940 = vmatpush1.msra.mxu0 %v914
    %941 = vmatprep.subr.mxu0 0.0
    %942 = vmatpush1.msra.mxu0 %v915
    %943 = vmatprep.subr.mxu0 0.0
    %944 = vmatpush1.msra.mxu0 %v916
    %945 = vmatprep.subr.mxu0 0.0
    %946 = vmatpush1.msra.mxu0 %v917
    %947 = vmatprep.subr.mxu0 0.0
    %948 = vmatpush1.msra.mxu0 %v918
    %949 = vmatprep.subr.mxu0 0.0
    %950 = vmatpush1.msra.mxu0 %v919
    %951 = vmatprep.subr.mxu0 0.0
    %952 = vmatpush1.msra.mxu0 %v920
    %953 = vmatprep.subr.mxu0 0.0
    %954 = vmatpush1.msra.mxu0 %v921
    %955 = vmatprep.subr.mxu0 0.0
    %956 = vmatpush1.msra.mxu0 %v922
    %957 = vmatprep.subr.mxu0 0.0
    %958 = vmatpush1.msra.mxu0 %v923
    %959 = vmatprep.subr.mxu0 0.0
    %960 = vmatpush1.msra.mxu0 %v924
    %961 = vmatprep.subr.mxu0 0.0
    %962 = vmatpush1.msra.mxu0 %v925
    %963 = vmatprep.subr.mxu0 0.0
    %964 = vmatpush1.msra.mxu0 %v926
    %965 = vmatprep.subr.mxu0 0.0
    %966 = vmatpush1.msra.mxu0 %v927
    %967 = vmatprep.subr.mxu0 0.0
    %968 = vmatpush1.msra.mxu0 %v928
    %969 = vmatprep.subr.mxu0 0.0
    %970 = vmatpush1.msra.mxu0 %v929
    %971 = vmatprep.subr.mxu0 0.0
    %972 = vmatpush1.msra.mxu0 0.0
    %973 = vmatprep.subr.mxu0 0.0
    %974 = vmatpush1.msra.mxu0 0.0
    %975 = vmatprep.subr.mxu0 0.0
    %976 = vmatpush1.msra.mxu0 0.0
    %977 = vmatprep.subr.mxu0 0.0
    %978 = vmatpush1.msra.mxu0 0.0
    %979 = vmatprep.subr.mxu0 0.0
    %980 = vmatpush1.msra.mxu0 0.0
    %981 = vmatprep.subr.mxu0 0.0
    %982 = vmatpush1.msra.mxu0 0.0
    %983 = vmatprep.subr.mxu0 0.0
    %984 = vmatpush1.msra.mxu0 0.0
    %985 = vmatprep.subr.mxu0 0.0
    %986 = vmatpush1.msra.mxu0 0.0
    %987 = vmatprep.subr.mxu0 0.0
    %988 = vmatpush1.msra.mxu0 0.0
    %989 = vmatprep.subr.mxu0 0.0
    %990 = vmatpush1.msra.mxu0 0.0
    %991 = vmatprep.subr.mxu0 0.0
    %992 = vmatpush1.msra.mxu0 0.0
    %993 = vmatprep.subr.mxu0 0.0
    %994 = vmatpush1.msra.mxu0 0.0
    %995 = vmatprep.subr.mxu0 0.0
    %996 = vmatpush1.msra.mxu0 0.0
    %997 = vmatprep.subr.mxu0 0.0
    %998 = vmatpush1.msra.mxu0 0.0
    %999 = vmatprep.subr.mxu0 0.0
    %1000 = vmatpush1.msra.mxu0 0.0
    %1001 = vmatprep.subr.mxu0 0.0
    %1002 = vmatpush1.msra.mxu0 0.0
    %1003 = vmatprep.mubr.f32.mxu0 0.0
    %1004 = vmatmul.mubr.f32.gmra.mrb[0].mxu0 %v911
    %v1005 = vpop.f32.mrb[0].mxu0
    %v1006 = vadd.f32 %v937, %v1005
    %v1007 = vpop.f32.mrb[0].mxu0
    %1008 = vdwg.mxu0
    %v1009 = vsub.f32 0.0, %v931
    %v1011 = vlaneseq
    %v1012 = vshrl.u32 %v1011, 7
    %v1013 = vsub.s32 0, %v1012
    %v1014 = vrot.slane %v1009, %v1013
    %v1016 = vmul.f32 %v1014, %v1006
    %v1017 = vmul.f32 %v1016, 1.442695
    %v1018 = vpow.pop %v1017
    %v1019 = vadd.f32 %v1018, 1.0
    %v1020 = vrcp.pop %v1019
    %v1021 = vsub.f32 1.0, %v932
    %v1023 = vlaneseq
    %v1024 = vshrl.u32 %v1023, 7
    %v1025 = vsub.s32 0, %v1024
    %v1026 = vrot.slane %v1021, %v1025
    %v1028 = vmul.f32 %v1020, %v1026
    %v1030 = vlaneseq
    %v1031 = vshrl.u32 %v1030, 7
    %v1032 = vsub.s32 0, %v1031
    %v1033 = vrot.slane %v932, %v1032
    %v1035 = vadd.f32 %v1033, %v1028
    %v1036 = vmul.f32 %v1035, %v1006
    %v1037 = vld [vmem:[#allocation12] sm:$0xff]
    %v1038 = vld [vmem:[#allocation12 + $0x8] sm:$0xff]
    %v1039 = vld [vmem:[#allocation12 + $0x10] sm:$0xff]
    %v1040 = vld [vmem:[#allocation12 + $0x18] sm:$0xff]
    %v1041 = vld [vmem:[#allocation12 + $0x20] sm:$0xff]
    %v1042 = vld [vmem:[#allocation12 + $0x28] sm:$0xff]
    %v1043 = vld [vmem:[#allocation12 + $0x30] sm:$0xff]
    %v1044 = vld [vmem:[#allocation12 + $0x38] sm:$0xff]
    %v1045 = vld [vmem:[#allocation12 + $0x40] sm:$0xff]
    %v1046 = vld [vmem:[#allocation12 + $0x48] sm:$0xff]
    %v1047 = vld [vmem:[#allocation12 + $0x50] sm:$0xff]
    %v1048 = vld [vmem:[#allocation12 + $0x58] sm:$0xff]
    %v1049 = vld [vmem:[#allocation12 + $0x60] sm:$0xff]
    %v1050 = vld [vmem:[#allocation12 + $0x68] sm:$0xff]
    %v1051 = vld [vmem:[#allocation12 + $0x70] sm:$0xff]
    %v1052 = vld [vmem:[#allocation12 + $0x78] sm:$0xff]
    %v1053 = vld [vmem:[#allocation13] sm:$0x1]
    %v1054 = vld [vmem:[#allocation15] sm:$0x1]
    %v1055 = vld [vmem:[#allocation16] sm:$0x1]
    %v1057 = vlaneseq
    %v1058 = vshrl.u32 %v1057, 7
    %v1059 = vsub.s32 0, %v1058
    %v1060 = vrot.slane %v1053, %v1059
    %1062 = vmatprep.subr.mxu0 0.0
    %1063 = vmatpush1.msra.mxu0 %v1037
    %1064 = vmatprep.subr.mxu0 0.0
    %1065 = vmatpush1.msra.mxu0 %v1038
    %1066 = vmatprep.subr.mxu0 0.0
    %1067 = vmatpush1.msra.mxu0 %v1039
    %1068 = vmatprep.subr.mxu0 0.0
    %1069 = vmatpush1.msra.mxu0 %v1040
    %1070 = vmatprep.subr.mxu0 0.0
    %1071 = vmatpush1.msra.mxu0 %v1041
    %1072 = vmatprep.subr.mxu0 0.0
    %1073 = vmatpush1.msra.mxu0 %v1042
    %1074 = vmatprep.subr.mxu0 0.0
    %1075 = vmatpush1.msra.mxu0 %v1043
    %1076 = vmatprep.subr.mxu0 0.0
    %1077 = vmatpush1.msra.mxu0 %v1044
    %1078 = vmatprep.subr.mxu0 0.0
    %1079 = vmatpush1.msra.mxu0 %v1045
    %1080 = vmatprep.subr.mxu0 0.0
    %1081 = vmatpush1.msra.mxu0 %v1046
    %1082 = vmatprep.subr.mxu0 0.0
    %1083 = vmatpush1.msra.mxu0 %v1047
    %1084 = vmatprep.subr.mxu0 0.0
    %1085 = vmatpush1.msra.mxu0 %v1048
    %1086 = vmatprep.subr.mxu0 0.0
    %1087 = vmatpush1.msra.mxu0 %v1049
    %1088 = vmatprep.subr.mxu0 0.0
    %1089 = vmatpush1.msra.mxu0 %v1050
    %1090 = vmatprep.subr.mxu0 0.0
    %1091 = vmatpush1.msra.mxu0 %v1051
    %1092 = vmatprep.subr.mxu0 0.0
    %1093 = vmatpush1.msra.mxu0 %v1052
    %1094 = vmatprep.subr.mxu0 0.0
    %1095 = vmatpush1.msra.mxu0 0.0
    %1096 = vmatprep.subr.mxu0 0.0
    %1097 = vmatpush1.msra.mxu0 0.0
    %1098 = vmatprep.subr.mxu0 0.0
    %1099 = vmatpush1.msra.mxu0 0.0
    %1100 = vmatprep.subr.mxu0 0.0
    %1101 = vmatpush1.msra.mxu0 0.0
    %1102 = vmatprep.subr.mxu0 0.0
    %1103 = vmatpush1.msra.mxu0 0.0
    %1104 = vmatprep.subr.mxu0 0.0
    %1105 = vmatpush1.msra.mxu0 0.0
    %1106 = vmatprep.subr.mxu0 0.0
    %1107 = vmatpush1.msra.mxu0 0.0
    %1108 = vmatprep.subr.mxu0 0.0
    %1109 = vmatpush1.msra.mxu0 0.0
    %1110 = vmatprep.subr.mxu0 0.0
    %1111 = vmatpush1.msra.mxu0 0.0
    %1112 = vmatprep.subr.mxu0 0.0
    %1113 = vmatpush1.msra.mxu0 0.0
    %1114 = vmatprep.subr.mxu0 0.0
    %1115 = vmatpush1.msra.mxu0 0.0
    %1116 = vmatprep.subr.mxu0 0.0
    %1117 = vmatpush1.msra.mxu0 0.0
    %1118 = vmatprep.subr.mxu0 0.0
    %1119 = vmatpush1.msra.mxu0 0.0
    %1120 = vmatprep.subr.mxu0 0.0
    %1121 = vmatpush1.msra.mxu0 0.0
    %1122 = vmatprep.subr.mxu0 0.0
    %1123 = vmatpush1.msra.mxu0 0.0
    %1124 = vmatprep.subr.mxu0 0.0
    %1125 = vmatpush1.msra.mxu0 0.0
    %1126 = vmatprep.mubr.f32.mxu0 0.0
    %1127 = vmatmul.mubr.f32.gmra.mrb[0].mxu0 %v1036
    %v1128 = vpop.f32.mrb[0].mxu0
    %v1129 = vadd.f32 %v1060, %v1128
    %v1130 = vpop.f32.mrb[0].mxu0
    %1131 = vdwg.mxu0
    %v1132 = vsub.f32 0.0, %v1054
    %v1134 = vlaneseq
    %v1135 = vshrl.u32 %v1134, 7
    %v1136 = vsub.s32 0, %v1135
    %v1137 = vrot.slane %v1132, %v1136
    %v1139 = vmul.f32 %v1137, %v1129
    %v1140 = vmul.f32 %v1139, 1.442695
    %v1141 = vpow.pop %v1140
    %v1142 = vadd.f32 %v1141, 1.0
    %v1143 = vrcp.pop %v1142
    %v1144 = vsub.f32 1.0, %v1055
    %v1146 = vlaneseq
    %v1147 = vshrl.u32 %v1146, 7
    %v1148 = vsub.s32 0, %v1147
    %v1149 = vrot.slane %v1144, %v1148
    %v1151 = vmul.f32 %v1143, %v1149
    %v1153 = vlaneseq
    %v1154 = vshrl.u32 %v1153, 7
    %v1155 = vsub.s32 0, %v1154
    %v1156 = vrot.slane %v1055, %v1155
    %v1158 = vadd.f32 %v1156, %v1151
    %v1159 = vmul.f32 %v1158, %v1129
    %v1160 = vld [vmem:[#allocation18] sm:$0xff]
    %v1161 = vld [vmem:[#allocation18 + $0x8] sm:$0xff]
    %v1162 = vld [vmem:[#allocation18 + $0x10] sm:$0xff]
    %v1163 = vld [vmem:[#allocation18 + $0x18] sm:$0xff]
    %v1164 = vld [vmem:[#allocation18 + $0x20] sm:$0xff]
    %v1165 = vld [vmem:[#allocation18 + $0x28] sm:$0xff]
    %v1166 = vld [vmem:[#allocation18 + $0x30] sm:$0xff]
    %v1167 = vld [vmem:[#allocation18 + $0x38] sm:$0xff]
    %v1168 = vld [vmem:[#allocation18 + $0x40] sm:$0xff]
    %v1169 = vld [vmem:[#allocation18 + $0x48] sm:$0xff]
    %v1170 = vld [vmem:[#allocation18 + $0x50] sm:$0xff]
    %v1171 = vld [vmem:[#allocation18 + $0x58] sm:$0xff]
    %v1172 = vld [vmem:[#allocation18 + $0x60] sm:$0xff]
    %v1173 = vld [vmem:[#allocation18 + $0x68] sm:$0xff]
    %v1174 = vld [vmem:[#allocation18 + $0x70] sm:$0xff]
    %v1175 = vld [vmem:[#allocation18 + $0x78] sm:$0xff]
    %v1176 = vld [vmem:[#allocation19] sm:$0x1]
    %1177 = vmatprep.subr.mxu0 0.0
    %1178 = vmatpush1.msra.mxu0 %v1160
    %1179 = vmatprep.subr.mxu0 0.0
    %1180 = vmatpush1.msra.mxu0 %v1161
    %1181 = vmatprep.subr.mxu0 0.0
    %1182 = vmatpush1.msra.mxu0 %v1162
    %1183 = vmatprep.subr.mxu0 0.0
    %1184 = vmatpush1.msra.mxu0 %v1163
    %1185 = vmatprep.subr.mxu0 0.0
    %1186 = vmatpush1.msra.mxu0 %v1164
    %1187 = vmatprep.subr.mxu0 0.0
    %1188 = vmatpush1.msra.mxu0 %v1165
    %1189 = vmatprep.subr.mxu0 0.0
    %1190 = vmatpush1.msra.mxu0 %v1166
    %1191 = vmatprep.subr.mxu0 0.0
    %1192 = vmatpush1.msra.mxu0 %v1167
    %1193 = vmatprep.subr.mxu0 0.0
    %1194 = vmatpush1.msra.mxu0 %v1168
    %1195 = vmatprep.subr.mxu0 0.0
    %1196 = vmatpush1.msra.mxu0 %v1169
    %1197 = vmatprep.subr.mxu0 0.0
    %1198 = vmatpush1.msra.mxu0 %v1170
    %1199 = vmatprep.subr.mxu0 0.0
    %1200 = vmatpush1.msra.mxu0 %v1171
    %1201 = vmatprep.subr.mxu0 0.0
    %1202 = vmatpush1.msra.mxu0 %v1172
    %1203 = vmatprep.subr.mxu0 0.0
    %1204 = vmatpush1.msra.mxu0 %v1173
    %1205 = vmatprep.subr.mxu0 0.0
    %1206 = vmatpush1.msra.mxu0 %v1174
    %1207 = vmatprep.subr.mxu0 0.0
    %1208 = vmatpush1.msra.mxu0 %v1175
    %1209 = vmatprep.subr.mxu0 0.0
    %1210 = vmatpush1.msra.mxu0 0.0
    %1211 = vmatprep.subr.mxu0 0.0
    %1212 = vmatpush1.msra.mxu0 0.0
    %1213 = vmatprep.subr.mxu0 0.0
    %1214 = vmatpush1.msra.mxu0 0.0
    %1215 = vmatprep.subr.mxu0 0.0
    %1216 = vmatpush1.msra.mxu0 0.0
    %1217 = vmatprep.subr.mxu0 0.0
    %1218 = vmatpush1.msra.mxu0 0.0
    %1219 = vmatprep.subr.mxu0 0.0
    %1220 = vmatpush1.msra.mxu0 0.0
    %1221 = vmatprep.subr.mxu0 0.0
    %1222 = vmatpush1.msra.mxu0 0.0
    %1223 = vmatprep.subr.mxu0 0.0
    %1224 = vmatpush1.msra.mxu0 0.0
    %1225 = vmatprep.subr.mxu0 0.0
    %1226 = vmatpush1.msra.mxu0 0.0
    %1227 = vmatprep.subr.mxu0 0.0
    %1228 = vmatpush1.msra.mxu0 0.0
    %1229 = vmatprep.subr.mxu0 0.0
    %1230 = vmatpush1.msra.mxu0 0.0
    %1231 = vmatprep.subr.mxu0 0.0
    %1232 = vmatpush1.msra.mxu0 0.0
    %1233 = vmatprep.subr.mxu0 0.0
    %1234 = vmatpush1.msra.mxu0 0.0
    %1235 = vmatprep.subr.mxu0 0.0
    %1236 = vmatpush1.msra.mxu0 0.0
    %1237 = vmatprep.subr.mxu0 0.0
    %1238 = vmatpush1.msra.mxu0 0.0
    %1239 = vmatprep.subr.mxu0 0.0
    %1240 = vmatpush1.msra.mxu0 0.0
    %1241 = vmatprep.mubr.f32.mxu0 0.0
    %1242 = vmatmul.mubr.f32.gmra.mrb[0].mxu0 %v911
    %v1243 = vpop.f32.mrb[0].mxu0
    %v1244 = vadd.f32 0.0, %v1243
    %v1245 = vpop.f32.mrb[0].mxu0
    %1246 = vdwg.mxu0
    %v1247 = vadd.f32 %v1159, %v1244
    %v1249 = vlaneseq
    %v1250 = vshrl.u32 %v1249, 7
    %v1251 = vsub.s32 0, %v1250
    %v1252 = vrot.slane %v1176, %v1251
    %v1254 = vadd.f32 %v1247, %v1252
    %v1255 = vld [vmem:[#allocation21] sm:$0xff]
    %v1256 = vld [vmem:[#allocation21 + $0x8] sm:$0xff]
    %v1257 = vld [vmem:[#allocation21 + $0x10] sm:$0xff]
    %v1258 = vld [vmem:[#allocation21 + $0x18] sm:$0xff]
    %v1259 = vld [vmem:[#allocation21 + $0x20] sm:$0xff]
    %v1260 = vld [vmem:[#allocation21 + $0x28] sm:$0xff]
    %v1261 = vld [vmem:[#allocation21 + $0x30] sm:$0xff]
    %v1262 = vld [vmem:[#allocation21 + $0x38] sm:$0xff]
    %v1263 = vld [vmem:[#allocation21 + $0x40] sm:$0xff]
    %v1264 = vld [vmem:[#allocation21 + $0x48] sm:$0xff]
    %v1265 = vld [vmem:[#allocation21 + $0x50] sm:$0xff]
    %v1266 = vld [vmem:[#allocation21 + $0x58] sm:$0xff]
    %v1267 = vld [vmem:[#allocation21 + $0x60] sm:$0xff]
    %v1268 = vld [vmem:[#allocation21 + $0x68] sm:$0xff]
    %v1269 = vld [vmem:[#allocation21 + $0x70] sm:$0xff]
    %v1270 = vld [vmem:[#allocation21 + $0x78] sm:$0xff]
    %v1271 = vld [vmem:[#allocation22] sm:$0x1]
    %v1272 = vld [vmem:[#allocation24] sm:$0x1]
    %v1273 = vld [vmem:[#allocation25] sm:$0x1]
    %v1275 = vlaneseq
    %v1276 = vshrl.u32 %v1275, 7
    %v1277 = vsub.s32 0, %v1276
    %v1278 = vrot.slane %v1271, %v1277
    %1280 = vmatprep.subr.mxu0 0.0
    %1281 = vmatpush1.msra.mxu0 %v1255
    %1282 = vmatprep.subr.mxu0 0.0
    %1283 = vmatpush1.msra.mxu0 %v1256
    %1284 = vmatprep.subr.mxu0 0.0
    %1285 = vmatpush1.msra.mxu0 %v1257
    %1286 = vmatprep.subr.mxu0 0.0
    %1287 = vmatpush1.msra.mxu0 %v1258
    %1288 = vmatprep.subr.mxu0 0.0
    %1289 = vmatpush1.msra.mxu0 %v1259
    %1290 = vmatprep.subr.mxu0 0.0
    %1291 = vmatpush1.msra.mxu0 %v1260
    %1292 = vmatprep.subr.mxu0 0.0
    %1293 = vmatpush1.msra.mxu0 %v1261
    %1294 = vmatprep.subr.mxu0 0.0
    %1295 = vmatpush1.msra.mxu0 %v1262
    %1296 = vmatprep.subr.mxu0 0.0
    %1297 = vmatpush1.msra.mxu0 %v1263
    %1298 = vmatprep.subr.mxu0 0.0
    %1299 = vmatpush1.msra.mxu0 %v1264
    %1300 = vmatprep.subr.mxu0 0.0
    %1301 = vmatpush1.msra.mxu0 %v1265
    %1302 = vmatprep.subr.mxu0 0.0
    %1303 = vmatpush1.msra.mxu0 %v1266
    %1304 = vmatprep.subr.mxu0 0.0
    %1305 = vmatpush1.msra.mxu0 %v1267
    %1306 = vmatprep.subr.mxu0 0.0
    %1307 = vmatpush1.msra.mxu0 %v1268
    %1308 = vmatprep.subr.mxu0 0.0
    %1309 = vmatpush1.msra.mxu0 %v1269
    %1310 = vmatprep.subr.mxu0 0.0
    %1311 = vmatpush1.msra.mxu0 %v1270
    %1312 = vmatprep.subr.mxu0 0.0
    %1313 = vmatpush1.msra.mxu0 0.0
    %1314 = vmatprep.subr.mxu0 0.0
    %1315 = vmatpush1.msra.mxu0 0.0
    %1316 = vmatprep.subr.mxu0 0.0
    %1317 = vmatpush1.msra.mxu0 0.0
    %1318 = vmatprep.subr.mxu0 0.0
    %1319 = vmatpush1.msra.mxu0 0.0
    %1320 = vmatprep.subr.mxu0 0.0
    %1321 = vmatpush1.msra.mxu0 0.0
    %1322 = vmatprep.subr.mxu0 0.0
    %1323 = vmatpush1.msra.mxu0 0.0
    %1324 = vmatprep.subr.mxu0 0.0
    %1325 = vmatpush1.msra.mxu0 0.0
    %1326 = vmatprep.subr.mxu0 0.0
    %1327 = vmatpush1.msra.mxu0 0.0
    %1328 = vmatprep.subr.mxu0 0.0
    %1329 = vmatpush1.msra.mxu0 0.0
    %1330 = vmatprep.subr.mxu0 0.0
    %1331 = vmatpush1.msra.mxu0 0.0
    %1332 = vmatprep.subr.mxu0 0.0
    %1333 = vmatpush1.msra.mxu0 0.0
    %1334 = vmatprep.subr.mxu0 0.0
    %1335 = vmatpush1.msra.mxu0 0.0
    %1336 = vmatprep.subr.mxu0 0.0
    %1337 = vmatpush1.msra.mxu0 0.0
    %1338 = vmatprep.subr.mxu0 0.0
    %1339 = vmatpush1.msra.mxu0 0.0
    %1340 = vmatprep.subr.mxu0 0.0
    %1341 = vmatpush1.msra.mxu0 0.0
    %1342 = vmatprep.subr.mxu0 0.0
    %1343 = vmatpush1.msra.mxu0 0.0
    %1344 = vmatprep.mubr.f32.mxu0 0.0
    %1345 = vmatmul.mubr.f32.gmra.mrb[0].mxu0 %v1254
    %v1346 = vpop.f32.mrb[0].mxu0
    %v1347 = vadd.f32 %v1278, %v1346
    %v1348 = vpop.f32.mrb[0].mxu0
    %1349 = vdwg.mxu0
    %v1350 = vsub.f32 0.0, %v1272
    %v1352 = vlaneseq
    %v1353 = vshrl.u32 %v1352, 7
    %v1354 = vsub.s32 0, %v1353
    %v1355 = vrot.slane %v1350, %v1354
    %v1357 = vmul.f32 %v1355, %v1347
    %v1358 = vmul.f32 %v1357, 1.442695
    %v1359 = vpow.pop %v1358
    %v1360 = vadd.f32 %v1359, 1.0
    %v1361 = vrcp.pop %v1360
    %v1362 = vsub.f32 1.0, %v1273
    %v1364 = vlaneseq
    %v1365 = vshrl.u32 %v1364, 7
    %v1366 = vsub.s32 0, %v1365
    %v1367 = vrot.slane %v1362, %v1366
    %v1369 = vmul.f32 %v1361, %v1367
    %v1371 = vlaneseq
    %v1372 = vshrl.u32 %v1371, 7
    %v1373 = vsub.s32 0, %v1372
    %v1374 = vrot.slane %v1273, %v1373
    %v1376 = vadd.f32 %v1374, %v1369
    %v1377 = vmul.f32 %v1376, %v1347
    %v1378 = vld [vmem:[#allocation27] sm:$0xff]
    %v1379 = vld [vmem:[#allocation27 + $0x8] sm:$0xff]
    %v1380 = vld [vmem:[#allocation27 + $0x10] sm:$0xff]
    %v1381 = vld [vmem:[#allocation27 + $0x18] sm:$0xff]
    %v1382 = vld [vmem:[#allocation27 + $0x20] sm:$0xff]
    %v1383 = vld [vmem:[#allocation27 + $0x28] sm:$0xff]
    %v1384 = vld [vmem:[#allocation27 + $0x30] sm:$0xff]
    %v1385 = vld [vmem:[#allocation27 + $0x38] sm:$0xff]
    %v1386 = vld [vmem:[#allocation27 + $0x40] sm:$0xff]
    %v1387 = vld [vmem:[#allocation27 + $0x48] sm:$0xff]
    %v1388 = vld [vmem:[#allocation27 + $0x50] sm:$0xff]
    %v1389 = vld [vmem:[#allocation27 + $0x58] sm:$0xff]
    %v1390 = vld [vmem:[#allocation27 + $0x60] sm:$0xff]
    %v1391 = vld [vmem:[#allocation27 + $0x68] sm:$0xff]
    %v1392 = vld [vmem:[#allocation27 + $0x70] sm:$0xff]
    %v1393 = vld [vmem:[#allocation27 + $0x78] sm:$0xff]
    %v1394 = vld [vmem:[#allocation28] sm:$0x1]
    %v1395 = vld [vmem:[#allocation30] sm:$0x1]
    %v1396 = vld [vmem:[#allocation31] sm:$0x1]
    %v1398 = vlaneseq
    %v1399 = vshrl.u32 %v1398, 7
    %v1400 = vsub.s32 0, %v1399
    %v1401 = vrot.slane %v1394, %v1400
    %1403 = vmatprep.subr.mxu0 0.0
    %1404 = vmatpush1.msra.mxu0 %v1378
    %1405 = vmatprep.subr.mxu0 0.0
    %1406 = vmatpush1.msra.mxu0 %v1379
    %1407 = vmatprep.subr.mxu0 0.0
    %1408 = vmatpush1.msra.mxu0 %v1380
    %1409 = vmatprep.subr.mxu0 0.0
    %1410 = vmatpush1.msra.mxu0 %v1381
    %1411 = vmatprep.subr.mxu0 0.0
    %1412 = vmatpush1.msra.mxu0 %v1382
    %1413 = vmatprep.subr.mxu0 0.0
    %1414 = vmatpush1.msra.mxu0 %v1383
    %1415 = vmatprep.subr.mxu0 0.0
    %1416 = vmatpush1.msra.mxu0 %v1384
    %1417 = vmatprep.subr.mxu0 0.0
    %1418 = vmatpush1.msra.mxu0 %v1385
    %1419 = vmatprep.subr.mxu0 0.0
    %1420 = vmatpush1.msra.mxu0 %v1386
    %1421 = vmatprep.subr.mxu0 0.0
    %1422 = vmatpush1.msra.mxu0 %v1387
    %1423 = vmatprep.subr.mxu0 0.0
    %1424 = vmatpush1.msra.mxu0 %v1388
    %1425 = vmatprep.subr.mxu0 0.0
    %1426 = vmatpush1.msra.mxu0 %v1389
    %1427 = vmatprep.subr.mxu0 0.0
    %1428 = vmatpush1.msra.mxu0 %v1390
    %1429 = vmatprep.subr.mxu0 0.0
    %1430 = vmatpush1.msra.mxu0 %v1391
    %1431 = vmatprep.subr.mxu0 0.0
    %1432 = vmatpush1.msra.mxu0 %v1392
    %1433 = vmatprep.subr.mxu0 0.0
    %1434 = vmatpush1.msra.mxu0 %v1393
    %1435 = vmatprep.subr.mxu0 0.0
    %1436 = vmatpush1.msra.mxu0 0.0
    %1437 = vmatprep.subr.mxu0 0.0
    %1438 = vmatpush1.msra.mxu0 0.0
    %1439 = vmatprep.subr.mxu0 0.0
    %1440 = vmatpush1.msra.mxu0 0.0
    %1441 = vmatprep.subr.mxu0 0.0
    %1442 = vmatpush1.msra.mxu0 0.0
    %1443 = vmatprep.subr.mxu0 0.0
    %1444 = vmatpush1.msra.mxu0 0.0
    %1445 = vmatprep.subr.mxu0 0.0
    %1446 = vmatpush1.msra.mxu0 0.0
    %1447 = vmatprep.subr.mxu0 0.0
    %1448 = vmatpush1.msra.mxu0 0.0
    %1449 = vmatprep.subr.mxu0 0.0
    %1450 = vmatpush1.msra.mxu0 0.0
    %1451 = vmatprep.subr.mxu0 0.0
    %1452 = vmatpush1.msra.mxu0 0.0
    %1453 = vmatprep.subr.mxu0 0.0
    %1454 = vmatpush1.msra.mxu0 0.0
    %1455 = vmatprep.subr.mxu0 0.0
    %1456 = vmatpush1.msra.mxu0 0.0
    %1457 = vmatprep.subr.mxu0 0.0
    %1458 = vmatpush1.msra.mxu0 0.0
    %1459 = vmatprep.subr.mxu0 0.0
    %1460 = vmatpush1.msra.mxu0 0.0
    %1461 = vmatprep.subr.mxu0 0.0
    %1462 = vmatpush1.msra.mxu0 0.0
    %1463 = vmatprep.subr.mxu0 0.0
    %1464 = vmatpush1.msra.mxu0 0.0
    %1465 = vmatprep.subr.mxu0 0.0
    %1466 = vmatpush1.msra.mxu0 0.0
    %1467 = vmatprep.mubr.f32.mxu0 0.0
    %1468 = vmatmul.mubr.f32.gmra.mrb[0].mxu0 %v1377
    %v1469 = vpop.f32.mrb[0].mxu0
    %v1470 = vadd.f32 %v1401, %v1469
    %v1471 = vpop.f32.mrb[0].mxu0
    %1472 = vdwg.mxu0
    %v1473 = vsub.f32 0.0, %v1395
    %v1475 = vlaneseq
    %v1476 = vshrl.u32 %v1475, 7
    %v1477 = vsub.s32 0, %v1476
    %v1478 = vrot.slane %v1473, %v1477
    %v1480 = vmul.f32 %v1478, %v1470
    %v1481 = vmul.f32 %v1480, 1.442695
    %v1482 = vpow.pop %v1481
    %v1483 = vadd.f32 %v1482, 1.0
    %v1484 = vrcp.pop %v1483
    %v1485 = vsub.f32 1.0, %v1396
    %v1487 = vlaneseq
    %v1488 = vshrl.u32 %v1487, 7
    %v1489 = vsub.s32 0, %v1488
    %v1490 = vrot.slane %v1485, %v1489
    %v1492 = vmul.f32 %v1484, %v1490
    %v1494 = vlaneseq
    %v1495 = vshrl.u32 %v1494, 7
    %v1496 = vsub.s32 0, %v1495
    %v1497 = vrot.slane %v1396, %v1496
    %v1499 = vadd.f32 %v1497, %v1492
    %v1500 = vmul.f32 %v1499, %v1470
    %v1501 = vld [vmem:[#allocation33] sm:$0xff]
    %v1502 = vld [vmem:[#allocation33 + $0x8] sm:$0xff]
    %v1503 = vld [vmem:[#allocation33 + $0x10] sm:$0xff]
    %v1504 = vld [vmem:[#allocation33 + $0x18] sm:$0xff]
    %v1505 = vld [vmem:[#allocation33 + $0x20] sm:$0xff]
    %v1506 = vld [vmem:[#allocation33 + $0x28] sm:$0xff]
    %v1507 = vld [vmem:[#allocation33 + $0x30] sm:$0xff]
    %v1508 = vld [vmem:[#allocation33 + $0x38] sm:$0xff]
    %v1509 = vld [vmem:[#allocation33 + $0x40] sm:$0xff]
    %v1510 = vld [vmem:[#allocation33 + $0x48] sm:$0xff]
    %v1511 = vld [vmem:[#allocation33 + $0x50] sm:$0xff]
    %v1512 = vld [vmem:[#allocation33 + $0x58] sm:$0xff]
    %v1513 = vld [vmem:[#allocation33 + $0x60] sm:$0xff]
    %v1514 = vld [vmem:[#allocation33 + $0x68] sm:$0xff]
    %v1515 = vld [vmem:[#allocation33 + $0x70] sm:$0xff]
    %v1516 = vld [vmem:[#allocation33 + $0x78] sm:$0xff]
    %v1517 = vld [vmem:[#allocation34] sm:$0x1]
    %1518 = vmatprep.subr.mxu0 0.0
    %1519 = vmatpush1.msra.mxu0 %v1501
    %1520 = vmatprep.subr.mxu0 0.0
    %1521 = vmatpush1.msra.mxu0 %v1502
    %1522 = vmatprep.subr.mxu0 0.0
    %1523 = vmatpush1.msra.mxu0 %v1503
    %1524 = vmatprep.subr.mxu0 0.0
    %1525 = vmatpush1.msra.mxu0 %v1504
    %1526 = vmatprep.subr.mxu0 0.0
    %1527 = vmatpush1.msra.mxu0 %v1505
    %1528 = vmatprep.subr.mxu0 0.0
    %1529 = vmatpush1.msra.mxu0 %v1506
    %1530 = vmatprep.subr.mxu0 0.0
    %1531 = vmatpush1.msra.mxu0 %v1507
    %1532 = vmatprep.subr.mxu0 0.0
    %1533 = vmatpush1.msra.mxu0 %v1508
    %1534 = vmatprep.subr.mxu0 0.0
    %1535 = vmatpush1.msra.mxu0 %v1509
    %1536 = vmatprep.subr.mxu0 0.0
    %1537 = vmatpush1.msra.mxu0 %v1510
    %1538 = vmatprep.subr.mxu0 0.0
    %1539 = vmatpush1.msra.mxu0 %v1511
    %1540 = vmatprep.subr.mxu0 0.0
    %1541 = vmatpush1.msra.mxu0 %v1512
    %1542 = vmatprep.subr.mxu0 0.0
    %1543 = vmatpush1.msra.mxu0 %v1513
    %1544 = vmatprep.subr.mxu0 0.0
    %1545 = vmatpush1.msra.mxu0 %v1514
    %1546 = vmatprep.subr.mxu0 0.0
    %1547 = vmatpush1.msra.mxu0 %v1515
    %1548 = vmatprep.subr.mxu0 0.0
    %1549 = vmatpush1.msra.mxu0 %v1516
    %1550 = vmatprep.subr.mxu0 0.0
    %1551 = vmatpush1.msra.mxu0 0.0
    %1552 = vmatprep.subr.mxu0 0.0
    %1553 = vmatpush1.msra.mxu0 0.0
    %1554 = vmatprep.subr.mxu0 0.0
    %1555 = vmatpush1.msra.mxu0 0.0
    %1556 = vmatprep.subr.mxu0 0.0
    %1557 = vmatpush1.msra.mxu0 0.0
    %1558 = vmatprep.subr.mxu0 0.0
    %1559 = vmatpush1.msra.mxu0 0.0
    %1560 = vmatprep.subr.mxu0 0.0
    %1561 = vmatpush1.msra.mxu0 0.0
    %1562 = vmatprep.subr.mxu0 0.0
    %1563 = vmatpush1.msra.mxu0 0.0
    %1564 = vmatprep.subr.mxu0 0.0
    %1565 = vmatpush1.msra.mxu0 0.0
    %1566 = vmatprep.subr.mxu0 0.0
    %1567 = vmatpush1.msra.mxu0 0.0
    %1568 = vmatprep.subr.mxu0 0.0
    %1569 = vmatpush1.msra.mxu0 0.0
    %1570 = vmatprep.subr.mxu0 0.0
    %1571 = vmatpush1.msra.mxu0 0.0
    %1572 = vmatprep.subr.mxu0 0.0
    %1573 = vmatpush1.msra.mxu0 0.0
    %1574 = vmatprep.subr.mxu0 0.0
    %1575 = vmatpush1.msra.mxu0 0.0
    %1576 = vmatprep.subr.mxu0 0.0
    %1577 = vmatpush1.msra.mxu0 0.0
    %1578 = vmatprep.subr.mxu0 0.0
    %1579 = vmatpush1.msra.mxu0 0.0
    %1580 = vmatprep.subr.mxu0 0.0
    %1581 = vmatpush1.msra.mxu0 0.0
    %1582 = vmatprep.mubr.f32.mxu0 0.0
    %1583 = vmatmul.mubr.f32.gmra.mrb[0].mxu0 %v1254
    %v1584 = vpop.f32.mrb[0].mxu0
    %v1585 = vadd.f32 0.0, %v1584
    %v1586 = vpop.f32.mrb[0].mxu0
    %1587 = vdwg.mxu0
    %v1588 = vadd.f32 %v1500, %v1585
    %v1590 = vlaneseq
    %v1591 = vshrl.u32 %v1590, 7
    %v1592 = vsub.s32 0, %v1591
    %v1593 = vrot.slane %v1517, %v1592
    %v1595 = vadd.f32 %v1588, %v1593
    %v1596 = vld [vmem:[#allocation36] sm:$0xff]
    %v1597 = vld [vmem:[#allocation36 + $0x8] sm:$0xff]
    %v1598 = vld [vmem:[#allocation36 + $0x10] sm:$0xff]
    %v1599 = vld [vmem:[#allocation36 + $0x18] sm:$0xff]
    %v1600 = vld [vmem:[#allocation36 + $0x20] sm:$0xff]
    %v1601 = vld [vmem:[#allocation36 + $0x28] sm:$0xff]
    %v1602 = vld [vmem:[#allocation36 + $0x30] sm:$0xff]
    %v1603 = vld [vmem:[#allocation36 + $0x38] sm:$0xff]
    %v1604 = vld [vmem:[#allocation36 + $0x40] sm:$0xff]
    %v1605 = vld [vmem:[#allocation36 + $0x48] sm:$0xff]
    %v1606 = vld [vmem:[#allocation36 + $0x50] sm:$0xff]
    %v1607 = vld [vmem:[#allocation36 + $0x58] sm:$0xff]
    %v1608 = vld [vmem:[#allocation36 + $0x60] sm:$0xff]
    %v1609 = vld [vmem:[#allocation36 + $0x68] sm:$0xff]
    %v1610 = vld [vmem:[#allocation36 + $0x70] sm:$0xff]
    %v1611 = vld [vmem:[#allocation36 + $0x78] sm:$0xff]
    %v1612 = vld [vmem:[#allocation37] sm:$0x1]
    %v1614 = vlaneseq
    %v1615 = vshrl.u32 %v1614, 7
    %v1616 = vsub.s32 0, %v1615
    %v1617 = vrot.slane %v1612, %v1616
    %1619 = vmatprep.subr.mxu0 0.0
    %1620 = vmatpush1.msra.mxu0 %v1596
    %1621 = vmatprep.subr.mxu0 0.0
    %1622 = vmatpush1.msra.mxu0 %v1597
    %1623 = vmatprep.subr.mxu0 0.0
    %1624 = vmatpush1.msra.mxu0 %v1598
    %1625 = vmatprep.subr.mxu0 0.0
    %1626 = vmatpush1.msra.mxu0 %v1599
    %1627 = vmatprep.subr.mxu0 0.0
    %1628 = vmatpush1.msra.mxu0 %v1600
    %1629 = vmatprep.subr.mxu0 0.0
    %1630 = vmatpush1.msra.mxu0 %v1601
    %1631 = vmatprep.subr.mxu0 0.0
    %1632 = vmatpush1.msra.mxu0 %v1602
    %1633 = vmatprep.subr.mxu0 0.0
    %1634 = vmatpush1.msra.mxu0 %v1603
    %1635 = vmatprep.subr.mxu0 0.0
    %1636 = vmatpush1.msra.mxu0 %v1604
    %1637 = vmatprep.subr.mxu0 0.0
    %1638 = vmatpush1.msra.mxu0 %v1605
    %1639 = vmatprep.subr.mxu0 0.0
    %1640 = vmatpush1.msra.mxu0 %v1606
    %1641 = vmatprep.subr.mxu0 0.0
    %1642 = vmatpush1.msra.mxu0 %v1607
    %1643 = vmatprep.subr.mxu0 0.0
    %1644 = vmatpush1.msra.mxu0 %v1608
    %1645 = vmatprep.subr.mxu0 0.0
    %1646 = vmatpush1.msra.mxu0 %v1609
    %1647 = vmatprep.subr.mxu0 0.0
    %1648 = vmatpush1.msra.mxu0 %v1610
    %1649 = vmatprep.subr.mxu0 0.0
    %1650 = vmatpush1.msra.mxu0 %v1611
    %1651 = vmatprep.subr.mxu0 0.0
    %1652 = vmatpush1.msra.mxu0 0.0
    %1653 = vmatprep.subr.mxu0 0.0
    %1654 = vmatpush1.msra.mxu0 0.0
    %1655 = vmatprep.subr.mxu0 0.0
    %1656 = vmatpush1.msra.mxu0 0.0
    %1657 = vmatprep.subr.mxu0 0.0
    %1658 = vmatpush1.msra.mxu0 0.0
    %1659 = vmatprep.subr.mxu0 0.0
    %1660 = vmatpush1.msra.mxu0 0.0
    %1661 = vmatprep.subr.mxu0 0.0
    %1662 = vmatpush1.msra.mxu0 0.0
    %1663 = vmatprep.subr.mxu0 0.0
    %1664 = vmatpush1.msra.mxu0 0.0
    %1665 = vmatprep.subr.mxu0 0.0
    %1666 = vmatpush1.msra.mxu0 0.0
    %1667 = vmatprep.subr.mxu0 0.0
    %1668 = vmatpush1.msra.mxu0 0.0
    %1669 = vmatprep.subr.mxu0 0.0
    %1670 = vmatpush1.msra.mxu0 0.0
    %1671 = vmatprep.subr.mxu0 0.0
    %1672 = vmatpush1.msra.mxu0 0.0
    %1673 = vmatprep.subr.mxu0 0.0
    %1674 = vmatpush1.msra.mxu0 0.0
    %1675 = vmatprep.subr.mxu0 0.0
    %1676 = vmatpush1.msra.mxu0 0.0
    %1677 = vmatprep.subr.mxu0 0.0
    %1678 = vmatpush1.msra.mxu0 0.0
    %1679 = vmatprep.subr.mxu0 0.0
    %1680 = vmatpush1.msra.mxu0 0.0
    %1681 = vmatprep.subr.mxu0 0.0
    %1682 = vmatpush1.msra.mxu0 0.0
    %1683 = vmatprep.mubr.f32.mxu0 0.0
    %1684 = vmatmul.mubr.f32.gmra.mrb[0].mxu0 %v1595
    %v1685 = vpop.f32.mrb[0].mxu0
    %v1686 = vadd.f32 %v1617, %v1685
    %v1687 = vpop.f32.mrb[0].mxu0
    %1688 = vdwg.mxu0
    %v1689 = vld [vmem:[#allocation39] sm:$0xff]
    %v1690 = vld [vmem:[#allocation39 + $0x8] sm:$0xff]
    %v1691 = vld [vmem:[#allocation39 + $0x10] sm:$0xff]
    %v1692 = vld [vmem:[#allocation39 + $0x18] sm:$0xff]
    %v1693 = vld [vmem:[#allocation39 + $0x20] sm:$0xff]
    %v1694 = vld [vmem:[#allocation39 + $0x28] sm:$0xff]
    %v1695 = vld [vmem:[#allocation39 + $0x30] sm:$0xff]
    %v1696 = vld [vmem:[#allocation39 + $0x38] sm:$0xff]
    %v1697 = vld [vmem:[#allocation39 + $0x40] sm:$0xff]
    %v1698 = vld [vmem:[#allocation39 + $0x48] sm:$0xff]
    %v1699 = vld [vmem:[#allocation39 + $0x50] sm:$0xff]
    %v1700 = vld [vmem:[#allocation39 + $0x58] sm:$0xff]
    %v1701 = vld [vmem:[#allocation39 + $0x60] sm:$0xff]
    %v1702 = vld [vmem:[#allocation39 + $0x68] sm:$0xff]
    %v1703 = vld [vmem:[#allocation39 + $0x70] sm:$0xff]
    %v1704 = vld [vmem:[#allocation39 + $0x78] sm:$0xff]
    %v1705 = vld [vmem:[#allocation40] sm:$0xff]
    %v1706 = vld [vmem:[#allocation40 + $0x8] sm:$0xff]
    %v1707 = vld [vmem:[#allocation40 + $0x10] sm:$0xff]
    %v1708 = vld [vmem:[#allocation40 + $0x18] sm:$0xff]
    %v1709 = vld [vmem:[#allocation40 + $0x20] sm:$0xff]
    %v1710 = vld [vmem:[#allocation40 + $0x28] sm:$0xff]
    %v1711 = vld [vmem:[#allocation40 + $0x30] sm:$0xff]
    %v1712 = vld [vmem:[#allocation40 + $0x38] sm:$0xff]
    %v1713 = vld [vmem:[#allocation40 + $0x40] sm:$0xff]
    %v1714 = vld [vmem:[#allocation40 + $0x48] sm:$0xff]
    %v1715 = vld [vmem:[#allocation40 + $0x50] sm:$0xff]
    %v1716 = vld [vmem:[#allocation40 + $0x58] sm:$0xff]
    %v1717 = vld [vmem:[#allocation40 + $0x60] sm:$0xff]
    %v1718 = vld [vmem:[#allocation40 + $0x68] sm:$0xff]
    %v1719 = vld [vmem:[#allocation40 + $0x70] sm:$0xff]
    %v1720 = vld [vmem:[#allocation40 + $0x78] sm:$0xff]
    %v1721 = vld [vmem:[#allocation42] sm:$0x1]
    %v1722 = vld [vmem:[#allocation43] sm:$0xff]
    %v1723 = vld [vmem:[#allocation43 + $0x8] sm:$0xff]
    %v1724 = vld [vmem:[#allocation43 + $0x10] sm:$0xff]
    %v1725 = vld [vmem:[#allocation43 + $0x18] sm:$0xff]
    %v1726 = vld [vmem:[#allocation43 + $0x20] sm:$0xff]
    %v1727 = vld [vmem:[#allocation43 + $0x28] sm:$0xff]
    %v1728 = vld [vmem:[#allocation43 + $0x30] sm:$0xff]
    %v1729 = vld [vmem:[#allocation43 + $0x38] sm:$0xff]
    %v1730 = vld [vmem:[#allocation43 + $0x40] sm:$0xff]
    %v1731 = vld [vmem:[#allocation43 + $0x48] sm:$0xff]
    %v1732 = vld [vmem:[#allocation43 + $0x50] sm:$0xff]
    %v1733 = vld [vmem:[#allocation43 + $0x58] sm:$0xff]
    %v1734 = vld [vmem:[#allocation43 + $0x60] sm:$0xff]
    %v1735 = vld [vmem:[#allocation43 + $0x68] sm:$0xff]
    %v1736 = vld [vmem:[#allocation43 + $0x70] sm:$0xff]
    %v1737 = vld [vmem:[#allocation43 + $0x78] sm:$0xff]
    %v1738 = vld [vmem:[#allocation45] sm:$0x1]
    %v1739 = vld [vmem:[#allocation46] sm:$0xff]
    %v1740 = vld [vmem:[#allocation46 + $0x8] sm:$0xff]
    %v1741 = vld [vmem:[#allocation46 + $0x10] sm:$0xff]
    %v1742 = vld [vmem:[#allocation46 + $0x18] sm:$0xff]
    %v1743 = vld [vmem:[#allocation46 + $0x20] sm:$0xff]
    %v1744 = vld [vmem:[#allocation46 + $0x28] sm:$0xff]
    %v1745 = vld [vmem:[#allocation46 + $0x30] sm:$0xff]
    %v1746 = vld [vmem:[#allocation46 + $0x38] sm:$0xff]
    %v1747 = vld [vmem:[#allocation46 + $0x40] sm:$0xff]
    %v1748 = vld [vmem:[#allocation46 + $0x48] sm:$0xff]
    %v1749 = vld [vmem:[#allocation46 + $0x50] sm:$0xff]
    %v1750 = vld [vmem:[#allocation46 + $0x58] sm:$0xff]
    %v1751 = vld [vmem:[#allocation46 + $0x60] sm:$0xff]
    %v1752 = vld [vmem:[#allocation46 + $0x68] sm:$0xff]
    %v1753 = vld [vmem:[#allocation46 + $0x70] sm:$0xff]
    %v1754 = vld [vmem:[#allocation46 + $0x78] sm:$0xff]
    %v1755 = vld [vmem:[#allocation48] sm:$0x1]
    %v1756 = vld [vmem:[#allocation49] sm:$0xff]
    %v1757 = vld [vmem:[#allocation49 + $0x8] sm:$0xff]
    %v1758 = vld [vmem:[#allocation49 + $0x10] sm:$0xff]
    %v1759 = vld [vmem:[#allocation49 + $0x18] sm:$0xff]
    %v1760 = vld [vmem:[#allocation51] sm:$0x1]
    %v1761 = vld [vmem:[#allocation52] sm:$0x1]
    %v1762 = vld [vmem:[#allocation54] sm:$0x1]
    %v1763 = vld [vmem:[%s73] sm:$0xff]
    %v1764 = vld [vmem:[%s73 + $0x8] sm:$0xff]
    %v1765 = vld [vmem:[%s73 + $0x10] sm:$0xff]
    %v1766 = vld [vmem:[%s73 + $0x18] sm:$0xff]
    %v1767 = vld [vmem:[%s73 + $0x20] sm:$0xff]
    %v1768 = vld [vmem:[%s73 + $0x28] sm:$0xff]
    %v1769 = vld [vmem:[%s73 + $0x30] sm:$0xff]
    %v1770 = vld [vmem:[%s73 + $0x38] sm:$0xff]
    %v1771 = vld [vmem:[%s73 + $0x40] sm:$0xff]
    %v1772 = vld [vmem:[%s73 + $0x48] sm:$0xff]
    %v1773 = vld [vmem:[%s73 + $0x50] sm:$0xff]
    %v1774 = vld [vmem:[%s73 + $0x58] sm:$0xff]
    %v1775 = vld [vmem:[%s73 + $0x60] sm:$0xff]
    %v1776 = vld [vmem:[%s73 + $0x68] sm:$0xff]
    %v1777 = vld [vmem:[%s73 + $0x70] sm:$0xff]
    %v1778 = vld [vmem:[%s73 + $0x78] sm:$0xff]
    %v1779 = vld [vmem:[#allocation55] sm:$0x1]
    %v1780 = vld [vmem:[#allocation57] sm:$0xff]
    %v1781 = vld [vmem:[#allocation57 + $0x8] sm:$0xff]
    %v1782 = vld [vmem:[#allocation57 + $0x10] sm:$0xff]
    %v1783 = vld [vmem:[#allocation57 + $0x18] sm:$0xff]
    %v1784 = vld [vmem:[#allocation57 + $0x20] sm:$0xff]
    %v1785 = vld [vmem:[#allocation57 + $0x28] sm:$0xff]
    %v1786 = vld [vmem:[#allocation57 + $0x30] sm:$0xff]
    %v1787 = vld [vmem:[#allocation57 + $0x38] sm:$0xff]
    %v1788 = vld [vmem:[#allocation57 + $0x40] sm:$0xff]
    %v1789 = vld [vmem:[#allocation57 + $0x48] sm:$0xff]
    %v1790 = vld [vmem:[#allocation57 + $0x50] sm:$0xff]
    %v1791 = vld [vmem:[#allocation57 + $0x58] sm:$0xff]
    %v1792 = vld [vmem:[#allocation57 + $0x60] sm:$0xff]
    %v1793 = vld [vmem:[#allocation57 + $0x68] sm:$0xff]
    %v1794 = vld [vmem:[#allocation57 + $0x70] sm:$0xff]
    %v1795 = vld [vmem:[#allocation57 + $0x78] sm:$0xff]
    %v1796 = vld [vmem:[#allocation58] sm:$0x1]
    %v1797 = vld [vmem:[#allocation60] sm:$0x1]
    %v1798 = vld [vmem:[%s83] sm:$0x1]
    %v1799 = vld [vmem:[%s85] sm:$0x1]
    %v1800 = vld [vmem:[%s87] sm:$0x1]
    %v1802 = vlaneseq
    %v1803 = vshrl.u32 %v1802, 7
    %v1804 = vsub.s32 0, %v1803
    %v1805 = vrot.slane %v1721, %v1804
    %1807 = vmatprep.subr.mxu0 0.0
    %1808 = vmatpush1.msra.mxu0 %v1705
    %1809 = vmatprep.subr.mxu0 0.0
    %1810 = vmatpush1.msra.mxu0 %v1706
    %1811 = vmatprep.subr.mxu0 0.0
    %1812 = vmatpush1.msra.mxu0 %v1707
    %1813 = vmatprep.subr.mxu0 0.0
    %1814 = vmatpush1.msra.mxu0 %v1708
    %1815 = vmatprep.subr.mxu0 0.0
    %1816 = vmatpush1.msra.mxu0 %v1709
    %1817 = vmatprep.subr.mxu0 0.0
    %1818 = vmatpush1.msra.mxu0 %v1710
    %1819 = vmatprep.subr.mxu0 0.0
    %1820 = vmatpush1.msra.mxu0 %v1711
    %1821 = vmatprep.subr.mxu0 0.0
    %1822 = vmatpush1.msra.mxu0 %v1712
    %1823 = vmatprep.subr.mxu0 0.0
    %1824 = vmatpush1.msra.mxu0 %v1713
    %1825 = vmatprep.subr.mxu0 0.0
    %1826 = vmatpush1.msra.mxu0 %v1714
    %1827 = vmatprep.subr.mxu0 0.0
    %1828 = vmatpush1.msra.mxu0 %v1715
    %1829 = vmatprep.subr.mxu0 0.0
    %1830 = vmatpush1.msra.mxu0 %v1716
    %1831 = vmatprep.subr.mxu0 0.0
    %1832 = vmatpush1.msra.mxu0 %v1717
    %1833 = vmatprep.subr.mxu0 0.0
    %1834 = vmatpush1.msra.mxu0 %v1718
    %1835 = vmatprep.subr.mxu0 0.0
    %1836 = vmatpush1.msra.mxu0 %v1719
    %1837 = vmatprep.subr.mxu0 0.0
    %1838 = vmatpush1.msra.mxu0 %v1720
    %1839 = vmatprep.subr.mxu0 0.0
    %1840 = vmatpush1.msra.mxu0 0.0
    %1841 = vmatprep.subr.mxu0 0.0
    %1842 = vmatpush1.msra.mxu0 0.0
    %1843 = vmatprep.subr.mxu0 0.0
    %1844 = vmatpush1.msra.mxu0 0.0
    %1845 = vmatprep.subr.mxu0 0.0
    %1846 = vmatpush1.msra.mxu0 0.0
    %1847 = vmatprep.subr.mxu0 0.0
    %1848 = vmatpush1.msra.mxu0 0.0
    %1849 = vmatprep.subr.mxu0 0.0
    %1850 = vmatpush1.msra.mxu0 0.0
    %1851 = vmatprep.subr.mxu0 0.0
    %1852 = vmatpush1.msra.mxu0 0.0
    %1853 = vmatprep.subr.mxu0 0.0
    %1854 = vmatpush1.msra.mxu0 0.0
    %1855 = vmatprep.subr.mxu0 0.0
    %1856 = vmatpush1.msra.mxu0 0.0
    %1857 = vmatprep.subr.mxu0 0.0
    %1858 = vmatpush1.msra.mxu0 0.0
    %1859 = vmatprep.subr.mxu0 0.0
    %1860 = vmatpush1.msra.mxu0 0.0
    %1861 = vmatprep.subr.mxu0 0.0
    %1862 = vmatpush1.msra.mxu0 0.0
    %1863 = vmatprep.subr.mxu0 0.0
    %1864 = vmatpush1.msra.mxu0 0.0
    %1865 = vmatprep.subr.mxu0 0.0
    %1866 = vmatpush1.msra.mxu0 0.0
    %1867 = vmatprep.subr.mxu0 0.0
    %1868 = vmatpush1.msra.mxu0 0.0
    %1869 = vmatprep.subr.mxu0 0.0
    %1870 = vmatpush1.msra.mxu0 0.0
    %1871 = vmatprep.mubr.f32.mxu0 0.0
    %1872 = vmatmul.mubr.f32.gmra.mrb[0].mxu0 %v1686
    %v1873 = vpop.f32.mrb[0].mxu0
    %v1874 = vadd.f32 %v1805, %v1873
    %v1875 = vpop.f32.mrb[0].mxu0
    %1876 = vdwg.mxu0
    %v1878 = vlaneseq
    %v1879 = vshrl.u32 %v1878, 7
    %v1880 = vsub.s32 0, %v1879
    %v1881 = vrot.slane %v1738, %v1880
    %1883 = vmatprep.subr.mxu0 0.0
    %1884 = vmatpush1.msra.mxu0 %v1722
    %1885 = vmatprep.subr.mxu0 0.0
    %1886 = vmatpush1.msra.mxu0 %v1723
    %1887 = vmatprep.subr.mxu0 0.0
    %1888 = vmatpush1.msra.mxu0 %v1724
    %1889 = vmatprep.subr.mxu0 0.0
    %1890 = vmatpush1.msra.mxu0 %v1725
    %1891 = vmatprep.subr.mxu0 0.0
    %1892 = vmatpush1.msra.mxu0 %v1726
    %1893 = vmatprep.subr.mxu0 0.0
    %1894 = vmatpush1.msra.mxu0 %v1727
    %1895 = vmatprep.subr.mxu0 0.0
    %1896 = vmatpush1.msra.mxu0 %v1728
    %1897 = vmatprep.subr.mxu0 0.0
    %1898 = vmatpush1.msra.mxu0 %v1729
    %1899 = vmatprep.subr.mxu0 0.0
    %1900 = vmatpush1.msra.mxu0 %v1730
    %1901 = vmatprep.subr.mxu0 0.0
    %1902 = vmatpush1.msra.mxu0 %v1731
    %1903 = vmatprep.subr.mxu0 0.0
    %1904 = vmatpush1.msra.mxu0 %v1732
    %1905 = vmatprep.subr.mxu0 0.0
    %1906 = vmatpush1.msra.mxu0 %v1733
    %1907 = vmatprep.subr.mxu0 0.0
    %1908 = vmatpush1.msra.mxu0 %v1734
    %1909 = vmatprep.subr.mxu0 0.0
    %1910 = vmatpush1.msra.mxu0 %v1735
    %1911 = vmatprep.subr.mxu0 0.0
    %1912 = vmatpush1.msra.mxu0 %v1736
    %1913 = vmatprep.subr.mxu0 0.0
    %1914 = vmatpush1.msra.mxu0 %v1737
    %1915 = vmatprep.subr.mxu0 0.0
    %1916 = vmatpush1.msra.mxu0 0.0
    %1917 = vmatprep.subr.mxu0 0.0
    %1918 = vmatpush1.msra.mxu0 0.0
    %1919 = vmatprep.subr.mxu0 0.0
    %1920 = vmatpush1.msra.mxu0 0.0
    %1921 = vmatprep.subr.mxu0 0.0
    %1922 = vmatpush1.msra.mxu0 0.0
    %1923 = vmatprep.subr.mxu0 0.0
    %1924 = vmatpush1.msra.mxu0 0.0
    %1925 = vmatprep.subr.mxu0 0.0
    %1926 = vmatpush1.msra.mxu0 0.0
    %1927 = vmatprep.subr.mxu0 0.0
    %1928 = vmatpush1.msra.mxu0 0.0
    %1929 = vmatprep.subr.mxu0 0.0
    %1930 = vmatpush1.msra.mxu0 0.0
    %1931 = vmatprep.subr.mxu0 0.0
    %1932 = vmatpush1.msra.mxu0 0.0
    %1933 = vmatprep.subr.mxu0 0.0
    %1934 = vmatpush1.msra.mxu0 0.0
    %1935 = vmatprep.subr.mxu0 0.0
    %1936 = vmatpush1.msra.mxu0 0.0
    %1937 = vmatprep.subr.mxu0 0.0
    %1938 = vmatpush1.msra.mxu0 0.0
    %1939 = vmatprep.subr.mxu0 0.0
    %1940 = vmatpush1.msra.mxu0 0.0
    %1941 = vmatprep.subr.mxu0 0.0
    %1942 = vmatpush1.msra.mxu0 0.0
    %1943 = vmatprep.subr.mxu0 0.0
    %1944 = vmatpush1.msra.mxu0 0.0
    %1945 = vmatprep.subr.mxu0 0.0
    %1946 = vmatpush1.msra.mxu0 0.0
    %1947 = vmatprep.mubr.f32.mxu0 0.0
    %1948 = vmatmul.mubr.f32.gmra.mrb[0].mxu0 %v1686
    %v1949 = vpop.f32.mrb[0].mxu0
    %v1950 = vadd.f32 %v1881, %v1949
    %v1951 = vpop.f32.mrb[0].mxu0
    %1952 = vdwg.mxu0
    %v1954 = vlaneseq
    %v1955 = vshrl.u32 %v1954, 7
    %v1956 = vsub.s32 0, %v1955
    %v1957 = vrot.slane %v1755, %v1956
    %1959 = vmatprep.subr.mxu0 0.0
    %1960 = vmatpush1.msra.mxu0 %v1739
    %1961 = vmatprep.subr.mxu0 0.0
    %1962 = vmatpush1.msra.mxu0 %v1740
    %1963 = vmatprep.subr.mxu0 0.0
    %1964 = vmatpush1.msra.mxu0 %v1741
    %1965 = vmatprep.subr.mxu0 0.0
    %1966 = vmatpush1.msra.mxu0 %v1742
    %1967 = vmatprep.subr.mxu0 0.0
    %1968 = vmatpush1.msra.mxu0 %v1743
    %1969 = vmatprep.subr.mxu0 0.0
    %1970 = vmatpush1.msra.mxu0 %v1744
    %1971 = vmatprep.subr.mxu0 0.0
    %1972 = vmatpush1.msra.mxu0 %v1745
    %1973 = vmatprep.subr.mxu0 0.0
    %1974 = vmatpush1.msra.mxu0 %v1746
    %1975 = vmatprep.subr.mxu0 0.0
    %1976 = vmatpush1.msra.mxu0 %v1747
    %1977 = vmatprep.subr.mxu0 0.0
    %1978 = vmatpush1.msra.mxu0 %v1748
    %1979 = vmatprep.subr.mxu0 0.0
    %1980 = vmatpush1.msra.mxu0 %v1749
    %1981 = vmatprep.subr.mxu0 0.0
    %1982 = vmatpush1.msra.mxu0 %v1750
    %1983 = vmatprep.subr.mxu0 0.0
    %1984 = vmatpush1.msra.mxu0 %v1751
    %1985 = vmatprep.subr.mxu0 0.0
    %1986 = vmatpush1.msra.mxu0 %v1752
    %1987 = vmatprep.subr.mxu0 0.0
    %1988 = vmatpush1.msra.mxu0 %v1753
    %1989 = vmatprep.subr.mxu0 0.0
    %1990 = vmatpush1.msra.mxu0 %v1754
    %1991 = vmatprep.subr.mxu0 0.0
    %1992 = vmatpush1.msra.mxu0 0.0
    %1993 = vmatprep.subr.mxu0 0.0
    %1994 = vmatpush1.msra.mxu0 0.0
    %1995 = vmatprep.subr.mxu0 0.0
    %1996 = vmatpush1.msra.mxu0 0.0
    %1997 = vmatprep.subr.mxu0 0.0
    %1998 = vmatpush1.msra.mxu0 0.0
    %1999 = vmatprep.subr.mxu0 0.0
    %2000 = vmatpush1.msra.mxu0 0.0
    %2001 = vmatprep.subr.mxu0 0.0
    %2002 = vmatpush1.msra.mxu0 0.0
    %2003 = vmatprep.subr.mxu0 0.0
    %2004 = vmatpush1.msra.mxu0 0.0
    %2005 = vmatprep.subr.mxu0 0.0
    %2006 = vmatpush1.msra.mxu0 0.0
    %2007 = vmatprep.subr.mxu0 0.0
    %2008 = vmatpush1.msra.mxu0 0.0
    %2009 = vmatprep.subr.mxu0 0.0
    %2010 = vmatpush1.msra.mxu0 0.0
    %2011 = vmatprep.subr.mxu0 0.0
    %2012 = vmatpush1.msra.mxu0 0.0
    %2013 = vmatprep.subr.mxu0 0.0
    %2014 = vmatpush1.msra.mxu0 0.0
    %2015 = vmatprep.subr.mxu0 0.0
    %2016 = vmatpush1.msra.mxu0 0.0
    %2017 = vmatprep.subr.mxu0 0.0
    %2018 = vmatpush1.msra.mxu0 0.0
    %2019 = vmatprep.subr.mxu0 0.0
    %2020 = vmatpush1.msra.mxu0 0.0
    %2021 = vmatprep.subr.mxu0 0.0
    %2022 = vmatpush1.msra.mxu0 0.0
    %2023 = vmatprep.mubr.f32.mxu0 0.0
    %2024 = vmatmul.mubr.f32.gmra.mrb[0].mxu0 %v1686
    %v2025 = vpop.f32.mrb[0].mxu0
    %v2026 = vadd.f32 %v1957, %v2025
    %v2027 = vpop.f32.mrb[0].mxu0
    %2028 = vdwg.mxu0
    %v2029 = vmul.f32 %v1874, %v1950
    %vm2030 = vcmask 64512
    %v2031 = vsel %vm2030, %v2029, 0.0
    %2032 = vadd.xlane.f32.xlu0 %v2031
    %v2033 = vpop.xlane.xlu0 %2032
    %v2034 = vmul.f32 %v2033, 0.35355338
    %2036 = vrot.lane.b32.xlu0 %v1950, 120
    %v2037 = vpop.permute.xlu0 %2036
    %v2039 = vmul.f32 %v1874, %v2037
    %v2040 = vsel %vm2030, %v2039, 0.0
    %2041 = vadd.xlane.f32.xlu0 %v2040
    %v2042 = vpop.xlane.xlu0 %2041
    %v2043 = vmul.f32 %v2042, 0.35355338
    %2044 = vrot.lane.b32.xlu0 %v1950, 112
    %v2045 = vpop.permute.xlu0 %2044
    %v2047 = vmul.f32 %v1874, %v2045
    %v2048 = vsel %vm2030, %v2047, 0.0
    %2049 = vadd.xlane.f32.xlu0 %v2048
    %v2050 = vpop.xlane.xlu0 %2049
    %v2051 = vmul.f32 %v2050, 0.35355338
    %2052 = vrot.lane.b32.xlu0 %v1950, 104
    %v2053 = vpop.permute.xlu0 %2052
    %v2055 = vmul.f32 %v1874, %v2053
    %v2056 = vsel %vm2030, %v2055, 0.0
    %2057 = vadd.xlane.f32.xlu0 %v2056
    %v2058 = vpop.xlane.xlu0 %2057
    %v2059 = vmul.f32 %v2058, 0.35355338
    %v2060 = vmax.f32 %v2034, %v2043
    %v2061 = vmax.f32 %v2060, %v2051
    %v2062 = vmax.f32 %v2061, %v2059
    %v2063 = vsub.f32 %v2034, %v2062
    %v2064 = vmul.f32 %v2063, 1.442695
    %v2065 = vpow.pop %v2064
    %v2066 = vsub.f32 %v2043, %v2062
    %v2067 = vmul.f32 %v2066, 1.442695
    %v2068 = vpow.pop %v2067
    %v2069 = vsub.f32 %v2051, %v2062
    %v2070 = vmul.f32 %v2069, 1.442695
    %v2071 = vpow.pop %v2070
    %v2072 = vsub.f32 %v2059, %v2062
    %v2073 = vmul.f32 %v2072, 1.442695
    %v2074 = vpow.pop %v2073
    %v2075 = vadd.f32 %v2065, %v2068
    %v2076 = vadd.f32 %v2075, %v2071
    %v2077 = vadd.f32 %v2076, %v2074
    %v2078 = vrcp.pop %v2077
    %v2079 = vmul.f32 %v2065, %v2078
    %v2080 = vmul.f32 %v2079, %v2026
    %v2081 = vmul.f32 %v2068, %v2078
    %v2082 = vmul.f32 %v2081, %v2026
    %2084 = vrot.lane.b32.xlu0 %v2082, 120
    %v2085 = vpop.permute.xlu0 %2084
    %v2087 = vadd.f32 %v2080, %v2085
    %v2088 = vmul.f32 %v2071, %v2078
    %v2089 = vmul.f32 %v2088, %v2026
    %2091 = vrot.lane.b32.xlu0 %v2089, 112
    %v2092 = vpop.permute.xlu0 %2091
    %v2094 = vadd.f32 %v2087, %v2092
    %v2095 = vmul.f32 %v2074, %v2078
    %v2096 = vmul.f32 %v2095, %v2026
    %2098 = vrot.lane.b32.xlu0 %v2096, 104
    %v2099 = vpop.permute.xlu0 %2098
    %v2101 = vadd.f32 %v2094, %v2099
    %2102 = vrot.lane.b32.xlu0 %v1950, 8
    %v2103 = vpop.permute.xlu0 %2102
    %v2105 = vmul.f32 %v1874, %v2103
    %2107 = vrot.lane.b32.xlu0 %v2105, 120
    %v2108 = vpop.permute.xlu0 %2107
    %v2110 = vsel %vm2030, %v2108, 0.0
    %2111 = vadd.xlane.f32.xlu0 %v2110
    %v2112 = vpop.xlane.xlu0 %2111
    %v2113 = vmul.f32 %v2112, 0.35355338
    %2115 = vrot.lane.b32.xlu0 %v2029, 120
    %v2116 = vpop.permute.xlu0 %2115
    %v2118 = vsel %vm2030, %v2116, 0.0
    %2119 = vadd.xlane.f32.xlu0 %v2118
    %v2120 = vpop.xlane.xlu0 %2119
    %v2121 = vmul.f32 %v2120, 0.35355338
    %2123 = vrot.lane.b32.xlu0 %v2039, 120
    %v2124 = vpop.permute.xlu0 %2123
    %v2126 = vsel %vm2030, %v2124, 0.0
    %2127 = vadd.xlane.f32.xlu0 %v2126
    %v2128 = vpop.xlane.xlu0 %2127
    %v2129 = vmul.f32 %v2128, 0.35355338
    %2131 = vrot.lane.b32.xlu0 %v2047, 120
    %v2132 = vpop.permute.xlu0 %2131
    %v2134 = vsel %vm2030, %v2132, 0.0
    %2135 = vadd.xlane.f32.xlu0 %v2134
    %v2136 = vpop.xlane.xlu0 %2135
    %v2137 = vmul.f32 %v2136, 0.35355338
    %v2138 = vmax.f32 %v2113, %v2121
    %v2139 = vmax.f32 %v2138, %v2129
    %v2140 = vmax.f32 %v2139, %v2137
    %v2141 = vsub.f32 %v2113, %v2140
    %v2142 = vmul.f32 %v2141, 1.442695
    %v2143 = vpow.pop %v2142
    %v2144 = vsub.f32 %v2121, %v2140
    %v2145 = vmul.f32 %v2144, 1.442695
    %v2146 = vpow.pop %v2145
    %v2147 = vsub.f32 %v2129, %v2140
    %v2148 = vmul.f32 %v2147, 1.442695
    %v2149 = vpow.pop %v2148
    %v2150 = vsub.f32 %v2137, %v2140
    %v2151 = vmul.f32 %v2150, 1.442695
    %v2152 = vpow.pop %v2151
    %v2153 = vadd.f32 %v2143, %v2146
    %v2154 = vadd.f32 %v2153, %v2149
    %v2155 = vadd.f32 %v2154, %v2152
    %v2156 = vrcp.pop %v2155
    %v2157 = vmul.f32 %v2143, %v2156
    %v2158 = vmul.f32 %v2157, %v2026
    %v2159 = vmul.f32 %v2146, %v2156
    %v2160 = vmul.f32 %v2159, %v2026
    %2162 = vrot.lane.b32.xlu0 %v2160, 120
    %v2163 = vpop.permute.xlu0 %2162
    %v2165 = vadd.f32 %v2158, %v2163
    %v2166 = vmul.f32 %v2149, %v2156
    %v2167 = vmul.f32 %v2166, %v2026
    %2169 = vrot.lane.b32.xlu0 %v2167, 112
    %v2170 = vpop.permute.xlu0 %2169
    %v2172 = vadd.f32 %v2165, %v2170
    %v2173 = vmul.f32 %v2152, %v2156
    %v2174 = vmul.f32 %v2173, %v2026
    %2176 = vrot.lane.b32.xlu0 %v2174, 104
    %v2177 = vpop.permute.xlu0 %2176
    %v2179 = vadd.f32 %v2172, %v2177
    %v2181 = vsel %vm2030, %v2179, 0
    %2183 = vmatprep.subr.mxu0 0.0
    %2184 = vmatpush1.msra.mxu0 %v1757
    %2185 = vmatprep.subr.mxu0 0.0
    %2186 = vmatpush1.msra.mxu0 0.0
    %2187 = vmatprep.subr.mxu0 0.0
    %2188 = vmatpush1.msra.mxu0 0.0
    %2189 = vmatprep.subr.mxu0 0.0
    %2190 = vmatpush1.msra.mxu0 0.0
    %2191 = vmatprep.subr.mxu0 0.0
    %2192 = vmatpush1.msra.mxu0 0.0
    %2193 = vmatprep.subr.mxu0 0.0
    %2194 = vmatpush1.msra.mxu0 0.0
    %2195 = vmatprep.subr.mxu0 0.0
    %2196 = vmatpush1.msra.mxu0 0.0
    %2197 = vmatprep.subr.mxu0 0.0
    %2198 = vmatpush1.msra.mxu0 0.0
    %2199 = vmatprep.subr.mxu0 0.0
    %2200 = vmatpush1.msra.mxu0 0.0
    %2201 = vmatprep.subr.mxu0 0.0
    %2202 = vmatpush1.msra.mxu0 0.0
    %2203 = vmatprep.subr.mxu0 0.0
    %2204 = vmatpush1.msra.mxu0 0.0
    %2205 = vmatprep.subr.mxu0 0.0
    %2206 = vmatpush1.msra.mxu0 0.0
    %2207 = vmatprep.subr.mxu0 0.0
    %2208 = vmatpush1.msra.mxu0 0.0
    %2209 = vmatprep.subr.mxu0 0.0
    %2210 = vmatpush1.msra.mxu0 0.0
    %2211 = vmatprep.subr.mxu0 0.0
    %2212 = vmatpush1.msra.mxu0 0.0
    %2213 = vmatprep.subr.mxu0 0.0
    %2214 = vmatpush1.msra.mxu0 0.0
    %2215 = vmatprep.subr.mxu0 0.0
    %2216 = vmatpush1.msra.mxu0 0.0
    %2217 = vmatprep.subr.mxu0 0.0
    %2218 = vmatpush1.msra.mxu0 0.0
    %2219 = vmatprep.subr.mxu0 0.0
    %2220 = vmatpush1.msra.mxu0 0.0
    %2221 = vmatprep.subr.mxu0 0.0
    %2222 = vmatpush1.msra.mxu0 0.0
    %2223 = vmatprep.subr.mxu0 0.0
    %2224 = vmatpush1.msra.mxu0 0.0
    %2225 = vmatprep.subr.mxu0 0.0
    %2226 = vmatpush1.msra.mxu0 0.0
    %2227 = vmatprep.subr.mxu0 0.0
    %2228 = vmatpush1.msra.mxu0 0.0
    %2229 = vmatprep.subr.mxu0 0.0
    %2230 = vmatpush1.msra.mxu0 0.0
    %2231 = vmatprep.subr.mxu0 0.0
    %2232 = vmatpush1.msra.mxu0 0.0
    %2233 = vmatprep.subr.mxu0 0.0
    %2234 = vmatpush1.msra.mxu0 0.0
    %2235 = vmatprep.subr.mxu0 0.0
    %2236 = vmatpush1.msra.mxu0 0.0
    %2237 = vmatprep.subr.mxu0 0.0
    %2238 = vmatpush1.msra.mxu0 0.0
    %2239 = vmatprep.subr.mxu0 0.0
    %2240 = vmatpush1.msra.mxu0 0.0
    %2241 = vmatprep.subr.mxu0 0.0
    %2242 = vmatpush1.msra.mxu0 0.0
    %2243 = vmatprep.subr.mxu0 0.0
    %2244 = vmatpush1.msra.mxu0 0.0
    %2245 = vmatprep.subr.mxu0 0.0
    %2246 = vmatpush1.msra.mxu0 0.0
    %2247 = vmatprep.mubr.f32.mxu0 0.0
    %2248 = vmatmul.mubr.f32.gmra.mrb[0].mxu0 %v2181
    %v2249 = vpop.f32.mrb[0].mxu0
    %v2250 = vadd.f32 0.0, %v2249
    %v2251 = vpop.f32.mrb[0].mxu0
    %2252 = vdwg.mxu0
    %v2254 = vsel %vm2030, %v2101, 0
    %2256 = vmatprep.subr.mxu0 0.0
    %2257 = vmatpush1.msra.mxu0 %v1756
    %2258 = vmatprep.subr.mxu0 0.0
    %2259 = vmatpush1.msra.mxu0 0.0
    %2260 = vmatprep.subr.mxu0 0.0
    %2261 = vmatpush1.msra.mxu0 0.0
    %2262 = vmatprep.subr.mxu0 0.0
    %2263 = vmatpush1.msra.mxu0 0.0
    %2264 = vmatprep.subr.mxu0 0.0
    %2265 = vmatpush1.msra.mxu0 0.0
    %2266 = vmatprep.subr.mxu0 0.0
    %2267 = vmatpush1.msra.mxu0 0.0
    %2268 = vmatprep.subr.mxu0 0.0
    %2269 = vmatpush1.msra.mxu0 0.0
    %2270 = vmatprep.subr.mxu0 0.0
    %2271 = vmatpush1.msra.mxu0 0.0
    %2272 = vmatprep.subr.mxu0 0.0
    %2273 = vmatpush1.msra.mxu0 0.0
    %2274 = vmatprep.subr.mxu0 0.0
    %2275 = vmatpush1.msra.mxu0 0.0
    %2276 = vmatprep.subr.mxu0 0.0
    %2277 = vmatpush1.msra.mxu0 0.0
    %2278 = vmatprep.subr.mxu0 0.0
    %2279 = vmatpush1.msra.mxu0 0.0
    %2280 = vmatprep.subr.mxu0 0.0
    %2281 = vmatpush1.msra.mxu0 0.0
    %2282 = vmatprep.subr.mxu0 0.0
    %2283 = vmatpush1.msra.mxu0 0.0
    %2284 = vmatprep.subr.mxu0 0.0
    %2285 = vmatpush1.msra.mxu0 0.0
    %2286 = vmatprep.subr.mxu0 0.0
    %2287 = vmatpush1.msra.mxu0 0.0
    %2288 = vmatprep.subr.mxu0 0.0
    %2289 = vmatpush1.msra.mxu0 0.0
    %2290 = vmatprep.subr.mxu0 0.0
    %2291 = vmatpush1.msra.mxu0 0.0
    %2292 = vmatprep.subr.mxu0 0.0
    %2293 = vmatpush1.msra.mxu0 0.0
    %2294 = vmatprep.subr.mxu0 0.0
    %2295 = vmatpush1.msra.mxu0 0.0
    %2296 = vmatprep.subr.mxu0 0.0
    %2297 = vmatpush1.msra.mxu0 0.0
    %2298 = vmatprep.subr.mxu0 0.0
    %2299 = vmatpush1.msra.mxu0 0.0
    %2300 = vmatprep.subr.mxu0 0.0
    %2301 = vmatpush1.msra.mxu0 0.0
    %2302 = vmatprep.subr.mxu0 0.0
    %2303 = vmatpush1.msra.mxu0 0.0
    %2304 = vmatprep.subr.mxu0 0.0
    %2305 = vmatpush1.msra.mxu0 0.0
    %2306 = vmatprep.subr.mxu0 0.0
    %2307 = vmatpush1.msra.mxu0 0.0
    %2308 = vmatprep.subr.mxu0 0.0
    %2309 = vmatpush1.msra.mxu0 0.0
    %2310 = vmatprep.subr.mxu0 0.0
    %2311 = vmatpush1.msra.mxu0 0.0
    %2312 = vmatprep.subr.mxu0 0.0
    %2313 = vmatpush1.msra.mxu0 0.0
    %2314 = vmatprep.subr.mxu0 0.0
    %2315 = vmatpush1.msra.mxu0 0.0
    %2316 = vmatprep.subr.mxu0 0.0
    %2317 = vmatpush1.msra.mxu0 0.0
    %2318 = vmatprep.subr.mxu0 0.0
    %2319 = vmatpush1.msra.mxu0 0.0
    %2320 = vmatprep.mubr.f32.mxu0 0.0
    %2321 = vmatmul.mubr.f32.gmra.mrb[0].mxu0 %v2254
    %v2322 = vpop.f32.mrb[0].mxu0
    %v2323 = vadd.f32 %v2250, %v2322
    %v2324 = vpop.f32.mrb[0].mxu0
    %2325 = vdwg.mxu0
    %2326 = vrot.lane.b32.xlu0 %v1950, 16
    %v2327 = vpop.permute.xlu0 %2326
    %v2329 = vmul.f32 %v1874, %v2327
    %2331 = vrot.lane.b32.xlu0 %v2329, 112
    %v2332 = vpop.permute.xlu0 %2331
    %v2334 = vsel %vm2030, %v2332, 0.0
    %2335 = vadd.xlane.f32.xlu0 %v2334
    %v2336 = vpop.xlane.xlu0 %2335
    %v2337 = vmul.f32 %v2336, 0.35355338
    %2338 = vrot.lane.b32.xlu0 %v2105, 112
    %v2339 = vpop.permute.xlu0 %2338
    %v2341 = vsel %vm2030, %v2339, 0.0
    %2342 = vadd.xlane.f32.xlu0 %v2341
    %v2343 = vpop.xlane.xlu0 %2342
    %v2344 = vmul.f32 %v2343, 0.35355338
    %2345 = vrot.lane.b32.xlu0 %v2029, 112
    %v2346 = vpop.permute.xlu0 %2345
    %v2348 = vsel %vm2030, %v2346, 0.0
    %2349 = vadd.xlane.f32.xlu0 %v2348
    %v2350 = vpop.xlane.xlu0 %2349
    %v2351 = vmul.f32 %v2350, 0.35355338
    %2352 = vrot.lane.b32.xlu0 %v2039, 112
    %v2353 = vpop.permute.xlu0 %2352
    %v2355 = vsel %vm2030, %v2353, 0.0
    %2356 = vadd.xlane.f32.xlu0 %v2355
    %v2357 = vpop.xlane.xlu0 %2356
    %v2358 = vmul.f32 %v2357, 0.35355338
    %v2359 = vmax.f32 %v2337, %v2344
    %v2360 = vmax.f32 %v2359, %v2351
    %v2361 = vmax.f32 %v2360, %v2358
    %v2362 = vsub.f32 %v2337, %v2361
    %v2363 = vmul.f32 %v2362, 1.442695
    %v2364 = vpow.pop %v2363
    %v2365 = vsub.f32 %v2344, %v2361
    %v2366 = vmul.f32 %v2365, 1.442695
    %v2367 = vpow.pop %v2366
    %v2368 = vsub.f32 %v2351, %v2361
    %v2369 = vmul.f32 %v2368, 1.442695
    %v2370 = vpow.pop %v2369
    %v2371 = vsub.f32 %v2358, %v2361
    %v2372 = vmul.f32 %v2371, 1.442695
    %v2373 = vpow.pop %v2372
    %v2374 = vadd.f32 %v2364, %v2367
    %v2375 = vadd.f32 %v2374, %v2370
    %v2376 = vadd.f32 %v2375, %v2373
    %v2377 = vrcp.pop %v2376
    %v2378 = vmul.f32 %v2364, %v2377
    %v2379 = vmul.f32 %v2378, %v2026
    %v2380 = vmul.f32 %v2367, %v2377
    %v2381 = vmul.f32 %v2380, %v2026
    %2383 = vrot.lane.b32.xlu0 %v2381, 120
    %v2384 = vpop.permute.xlu0 %2383
    %v2386 = vadd.f32 %v2379, %v2384
    %v2387 = vmul.f32 %v2370, %v2377
    %v2388 = vmul.f32 %v2387, %v2026
    %2390 = vrot.lane.b32.xlu0 %v2388, 112
    %v2391 = vpop.permute.xlu0 %2390
    %v2393 = vadd.f32 %v2386, %v2391
    %v2394 = vmul.f32 %v2373, %v2377
    %v2395 = vmul.f32 %v2394, %v2026
    %2397 = vrot.lane.b32.xlu0 %v2395, 104
    %v2398 = vpop.permute.xlu0 %2397
    %v2400 = vadd.f32 %v2393, %v2398
    %v2402 = vsel %vm2030, %v2400, 0
    %2404 = vmatprep.subr.mxu0 0.0
    %2405 = vmatpush1.msra.mxu0 %v1758
    %2406 = vmatprep.subr.mxu0 0.0
    %2407 = vmatpush1.msra.mxu0 0.0
    %2408 = vmatprep.subr.mxu0 0.0
    %2409 = vmatpush1.msra.mxu0 0.0
    %2410 = vmatprep.subr.mxu0 0.0
    %2411 = vmatpush1.msra.mxu0 0.0
    %2412 = vmatprep.subr.mxu0 0.0
    %2413 = vmatpush1.msra.mxu0 0.0
    %2414 = vmatprep.subr.mxu0 0.0
    %2415 = vmatpush1.msra.mxu0 0.0
    %2416 = vmatprep.subr.mxu0 0.0
    %2417 = vmatpush1.msra.mxu0 0.0
    %2418 = vmatprep.subr.mxu0 0.0
    %2419 = vmatpush1.msra.mxu0 0.0
    %2420 = vmatprep.subr.mxu0 0.0
    %2421 = vmatpush1.msra.mxu0 0.0
    %2422 = vmatprep.subr.mxu0 0.0
    %2423 = vmatpush1.msra.mxu0 0.0
    %2424 = vmatprep.subr.mxu0 0.0
    %2425 = vmatpush1.msra.mxu0 0.0
    %2426 = vmatprep.subr.mxu0 0.0
    %2427 = vmatpush1.msra.mxu0 0.0
    %2428 = vmatprep.subr.mxu0 0.0
    %2429 = vmatpush1.msra.mxu0 0.0
    %2430 = vmatprep.subr.mxu0 0.0
    %2431 = vmatpush1.msra.mxu0 0.0
    %2432 = vmatprep.subr.mxu0 0.0
    %2433 = vmatpush1.msra.mxu0 0.0
    %2434 = vmatprep.subr.mxu0 0.0
    %2435 = vmatpush1.msra.mxu0 0.0
    %2436 = vmatprep.subr.mxu0 0.0
    %2437 = vmatpush1.msra.mxu0 0.0
    %2438 = vmatprep.subr.mxu0 0.0
    %2439 = vmatpush1.msra.mxu0 0.0
    %2440 = vmatprep.subr.mxu0 0.0
    %2441 = vmatpush1.msra.mxu0 0.0
    %2442 = vmatprep.subr.mxu0 0.0
    %2443 = vmatpush1.msra.mxu0 0.0
    %2444 = vmatprep.subr.mxu0 0.0
    %2445 = vmatpush1.msra.mxu0 0.0
    %2446 = vmatprep.subr.mxu0 0.0
    %2447 = vmatpush1.msra.mxu0 0.0
    %2448 = vmatprep.subr.mxu0 0.0
    %2449 = vmatpush1.msra.mxu0 0.0
    %2450 = vmatprep.subr.mxu0 0.0
    %2451 = vmatpush1.msra.mxu0 0.0
    %2452 = vmatprep.subr.mxu0 0.0
    %2453 = vmatpush1.msra.mxu0 0.0
    %2454 = vmatprep.subr.mxu0 0.0
    %2455 = vmatpush1.msra.mxu0 0.0
    %2456 = vmatprep.subr.mxu0 0.0
    %2457 = vmatpush1.msra.mxu0 0.0
    %2458 = vmatprep.subr.mxu0 0.0
    %2459 = vmatpush1.msra.mxu0 0.0
    %2460 = vmatprep.subr.mxu0 0.0
    %2461 = vmatpush1.msra.mxu0 0.0
    %2462 = vmatprep.subr.mxu0 0.0
    %2463 = vmatpush1.msra.mxu0 0.0
    %2464 = vmatprep.subr.mxu0 0.0
    %2465 = vmatpush1.msra.mxu0 0.0
    %2466 = vmatprep.subr.mxu0 0.0
    %2467 = vmatpush1.msra.mxu0 0.0
    %2468 = vmatprep.mubr.f32.mxu0 0.0
    %2469 = vmatmul.mubr.f32.gmra.mrb[0].mxu0 %v2402
    %v2470 = vpop.f32.mrb[0].mxu0
    %v2471 = vadd.f32 0.0, %v2470
    %v2472 = vpop.f32.mrb[0].mxu0
    %2473 = vdwg.mxu0
    %v2474 = vadd.f32 %v2323, %v2471
    %2475 = vrot.lane.b32.xlu0 %v1950, 24
    %v2476 = vpop.permute.xlu0 %2475
    %v2478 = vmul.f32 %v1874, %v2476
    %2480 = vrot.lane.b32.xlu0 %v2478, 104
    %v2481 = vpop.permute.xlu0 %2480
    %v2483 = vsel %vm2030, %v2481, 0.0
    %2484 = vadd.xlane.f32.xlu0 %v2483
    %v2485 = vpop.xlane.xlu0 %2484
    %v2486 = vmul.f32 %v2485, 0.35355338
    %2487 = vrot.lane.b32.xlu0 %v2329, 104
    %v2488 = vpop.permute.xlu0 %2487
    %v2490 = vsel %vm2030, %v2488, 0.0
    %2491 = vadd.xlane.f32.xlu0 %v2490
    %v2492 = vpop.xlane.xlu0 %2491
    %v2493 = vmul.f32 %v2492, 0.35355338
    %2494 = vrot.lane.b32.xlu0 %v2105, 104
    %v2495 = vpop.permute.xlu0 %2494
    %v2497 = vsel %vm2030, %v2495, 0.0
    %2498 = vadd.xlane.f32.xlu0 %v2497
    %v2499 = vpop.xlane.xlu0 %2498
    %v2500 = vmul.f32 %v2499, 0.35355338
    %2501 = vrot.lane.b32.xlu0 %v2029, 104
    %v2502 = vpop.permute.xlu0 %2501
    %v2504 = vsel %vm2030, %v2502, 0.0
    %2505 = vadd.xlane.f32.xlu0 %v2504
    %v2506 = vpop.xlane.xlu0 %2505
    %v2507 = vmul.f32 %v2506, 0.35355338
    %v2508 = vmax.f32 %v2486, %v2493
    %v2509 = vmax.f32 %v2508, %v2500
    %v2510 = vmax.f32 %v2509, %v2507
    %v2511 = vsub.f32 %v2486, %v2510
    %v2512 = vmul.f32 %v2511, 1.442695
    %v2513 = vpow.pop %v2512
    %v2514 = vsub.f32 %v2493, %v2510
    %v2515 = vmul.f32 %v2514, 1.442695
    %v2516 = vpow.pop %v2515
    %v2517 = vsub.f32 %v2500, %v2510
    %v2518 = vmul.f32 %v2517, 1.442695
    %v2519 = vpow.pop %v2518
    %v2520 = vsub.f32 %v2507, %v2510
    %v2521 = vmul.f32 %v2520, 1.442695
    %v2522 = vpow.pop %v2521
    %v2523 = vadd.f32 %v2513, %v2516
    %v2524 = vadd.f32 %v2523, %v2519
    %v2525 = vadd.f32 %v2524, %v2522
    %v2526 = vrcp.pop %v2525
    %v2527 = vmul.f32 %v2513, %v2526
    %v2528 = vmul.f32 %v2527, %v2026
    %v2529 = vmul.f32 %v2516, %v2526
    %v2530 = vmul.f32 %v2529, %v2026
    %2532 = vrot.lane.b32.xlu0 %v2530, 120
    %v2533 = vpop.permute.xlu0 %2532
    %v2535 = vadd.f32 %v2528, %v2533
    %v2536 = vmul.f32 %v2519, %v2526
    %v2537 = vmul.f32 %v2536, %v2026
    %2539 = vrot.lane.b32.xlu0 %v2537, 112
    %v2540 = vpop.permute.xlu0 %2539
    %v2542 = vadd.f32 %v2535, %v2540
    %v2543 = vmul.f32 %v2522, %v2526
    %v2544 = vmul.f32 %v2543, %v2026
    %2546 = vrot.lane.b32.xlu0 %v2544, 104
    %v2547 = vpop.permute.xlu0 %2546
    %v2549 = vadd.f32 %v2542, %v2547
    %v2551 = vsel %vm2030, %v2549, 0
    %2553 = vmatprep.subr.mxu0 0.0
    %2554 = vmatpush1.msra.mxu0 %v1759
    %2555 = vmatprep.subr.mxu0 0.0
    %2556 = vmatpush1.msra.mxu0 0.0
    %2557 = vmatprep.subr.mxu0 0.0
    %2558 = vmatpush1.msra.mxu0 0.0
    %2559 = vmatprep.subr.mxu0 0.0
    %2560 = vmatpush1.msra.mxu0 0.0
    %2561 = vmatprep.subr.mxu0 0.0
    %2562 = vmatpush1.msra.mxu0 0.0
    %2563 = vmatprep.subr.mxu0 0.0
    %2564 = vmatpush1.msra.mxu0 0.0
    %2565 = vmatprep.subr.mxu0 0.0
    %2566 = vmatpush1.msra.mxu0 0.0
    %2567 = vmatprep.subr.mxu0 0.0
    %2568 = vmatpush1.msra.mxu0 0.0
    %2569 = vmatprep.subr.mxu0 0.0
    %2570 = vmatpush1.msra.mxu0 0.0
    %2571 = vmatprep.subr.mxu0 0.0
    %2572 = vmatpush1.msra.mxu0 0.0
    %2573 = vmatprep.subr.mxu0 0.0
    %2574 = vmatpush1.msra.mxu0 0.0
    %2575 = vmatprep.subr.mxu0 0.0
    %2576 = vmatpush1.msra.mxu0 0.0
    %2577 = vmatprep.subr.mxu0 0.0
    %2578 = vmatpush1.msra.mxu0 0.0
    %2579 = vmatprep.subr.mxu0 0.0
    %2580 = vmatpush1.msra.mxu0 0.0
    %2581 = vmatprep.subr.mxu0 0.0
    %2582 = vmatpush1.msra.mxu0 0.0
    %2583 = vmatprep.subr.mxu0 0.0
    %2584 = vmatpush1.msra.mxu0 0.0
    %2585 = vmatprep.subr.mxu0 0.0
    %2586 = vmatpush1.msra.mxu0 0.0
    %2587 = vmatprep.subr.mxu0 0.0
    %2588 = vmatpush1.msra.mxu0 0.0
    %2589 = vmatprep.subr.mxu0 0.0
    %2590 = vmatpush1.msra.mxu0 0.0
    %2591 = vmatprep.subr.mxu0 0.0
    %2592 = vmatpush1.msra.mxu0 0.0
    %2593 = vmatprep.subr.mxu0 0.0
    %2594 = vmatpush1.msra.mxu0 0.0
    %2595 = vmatprep.subr.mxu0 0.0
    %2596 = vmatpush1.msra.mxu0 0.0
    %2597 = vmatprep.subr.mxu0 0.0
    %2598 = vmatpush1.msra.mxu0 0.0
    %2599 = vmatprep.subr.mxu0 0.0
    %2600 = vmatpush1.msra.mxu0 0.0
    %2601 = vmatprep.subr.mxu0 0.0
    %2602 = vmatpush1.msra.mxu0 0.0
    %2603 = vmatprep.subr.mxu0 0.0
    %2604 = vmatpush1.msra.mxu0 0.0
    %2605 = vmatprep.subr.mxu0 0.0
    %2606 = vmatpush1.msra.mxu0 0.0
    %2607 = vmatprep.subr.mxu0 0.0
    %2608 = vmatpush1.msra.mxu0 0.0
    %2609 = vmatprep.subr.mxu0 0.0
    %2610 = vmatpush1.msra.mxu0 0.0
    %2611 = vmatprep.subr.mxu0 0.0
    %2612 = vmatpush1.msra.mxu0 0.0
    %2613 = vmatprep.subr.mxu0 0.0
    %2614 = vmatpush1.msra.mxu0 0.0
    %2615 = vmatprep.subr.mxu0 0.0
    %2616 = vmatpush1.msra.mxu0 0.0
    %2617 = vmatprep.mubr.f32.mxu0 0.0
    %2618 = vmatmul.mubr.f32.gmra.mrb[0].mxu0 %v2551
    %v2619 = vpop.f32.mrb[0].mxu0
    %v2620 = vadd.f32 0.0, %v2619
    %v2621 = vpop.f32.mrb[0].mxu0
    %2622 = vdwg.mxu0
    %v2623 = vadd.f32 %v2474, %v2620
    %v2625 = vlaneseq
    %v2626 = vshrl.u32 %v2625, 7
    %v2627 = vsub.s32 0, %v2626
    %v2628 = vrot.slane %v1760, %v2627
    %v2630 = vadd.f32 %v2623, %v2628
    %v2631 = vadd.f32 %v1686, %v2630
    %2632 = vmatprep.subr.mxu0 0.0
    %2633 = vmatpush1.msra.mxu0 %v1689
    %2634 = vmatprep.subr.mxu0 0.0
    %2635 = vmatpush1.msra.mxu0 %v1690
    %2636 = vmatprep.subr.mxu0 0.0
    %2637 = vmatpush1.msra.mxu0 %v1691
    %2638 = vmatprep.subr.mxu0 0.0
    %2639 = vmatpush1.msra.mxu0 %v1692
    %2640 = vmatprep.subr.mxu0 0.0
    %2641 = vmatpush1.msra.mxu0 %v1693
    %2642 = vmatprep.subr.mxu0 0.0
    %2643 = vmatpush1.msra.mxu0 %v1694
    %2644 = vmatprep.subr.mxu0 0.0
    %2645 = vmatpush1.msra.mxu0 %v1695
    %2646 = vmatprep.subr.mxu0 0.0
    %2647 = vmatpush1.msra.mxu0 %v1696
    %2648 = vmatprep.subr.mxu0 0.0
    %2649 = vmatpush1.msra.mxu0 %v1697
    %2650 = vmatprep.subr.mxu0 0.0
    %2651 = vmatpush1.msra.mxu0 %v1698
    %2652 = vmatprep.subr.mxu0 0.0
    %2653 = vmatpush1.msra.mxu0 %v1699
    %2654 = vmatprep.subr.mxu0 0.0
    %2655 = vmatpush1.msra.mxu0 %v1700
    %2656 = vmatprep.subr.mxu0 0.0
    %2657 = vmatpush1.msra.mxu0 %v1701
    %2658 = vmatprep.subr.mxu0 0.0
    %2659 = vmatpush1.msra.mxu0 %v1702
    %2660 = vmatprep.subr.mxu0 0.0
    %2661 = vmatpush1.msra.mxu0 %v1703
    %2662 = vmatprep.subr.mxu0 0.0
    %2663 = vmatpush1.msra.mxu0 %v1704
    %2664 = vmatprep.subr.mxu0 0.0
    %2665 = vmatpush1.msra.mxu0 0.0
    %2666 = vmatprep.subr.mxu0 0.0
    %2667 = vmatpush1.msra.mxu0 0.0
    %2668 = vmatprep.subr.mxu0 0.0
    %2669 = vmatpush1.msra.mxu0 0.0
    %2670 = vmatprep.subr.mxu0 0.0
    %2671 = vmatpush1.msra.mxu0 0.0
    %2672 = vmatprep.subr.mxu0 0.0
    %2673 = vmatpush1.msra.mxu0 0.0
    %2674 = vmatprep.subr.mxu0 0.0
    %2675 = vmatpush1.msra.mxu0 0.0
    %2676 = vmatprep.subr.mxu0 0.0
    %2677 = vmatpush1.msra.mxu0 0.0
    %2678 = vmatprep.subr.mxu0 0.0
    %2679 = vmatpush1.msra.mxu0 0.0
    %2680 = vmatprep.subr.mxu0 0.0
    %2681 = vmatpush1.msra.mxu0 0.0
    %2682 = vmatprep.subr.mxu0 0.0
    %2683 = vmatpush1.msra.mxu0 0.0
    %2684 = vmatprep.subr.mxu0 0.0
    %2685 = vmatpush1.msra.mxu0 0.0
    %2686 = vmatprep.subr.mxu0 0.0
    %2687 = vmatpush1.msra.mxu0 0.0
    %2688 = vmatprep.subr.mxu0 0.0
    %2689 = vmatpush1.msra.mxu0 0.0
    %2690 = vmatprep.subr.mxu0 0.0
    %2691 = vmatpush1.msra.mxu0 0.0
    %2692 = vmatprep.subr.mxu0 0.0
    %2693 = vmatpush1.msra.mxu0 0.0
    %2694 = vmatprep.subr.mxu0 0.0
    %2695 = vmatpush1.msra.mxu0 0.0
    %2696 = vmatprep.mubr.f32.mxu0 0.0
    %2697 = vmatmul.mubr.f32.gmra.mrb[0].mxu0 %v2631
    %v2698 = vpop.f32.mrb[0].mxu0
    %v2699 = vadd.f32 0.0, %v2698
    %v2700 = vpop.f32.mrb[0].mxu0
    %2701 = vdwg.mxu0
    %v2702 = vsub.f32 %v2631, %v2699
    %v2703 = vmul.f32 %v2702, %v2702
    %2704 = vmatprep.subr.mxu0 0.0
    %2705 = vmatpush1.msra.mxu0 %v1689
    %2706 = vmatprep.subr.mxu0 0.0
    %2707 = vmatpush1.msra.mxu0 %v1690
    %2708 = vmatprep.subr.mxu0 0.0
    %2709 = vmatpush1.msra.mxu0 %v1691
    %2710 = vmatprep.subr.mxu0 0.0
    %2711 = vmatpush1.msra.mxu0 %v1692
    %2712 = vmatprep.subr.mxu0 0.0
    %2713 = vmatpush1.msra.mxu0 %v1693
    %2714 = vmatprep.subr.mxu0 0.0
    %2715 = vmatpush1.msra.mxu0 %v1694
    %2716 = vmatprep.subr.mxu0 0.0
    %2717 = vmatpush1.msra.mxu0 %v1695
    %2718 = vmatprep.subr.mxu0 0.0
    %2719 = vmatpush1.msra.mxu0 %v1696
    %2720 = vmatprep.subr.mxu0 0.0
    %2721 = vmatpush1.msra.mxu0 %v1697
    %2722 = vmatprep.subr.mxu0 0.0
    %2723 = vmatpush1.msra.mxu0 %v1698
    %2724 = vmatprep.subr.mxu0 0.0
    %2725 = vmatpush1.msra.mxu0 %v1699
    %2726 = vmatprep.subr.mxu0 0.0
    %2727 = vmatpush1.msra.mxu0 %v1700
    %2728 = vmatprep.subr.mxu0 0.0
    %2729 = vmatpush1.msra.mxu0 %v1701
    %2730 = vmatprep.subr.mxu0 0.0
    %2731 = vmatpush1.msra.mxu0 %v1702
    %2732 = vmatprep.subr.mxu0 0.0
    %2733 = vmatpush1.msra.mxu0 %v1703
    %2734 = vmatprep.subr.mxu0 0.0
    %2735 = vmatpush1.msra.mxu0 %v1704
    %2736 = vmatprep.subr.mxu0 0.0
    %2737 = vmatpush1.msra.mxu0 0.0
    %2738 = vmatprep.subr.mxu0 0.0
    %2739 = vmatpush1.msra.mxu0 0.0
    %2740 = vmatprep.subr.mxu0 0.0
    %2741 = vmatpush1.msra.mxu0 0.0
    %2742 = vmatprep.subr.mxu0 0.0
    %2743 = vmatpush1.msra.mxu0 0.0
    %2744 = vmatprep.subr.mxu0 0.0
    %2745 = vmatpush1.msra.mxu0 0.0
    %2746 = vmatprep.subr.mxu0 0.0
    %2747 = vmatpush1.msra.mxu0 0.0
    %2748 = vmatprep.subr.mxu0 0.0
    %2749 = vmatpush1.msra.mxu0 0.0
    %2750 = vmatprep.subr.mxu0 0.0
    %2751 = vmatpush1.msra.mxu0 0.0
    %2752 = vmatprep.subr.mxu0 0.0
    %2753 = vmatpush1.msra.mxu0 0.0
    %2754 = vmatprep.subr.mxu0 0.0
    %2755 = vmatpush1.msra.mxu0 0.0
    %2756 = vmatprep.subr.mxu0 0.0
    %2757 = vmatpush1.msra.mxu0 0.0
    %2758 = vmatprep.subr.mxu0 0.0
    %2759 = vmatpush1.msra.mxu0 0.0
    %2760 = vmatprep.subr.mxu0 0.0
    %2761 = vmatpush1.msra.mxu0 0.0
    %2762 = vmatprep.subr.mxu0 0.0
    %2763 = vmatpush1.msra.mxu0 0.0
    %2764 = vmatprep.subr.mxu0 0.0
    %2765 = vmatpush1.msra.mxu0 0.0
    %2766 = vmatprep.subr.mxu0 0.0
    %2767 = vmatpush1.msra.mxu0 0.0
    %2768 = vmatprep.mubr.f32.mxu0 0.0
    %2769 = vmatmul.mubr.f32.gmra.mrb[0].mxu0 %v2703
    %v2770 = vpop.f32.mrb[0].mxu0
    %v2771 = vadd.f32 1e-05, %v2770
    %v2772 = vpop.f32.mrb[0].mxu0
    %2773 = vdwg.mxu0
    %v2774 = vrsqrt.pop %v2771
    %v2775 = vmul.f32 %v2702, %v2774
    %v2777 = vlaneseq
    %v2778 = vshrl.u32 %v2777, 7
    %v2779 = vsub.s32 0, %v2778
    %v2780 = vrot.slane %v1761, %v2779
    %v2782 = vmul.f32 %v2775, %v2780
    %v2784 = vlaneseq
    %v2785 = vshrl.u32 %v2784, 7
    %v2786 = vsub.s32 0, %v2785
    %v2787 = vrot.slane %v1762, %v2786
    %v2789 = vadd.f32 %v2782, %v2787
    %v2791 = vlaneseq
    %v2792 = vshrl.u32 %v2791, 7
    %v2793 = vsub.s32 0, %v2792
    %v2794 = vrot.slane %v1779, %v2793
    %2796 = vmatprep.subr.mxu0 0.0
    %2797 = vmatpush1.msra.mxu0 %v1763
    %2798 = vmatprep.subr.mxu0 0.0
    %2799 = vmatpush1.msra.mxu0 %v1764
    %2800 = vmatprep.subr.mxu0 0.0
    %2801 = vmatpush1.msra.mxu0 %v1765
    %2802 = vmatprep.subr.mxu0 0.0
    %2803 = vmatpush1.msra.mxu0 %v1766
    %2804 = vmatprep.subr.mxu0 0.0
    %2805 = vmatpush1.msra.mxu0 %v1767
    %2806 = vmatprep.subr.mxu0 0.0
    %2807 = vmatpush1.msra.mxu0 %v1768
    %2808 = vmatprep.subr.mxu0 0.0
    %2809 = vmatpush1.msra.mxu0 %v1769
    %2810 = vmatprep.subr.mxu0 0.0
    %2811 = vmatpush1.msra.mxu0 %v1770
    %2812 = vmatprep.subr.mxu0 0.0
    %2813 = vmatpush1.msra.mxu0 %v1771
    %2814 = vmatprep.subr.mxu0 0.0
    %2815 = vmatpush1.msra.mxu0 %v1772
    %2816 = vmatprep.subr.mxu0 0.0
    %2817 = vmatpush1.msra.mxu0 %v1773
    %2818 = vmatprep.subr.mxu0 0.0
    %2819 = vmatpush1.msra.mxu0 %v1774
    %2820 = vmatprep.subr.mxu0 0.0
    %2821 = vmatpush1.msra.mxu0 %v1775
    %2822 = vmatprep.subr.mxu0 0.0
    %2823 = vmatpush1.msra.mxu0 %v1776
    %2824 = vmatprep.subr.mxu0 0.0
    %2825 = vmatpush1.msra.mxu0 %v1777
    %2826 = vmatprep.subr.mxu0 0.0
    %2827 = vmatpush1.msra.mxu0 %v1778
    %2828 = vmatprep.subr.mxu0 0.0
    %2829 = vmatpush1.msra.mxu0 0.0
    %2830 = vmatprep.subr.mxu0 0.0
    %2831 = vmatpush1.msra.mxu0 0.0
    %2832 = vmatprep.subr.mxu0 0.0
    %2833 = vmatpush1.msra.mxu0 0.0
    %2834 = vmatprep.subr.mxu0 0.0
    %2835 = vmatpush1.msra.mxu0 0.0
    %2836 = vmatprep.subr.mxu0 0.0
    %2837 = vmatpush1.msra.mxu0 0.0
    %2838 = vmatprep.subr.mxu0 0.0
    %2839 = vmatpush1.msra.mxu0 0.0
    %2840 = vmatprep.subr.mxu0 0.0
    %2841 = vmatpush1.msra.mxu0 0.0
    %2842 = vmatprep.subr.mxu0 0.0
    %2843 = vmatpush1.msra.mxu0 0.0
    %2844 = vmatprep.subr.mxu0 0.0
    %2845 = vmatpush1.msra.mxu0 0.0
    %2846 = vmatprep.subr.mxu0 0.0
    %2847 = vmatpush1.msra.mxu0 0.0
    %2848 = vmatprep.subr.mxu0 0.0
    %2849 = vmatpush1.msra.mxu0 0.0
    %2850 = vmatprep.subr.mxu0 0.0
    %2851 = vmatpush1.msra.mxu0 0.0
    %2852 = vmatprep.subr.mxu0 0.0
    %2853 = vmatpush1.msra.mxu0 0.0
    %2854 = vmatprep.subr.mxu0 0.0
    %2855 = vmatpush1.msra.mxu0 0.0
    %2856 = vmatprep.subr.mxu0 0.0
    %2857 = vmatpush1.msra.mxu0 0.0
    %2858 = vmatprep.subr.mxu0 0.0
    %2859 = vmatpush1.msra.mxu0 0.0
    %2860 = vmatprep.mubr.f32.mxu0 0.0
    %2861 = vmatmul.mubr.f32.gmra.mrb[0].mxu0 %v2789
    %v2862 = vpop.f32.mrb[0].mxu0
    %v2863 = vadd.f32 %v2794, %v2862
    %v2864 = vpop.f32.mrb[0].mxu0
    %2865 = vdwg.mxu0
    %v2866 = vmax.f32 %v2863, 0.0
    %v2868 = vlaneseq
    %v2869 = vshrl.u32 %v2868, 7
    %v2870 = vsub.s32 0, %v2869
    %v2871 = vrot.slane %v1796, %v2870
    %2873 = vmatprep.subr.mxu0 0.0
    %2874 = vmatpush1.msra.mxu0 %v1780
    %2875 = vmatprep.subr.mxu0 0.0
    %2876 = vmatpush1.msra.mxu0 %v1781
    %2877 = vmatprep.subr.mxu0 0.0
    %2878 = vmatpush1.msra.mxu0 %v1782
    %2879 = vmatprep.subr.mxu0 0.0
    %2880 = vmatpush1.msra.mxu0 %v1783
    %2881 = vmatprep.subr.mxu0 0.0
    %2882 = vmatpush1.msra.mxu0 %v1784
    %2883 = vmatprep.subr.mxu0 0.0
    %2884 = vmatpush1.msra.mxu0 %v1785
    %2885 = vmatprep.subr.mxu0 0.0
    %2886 = vmatpush1.msra.mxu0 %v1786
    %2887 = vmatprep.subr.mxu0 0.0
    %2888 = vmatpush1.msra.mxu0 %v1787
    %2889 = vmatprep.subr.mxu0 0.0
    %2890 = vmatpush1.msra.mxu0 %v1788
    %2891 = vmatprep.subr.mxu0 0.0
    %2892 = vmatpush1.msra.mxu0 %v1789
    %2893 = vmatprep.subr.mxu0 0.0
    %2894 = vmatpush1.msra.mxu0 %v1790
    %2895 = vmatprep.subr.mxu0 0.0
    %2896 = vmatpush1.msra.mxu0 %v1791
    %2897 = vmatprep.subr.mxu0 0.0
    %2898 = vmatpush1.msra.mxu0 %v1792
    %2899 = vmatprep.subr.mxu0 0.0
    %2900 = vmatpush1.msra.mxu0 %v1793
    %2901 = vmatprep.subr.mxu0 0.0
    %2902 = vmatpush1.msra.mxu0 %v1794
    %2903 = vmatprep.subr.mxu0 0.0
    %2904 = vmatpush1.msra.mxu0 %v1795
    %2905 = vmatprep.subr.mxu0 0.0
    %2906 = vmatpush1.msra.mxu0 0.0
    %2907 = vmatprep.subr.mxu0 0.0
    %2908 = vmatpush1.msra.mxu0 0.0
    %2909 = vmatprep.subr.mxu0 0.0
    %2910 = vmatpush1.msra.mxu0 0.0
    %2911 = vmatprep.subr.mxu0 0.0
    %2912 = vmatpush1.msra.mxu0 0.0
    %2913 = vmatprep.subr.mxu0 0.0
    %2914 = vmatpush1.msra.mxu0 0.0
    %2915 = vmatprep.subr.mxu0 0.0
    %2916 = vmatpush1.msra.mxu0 0.0
    %2917 = vmatprep.subr.mxu0 0.0
    %2918 = vmatpush1.msra.mxu0 0.0
    %2919 = vmatprep.subr.mxu0 0.0
    %2920 = vmatpush1.msra.mxu0 0.0
    %2921 = vmatprep.subr.mxu0 0.0
    %2922 = vmatpush1.msra.mxu0 0.0
    %2923 = vmatprep.subr.mxu0 0.0
    %2924 = vmatpush1.msra.mxu0 0.0
    %2925 = vmatprep.subr.mxu0 0.0
    %2926 = vmatpush1.msra.mxu0 0.0
    %2927 = vmatprep.subr.mxu0 0.0
    %2928 = vmatpush1.msra.mxu0 0.0
    %2929 = vmatprep.subr.mxu0 0.0
    %2930 = vmatpush1.msra.mxu0 0.0
    %2931 = vmatprep.subr.mxu0 0.0
    %2932 = vmatpush1.msra.mxu0 0.0
    %2933 = vmatprep.subr.mxu0 0.0
    %2934 = vmatpush1.msra.mxu0 0.0
    %2935 = vmatprep.subr.mxu0 0.0
    %2936 = vmatpush1.msra.mxu0 0.0
    %2937 = vmatprep.mubr.f32.mxu0 0.0
    %2938 = vmatmul.mubr.f32.gmra.mrb[0].mxu0 %v2866
    %v2939 = vpop.f32.mrb[0].mxu0
    %v2940 = vadd.f32 %v2871, %v2939
    %v2941 = vpop.f32.mrb[0].mxu0
    %2942 = vdwg.mxu0
    %v2943 = vadd.f32 %v2789, %v2940
    %2944 = vmatprep.subr.mxu0 0.0
    %2945 = vmatpush1.msra.mxu0 %v1689
    %2946 = vmatprep.subr.mxu0 0.0
    %2947 = vmatpush1.msra.mxu0 %v1690
    %2948 = vmatprep.subr.mxu0 0.0
    %2949 = vmatpush1.msra.mxu0 %v1691
    %2950 = vmatprep.subr.mxu0 0.0
    %2951 = vmatpush1.msra.mxu0 %v1692
    %2952 = vmatprep.subr.mxu0 0.0
    %2953 = vmatpush1.msra.mxu0 %v1693
    %2954 = vmatprep.subr.mxu0 0.0
    %2955 = vmatpush1.msra.mxu0 %v1694
    %2956 = vmatprep.subr.mxu0 0.0
    %2957 = vmatpush1.msra.mxu0 %v1695
    %2958 = vmatprep.subr.mxu0 0.0
    %2959 = vmatpush1.msra.mxu0 %v1696
    %2960 = vmatprep.subr.mxu0 0.0
    %2961 = vmatpush1.msra.mxu0 %v1697
    %2962 = vmatprep.subr.mxu0 0.0
    %2963 = vmatpush1.msra.mxu0 %v1698
    %2964 = vmatprep.subr.mxu0 0.0
    %2965 = vmatpush1.msra.mxu0 %v1699
    %2966 = vmatprep.subr.mxu0 0.0
    %2967 = vmatpush1.msra.mxu0 %v1700
    %2968 = vmatprep.subr.mxu0 0.0
    %2969 = vmatpush1.msra.mxu0 %v1701
    %2970 = vmatprep.subr.mxu0 0.0
    %2971 = vmatpush1.msra.mxu0 %v1702
    %2972 = vmatprep.subr.mxu0 0.0
    %2973 = vmatpush1.msra.mxu0 %v1703
    %2974 = vmatprep.subr.mxu0 0.0
    %2975 = vmatpush1.msra.mxu0 %v1704
    %2976 = vmatprep.subr.mxu0 0.0
    %2977 = vmatpush1.msra.mxu0 0.0
    %2978 = vmatprep.subr.mxu0 0.0
    %2979 = vmatpush1.msra.mxu0 0.0
    %2980 = vmatprep.subr.mxu0 0.0
    %2981 = vmatpush1.msra.mxu0 0.0
    %2982 = vmatprep.subr.mxu0 0.0
    %2983 = vmatpush1.msra.mxu0 0.0
    %2984 = vmatprep.subr.mxu0 0.0
    %2985 = vmatpush1.msra.mxu0 0.0
    %2986 = vmatprep.subr.mxu0 0.0
    %2987 = vmatpush1.msra.mxu0 0.0
    %2988 = vmatprep.subr.mxu0 0.0
    %2989 = vmatpush1.msra.mxu0 0.0
    %2990 = vmatprep.subr.mxu0 0.0
    %2991 = vmatpush1.msra.mxu0 0.0
    %2992 = vmatprep.subr.mxu0 0.0
    %2993 = vmatpush1.msra.mxu0 0.0
    %2994 = vmatprep.subr.mxu0 0.0
    %2995 = vmatpush1.msra.mxu0 0.0
    %2996 = vmatprep.subr.mxu0 0.0
    %2997 = vmatpush1.msra.mxu0 0.0
    %2998 = vmatprep.subr.mxu0 0.0
    %2999 = vmatpush1.msra.mxu0 0.0
    %3000 = vmatprep.subr.mxu0 0.0
    %3001 = vmatpush1.msra.mxu0 0.0
    %3002 = vmatprep.subr.mxu0 0.0
    %3003 = vmatpush1.msra.mxu0 0.0
    %3004 = vmatprep.subr.mxu0 0.0
    %3005 = vmatpush1.msra.mxu0 0.0
    %3006 = vmatprep.subr.mxu0 0.0
    %3007 = vmatpush1.msra.mxu0 0.0
    %3008 = vmatprep.mubr.f32.mxu0 0.0
    %3009 = vmatmul.mubr.f32.gmra.mrb[0].mxu0 %v2943
    %v3010 = vpop.f32.mrb[0].mxu0
    %v3011 = vadd.f32 0.0, %v3010
    %v3012 = vpop.f32.mrb[0].mxu0
    %3013 = vdwg.mxu0
    %v3014 = vsub.f32 %v2943, %v3011
    %v3015 = vmul.f32 %v3014, %v3014
    %3016 = vmatprep.subr.mxu0 0.0
    %3017 = vmatpush1.msra.mxu0 %v1689
    %3018 = vmatprep.subr.mxu0 0.0
    %3019 = vmatpush1.msra.mxu0 %v1690
    %3020 = vmatprep.subr.mxu0 0.0
    %3021 = vmatpush1.msra.mxu0 %v1691
    %3022 = vmatprep.subr.mxu0 0.0
    %3023 = vmatpush1.msra.mxu0 %v1692
    %3024 = vmatprep.subr.mxu0 0.0
    %3025 = vmatpush1.msra.mxu0 %v1693
    %3026 = vmatprep.subr.mxu0 0.0
    %3027 = vmatpush1.msra.mxu0 %v1694
    %3028 = vmatprep.subr.mxu0 0.0
    %3029 = vmatpush1.msra.mxu0 %v1695
    %3030 = vmatprep.subr.mxu0 0.0
    %3031 = vmatpush1.msra.mxu0 %v1696
    %3032 = vmatprep.subr.mxu0 0.0
    %3033 = vmatpush1.msra.mxu0 %v1697
    %3034 = vmatprep.subr.mxu0 0.0
    %3035 = vmatpush1.msra.mxu0 %v1698
    %3036 = vmatprep.subr.mxu0 0.0
    %3037 = vmatpush1.msra.mxu0 %v1699
    %3038 = vmatprep.subr.mxu0 0.0
    %3039 = vmatpush1.msra.mxu0 %v1700
    %3040 = vmatprep.subr.mxu0 0.0
    %3041 = vmatpush1.msra.mxu0 %v1701
    %3042 = vmatprep.subr.mxu0 0.0
    %3043 = vmatpush1.msra.mxu0 %v1702
    %3044 = vmatprep.subr.mxu0 0.0
    %3045 = vmatpush1.msra.mxu0 %v1703
    %3046 = vmatprep.subr.mxu0 0.0
    %3047 = vmatpush1.msra.mxu0 %v1704
    %3048 = vmatprep.subr.mxu0 0.0
    %3049 = vmatpush1.msra.mxu0 0.0
    %3050 = vmatprep.subr.mxu0 0.0
    %3051 = vmatpush1.msra.mxu0 0.0
    %3052 = vmatprep.subr.mxu0 0.0
    %3053 = vmatpush1.msra.mxu0 0.0
    %3054 = vmatprep.subr.mxu0 0.0
    %3055 = vmatpush1.msra.mxu0 0.0
    %3056 = vmatprep.subr.mxu0 0.0
    %3057 = vmatpush1.msra.mxu0 0.0
    %3058 = vmatprep.subr.mxu0 0.0
    %3059 = vmatpush1.msra.mxu0 0.0
    %3060 = vmatprep.subr.mxu0 0.0
    %3061 = vmatpush1.msra.mxu0 0.0
    %3062 = vmatprep.subr.mxu0 0.0
    %3063 = vmatpush1.msra.mxu0 0.0
    %3064 = vmatprep.subr.mxu0 0.0
    %3065 = vmatpush1.msra.mxu0 0.0
    %3066 = vmatprep.subr.mxu0 0.0
    %3067 = vmatpush1.msra.mxu0 0.0
    %3068 = vmatprep.subr.mxu0 0.0
    %3069 = vmatpush1.msra.mxu0 0.0
    %3070 = vmatprep.subr.mxu0 0.0
    %3071 = vmatpush1.msra.mxu0 0.0
    %3072 = vmatprep.subr.mxu0 0.0
    %3073 = vmatpush1.msra.mxu0 0.0
    %3074 = vmatprep.subr.mxu0 0.0
    %3075 = vmatpush1.msra.mxu0 0.0
    %3076 = vmatprep.subr.mxu0 0.0
    %3077 = vmatpush1.msra.mxu0 0.0
    %3078 = vmatprep.subr.mxu0 0.0
    %3079 = vmatpush1.msra.mxu0 0.0
    %3080 = vmatprep.mubr.f32.mxu0 0.0
    %3081 = vmatmul.mubr.f32.gmra.mrb[0].mxu0 %v3015
    %v3082 = vpop.f32.mrb[0].mxu0
    %v3083 = vadd.f32 1e-05, %v3082
    %v3084 = vpop.f32.mrb[0].mxu0
    %3085 = vdwg.mxu0
    %v3086 = vrsqrt.pop %v3083
    %v3087 = vmul.f32 %v3014, %v3086
    %v3089 = vlaneseq
    %v3090 = vshrl.u32 %v3089, 7
    %v3091 = vsub.s32 0, %v3090
    %v3092 = vrot.slane %v1797, %v3091
    %v3094 = vmul.f32 %v3087, %v3092
    %v3096 = vlaneseq
    %v3097 = vshrl.u32 %v3096, 7
    %v3098 = vsub.s32 0, %v3097
    %v3099 = vrot.slane %v1798, %v3098
    %v3101 = vadd.f32 %v3094, %v3099
    %v3102 = vsub.f32 0.0, %v1799
    %v3104 = vlaneseq
    %v3105 = vshrl.u32 %v3104, 7
    %v3106 = vsub.s32 0, %v3105
    %v3107 = vrot.slane %v3102, %v3106
    %v3109 = vmul.f32 %v3107, %v3101
    %v3110 = vmul.f32 %v3109, 1.442695
    %v3111 = vpow.pop %v3110
    %v3112 = vadd.f32 %v3111, 1.0
    %v3113 = vrcp.pop %v3112
    %v3114 = vsub.f32 1.0, %v1800
    %v3116 = vlaneseq
    %v3117 = vshrl.u32 %v3116, 7
    %v3118 = vsub.s32 0, %v3117
    %v3119 = vrot.slane %v3114, %v3118
    %v3121 = vmul.f32 %v3113, %v3119
    %v3123 = vlaneseq
    %v3124 = vshrl.u32 %v3123, 7
    %v3125 = vsub.s32 0, %v3124
    %v3126 = vrot.slane %v1800, %v3125
    %v3128 = vadd.f32 %v3126, %v3121
    %v3129 = vmul.f32 %v3128, %v3101
    %v3130 = vld [vmem:[#allocation61] sm:$0xff]
    %v3131 = vld [vmem:[#allocation61 + $0x8] sm:$0xff]
    %v3132 = vld [vmem:[#allocation61 + $0x10] sm:$0xff]
    %v3133 = vld [vmem:[#allocation61 + $0x18] sm:$0xff]
    %v3134 = vld [vmem:[#allocation61 + $0x20] sm:$0xff]
    %v3135 = vld [vmem:[#allocation61 + $0x28] sm:$0xff]
    %v3136 = vld [vmem:[#allocation61 + $0x30] sm:$0xff]
    %v3137 = vld [vmem:[#allocation61 + $0x38] sm:$0xff]
    %v3138 = vld [vmem:[#allocation61 + $0x40] sm:$0xff]
    %v3139 = vld [vmem:[#allocation61 + $0x48] sm:$0xff]
    %v3140 = vld [vmem:[#allocation61 + $0x50] sm:$0xff]
    %v3141 = vld [vmem:[#allocation61 + $0x58] sm:$0xff]
    %v3142 = vld [vmem:[#allocation61 + $0x60] sm:$0xff]
    %v3143 = vld [vmem:[#allocation61 + $0x68] sm:$0xff]
    %v3144 = vld [vmem:[#allocation61 + $0x70] sm:$0xff]
    %v3145 = vld [vmem:[#allocation61 + $0x78] sm:$0xff]
    %v3146 = vld [vmem:[%s91] sm:$0x1]
    %v3147 = vld [vmem:[#allocation63] sm:$0xff]
    %v3148 = vld [vmem:[#allocation63 + $0x8] sm:$0xff]
    %v3149 = vld [vmem:[#allocation63 + $0x10] sm:$0xff]
    %v3150 = vld [vmem:[#allocation63 + $0x18] sm:$0xff]
    %v3151 = vld [vmem:[#allocation63 + $0x20] sm:$0xff]
    %v3152 = vld [vmem:[#allocation63 + $0x28] sm:$0xff]
    %v3153 = vld [vmem:[#allocation63 + $0x30] sm:$0xff]
    %v3154 = vld [vmem:[#allocation63 + $0x38] sm:$0xff]
    %v3155 = vld [vmem:[#allocation63 + $0x40] sm:$0xff]
    %v3156 = vld [vmem:[#allocation63 + $0x48] sm:$0xff]
    %v3157 = vld [vmem:[#allocation63 + $0x50] sm:$0xff]
    %v3158 = vld [vmem:[#allocation63 + $0x58] sm:$0xff]
    %v3159 = vld [vmem:[#allocation63 + $0x60] sm:$0xff]
    %v3160 = vld [vmem:[#allocation63 + $0x68] sm:$0xff]
    %v3161 = vld [vmem:[#allocation63 + $0x70] sm:$0xff]
    %v3162 = vld [vmem:[#allocation63 + $0x78] sm:$0xff]
    %v3163 = vld [vmem:[%s95] sm:$0x1]
    %v3164 = vld [vmem:[#allocation64] sm:$0xff]
    %v3165 = vld [vmem:[#allocation64 + $0x8] sm:$0xff]
    %v3166 = vld [vmem:[#allocation64 + $0x10] sm:$0xff]
    %v3167 = vld [vmem:[#allocation64 + $0x18] sm:$0xff]
    %v3168 = vld [vmem:[#allocation64 + $0x20] sm:$0xff]
    %v3169 = vld [vmem:[#allocation64 + $0x28] sm:$0xff]
    %v3170 = vld [vmem:[#allocation64 + $0x30] sm:$0xff]
    %v3171 = vld [vmem:[#allocation64 + $0x38] sm:$0xff]
    %v3172 = vld [vmem:[#allocation64 + $0x40] sm:$0xff]
    %v3173 = vld [vmem:[#allocation64 + $0x48] sm:$0xff]
    %v3174 = vld [vmem:[#allocation64 + $0x50] sm:$0xff]
    %v3175 = vld [vmem:[#allocation64 + $0x58] sm:$0xff]
    %v3176 = vld [vmem:[#allocation64 + $0x60] sm:$0xff]
    %v3177 = vld [vmem:[#allocation64 + $0x68] sm:$0xff]
    %v3178 = vld [vmem:[#allocation64 + $0x70] sm:$0xff]
    %v3179 = vld [vmem:[#allocation64 + $0x78] sm:$0xff]
    %v3180 = vld [vmem:[%s99] sm:$0x1]
    %v3181 = vld [vmem:[%s101] sm:$0xff]
    %v3182 = vld [vmem:[%s101 + $0x8] sm:$0xff]
    %v3183 = vld [vmem:[%s101 + $0x10] sm:$0xff]
    %v3184 = vld [vmem:[%s101 + $0x18] sm:$0xff]
    %v3185 = vld [vmem:[%s103] sm:$0x1]
    %v3186 = vld [vmem:[%s105] sm:$0x1]
    %v3187 = vld [vmem:[%s107] sm:$0x1]
    %v3188 = vld [vmem:[#allocation66] sm:$0xff]
    %v3189 = vld [vmem:[#allocation66 + $0x8] sm:$0xff]
    %v3190 = vld [vmem:[#allocation66 + $0x10] sm:$0xff]
    %v3191 = vld [vmem:[#allocation66 + $0x18] sm:$0xff]
    %v3192 = vld [vmem:[#allocation66 + $0x20] sm:$0xff]
    %v3193 = vld [vmem:[#allocation66 + $0x28] sm:$0xff]
    %v3194 = vld [vmem:[#allocation66 + $0x30] sm:$0xff]
    %v3195 = vld [vmem:[#allocation66 + $0x38] sm:$0xff]
    %v3196 = vld [vmem:[#allocation66 + $0x40] sm:$0xff]
    %v3197 = vld [vmem:[#allocation66 + $0x48] sm:$0xff]
    %v3198 = vld [vmem:[#allocation66 + $0x50] sm:$0xff]
    %v3199 = vld [vmem:[#allocation66 + $0x58] sm:$0xff]
    %v3200 = vld [vmem:[#allocation66 + $0x60] sm:$0xff]
    %v3201 = vld [vmem:[#allocation66 + $0x68] sm:$0xff]
    %v3202 = vld [vmem:[#allocation66 + $0x70] sm:$0xff]
    %v3203 = vld [vmem:[#allocation66 + $0x78] sm:$0xff]
    %v3204 = vld [vmem:[%s111] sm:$0x1]
    %v3205 = vld [vmem:[#allocation67] sm:$0xff]
    %v3206 = vld [vmem:[#allocation67 + $0x8] sm:$0xff]
    %v3207 = vld [vmem:[#allocation67 + $0x10] sm:$0xff]
    %v3208 = vld [vmem:[#allocation67 + $0x18] sm:$0xff]
    %v3209 = vld [vmem:[#allocation67 + $0x20] sm:$0xff]
    %v3210 = vld [vmem:[#allocation67 + $0x28] sm:$0xff]
    %v3211 = vld [vmem:[#allocation67 + $0x30] sm:$0xff]
    %v3212 = vld [vmem:[#allocation67 + $0x38] sm:$0xff]
    %v3213 = vld [vmem:[#allocation67 + $0x40] sm:$0xff]
    %v3214 = vld [vmem:[#allocation67 + $0x48] sm:$0xff]
    %v3215 = vld [vmem:[#allocation67 + $0x50] sm:$0xff]
    %v3216 = vld [vmem:[#allocation67 + $0x58] sm:$0xff]
    %v3217 = vld [vmem:[#allocation67 + $0x60] sm:$0xff]
    %v3218 = vld [vmem:[#allocation67 + $0x68] sm:$0xff]
    %v3219 = vld [vmem:[#allocation67 + $0x70] sm:$0xff]
    %v3220 = vld [vmem:[#allocation67 + $0x78] sm:$0xff]
    %v3221 = vld [vmem:[%s115] sm:$0x1]
    %v3222 = vld [vmem:[%s117] sm:$0x1]
    %v3223 = vld [vmem:[%s119] sm:$0x1]
    %v3224 = vld [vmem:[%s121] sm:$0x1]
    %v3225 = vld [vmem:[%s123] sm:$0x1]
    %v3227 = vlaneseq
    %v3228 = vshrl.u32 %v3227, 7
    %v3229 = vsub.s32 0, %v3228
    %v3230 = vrot.slane %v3146, %v3229
    %3232 = vmatprep.subr.mxu0 0.0
    %3233 = vmatpush1.msra.mxu0 %v3130
    %3234 = vmatprep.subr.mxu0 0.0
    %3235 = vmatpush1.msra.mxu0 %v3131
    %3236 = vmatprep.subr.mxu0 0.0
    %3237 = vmatpush1.msra.mxu0 %v3132
    %3238 = vmatprep.subr.mxu0 0.0
    %3239 = vmatpush1.msra.mxu0 %v3133
    %3240 = vmatprep.subr.mxu0 0.0
    %3241 = vmatpush1.msra.mxu0 %v3134
    %3242 = vmatprep.subr.mxu0 0.0
    %3243 = vmatpush1.msra.mxu0 %v3135
    %3244 = vmatprep.subr.mxu0 0.0
    %3245 = vmatpush1.msra.mxu0 %v3136
    %3246 = vmatprep.subr.mxu0 0.0
    %3247 = vmatpush1.msra.mxu0 %v3137
    %3248 = vmatprep.subr.mxu0 0.0
    %3249 = vmatpush1.msra.mxu0 %v3138
    %3250 = vmatprep.subr.mxu0 0.0
    %3251 = vmatpush1.msra.mxu0 %v3139
    %3252 = vmatprep.subr.mxu0 0.0
    %3253 = vmatpush1.msra.mxu0 %v3140
    %3254 = vmatprep.subr.mxu0 0.0
    %3255 = vmatpush1.msra.mxu0 %v3141
    %3256 = vmatprep.subr.mxu0 0.0
    %3257 = vmatpush1.msra.mxu0 %v3142
    %3258 = vmatprep.subr.mxu0 0.0
    %3259 = vmatpush1.msra.mxu0 %v3143
    %3260 = vmatprep.subr.mxu0 0.0
    %3261 = vmatpush1.msra.mxu0 %v3144
    %3262 = vmatprep.subr.mxu0 0.0
    %3263 = vmatpush1.msra.mxu0 %v3145
    %3264 = vmatprep.subr.mxu0 0.0
    %3265 = vmatpush1.msra.mxu0 0.0
    %3266 = vmatprep.subr.mxu0 0.0
    %3267 = vmatpush1.msra.mxu0 0.0
    %3268 = vmatprep.subr.mxu0 0.0
    %3269 = vmatpush1.msra.mxu0 0.0
    %3270 = vmatprep.subr.mxu0 0.0
    %3271 = vmatpush1.msra.mxu0 0.0
    %3272 = vmatprep.subr.mxu0 0.0
    %3273 = vmatpush1.msra.mxu0 0.0
    %3274 = vmatprep.subr.mxu0 0.0
    %3275 = vmatpush1.msra.mxu0 0.0
    %3276 = vmatprep.subr.mxu0 0.0
    %3277 = vmatpush1.msra.mxu0 0.0
    %3278 = vmatprep.subr.mxu0 0.0
    %3279 = vmatpush1.msra.mxu0 0.0
    %3280 = vmatprep.subr.mxu0 0.0
    %3281 = vmatpush1.msra.mxu0 0.0
    %3282 = vmatprep.subr.mxu0 0.0
    %3283 = vmatpush1.msra.mxu0 0.0
    %3284 = vmatprep.subr.mxu0 0.0
    %3285 = vmatpush1.msra.mxu0 0.0
    %3286 = vmatprep.subr.mxu0 0.0
    %3287 = vmatpush1.msra.mxu0 0.0
    %3288 = vmatprep.subr.mxu0 0.0
    %3289 = vmatpush1.msra.mxu0 0.0
    %3290 = vmatprep.subr.mxu0 0.0
    %3291 = vmatpush1.msra.mxu0 0.0
    %3292 = vmatprep.subr.mxu0 0.0
    %3293 = vmatpush1.msra.mxu0 0.0
    %3294 = vmatprep.subr.mxu0 0.0
    %3295 = vmatpush1.msra.mxu0 0.0
    %3296 = vmatprep.mubr.f32.mxu0 0.0
    %3297 = vmatmul.mubr.f32.gmra.mrb[0].mxu0 %v3129
    %v3298 = vpop.f32.mrb[0].mxu0
    %v3299 = vadd.f32 %v3230, %v3298
    %v3300 = vpop.f32.mrb[0].mxu0
    %3301 = vdwg.mxu0
    %v3303 = vlaneseq
    %v3304 = vshrl.u32 %v3303, 7
    %v3305 = vsub.s32 0, %v3304
    %v3306 = vrot.slane %v3163, %v3305
    %3308 = vmatprep.subr.mxu0 0.0
    %3309 = vmatpush1.msra.mxu0 %v3147
    %3310 = vmatprep.subr.mxu0 0.0
    %3311 = vmatpush1.msra.mxu0 %v3148
    %3312 = vmatprep.subr.mxu0 0.0
    %3313 = vmatpush1.msra.mxu0 %v3149
    %3314 = vmatprep.subr.mxu0 0.0
    %3315 = vmatpush1.msra.mxu0 %v3150
    %3316 = vmatprep.subr.mxu0 0.0
    %3317 = vmatpush1.msra.mxu0 %v3151
    %3318 = vmatprep.subr.mxu0 0.0
    %3319 = vmatpush1.msra.mxu0 %v3152
    %3320 = vmatprep.subr.mxu0 0.0
    %3321 = vmatpush1.msra.mxu0 %v3153
    %3322 = vmatprep.subr.mxu0 0.0
    %3323 = vmatpush1.msra.mxu0 %v3154
    %3324 = vmatprep.subr.mxu0 0.0
    %3325 = vmatpush1.msra.mxu0 %v3155
    %3326 = vmatprep.subr.mxu0 0.0
    %3327 = vmatpush1.msra.mxu0 %v3156
    %3328 = vmatprep.subr.mxu0 0.0
    %3329 = vmatpush1.msra.mxu0 %v3157
    %3330 = vmatprep.subr.mxu0 0.0
    %3331 = vmatpush1.msra.mxu0 %v3158
    %3332 = vmatprep.subr.mxu0 0.0
    %3333 = vmatpush1.msra.mxu0 %v3159
    %3334 = vmatprep.subr.mxu0 0.0
    %3335 = vmatpush1.msra.mxu0 %v3160
    %3336 = vmatprep.subr.mxu0 0.0
    %3337 = vmatpush1.msra.mxu0 %v3161
    %3338 = vmatprep.subr.mxu0 0.0
    %3339 = vmatpush1.msra.mxu0 %v3162
    %3340 = vmatprep.subr.mxu0 0.0
    %3341 = vmatpush1.msra.mxu0 0.0
    %3342 = vmatprep.subr.mxu0 0.0
    %3343 = vmatpush1.msra.mxu0 0.0
    %3344 = vmatprep.subr.mxu0 0.0
    %3345 = vmatpush1.msra.mxu0 0.0
    %3346 = vmatprep.subr.mxu0 0.0
    %3347 = vmatpush1.msra.mxu0 0.0
    %3348 = vmatprep.subr.mxu0 0.0
    %3349 = vmatpush1.msra.mxu0 0.0
    %3350 = vmatprep.subr.mxu0 0.0
    %3351 = vmatpush1.msra.mxu0 0.0
    %3352 = vmatprep.subr.mxu0 0.0
    %3353 = vmatpush1.msra.mxu0 0.0
    %3354 = vmatprep.subr.mxu0 0.0
    %3355 = vmatpush1.msra.mxu0 0.0
    %3356 = vmatprep.subr.mxu0 0.0
    %3357 = vmatpush1.msra.mxu0 0.0
    %3358 = vmatprep.subr.mxu0 0.0
    %3359 = vmatpush1.msra.mxu0 0.0
    %3360 = vmatprep.subr.mxu0 0.0
    %3361 = vmatpush1.msra.mxu0 0.0
    %3362 = vmatprep.subr.mxu0 0.0
    %3363 = vmatpush1.msra.mxu0 0.0
    %3364 = vmatprep.subr.mxu0 0.0
    %3365 = vmatpush1.msra.mxu0 0.0
    %3366 = vmatprep.subr.mxu0 0.0
    %3367 = vmatpush1.msra.mxu0 0.0
    %3368 = vmatprep.subr.mxu0 0.0
    %3369 = vmatpush1.msra.mxu0 0.0
    %3370 = vmatprep.subr.mxu0 0.0
    %3371 = vmatpush1.msra.mxu0 0.0
    %3372 = vmatprep.mubr.f32.mxu0 0.0
    %3373 = vmatmul.mubr.f32.gmra.mrb[0].mxu0 %v3129
    %v3374 = vpop.f32.mrb[0].mxu0
    %v3375 = vadd.f32 %v3306, %v3374
    %v3376 = vpop.f32.mrb[0].mxu0
    %3377 = vdwg.mxu0
    %v3379 = vlaneseq
    %v3380 = vshrl.u32 %v3379, 7
    %v3381 = vsub.s32 0, %v3380
    %v3382 = vrot.slane %v3180, %v3381
    %3384 = vmatprep.subr.mxu0 0.0
    %3385 = vmatpush1.msra.mxu0 %v3164
    %3386 = vmatprep.subr.mxu0 0.0
    %3387 = vmatpush1.msra.mxu0 %v3165
    %3388 = vmatprep.subr.mxu0 0.0
    %3389 = vmatpush1.msra.mxu0 %v3166
    %3390 = vmatprep.subr.mxu0 0.0
    %3391 = vmatpush1.msra.mxu0 %v3167
    %3392 = vmatprep.subr.mxu0 0.0
    %3393 = vmatpush1.msra.mxu0 %v3168
    %3394 = vmatprep.subr.mxu0 0.0
    %3395 = vmatpush1.msra.mxu0 %v3169
    %3396 = vmatprep.subr.mxu0 0.0
    %3397 = vmatpush1.msra.mxu0 %v3170
    %3398 = vmatprep.subr.mxu0 0.0
    %3399 = vmatpush1.msra.mxu0 %v3171
    %3400 = vmatprep.subr.mxu0 0.0
    %3401 = vmatpush1.msra.mxu0 %v3172
    %3402 = vmatprep.subr.mxu0 0.0
    %3403 = vmatpush1.msra.mxu0 %v3173
    %3404 = vmatprep.subr.mxu0 0.0
    %3405 = vmatpush1.msra.mxu0 %v3174
    %3406 = vmatprep.subr.mxu0 0.0
    %3407 = vmatpush1.msra.mxu0 %v3175
    %3408 = vmatprep.subr.mxu0 0.0
    %3409 = vmatpush1.msra.mxu0 %v3176
    %3410 = vmatprep.subr.mxu0 0.0
    %3411 = vmatpush1.msra.mxu0 %v3177
    %3412 = vmatprep.subr.mxu0 0.0
    %3413 = vmatpush1.msra.mxu0 %v3178
    %3414 = vmatprep.subr.mxu0 0.0
    %3415 = vmatpush1.msra.mxu0 %v3179
    %3416 = vmatprep.subr.mxu0 0.0
    %3417 = vmatpush1.msra.mxu0 0.0
    %3418 = vmatprep.subr.mxu0 0.0
    %3419 = vmatpush1.msra.mxu0 0.0
    %3420 = vmatprep.subr.mxu0 0.0
    %3421 = vmatpush1.msra.mxu0 0.0
    %3422 = vmatprep.subr.mxu0 0.0
    %3423 = vmatpush1.msra.mxu0 0.0
    %3424 = vmatprep.subr.mxu0 0.0
    %3425 = vmatpush1.msra.mxu0 0.0
    %3426 = vmatprep.subr.mxu0 0.0
    %3427 = vmatpush1.msra.mxu0 0.0
    %3428 = vmatprep.subr.mxu0 0.0
    %3429 = vmatpush1.msra.mxu0 0.0
    %3430 = vmatprep.subr.mxu0 0.0
    %3431 = vmatpush1.msra.mxu0 0.0
    %3432 = vmatprep.subr.mxu0 0.0
    %3433 = vmatpush1.msra.mxu0 0.0
    %3434 = vmatprep.subr.mxu0 0.0
    %3435 = vmatpush1.msra.mxu0 0.0
    %3436 = vmatprep.subr.mxu0 0.0
    %3437 = vmatpush1.msra.mxu0 0.0
    %3438 = vmatprep.subr.mxu0 0.0
    %3439 = vmatpush1.msra.mxu0 0.0
    %3440 = vmatprep.subr.mxu0 0.0
    %3441 = vmatpush1.msra.mxu0 0.0
    %3442 = vmatprep.subr.mxu0 0.0
    %3443 = vmatpush1.msra.mxu0 0.0
    %3444 = vmatprep.subr.mxu0 0.0
    %3445 = vmatpush1.msra.mxu0 0.0
    %3446 = vmatprep.subr.mxu0 0.0
    %3447 = vmatpush1.msra.mxu0 0.0
    %3448 = vmatprep.mubr.f32.mxu0 0.0
    %3449 = vmatmul.mubr.f32.gmra.mrb[0].mxu0 %v3129
    %v3450 = vpop.f32.mrb[0].mxu0
    %v3451 = vadd.f32 %v3382, %v3450
    %v3452 = vpop.f32.mrb[0].mxu0
    %3453 = vdwg.mxu0
    %v3454 = vmul.f32 %v3299, %v3375
    %v3455 = vsel %vm2030, %v3454, 0.0
    %3456 = vadd.xlane.f32.xlu0 %v3455
    %v3457 = vpop.xlane.xlu0 %3456
    %v3458 = vmul.f32 %v3457, 0.35355338
    %3460 = vrot.lane.b32.xlu0 %v3375, 120
    %v3461 = vpop.permute.xlu0 %3460
    %v3463 = vmul.f32 %v3299, %v3461
    %v3464 = vsel %vm2030, %v3463, 0.0
    %3465 = vadd.xlane.f32.xlu0 %v3464
    %v3466 = vpop.xlane.xlu0 %3465
    %v3467 = vmul.f32 %v3466, 0.35355338
    %3468 = vrot.lane.b32.xlu0 %v3375, 112
    %v3469 = vpop.permute.xlu0 %3468
    %v3471 = vmul.f32 %v3299, %v3469
    %v3472 = vsel %vm2030, %v3471, 0.0
    %3473 = vadd.xlane.f32.xlu0 %v3472
    %v3474 = vpop.xlane.xlu0 %3473
    %v3475 = vmul.f32 %v3474, 0.35355338
    %3476 = vrot.lane.b32.xlu0 %v3375, 104
    %v3477 = vpop.permute.xlu0 %3476
    %v3479 = vmul.f32 %v3299, %v3477
    %v3480 = vsel %vm2030, %v3479, 0.0
    %3481 = vadd.xlane.f32.xlu0 %v3480
    %v3482 = vpop.xlane.xlu0 %3481
    %v3483 = vmul.f32 %v3482, 0.35355338
    %v3484 = vmax.f32 %v3458, %v3467
    %v3485 = vmax.f32 %v3484, %v3475
    %v3486 = vmax.f32 %v3485, %v3483
    %v3487 = vsub.f32 %v3458, %v3486
    %v3488 = vmul.f32 %v3487, 1.442695
    %v3489 = vpow.pop %v3488
    %v3490 = vsub.f32 %v3467, %v3486
    %v3491 = vmul.f32 %v3490, 1.442695
    %v3492 = vpow.pop %v3491
    %v3493 = vsub.f32 %v3475, %v3486
    %v3494 = vmul.f32 %v3493, 1.442695
    %v3495 = vpow.pop %v3494
    %v3496 = vsub.f32 %v3483, %v3486
    %v3497 = vmul.f32 %v3496, 1.442695
    %v3498 = vpow.pop %v3497
    %v3499 = vadd.f32 %v3489, %v3492
    %v3500 = vadd.f32 %v3499, %v3495
    %v3501 = vadd.f32 %v3500, %v3498
    %v3502 = vrcp.pop %v3501
    %v3503 = vmul.f32 %v3489, %v3502
    %v3504 = vmul.f32 %v3503, %v3451
    %v3505 = vmul.f32 %v3492, %v3502
    %v3506 = vmul.f32 %v3505, %v3451
    %3508 = vrot.lane.b32.xlu0 %v3506, 120
    %v3509 = vpop.permute.xlu0 %3508
    %v3511 = vadd.f32 %v3504, %v3509
    %v3512 = vmul.f32 %v3495, %v3502
    %v3513 = vmul.f32 %v3512, %v3451
    %3515 = vrot.lane.b32.xlu0 %v3513, 112
    %v3516 = vpop.permute.xlu0 %3515
    %v3518 = vadd.f32 %v3511, %v3516
    %v3519 = vmul.f32 %v3498, %v3502
    %v3520 = vmul.f32 %v3519, %v3451
    %3522 = vrot.lane.b32.xlu0 %v3520, 104
    %v3523 = vpop.permute.xlu0 %3522
    %v3525 = vadd.f32 %v3518, %v3523
    %3526 = vrot.lane.b32.xlu0 %v3375, 8
    %v3527 = vpop.permute.xlu0 %3526
    %v3529 = vmul.f32 %v3299, %v3527
    %3531 = vrot.lane.b32.xlu0 %v3529, 120
    %v3532 = vpop.permute.xlu0 %3531
    %v3534 = vsel %vm2030, %v3532, 0.0
    %3535 = vadd.xlane.f32.xlu0 %v3534
    %v3536 = vpop.xlane.xlu0 %3535
    %v3537 = vmul.f32 %v3536, 0.35355338
    %3539 = vrot.lane.b32.xlu0 %v3454, 120
    %v3540 = vpop.permute.xlu0 %3539
    %v3542 = vsel %vm2030, %v3540, 0.0
    %3543 = vadd.xlane.f32.xlu0 %v3542
    %v3544 = vpop.xlane.xlu0 %3543
    %v3545 = vmul.f32 %v3544, 0.35355338
    %3547 = vrot.lane.b32.xlu0 %v3463, 120
    %v3548 = vpop.permute.xlu0 %3547
    %v3550 = vsel %vm2030, %v3548, 0.0
    %3551 = vadd.xlane.f32.xlu0 %v3550
    %v3552 = vpop.xlane.xlu0 %3551
    %v3553 = vmul.f32 %v3552, 0.35355338
    %3555 = vrot.lane.b32.xlu0 %v3471, 120
    %v3556 = vpop.permute.xlu0 %3555
    %v3558 = vsel %vm2030, %v3556, 0.0
    %3559 = vadd.xlane.f32.xlu0 %v3558
    %v3560 = vpop.xlane.xlu0 %3559
    %v3561 = vmul.f32 %v3560, 0.35355338
    %v3562 = vmax.f32 %v3537, %v3545
    %v3563 = vmax.f32 %v3562, %v3553
    %v3564 = vmax.f32 %v3563, %v3561
    %v3565 = vsub.f32 %v3537, %v3564
    %v3566 = vmul.f32 %v3565, 1.442695
    %v3567 = vpow.pop %v3566
    %v3568 = vsub.f32 %v3545, %v3564
    %v3569 = vmul.f32 %v3568, 1.442695
    %v3570 = vpow.pop %v3569
    %v3571 = vsub.f32 %v3553, %v3564
    %v3572 = vmul.f32 %v3571, 1.442695
    %v3573 = vpow.pop %v3572
    %v3574 = vsub.f32 %v3561, %v3564
    %v3575 = vmul.f32 %v3574, 1.442695
    %v3576 = vpow.pop %v3575
    %v3577 = vadd.f32 %v3567, %v3570
    %v3578 = vadd.f32 %v3577, %v3573
    %v3579 = vadd.f32 %v3578, %v3576
    %v3580 = vrcp.pop %v3579
    %v3581 = vmul.f32 %v3567, %v3580
    %v3582 = vmul.f32 %v3581, %v3451
    %v3583 = vmul.f32 %v3570, %v3580
    %v3584 = vmul.f32 %v3583, %v3451
    %3586 = vrot.lane.b32.xlu0 %v3584, 120
    %v3587 = vpop.permute.xlu0 %3586
    %v3589 = vadd.f32 %v3582, %v3587
    %v3590 = vmul.f32 %v3573, %v3580
    %v3591 = vmul.f32 %v3590, %v3451
    %3593 = vrot.lane.b32.xlu0 %v3591, 112
    %v3594 = vpop.permute.xlu0 %3593
    %v3596 = vadd.f32 %v3589, %v3594
    %v3597 = vmul.f32 %v3576, %v3580
    %v3598 = vmul.f32 %v3597, %v3451
    %3600 = vrot.lane.b32.xlu0 %v3598, 104
    %v3601 = vpop.permute.xlu0 %3600
    %v3603 = vadd.f32 %v3596, %v3601
    %v3605 = vsel %vm2030, %v3603, 0
    %3607 = vmatprep.subr.mxu0 0.0
    %3608 = vmatpush1.msra.mxu0 %v3182
    %3609 = vmatprep.subr.mxu0 0.0
    %3610 = vmatpush1.msra.mxu0 0.0
    %3611 = vmatprep.subr.mxu0 0.0
    %3612 = vmatpush1.msra.mxu0 0.0
    %3613 = vmatprep.subr.mxu0 0.0
    %3614 = vmatpush1.msra.mxu0 0.0
    %3615 = vmatprep.subr.mxu0 0.0
    %3616 = vmatpush1.msra.mxu0 0.0
    %3617 = vmatprep.subr.mxu0 0.0
    %3618 = vmatpush1.msra.mxu0 0.0
    %3619 = vmatprep.subr.mxu0 0.0
    %3620 = vmatpush1.msra.mxu0 0.0
    %3621 = vmatprep.subr.mxu0 0.0
    %3622 = vmatpush1.msra.mxu0 0.0
    %3623 = vmatprep.subr.mxu0 0.0
    %3624 = vmatpush1.msra.mxu0 0.0
    %3625 = vmatprep.subr.mxu0 0.0
    %3626 = vmatpush1.msra.mxu0 0.0
    %3627 = vmatprep.subr.mxu0 0.0
    %3628 = vmatpush1.msra.mxu0 0.0
    %3629 = vmatprep.subr.mxu0 0.0
    %3630 = vmatpush1.msra.mxu0 0.0
    %3631 = vmatprep.subr.mxu0 0.0
    %3632 = vmatpush1.msra.mxu0 0.0
    %3633 = vmatprep.subr.mxu0 0.0
    %3634 = vmatpush1.msra.mxu0 0.0
    %3635 = vmatprep.subr.mxu0 0.0
    %3636 = vmatpush1.msra.mxu0 0.0
    %3637 = vmatprep.subr.mxu0 0.0
    %3638 = vmatpush1.msra.mxu0 0.0
    %3639 = vmatprep.subr.mxu0 0.0
    %3640 = vmatpush1.msra.mxu0 0.0
    %3641 = vmatprep.subr.mxu0 0.0
    %3642 = vmatpush1.msra.mxu0 0.0
    %3643 = vmatprep.subr.mxu0 0.0
    %3644 = vmatpush1.msra.mxu0 0.0
    %3645 = vmatprep.subr.mxu0 0.0
    %3646 = vmatpush1.msra.mxu0 0.0
    %3647 = vmatprep.subr.mxu0 0.0
    %3648 = vmatpush1.msra.mxu0 0.0
    %3649 = vmatprep.subr.mxu0 0.0
    %3650 = vmatpush1.msra.mxu0 0.0
    %3651 = vmatprep.subr.mxu0 0.0
    %3652 = vmatpush1.msra.mxu0 0.0
    %3653 = vmatprep.subr.mxu0 0.0
    %3654 = vmatpush1.msra.mxu0 0.0
    %3655 = vmatprep.subr.mxu0 0.0
    %3656 = vmatpush1.msra.mxu0 0.0
    %3657 = vmatprep.subr.mxu0 0.0
    %3658 = vmatpush1.msra.mxu0 0.0
    %3659 = vmatprep.subr.mxu0 0.0
    %3660 = vmatpush1.msra.mxu0 0.0
    %3661 = vmatprep.subr.mxu0 0.0
    %3662 = vmatpush1.msra.mxu0 0.0
    %3663 = vmatprep.subr.mxu0 0.0
    %3664 = vmatpush1.msra.mxu0 0.0
    %3665 = vmatprep.subr.mxu0 0.0
    %3666 = vmatpush1.msra.mxu0 0.0
    %3667 = vmatprep.subr.mxu0 0.0
    %3668 = vmatpush1.msra.mxu0 0.0
    %3669 = vmatprep.subr.mxu0 0.0
    %3670 = vmatpush1.msra.mxu0 0.0
    %3671 = vmatprep.mubr.f32.mxu0 0.0
    %3672 = vmatmul.mubr.f32.gmra.mrb[0].mxu0 %v3605
    %v3673 = vpop.f32.mrb[0].mxu0
    %v3674 = vadd.f32 0.0, %v3673
    %v3675 = vpop.f32.mrb[0].mxu0
    %3676 = vdwg.mxu0
    %v3678 = vsel %vm2030, %v3525, 0
    %3680 = vmatprep.subr.mxu0 0.0
    %3681 = vmatpush1.msra.mxu0 %v3181
    %3682 = vmatprep.subr.mxu0 0.0
    %3683 = vmatpush1.msra.mxu0 0.0
    %3684 = vmatprep.subr.mxu0 0.0
    %3685 = vmatpush1.msra.mxu0 0.0
    %3686 = vmatprep.subr.mxu0 0.0
    %3687 = vmatpush1.msra.mxu0 0.0
    %3688 = vmatprep.subr.mxu0 0.0
    %3689 = vmatpush1.msra.mxu0 0.0
    %3690 = vmatprep.subr.mxu0 0.0
    %3691 = vmatpush1.msra.mxu0 0.0
    %3692 = vmatprep.subr.mxu0 0.0
    %3693 = vmatpush1.msra.mxu0 0.0
    %3694 = vmatprep.subr.mxu0 0.0
    %3695 = vmatpush1.msra.mxu0 0.0
    %3696 = vmatprep.subr.mxu0 0.0
    %3697 = vmatpush1.msra.mxu0 0.0
    %3698 = vmatprep.subr.mxu0 0.0
    %3699 = vmatpush1.msra.mxu0 0.0
    %3700 = vmatprep.subr.mxu0 0.0
    %3701 = vmatpush1.msra.mxu0 0.0
    %3702 = vmatprep.subr.mxu0 0.0
    %3703 = vmatpush1.msra.mxu0 0.0
    %3704 = vmatprep.subr.mxu0 0.0
    %3705 = vmatpush1.msra.mxu0 0.0
    %3706 = vmatprep.subr.mxu0 0.0
    %3707 = vmatpush1.msra.mxu0 0.0
    %3708 = vmatprep.subr.mxu0 0.0
    %3709 = vmatpush1.msra.mxu0 0.0
    %3710 = vmatprep.subr.mxu0 0.0
    %3711 = vmatpush1.msra.mxu0 0.0
    %3712 = vmatprep.subr.mxu0 0.0
    %3713 = vmatpush1.msra.mxu0 0.0
    %3714 = vmatprep.subr.mxu0 0.0
    %3715 = vmatpush1.msra.mxu0 0.0
    %3716 = vmatprep.subr.mxu0 0.0
    %3717 = vmatpush1.msra.mxu0 0.0
    %3718 = vmatprep.subr.mxu0 0.0
    %3719 = vmatpush1.msra.mxu0 0.0
    %3720 = vmatprep.subr.mxu0 0.0
    %3721 = vmatpush1.msra.mxu0 0.0
    %3722 = vmatprep.subr.mxu0 0.0
    %3723 = vmatpush1.msra.mxu0 0.0
    %3724 = vmatprep.subr.mxu0 0.0
    %3725 = vmatpush1.msra.mxu0 0.0
    %3726 = vmatprep.subr.mxu0 0.0
    %3727 = vmatpush1.msra.mxu0 0.0
    %3728 = vmatprep.subr.mxu0 0.0
    %3729 = vmatpush1.msra.mxu0 0.0
    %3730 = vmatprep.subr.mxu0 0.0
    %3731 = vmatpush1.msra.mxu0 0.0
    %3732 = vmatprep.subr.mxu0 0.0
    %3733 = vmatpush1.msra.mxu0 0.0
    %3734 = vmatprep.subr.mxu0 0.0
    %3735 = vmatpush1.msra.mxu0 0.0
    %3736 = vmatprep.subr.mxu0 0.0
    %3737 = vmatpush1.msra.mxu0 0.0
    %3738 = vmatprep.subr.mxu0 0.0
    %3739 = vmatpush1.msra.mxu0 0.0
    %3740 = vmatprep.subr.mxu0 0.0
    %3741 = vmatpush1.msra.mxu0 0.0
    %3742 = vmatprep.subr.mxu0 0.0
    %3743 = vmatpush1.msra.mxu0 0.0
    %3744 = vmatprep.mubr.f32.mxu0 0.0
    %3745 = vmatmul.mubr.f32.gmra.mrb[0].mxu0 %v3678
    %v3746 = vpop.f32.mrb[0].mxu0
    %v3747 = vadd.f32 %v3674, %v3746
    %v3748 = vpop.f32.mrb[0].mxu0
    %3749 = vdwg.mxu0
    %3750 = vrot.lane.b32.xlu0 %v3375, 16
    %v3751 = vpop.permute.xlu0 %3750
    %v3753 = vmul.f32 %v3299, %v3751
    %3755 = vrot.lane.b32.xlu0 %v3753, 112
    %v3756 = vpop.permute.xlu0 %3755
    %v3758 = vsel %vm2030, %v3756, 0.0
    %3759 = vadd.xlane.f32.xlu0 %v3758
    %v3760 = vpop.xlane.xlu0 %3759
    %v3761 = vmul.f32 %v3760, 0.35355338
    %3762 = vrot.lane.b32.xlu0 %v3529, 112
    %v3763 = vpop.permute.xlu0 %3762
    %v3765 = vsel %vm2030, %v3763, 0.0
    %3766 = vadd.xlane.f32.xlu0 %v3765
    %v3767 = vpop.xlane.xlu0 %3766
    %v3768 = vmul.f32 %v3767, 0.35355338
    %3769 = vrot.lane.b32.xlu0 %v3454, 112
    %v3770 = vpop.permute.xlu0 %3769
    %v3772 = vsel %vm2030, %v3770, 0.0
    %3773 = vadd.xlane.f32.xlu0 %v3772
    %v3774 = vpop.xlane.xlu0 %3773
    %v3775 = vmul.f32 %v3774, 0.35355338
    %3776 = vrot.lane.b32.xlu0 %v3463, 112
    %v3777 = vpop.permute.xlu0 %3776
    %v3779 = vsel %vm2030, %v3777, 0.0
    %3780 = vadd.xlane.f32.xlu0 %v3779
    %v3781 = vpop.xlane.xlu0 %3780
    %v3782 = vmul.f32 %v3781, 0.35355338
    %v3783 = vmax.f32 %v3761, %v3768
    %v3784 = vmax.f32 %v3783, %v3775
    %v3785 = vmax.f32 %v3784, %v3782
    %v3786 = vsub.f32 %v3761, %v3785
    %v3787 = vmul.f32 %v3786, 1.442695
    %v3788 = vpow.pop %v3787
    %v3789 = vsub.f32 %v3768, %v3785
    %v3790 = vmul.f32 %v3789, 1.442695
    %v3791 = vpow.pop %v3790
    %v3792 = vsub.f32 %v3775, %v3785
    %v3793 = vmul.f32 %v3792, 1.442695
    %v3794 = vpow.pop %v3793
    %v3795 = vsub.f32 %v3782, %v3785
    %v3796 = vmul.f32 %v3795, 1.442695
    %v3797 = vpow.pop %v3796
    %v3798 = vadd.f32 %v3788, %v3791
    %v3799 = vadd.f32 %v3798, %v3794
    %v3800 = vadd.f32 %v3799, %v3797
    %v3801 = vrcp.pop %v3800
    %v3802 = vmul.f32 %v3788, %v3801
    %v3803 = vmul.f32 %v3802, %v3451
    %v3804 = vmul.f32 %v3791, %v3801
    %v3805 = vmul.f32 %v3804, %v3451
    %3807 = vrot.lane.b32.xlu0 %v3805, 120
    %v3808 = vpop.permute.xlu0 %3807
    %v3810 = vadd.f32 %v3803, %v3808
    %v3811 = vmul.f32 %v3794, %v3801
    %v3812 = vmul.f32 %v3811, %v3451
    %3814 = vrot.lane.b32.xlu0 %v3812, 112
    %v3815 = vpop.permute.xlu0 %3814
    %v3817 = vadd.f32 %v3810, %v3815
    %v3818 = vmul.f32 %v3797, %v3801
    %v3819 = vmul.f32 %v3818, %v3451
    %3821 = vrot.lane.b32.xlu0 %v3819, 104
    %v3822 = vpop.permute.xlu0 %3821
    %v3824 = vadd.f32 %v3817, %v3822
    %v3826 = vsel %vm2030, %v3824, 0
    %3828 = vmatprep.subr.mxu0 0.0
    %3829 = vmatpush1.msra.mxu0 %v3183
    %3830 = vmatprep.subr.mxu0 0.0
    %3831 = vmatpush1.msra.mxu0 0.0
    %3832 = vmatprep.subr.mxu0 0.0
    %3833 = vmatpush1.msra.mxu0 0.0
    %3834 = vmatprep.subr.mxu0 0.0
    %3835 = vmatpush1.msra.mxu0 0.0
    %3836 = vmatprep.subr.mxu0 0.0
    %3837 = vmatpush1.msra.mxu0 0.0
    %3838 = vmatprep.subr.mxu0 0.0
    %3839 = vmatpush1.msra.mxu0 0.0
    %3840 = vmatprep.subr.mxu0 0.0
    %3841 = vmatpush1.msra.mxu0 0.0
    %3842 = vmatprep.subr.mxu0 0.0
    %3843 = vmatpush1.msra.mxu0 0.0
    %3844 = vmatprep.subr.mxu0 0.0
    %3845 = vmatpush1.msra.mxu0 0.0
    %3846 = vmatprep.subr.mxu0 0.0
    %3847 = vmatpush1.msra.mxu0 0.0
    %3848 = vmatprep.subr.mxu0 0.0
    %3849 = vmatpush1.msra.mxu0 0.0
    %3850 = vmatprep.subr.mxu0 0.0
    %3851 = vmatpush1.msra.mxu0 0.0
    %3852 = vmatprep.subr.mxu0 0.0
    %3853 = vmatpush1.msra.mxu0 0.0
    %3854 = vmatprep.subr.mxu0 0.0
    %3855 = vmatpush1.msra.mxu0 0.0
    %3856 = vmatprep.subr.mxu0 0.0
    %3857 = vmatpush1.msra.mxu0 0.0
    %3858 = vmatprep.subr.mxu0 0.0
    %3859 = vmatpush1.msra.mxu0 0.0
    %3860 = vmatprep.subr.mxu0 0.0
    %3861 = vmatpush1.msra.mxu0 0.0
    %3862 = vmatprep.subr.mxu0 0.0
    %3863 = vmatpush1.msra.mxu0 0.0
    %3864 = vmatprep.subr.mxu0 0.0
    %3865 = vmatpush1.msra.mxu0 0.0
    %3866 = vmatprep.subr.mxu0 0.0
    %3867 = vmatpush1.msra.mxu0 0.0
    %3868 = vmatprep.subr.mxu0 0.0
    %3869 = vmatpush1.msra.mxu0 0.0
    %3870 = vmatprep.subr.mxu0 0.0
    %3871 = vmatpush1.msra.mxu0 0.0
    %3872 = vmatprep.subr.mxu0 0.0
    %3873 = vmatpush1.msra.mxu0 0.0
    %3874 = vmatprep.subr.mxu0 0.0
    %3875 = vmatpush1.msra.mxu0 0.0
    %3876 = vmatprep.subr.mxu0 0.0
    %3877 = vmatpush1.msra.mxu0 0.0
    %3878 = vmatprep.subr.mxu0 0.0
    %3879 = vmatpush1.msra.mxu0 0.0
    %3880 = vmatprep.subr.mxu0 0.0
    %3881 = vmatpush1.msra.mxu0 0.0
    %3882 = vmatprep.subr.mxu0 0.0
    %3883 = vmatpush1.msra.mxu0 0.0
    %3884 = vmatprep.subr.mxu0 0.0
    %3885 = vmatpush1.msra.mxu0 0.0
    %3886 = vmatprep.subr.mxu0 0.0
    %3887 = vmatpush1.msra.mxu0 0.0
    %3888 = vmatprep.subr.mxu0 0.0
    %3889 = vmatpush1.msra.mxu0 0.0
    %3890 = vmatprep.subr.mxu0 0.0
    %3891 = vmatpush1.msra.mxu0 0.0
    %3892 = vmatprep.mubr.f32.mxu0 0.0
    %3893 = vmatmul.mubr.f32.gmra.mrb[0].mxu0 %v3826
    %v3894 = vpop.f32.mrb[0].mxu0
    %v3895 = vadd.f32 0.0, %v3894
    %v3896 = vpop.f32.mrb[0].mxu0
    %3897 = vdwg.mxu0
    %v3898 = vadd.f32 %v3747, %v3895
    %3899 = vrot.lane.b32.xlu0 %v3375, 24
    %v3900 = vpop.permute.xlu0 %3899
    %v3902 = vmul.f32 %v3299, %v3900
    %3904 = vrot.lane.b32.xlu0 %v3902, 104
    %v3905 = vpop.permute.xlu0 %3904
    %v3907 = vsel %vm2030, %v3905, 0.0
    %3908 = vadd.xlane.f32.xlu0 %v3907
    %v3909 = vpop.xlane.xlu0 %3908
    %v3910 = vmul.f32 %v3909, 0.35355338
    %3911 = vrot.lane.b32.xlu0 %v3753, 104
    %v3912 = vpop.permute.xlu0 %3911
    %v3914 = vsel %vm2030, %v3912, 0.0
    %3915 = vadd.xlane.f32.xlu0 %v3914
    %v3916 = vpop.xlane.xlu0 %3915
    %v3917 = vmul.f32 %v3916, 0.35355338
    %3918 = vrot.lane.b32.xlu0 %v3529, 104
    %v3919 = vpop.permute.xlu0 %3918
    %v3921 = vsel %vm2030, %v3919, 0.0
    %3922 = vadd.xlane.f32.xlu0 %v3921
    %v3923 = vpop.xlane.xlu0 %3922
    %v3924 = vmul.f32 %v3923, 0.35355338
    %3925 = vrot.lane.b32.xlu0 %v3454, 104
    %v3926 = vpop.permute.xlu0 %3925
    %v3928 = vsel %vm2030, %v3926, 0.0
    %3929 = vadd.xlane.f32.xlu0 %v3928
    %v3930 = vpop.xlane.xlu0 %3929
    %v3931 = vmul.f32 %v3930, 0.35355338
    %v3932 = vmax.f32 %v3910, %v3917
    %v3933 = vmax.f32 %v3932, %v3924
    %v3934 = vmax.f32 %v3933, %v3931
    %v3935 = vsub.f32 %v3910, %v3934
    %v3936 = vmul.f32 %v3935, 1.442695
    %v3937 = vpow.pop %v3936
    %v3938 = vsub.f32 %v3917, %v3934
    %v3939 = vmul.f32 %v3938, 1.442695
    %v3940 = vpow.pop %v3939
    %v3941 = vsub.f32 %v3924, %v3934
    %v3942 = vmul.f32 %v3941, 1.442695
    %v3943 = vpow.pop %v3942
    %v3944 = vsub.f32 %v3931, %v3934
    %v3945 = vmul.f32 %v3944, 1.442695
    %v3946 = vpow.pop %v3945
    %v3947 = vadd.f32 %v3937, %v3940
    %v3948 = vadd.f32 %v3947, %v3943
    %v3949 = vadd.f32 %v3948, %v3946
    %v3950 = vrcp.pop %v3949
    %v3951 = vmul.f32 %v3937, %v3950
    %v3952 = vmul.f32 %v3951, %v3451
    %v3953 = vmul.f32 %v3940, %v3950
    %v3954 = vmul.f32 %v3953, %v3451
    %3956 = vrot.lane.b32.xlu0 %v3954, 120
    %v3957 = vpop.permute.xlu0 %3956
    %v3959 = vadd.f32 %v3952, %v3957
    %v3960 = vmul.f32 %v3943, %v3950
    %v3961 = vmul.f32 %v3960, %v3451
    %3963 = vrot.lane.b32.xlu0 %v3961, 112
    %v3964 = vpop.permute.xlu0 %3963
    %v3966 = vadd.f32 %v3959, %v3964
    %v3967 = vmul.f32 %v3946, %v3950
    %v3968 = vmul.f32 %v3967, %v3451
    %3970 = vrot.lane.b32.xlu0 %v3968, 104
    %v3971 = vpop.permute.xlu0 %3970
    %v3973 = vadd.f32 %v3966, %v3971
    %v3975 = vsel %vm2030, %v3973, 0
    %3977 = vmatprep.subr.mxu0 0.0
    %3978 = vmatpush1.msra.mxu0 %v3184
    %3979 = vmatprep.subr.mxu0 0.0
    %3980 = vmatpush1.msra.mxu0 0.0
    %3981 = vmatprep.subr.mxu0 0.0
    %3982 = vmatpush1.msra.mxu0 0.0
    %3983 = vmatprep.subr.mxu0 0.0
    %3984 = vmatpush1.msra.mxu0 0.0
    %3985 = vmatprep.subr.mxu0 0.0
    %3986 = vmatpush1.msra.mxu0 0.0
    %3987 = vmatprep.subr.mxu0 0.0
    %3988 = vmatpush1.msra.mxu0 0.0
    %3989 = vmatprep.subr.mxu0 0.0
    %3990 = vmatpush1.msra.mxu0 0.0
    %3991 = vmatprep.subr.mxu0 0.0
    %3992 = vmatpush1.msra.mxu0 0.0
    %3993 = vmatprep.subr.mxu0 0.0
    %3994 = vmatpush1.msra.mxu0 0.0
    %3995 = vmatprep.subr.mxu0 0.0
    %3996 = vmatpush1.msra.mxu0 0.0
    %3997 = vmatprep.subr.mxu0 0.0
    %3998 = vmatpush1.msra.mxu0 0.0
    %3999 = vmatprep.subr.mxu0 0.0
    %4000 = vmatpush1.msra.mxu0 0.0
    %4001 = vmatprep.subr.mxu0 0.0
    %4002 = vmatpush1.msra.mxu0 0.0
    %4003 = vmatprep.subr.mxu0 0.0
    %4004 = vmatpush1.msra.mxu0 0.0
    %4005 = vmatprep.subr.mxu0 0.0
    %4006 = vmatpush1.msra.mxu0 0.0
    %4007 = vmatprep.subr.mxu0 0.0
    %4008 = vmatpush1.msra.mxu0 0.0
    %4009 = vmatprep.subr.mxu0 0.0
    %4010 = vmatpush1.msra.mxu0 0.0
    %4011 = vmatprep.subr.mxu0 0.0
    %4012 = vmatpush1.msra.mxu0 0.0
    %4013 = vmatprep.subr.mxu0 0.0
    %4014 = vmatpush1.msra.mxu0 0.0
    %4015 = vmatprep.subr.mxu0 0.0
    %4016 = vmatpush1.msra.mxu0 0.0
    %4017 = vmatprep.subr.mxu0 0.0
    %4018 = vmatpush1.msra.mxu0 0.0
    %4019 = vmatprep.subr.mxu0 0.0
    %4020 = vmatpush1.msra.mxu0 0.0
    %4021 = vmatprep.subr.mxu0 0.0
    %4022 = vmatpush1.msra.mxu0 0.0
    %4023 = vmatprep.subr.mxu0 0.0
    %4024 = vmatpush1.msra.mxu0 0.0
    %4025 = vmatprep.subr.mxu0 0.0
    %4026 = vmatpush1.msra.mxu0 0.0
    %4027 = vmatprep.subr.mxu0 0.0
    %4028 = vmatpush1.msra.mxu0 0.0
    %4029 = vmatprep.subr.mxu0 0.0
    %4030 = vmatpush1.msra.mxu0 0.0
    %4031 = vmatprep.subr.mxu0 0.0
    %4032 = vmatpush1.msra.mxu0 0.0
    %4033 = vmatprep.subr.mxu0 0.0
    %4034 = vmatpush1.msra.mxu0 0.0
    %4035 = vmatprep.subr.mxu0 0.0
    %4036 = vmatpush1.msra.mxu0 0.0
    %4037 = vmatprep.subr.mxu0 0.0
    %4038 = vmatpush1.msra.mxu0 0.0
    %4039 = vmatprep.subr.mxu0 0.0
    %4040 = vmatpush1.msra.mxu0 0.0
    %4041 = vmatprep.mubr.f32.mxu0 0.0
    %4042 = vmatmul.mubr.f32.gmra.mrb[0].mxu0 %v3975
    %v4043 = vpop.f32.mrb[0].mxu0
    %v4044 = vadd.f32 0.0, %v4043
    %v4045 = vpop.f32.mrb[0].mxu0
    %4046 = vdwg.mxu0
    %v4047 = vadd.f32 %v3898, %v4044
    %v4049 = vlaneseq
    %v4050 = vshrl.u32 %v4049, 7
    %v4051 = vsub.s32 0, %v4050
    %v4052 = vrot.slane %v3185, %v4051
    %v4054 = vadd.f32 %v4047, %v4052
    %v4055 = vadd.f32 %v3129, %v4054
    %4056 = vmatprep.subr.mxu0 0.0
    %4057 = vmatpush1.msra.mxu0 %v1689
    %4058 = vmatprep.subr.mxu0 0.0
    %4059 = vmatpush1.msra.mxu0 %v1690
    %4060 = vmatprep.subr.mxu0 0.0
    %4061 = vmatpush1.msra.mxu0 %v1691
    %4062 = vmatprep.subr.mxu0 0.0
    %4063 = vmatpush1.msra.mxu0 %v1692
    %4064 = vmatprep.subr.mxu0 0.0
    %4065 = vmatpush1.msra.mxu0 %v1693
    %4066 = vmatprep.subr.mxu0 0.0
    %4067 = vmatpush1.msra.mxu0 %v1694
    %4068 = vmatprep.subr.mxu0 0.0
    %4069 = vmatpush1.msra.mxu0 %v1695
    %4070 = vmatprep.subr.mxu0 0.0
    %4071 = vmatpush1.msra.mxu0 %v1696
    %4072 = vmatprep.subr.mxu0 0.0
    %4073 = vmatpush1.msra.mxu0 %v1697
    %4074 = vmatprep.subr.mxu0 0.0
    %4075 = vmatpush1.msra.mxu0 %v1698
    %4076 = vmatprep.subr.mxu0 0.0
    %4077 = vmatpush1.msra.mxu0 %v1699
    %4078 = vmatprep.subr.mxu0 0.0
    %4079 = vmatpush1.msra.mxu0 %v1700
    %4080 = vmatprep.subr.mxu0 0.0
    %4081 = vmatpush1.msra.mxu0 %v1701
    %4082 = vmatprep.subr.mxu0 0.0
    %4083 = vmatpush1.msra.mxu0 %v1702
    %4084 = vmatprep.subr.mxu0 0.0
    %4085 = vmatpush1.msra.mxu0 %v1703
    %4086 = vmatprep.subr.mxu0 0.0
    %4087 = vmatpush1.msra.mxu0 %v1704
    %4088 = vmatprep.subr.mxu0 0.0
    %4089 = vmatpush1.msra.mxu0 0.0
    %4090 = vmatprep.subr.mxu0 0.0
    %4091 = vmatpush1.msra.mxu0 0.0
    %4092 = vmatprep.subr.mxu0 0.0
    %4093 = vmatpush1.msra.mxu0 0.0
    %4094 = vmatprep.subr.mxu0 0.0
    %4095 = vmatpush1.msra.mxu0 0.0
    %4096 = vmatprep.subr.mxu0 0.0
    %4097 = vmatpush1.msra.mxu0 0.0
    %4098 = vmatprep.subr.mxu0 0.0
    %4099 = vmatpush1.msra.mxu0 0.0
    %4100 = vmatprep.subr.mxu0 0.0
    %4101 = vmatpush1.msra.mxu0 0.0
    %4102 = vmatprep.subr.mxu0 0.0
    %4103 = vmatpush1.msra.mxu0 0.0
    %4104 = vmatprep.subr.mxu0 0.0
    %4105 = vmatpush1.msra.mxu0 0.0
    %4106 = vmatprep.subr.mxu0 0.0
    %4107 = vmatpush1.msra.mxu0 0.0
    %4108 = vmatprep.subr.mxu0 0.0
    %4109 = vmatpush1.msra.mxu0 0.0
    %4110 = vmatprep.subr.mxu0 0.0
    %4111 = vmatpush1.msra.mxu0 0.0
    %4112 = vmatprep.subr.mxu0 0.0
    %4113 = vmatpush1.msra.mxu0 0.0
    %4114 = vmatprep.subr.mxu0 0.0
    %4115 = vmatpush1.msra.mxu0 0.0
    %4116 = vmatprep.subr.mxu0 0.0
    %4117 = vmatpush1.msra.mxu0 0.0
    %4118 = vmatprep.subr.mxu0 0.0
    %4119 = vmatpush1.msra.mxu0 0.0
    %4120 = vmatprep.mubr.f32.mxu0 0.0
    %4121 = vmatmul.mubr.f32.gmra.mrb[0].mxu0 %v4055
    %v4122 = vpop.f32.mrb[0].mxu0
    %v4123 = vadd.f32 0.0, %v4122
    %v4124 = vpop.f32.mrb[0].mxu0
    %4125 = vdwg.mxu0
    %v4126 = vsub.f32 %v4055, %v4123
    %v4127 = vmul.f32 %v4126, %v4126
    %4128 = vmatprep.subr.mxu0 0.0
    %4129 = vmatpush1.msra.mxu0 %v1689
    %4130 = vmatprep.subr.mxu0 0.0
    %4131 = vmatpush1.msra.mxu0 %v1690
    %4132 = vmatprep.subr.mxu0 0.0
    %4133 = vmatpush1.msra.mxu0 %v1691
    %4134 = vmatprep.subr.mxu0 0.0
    %4135 = vmatpush1.msra.mxu0 %v1692
    %4136 = vmatprep.subr.mxu0 0.0
    %4137 = vmatpush1.msra.mxu0 %v1693
    %4138 = vmatprep.subr.mxu0 0.0
    %4139 = vmatpush1.msra.mxu0 %v1694
    %4140 = vmatprep.subr.mxu0 0.0
    %4141 = vmatpush1.msra.mxu0 %v1695
    %4142 = vmatprep.subr.mxu0 0.0
    %4143 = vmatpush1.msra.mxu0 %v1696
    %4144 = vmatprep.subr.mxu0 0.0
    %4145 = vmatpush1.msra.mxu0 %v1697
    %4146 = vmatprep.subr.mxu0 0.0
    %4147 = vmatpush1.msra.mxu0 %v1698
    %4148 = vmatprep.subr.mxu0 0.0
    %4149 = vmatpush1.msra.mxu0 %v1699
    %4150 = vmatprep.subr.mxu0 0.0
    %4151 = vmatpush1.msra.mxu0 %v1700
    %4152 = vmatprep.subr.mxu0 0.0
    %4153 = vmatpush1.msra.mxu0 %v1701
    %4154 = vmatprep.subr.mxu0 0.0
    %4155 = vmatpush1.msra.mxu0 %v1702
    %4156 = vmatprep.subr.mxu0 0.0
    %4157 = vmatpush1.msra.mxu0 %v1703
    %4158 = vmatprep.subr.mxu0 0.0
    %4159 = vmatpush1.msra.mxu0 %v1704
    %4160 = vmatprep.subr.mxu0 0.0
    %4161 = vmatpush1.msra.mxu0 0.0
    %4162 = vmatprep.subr.mxu0 0.0
    %4163 = vmatpush1.msra.mxu0 0.0
    %4164 = vmatprep.subr.mxu0 0.0
    %4165 = vmatpush1.msra.mxu0 0.0
    %4166 = vmatprep.subr.mxu0 0.0
    %4167 = vmatpush1.msra.mxu0 0.0
    %4168 = vmatprep.subr.mxu0 0.0
    %4169 = vmatpush1.msra.mxu0 0.0
    %4170 = vmatprep.subr.mxu0 0.0
    %4171 = vmatpush1.msra.mxu0 0.0
    %4172 = vmatprep.subr.mxu0 0.0
    %4173 = vmatpush1.msra.mxu0 0.0
    %4174 = vmatprep.subr.mxu0 0.0
    %4175 = vmatpush1.msra.mxu0 0.0
    %4176 = vmatprep.subr.mxu0 0.0
    %4177 = vmatpush1.msra.mxu0 0.0
    %4178 = vmatprep.subr.mxu0 0.0
    %4179 = vmatpush1.msra.mxu0 0.0
    %4180 = vmatprep.subr.mxu0 0.0
    %4181 = vmatpush1.msra.mxu0 0.0
    %4182 = vmatprep.subr.mxu0 0.0
    %4183 = vmatpush1.msra.mxu0 0.0
    %4184 = vmatprep.subr.mxu0 0.0
    %4185 = vmatpush1.msra.mxu0 0.0
    %4186 = vmatprep.subr.mxu0 0.0
    %4187 = vmatpush1.msra.mxu0 0.0
    %4188 = vmatprep.subr.mxu0 0.0
    %4189 = vmatpush1.msra.mxu0 0.0
    %4190 = vmatprep.subr.mxu0 0.0
    %4191 = vmatpush1.msra.mxu0 0.0
    %4192 = vmatprep.mubr.f32.mxu0 0.0
    %4193 = vmatmul.mubr.f32.gmra.mrb[0].mxu0 %v4127
    %v4194 = vpop.f32.mrb[0].mxu0
    %v4195 = vadd.f32 1e-05, %v4194
    %v4196 = vpop.f32.mrb[0].mxu0
    %4197 = vdwg.mxu0
    %v4198 = vrsqrt.pop %v4195
    %v4199 = vmul.f32 %v4126, %v4198
    %v4201 = vlaneseq
    %v4202 = vshrl.u32 %v4201, 7
    %v4203 = vsub.s32 0, %v4202
    %v4204 = vrot.slane %v3186, %v4203
    %v4206 = vmul.f32 %v4199, %v4204
    %v4208 = vlaneseq
    %v4209 = vshrl.u32 %v4208, 7
    %v4210 = vsub.s32 0, %v4209
    %v4211 = vrot.slane %v3187, %v4210
    %v4213 = vadd.f32 %v4206, %v4211
    %v4215 = vlaneseq
    %v4216 = vshrl.u32 %v4215, 7
    %v4217 = vsub.s32 0, %v4216
    %v4218 = vrot.slane %v3204, %v4217
    %4220 = vmatprep.subr.mxu0 0.0
    %4221 = vmatpush1.msra.mxu0 %v3188
    %4222 = vmatprep.subr.mxu0 0.0
    %4223 = vmatpush1.msra.mxu0 %v3189
    %4224 = vmatprep.subr.mxu0 0.0
    %4225 = vmatpush1.msra.mxu0 %v3190
    %4226 = vmatprep.subr.mxu0 0.0
    %4227 = vmatpush1.msra.mxu0 %v3191
    %4228 = vmatprep.subr.mxu0 0.0
    %4229 = vmatpush1.msra.mxu0 %v3192
    %4230 = vmatprep.subr.mxu0 0.0
    %4231 = vmatpush1.msra.mxu0 %v3193
    %4232 = vmatprep.subr.mxu0 0.0
    %4233 = vmatpush1.msra.mxu0 %v3194
    %4234 = vmatprep.subr.mxu0 0.0
    %4235 = vmatpush1.msra.mxu0 %v3195
    %4236 = vmatprep.subr.mxu0 0.0
    %4237 = vmatpush1.msra.mxu0 %v3196
    %4238 = vmatprep.subr.mxu0 0.0
    %4239 = vmatpush1.msra.mxu0 %v3197
    %4240 = vmatprep.subr.mxu0 0.0
    %4241 = vmatpush1.msra.mxu0 %v3198
    %4242 = vmatprep.subr.mxu0 0.0
    %4243 = vmatpush1.msra.mxu0 %v3199
    %4244 = vmatprep.subr.mxu0 0.0
    %4245 = vmatpush1.msra.mxu0 %v3200
    %4246 = vmatprep.subr.mxu0 0.0
    %4247 = vmatpush1.msra.mxu0 %v3201
    %4248 = vmatprep.subr.mxu0 0.0
    %4249 = vmatpush1.msra.mxu0 %v3202
    %4250 = vmatprep.subr.mxu0 0.0
    %4251 = vmatpush1.msra.mxu0 %v3203
    %4252 = vmatprep.subr.mxu0 0.0
    %4253 = vmatpush1.msra.mxu0 0.0
    %4254 = vmatprep.subr.mxu0 0.0
    %4255 = vmatpush1.msra.mxu0 0.0
    %4256 = vmatprep.subr.mxu0 0.0
    %4257 = vmatpush1.msra.mxu0 0.0
    %4258 = vmatprep.subr.mxu0 0.0
    %4259 = vmatpush1.msra.mxu0 0.0
    %4260 = vmatprep.subr.mxu0 0.0
    %4261 = vmatpush1.msra.mxu0 0.0
    %4262 = vmatprep.subr.mxu0 0.0
    %4263 = vmatpush1.msra.mxu0 0.0
    %4264 = vmatprep.subr.mxu0 0.0
    %4265 = vmatpush1.msra.mxu0 0.0
    %4266 = vmatprep.subr.mxu0 0.0
    %4267 = vmatpush1.msra.mxu0 0.0
    %4268 = vmatprep.subr.mxu0 0.0
    %4269 = vmatpush1.msra.mxu0 0.0
    %4270 = vmatprep.subr.mxu0 0.0
    %4271 = vmatpush1.msra.mxu0 0.0
    %4272 = vmatprep.subr.mxu0 0.0
    %4273 = vmatpush1.msra.mxu0 0.0
    %4274 = vmatprep.subr.mxu0 0.0
    %4275 = vmatpush1.msra.mxu0 0.0
    %4276 = vmatprep.subr.mxu0 0.0
    %4277 = vmatpush1.msra.mxu0 0.0
    %4278 = vmatprep.subr.mxu0 0.0
    %4279 = vmatpush1.msra.mxu0 0.0
    %4280 = vmatprep.subr.mxu0 0.0
    %4281 = vmatpush1.msra.mxu0 0.0
    %4282 = vmatprep.subr.mxu0 0.0
    %4283 = vmatpush1.msra.mxu0 0.0
    %4284 = vmatprep.mubr.f32.mxu0 0.0
    %4285 = vmatmul.mubr.f32.gmra.mrb[0].mxu0 %v4213
    %v4286 = vpop.f32.mrb[0].mxu0
    %v4287 = vadd.f32 %v4218, %v4286
    %v4288 = vpop.f32.mrb[0].mxu0
    %4289 = vdwg.mxu0
    %v4290 = vmax.f32 %v4287, 0.0
    %v4292 = vlaneseq
    %v4293 = vshrl.u32 %v4292, 7
    %v4294 = vsub.s32 0, %v4293
    %v4295 = vrot.slane %v3221, %v4294
    %4297 = vmatprep.subr.mxu0 0.0
    %4298 = vmatpush1.msra.mxu0 %v3205
    %4299 = vmatprep.subr.mxu0 0.0
    %4300 = vmatpush1.msra.mxu0 %v3206
    %4301 = vmatprep.subr.mxu0 0.0
    %4302 = vmatpush1.msra.mxu0 %v3207
    %4303 = vmatprep.subr.mxu0 0.0
    %4304 = vmatpush1.msra.mxu0 %v3208
    %4305 = vmatprep.subr.mxu0 0.0
    %4306 = vmatpush1.msra.mxu0 %v3209
    %4307 = vmatprep.subr.mxu0 0.0
    %4308 = vmatpush1.msra.mxu0 %v3210
    %4309 = vmatprep.subr.mxu0 0.0
    %4310 = vmatpush1.msra.mxu0 %v3211
    %4311 = vmatprep.subr.mxu0 0.0
    %4312 = vmatpush1.msra.mxu0 %v3212
    %4313 = vmatprep.subr.mxu0 0.0
    %4314 = vmatpush1.msra.mxu0 %v3213
    %4315 = vmatprep.subr.mxu0 0.0
    %4316 = vmatpush1.msra.mxu0 %v3214
    %4317 = vmatprep.subr.mxu0 0.0
    %4318 = vmatpush1.msra.mxu0 %v3215
    %4319 = vmatprep.subr.mxu0 0.0
    %4320 = vmatpush1.msra.mxu0 %v3216
    %4321 = vmatprep.subr.mxu0 0.0
    %4322 = vmatpush1.msra.mxu0 %v3217
    %4323 = vmatprep.subr.mxu0 0.0
    %4324 = vmatpush1.msra.mxu0 %v3218
    %4325 = vmatprep.subr.mxu0 0.0
    %4326 = vmatpush1.msra.mxu0 %v3219
    %4327 = vmatprep.subr.mxu0 0.0
    %4328 = vmatpush1.msra.mxu0 %v3220
    %4329 = vmatprep.subr.mxu0 0.0
    %4330 = vmatpush1.msra.mxu0 0.0
    %4331 = vmatprep.subr.mxu0 0.0
    %4332 = vmatpush1.msra.mxu0 0.0
    %4333 = vmatprep.subr.mxu0 0.0
    %4334 = vmatpush1.msra.mxu0 0.0
    %4335 = vmatprep.subr.mxu0 0.0
    %4336 = vmatpush1.msra.mxu0 0.0
    %4337 = vmatprep.subr.mxu0 0.0
    %4338 = vmatpush1.msra.mxu0 0.0
    %4339 = vmatprep.subr.mxu0 0.0
    %4340 = vmatpush1.msra.mxu0 0.0
    %4341 = vmatprep.subr.mxu0 0.0
    %4342 = vmatpush1.msra.mxu0 0.0
    %4343 = vmatprep.subr.mxu0 0.0
    %4344 = vmatpush1.msra.mxu0 0.0
    %4345 = vmatprep.subr.mxu0 0.0
    %4346 = vmatpush1.msra.mxu0 0.0
    %4347 = vmatprep.subr.mxu0 0.0
    %4348 = vmatpush1.msra.mxu0 0.0
    %4349 = vmatprep.subr.mxu0 0.0
    %4350 = vmatpush1.msra.mxu0 0.0
    %4351 = vmatprep.subr.mxu0 0.0
    %4352 = vmatpush1.msra.mxu0 0.0
    %4353 = vmatprep.subr.mxu0 0.0
    %4354 = vmatpush1.msra.mxu0 0.0
    %4355 = vmatprep.subr.mxu0 0.0
    %4356 = vmatpush1.msra.mxu0 0.0
    %4357 = vmatprep.subr.mxu0 0.0
    %4358 = vmatpush1.msra.mxu0 0.0
    %4359 = vmatprep.subr.mxu0 0.0
    %4360 = vmatpush1.msra.mxu0 0.0
    %4361 = vmatprep.mubr.f32.mxu0 0.0
    %4362 = vmatmul.mubr.f32.gmra.mrb[0].mxu0 %v4290
    %v4363 = vpop.f32.mrb[0].mxu0
    %v4364 = vadd.f32 %v4295, %v4363
    %v4365 = vpop.f32.mrb[0].mxu0
    %4366 = vdwg.mxu0
    %v4367 = vadd.f32 %v4213, %v4364
    %4368 = vmatprep.subr.mxu0 0.0
    %4369 = vmatpush1.msra.mxu0 %v1689
    %4370 = vmatprep.subr.mxu0 0.0
    %4371 = vmatpush1.msra.mxu0 %v1690
    %4372 = vmatprep.subr.mxu0 0.0
    %4373 = vmatpush1.msra.mxu0 %v1691
    %4374 = vmatprep.subr.mxu0 0.0
    %4375 = vmatpush1.msra.mxu0 %v1692
    %4376 = vmatprep.subr.mxu0 0.0
    %4377 = vmatpush1.msra.mxu0 %v1693
    %4378 = vmatprep.subr.mxu0 0.0
    %4379 = vmatpush1.msra.mxu0 %v1694
    %4380 = vmatprep.subr.mxu0 0.0
    %4381 = vmatpush1.msra.mxu0 %v1695
    %4382 = vmatprep.subr.mxu0 0.0
    %4383 = vmatpush1.msra.mxu0 %v1696
    %4384 = vmatprep.subr.mxu0 0.0
    %4385 = vmatpush1.msra.mxu0 %v1697
    %4386 = vmatprep.subr.mxu0 0.0
    %4387 = vmatpush1.msra.mxu0 %v1698
    %4388 = vmatprep.subr.mxu0 0.0
    %4389 = vmatpush1.msra.mxu0 %v1699
    %4390 = vmatprep.subr.mxu0 0.0
    %4391 = vmatpush1.msra.mxu0 %v1700
    %4392 = vmatprep.subr.mxu0 0.0
    %4393 = vmatpush1.msra.mxu0 %v1701
    %4394 = vmatprep.subr.mxu0 0.0
    %4395 = vmatpush1.msra.mxu0 %v1702
    %4396 = vmatprep.subr.mxu0 0.0
    %4397 = vmatpush1.msra.mxu0 %v1703
    %4398 = vmatprep.subr.mxu0 0.0
    %4399 = vmatpush1.msra.mxu0 %v1704
    %4400 = vmatprep.subr.mxu0 0.0
    %4401 = vmatpush1.msra.mxu0 0.0
    %4402 = vmatprep.subr.mxu0 0.0
    %4403 = vmatpush1.msra.mxu0 0.0
    %4404 = vmatprep.subr.mxu0 0.0
    %4405 = vmatpush1.msra.mxu0 0.0
    %4406 = vmatprep.subr.mxu0 0.0
    %4407 = vmatpush1.msra.mxu0 0.0
    %4408 = vmatprep.subr.mxu0 0.0
    %4409 = vmatpush1.msra.mxu0 0.0
    %4410 = vmatprep.subr.mxu0 0.0
    %4411 = vmatpush1.msra.mxu0 0.0
    %4412 = vmatprep.subr.mxu0 0.0
    %4413 = vmatpush1.msra.mxu0 0.0
    %4414 = vmatprep.subr.mxu0 0.0
    %4415 = vmatpush1.msra.mxu0 0.0
    %4416 = vmatprep.subr.mxu0 0.0
    %4417 = vmatpush1.msra.mxu0 0.0
    %4418 = vmatprep.subr.mxu0 0.0
    %4419 = vmatpush1.msra.mxu0 0.0
    %4420 = vmatprep.subr.mxu0 0.0
    %4421 = vmatpush1.msra.mxu0 0.0
    %4422 = vmatprep.subr.mxu0 0.0
    %4423 = vmatpush1.msra.mxu0 0.0
    %4424 = vmatprep.subr.mxu0 0.0
    %4425 = vmatpush1.msra.mxu0 0.0
    %4426 = vmatprep.subr.mxu0 0.0
    %4427 = vmatpush1.msra.mxu0 0.0
    %4428 = vmatprep.subr.mxu0 0.0
    %4429 = vmatpush1.msra.mxu0 0.0
    %4430 = vmatprep.subr.mxu0 0.0
    %4431 = vmatpush1.msra.mxu0 0.0
    %4432 = vmatprep.mubr.f32.mxu0 0.0
    %4433 = vmatmul.mubr.f32.gmra.mrb[0].mxu0 %v4367
    %v4434 = vpop.f32.mrb[0].mxu0
    %v4435 = vadd.f32 0.0, %v4434
    %v4436 = vpop.f32.mrb[0].mxu0
    %4437 = vdwg.mxu0
    %v4438 = vsub.f32 %v4367, %v4435
    %v4439 = vmul.f32 %v4438, %v4438
    %4440 = vmatprep.subr.mxu0 0.0
    %4441 = vmatpush1.msra.mxu0 %v1689
    %4442 = vmatprep.subr.mxu0 0.0
    %4443 = vmatpush1.msra.mxu0 %v1690
    %4444 = vmatprep.subr.mxu0 0.0
    %4445 = vmatpush1.msra.mxu0 %v1691
    %4446 = vmatprep.subr.mxu0 0.0
    %4447 = vmatpush1.msra.mxu0 %v1692
    %4448 = vmatprep.subr.mxu0 0.0
    %4449 = vmatpush1.msra.mxu0 %v1693
    %4450 = vmatprep.subr.mxu0 0.0
    %4451 = vmatpush1.msra.mxu0 %v1694
    %4452 = vmatprep.subr.mxu0 0.0
    %4453 = vmatpush1.msra.mxu0 %v1695
    %4454 = vmatprep.subr.mxu0 0.0
    %4455 = vmatpush1.msra.mxu0 %v1696
    %4456 = vmatprep.subr.mxu0 0.0
    %4457 = vmatpush1.msra.mxu0 %v1697
    %4458 = vmatprep.subr.mxu0 0.0
    %4459 = vmatpush1.msra.mxu0 %v1698
    %4460 = vmatprep.subr.mxu0 0.0
    %4461 = vmatpush1.msra.mxu0 %v1699
    %4462 = vmatprep.subr.mxu0 0.0
    %4463 = vmatpush1.msra.mxu0 %v1700
    %4464 = vmatprep.subr.mxu0 0.0
    %4465 = vmatpush1.msra.mxu0 %v1701
    %4466 = vmatprep.subr.mxu0 0.0
    %4467 = vmatpush1.msra.mxu0 %v1702
    %4468 = vmatprep.subr.mxu0 0.0
    %4469 = vmatpush1.msra.mxu0 %v1703
    %4470 = vmatprep.subr.mxu0 0.0
    %4471 = vmatpush1.msra.mxu0 %v1704
    %4472 = vmatprep.subr.mxu0 0.0
    %4473 = vmatpush1.msra.mxu0 0.0
    %4474 = vmatprep.subr.mxu0 0.0
    %4475 = vmatpush1.msra.mxu0 0.0
    %4476 = vmatprep.subr.mxu0 0.0
    %4477 = vmatpush1.msra.mxu0 0.0
    %4478 = vmatprep.subr.mxu0 0.0
    %4479 = vmatpush1.msra.mxu0 0.0
    %4480 = vmatprep.subr.mxu0 0.0
    %4481 = vmatpush1.msra.mxu0 0.0
    %4482 = vmatprep.subr.mxu0 0.0
    %4483 = vmatpush1.msra.mxu0 0.0
    %4484 = vmatprep.subr.mxu0 0.0
    %4485 = vmatpush1.msra.mxu0 0.0
    %4486 = vmatprep.subr.mxu0 0.0
    %4487 = vmatpush1.msra.mxu0 0.0
    %4488 = vmatprep.subr.mxu0 0.0
    %4489 = vmatpush1.msra.mxu0 0.0
    %4490 = vmatprep.subr.mxu0 0.0
    %4491 = vmatpush1.msra.mxu0 0.0
    %4492 = vmatprep.subr.mxu0 0.0
    %4493 = vmatpush1.msra.mxu0 0.0
    %4494 = vmatprep.subr.mxu0 0.0
    %4495 = vmatpush1.msra.mxu0 0.0
    %4496 = vmatprep.subr.mxu0 0.0
    %4497 = vmatpush1.msra.mxu0 0.0
    %4498 = vmatprep.subr.mxu0 0.0
    %4499 = vmatpush1.msra.mxu0 0.0
    %4500 = vmatprep.subr.mxu0 0.0
    %4501 = vmatpush1.msra.mxu0 0.0
    %4502 = vmatprep.subr.mxu0 0.0
    %4503 = vmatpush1.msra.mxu0 0.0
    %4504 = vmatprep.mubr.f32.mxu0 0.0
    %4505 = vmatmul.mubr.f32.gmra.mrb[0].mxu0 %v4439
    %v4506 = vpop.f32.mrb[0].mxu0
    %v4507 = vadd.f32 1e-05, %v4506
    %v4508 = vpop.f32.mrb[0].mxu0
    %4509 = vdwg.mxu0
    %v4510 = vrsqrt.pop %v4507
    %v4511 = vmul.f32 %v4438, %v4510
    %v4513 = vlaneseq
    %v4514 = vshrl.u32 %v4513, 7
    %v4515 = vsub.s32 0, %v4514
    %v4516 = vrot.slane %v3222, %v4515
    %v4518 = vmul.f32 %v4511, %v4516
    %v4520 = vlaneseq
    %v4521 = vshrl.u32 %v4520, 7
    %v4522 = vsub.s32 0, %v4521
    %v4523 = vrot.slane %v3223, %v4522
    %v4525 = vadd.f32 %v4518, %v4523
    %v4526 = vsub.f32 0.0, %v3224
    %v4528 = vlaneseq
    %v4529 = vshrl.u32 %v4528, 7
    %v4530 = vsub.s32 0, %v4529
    %v4531 = vrot.slane %v4526, %v4530
    %v4533 = vmul.f32 %v4531, %v4525
    %v4534 = vmul.f32 %v4533, 1.442695
    %v4535 = vpow.pop %v4534
    %v4536 = vadd.f32 %v4535, 1.0
    %v4537 = vrcp.pop %v4536
    %v4538 = vsub.f32 1.0, %v3225
    %v4540 = vlaneseq
    %v4541 = vshrl.u32 %v4540, 7
    %v4542 = vsub.s32 0, %v4541
    %v4543 = vrot.slane %v4538, %v4542
    %v4545 = vmul.f32 %v4537, %v4543
    %v4547 = vlaneseq
    %v4548 = vshrl.u32 %v4547, 7
    %v4549 = vsub.s32 0, %v4548
    %v4550 = vrot.slane %v3225, %v4549
    %v4552 = vadd.f32 %v4550, %v4545
    %v4553 = vmul.f32 %v4552, %v4525
    %v4554 = vld [vmem:[#allocation69] sm:$0xff]
    %v4555 = vld [vmem:[#allocation69 + $0x8] sm:$0xff]
    %v4556 = vld [vmem:[#allocation69 + $0x10] sm:$0xff]
    %v4557 = vld [vmem:[#allocation69 + $0x18] sm:$0xff]
    %v4558 = vld [vmem:[#allocation69 + $0x20] sm:$0xff]
    %v4559 = vld [vmem:[#allocation69 + $0x28] sm:$0xff]
    %v4560 = vld [vmem:[#allocation69 + $0x30] sm:$0xff]
    %v4561 = vld [vmem:[#allocation69 + $0x38] sm:$0xff]
    %v4562 = vld [vmem:[#allocation69 + $0x40] sm:$0xff]
    %v4563 = vld [vmem:[#allocation69 + $0x48] sm:$0xff]
    %v4564 = vld [vmem:[#allocation69 + $0x50] sm:$0xff]
    %v4565 = vld [vmem:[#allocation69 + $0x58] sm:$0xff]
    %v4566 = vld [vmem:[#allocation69 + $0x60] sm:$0xff]
    %v4567 = vld [vmem:[#allocation69 + $0x68] sm:$0xff]
    %v4568 = vld [vmem:[#allocation69 + $0x70] sm:$0xff]
    %v4569 = vld [vmem:[#allocation69 + $0x78] sm:$0xff]
    %v4570 = vld [vmem:[%s127] sm:$0x1]
    %v4572 = vlaneseq
    %v4573 = vshrl.u32 %v4572, 7
    %v4574 = vsub.s32 0, %v4573
    %v4575 = vrot.slane %v4570, %v4574
    %4577 = vmatprep.subr.mxu0 0.0
    %4578 = vmatpush1.msra.mxu0 %v4554
    %4579 = vmatprep.subr.mxu0 0.0
    %4580 = vmatpush1.msra.mxu0 %v4555
    %4581 = vmatprep.subr.mxu0 0.0
    %4582 = vmatpush1.msra.mxu0 %v4556
    %4583 = vmatprep.subr.mxu0 0.0
    %4584 = vmatpush1.msra.mxu0 %v4557
    %4585 = vmatprep.subr.mxu0 0.0
    %4586 = vmatpush1.msra.mxu0 %v4558
    %4587 = vmatprep.subr.mxu0 0.0
    %4588 = vmatpush1.msra.mxu0 %v4559
    %4589 = vmatprep.subr.mxu0 0.0
    %4590 = vmatpush1.msra.mxu0 %v4560
    %4591 = vmatprep.subr.mxu0 0.0
    %4592 = vmatpush1.msra.mxu0 %v4561
    %4593 = vmatprep.subr.mxu0 0.0
    %4594 = vmatpush1.msra.mxu0 %v4562
    %4595 = vmatprep.subr.mxu0 0.0
    %4596 = vmatpush1.msra.mxu0 %v4563
    %4597 = vmatprep.subr.mxu0 0.0
    %4598 = vmatpush1.msra.mxu0 %v4564
    %4599 = vmatprep.subr.mxu0 0.0
    %4600 = vmatpush1.msra.mxu0 %v4565
    %4601 = vmatprep.subr.mxu0 0.0
    %4602 = vmatpush1.msra.mxu0 %v4566
    %4603 = vmatprep.subr.mxu0 0.0
    %4604 = vmatpush1.msra.mxu0 %v4567
    %4605 = vmatprep.subr.mxu0 0.0
    %4606 = vmatpush1.msra.mxu0 %v4568
    %4607 = vmatprep.subr.mxu0 0.0
    %4608 = vmatpush1.msra.mxu0 %v4569
    %4609 = vmatprep.subr.mxu0 0.0
    %4610 = vmatpush1.msra.mxu0 0.0
    %4611 = vmatprep.subr.mxu0 0.0
    %4612 = vmatpush1.msra.mxu0 0.0
    %4613 = vmatprep.subr.mxu0 0.0
    %4614 = vmatpush1.msra.mxu0 0.0
    %4615 = vmatprep.subr.mxu0 0.0
    %4616 = vmatpush1.msra.mxu0 0.0
    %4617 = vmatprep.subr.mxu0 0.0
    %4618 = vmatpush1.msra.mxu0 0.0
    %4619 = vmatprep.subr.mxu0 0.0
    %4620 = vmatpush1.msra.mxu0 0.0
    %4621 = vmatprep.subr.mxu0 0.0
    %4622 = vmatpush1.msra.mxu0 0.0
    %4623 = vmatprep.subr.mxu0 0.0
    %4624 = vmatpush1.msra.mxu0 0.0
    %4625 = vmatprep.subr.mxu0 0.0
    %4626 = vmatpush1.msra.mxu0 0.0
    %4627 = vmatprep.subr.mxu0 0.0
    %4628 = vmatpush1.msra.mxu0 0.0
    %4629 = vmatprep.subr.mxu0 0.0
    %4630 = vmatpush1.msra.mxu0 0.0
    %4631 = vmatprep.subr.mxu0 0.0
    %4632 = vmatpush1.msra.mxu0 0.0
    %4633 = vmatprep.subr.mxu0 0.0
    %4634 = vmatpush1.msra.mxu0 0.0
    %4635 = vmatprep.subr.mxu0 0.0
    %4636 = vmatpush1.msra.mxu0 0.0
    %4637 = vmatprep.subr.mxu0 0.0
    %4638 = vmatpush1.msra.mxu0 0.0
    %4639 = vmatprep.subr.mxu0 0.0
    %4640 = vmatpush1.msra.mxu0 0.0
    %4641 = vmatprep.mubr.f32.mxu0 0.0
    %4642 = vmatmul.mubr.f32.gmra.mrb[0].mxu0 %v4553
    %v4643 = vpop.f32.mrb[0].mxu0
    %v4644 = vadd.f32 %v4575, %v4643
    %v4645 = vpop.f32.mrb[0].mxu0
    %4646 = vdwg.mxu0
    %4647 = vst [vmem:[%s129] sm:$0xff] %v4644
    // Predicated region
    $region438: #{_lambda_.1} parent=1 // pred_check
      _
    $region439: #{_lambda_.1} parent=1 // pred_check_branch
      %4649 = sbr.rel (0) target = $region441
    $region440: #{_lambda_.1} parent=1 // pred_region
      _
    $region441: #{_lambda_.1} parent=1 // pred_fallthru
      _
    // Predicated region
    $region442: #{_lambda_.1} parent=1 // pred_check
      _
    $region443: #{_lambda_.1} parent=1 // pred_check_branch
      %4651 = sbr.rel (0) target = $region445
    $region444: #{_lambda_.1} parent=1 // pred_region
      _
    $region445: #{_lambda_.1} parent=1 // pred_fallthru
      _
    %4652 = vsyncpa [#allocation3], 1
    %4653 = vsyncpa [#allocation5], 1
    %4654 = vsyncpa [#allocation8], 1
    %4655 = vsyncpa [#allocation11], 1
    %4656 = vsyncpa [#allocation14], 1
    %4657 = vsyncpa [#allocation17], 1
    %4658 = vsyncpa [#allocation20], 1
    %4659 = vsyncpa [#allocation23], 1
    %4660 = vsyncpa [#allocation26], 1
    %4661 = vsyncpa [#allocation29], 1
    %4662 = vsyncpa [#allocation32], 1
    %4663 = vsyncpa [#allocation35], 1
    %4664 = vsyncpa [#allocation38], 1
    %4665 = vsyncpa [#allocation41], 1
    %4666 = vsyncpa [#allocation44], 1
    %4667 = vsyncpa [#allocation47], 1
    %4668 = vsyncpa [#allocation50], 1
    %4669 = vsyncpa [#allocation53], 1
    %4670 = vsyncpa [#allocation56], 1
    %4671 = vsyncpa [#allocation59], 1
    %4672 = vsyncpa [#allocation62], 1
    %4673 = vsyncpa [#allocation65], 1
    %4674 = vsyncpa [#allocation68], 1

</llo_original>
